<compile_context>
chip_gen: v7x
topology: tpu7x:2x2x1
jax: 0.10.0
libtpu: 0.0.40
codegen_flags: <defaults>
</compile_context>

<pallas_src>
import math
import jax
import jax.numpy as jnp
from jax.experimental import pallas as pl
from jax.experimental.pallas import tpu as pltpu

K = 32  # latent size "k" of the module (must be even)


def _round_up(n, m):
    return ((n + m - 1) // m) * m


def _softplus(x):
    # matches torch.nn.functional.softplus(x, beta=1, threshold=20)
    return jnp.where(x > 20.0, x, jnp.log1p(jnp.exp(jnp.minimum(x, 20.0))))


def vae_kernel(x_ref,
               w1_ref, b1_ref,
               w2_ref, b2_ref,
               w3_ref, b3_ref,
               w4_ref, b4_ref,
               w5_ref, b5_ref,
               z1p_ref, dec_ref):
    x = x_ref[...]                                                    # [TB, 784] bf16

    # ---- encoder: Linear(784,1024) -> ReLU -> Linear(1024,1024) -> ReLU
    #               -> Linear(1024, 2k) (head padded to 128 output lanes)
    h1 = jnp.dot(x, w1_ref[...], preferred_element_type=jnp.float32) + b1_ref[...]
    h1 = jnp.maximum(h1, 0.0).astype(jnp.bfloat16)
    h2 = jnp.dot(h1, w2_ref[...], preferred_element_type=jnp.float32) + b2_ref[...]
    h2 = jnp.maximum(h2, 0.0).astype(jnp.bfloat16)
    z1p = jnp.dot(h2, w3_ref[...], preferred_element_type=jnp.float32) + b3_ref[...]
    z1p_ref[...] = z1p                                                # lane-dense [TB, 128]

    # ---- stochastic layers (eval): z1 = mu1 = z1p[:, :K]; z2 = mu2 = z1[:, :K//2]
    z2 = z1p[:, :K // 2].astype(jnp.bfloat16)                         # [TB, k//2]

    # ---- decoder: Linear(k//2,1024) -> ReLU -> Linear(1024,784) -> Sigmoid
    h3 = jnp.dot(z2, w4_ref[...], preferred_element_type=jnp.float32) + b4_ref[...]
    h3 = jnp.maximum(h3, 0.0).astype(jnp.bfloat16)
    logits = jnp.dot(h3, w5_ref[...], preferred_element_type=jnp.float32) + b5_ref[...]
    dec_ref[...] = jax.nn.sigmoid(logits)                             # EUP logistic path


def xavier_uniform_relu(key, fan_in, fan_out):
    # nn.init.xavier_uniform_ with gain = calculate_gain('relu') = sqrt(2)
    gain = math.sqrt(2.0)
    bound = gain * math.sqrt(6.0 / (fan_in + fan_out))
    # transposed weight [in, out] so the kernel computes y = x @ W
    return jax.random.uniform(key, (fan_in, fan_out), jnp.float32, -bound, bound)


def make_params(key):
    ks = jax.random.split(key, 5)
    w3 = xavier_uniform_relu(ks[2], 1024, 2 * K)
    # pad the encoder head to 128 output columns for a lane-dense latent store
    w3p = jnp.zeros((1024, 128), jnp.float32).at[:, :2 * K].set(w3)
    params = {
        "w1": xavier_uniform_relu(ks[0], 784, 1024).astype(jnp.bfloat16),
        "b1": jnp.zeros((1, 1024), jnp.float32),
        "w2": xavier_uniform_relu(ks[1], 1024, 1024).astype(jnp.bfloat16),
        "b2": jnp.zeros((1, 1024), jnp.float32),
        "w3": w3p.astype(jnp.bfloat16),
        "b3": jnp.zeros((1, 128), jnp.float32),
        "w4": xavier_uniform_relu(ks[3], K // 2, 1024).astype(jnp.bfloat16),
        "b4": jnp.zeros((1, 1024), jnp.float32),
        "w5": xavier_uniform_relu(ks[4], 1024, 784).astype(jnp.bfloat16),
        "b5": jnp.zeros((1, 784), jnp.float32),
    }
    return params


def fmnist_2stochastic_vae_forward(x_nchw, params):
    B = x_nchw.shape[0]
    x = x_nchw.reshape(B, -1).astype(jnp.bfloat16)        # x.view(x.size(0), -1)

    # batch tile: 256 rows for full MXU occupancy at large batch; small batches
    # round up to a 16-row tile (bf16 sublane packing) and run a 1-step grid.
    TB = 256 if B >= 256 else _round_up(B, 16)
    Bp = _round_up(B, TB)
    if Bp != B:
        x = jnp.pad(x, ((0, Bp - B), (0, 0)))

    row = lambda i: (i, 0)     # batch-tiled arrays
    const = lambda i: (0, 0)   # weights/biases: constant block -> stay VMEM-resident

    in_specs = [
        pl.BlockSpec((TB, 784), row),             # x
        pl.BlockSpec((784, 1024), const),         # w1
        pl.BlockSpec((1, 1024), const),           # b1
        pl.BlockSpec((1024, 1024), const),        # w2
        pl.BlockSpec((1, 1024), const),           # b2
        pl.BlockSpec((1024, 128), const),         # w3 (padded head)
        pl.BlockSpec((1, 128), const),            # b3 (padded head)
        pl.BlockSpec((K // 2, 1024), const),      # w4
        pl.BlockSpec((1, 1024), const),           # b4
        pl.BlockSpec((1024, 784), const),         # w5
        pl.BlockSpec((1, 784), const),            # b5
    ]
    out_specs = (
        pl.BlockSpec((TB, 128), row),             # packed z1_params (lane-dense)
        pl.BlockSpec((TB, 784), row),             # decoded
    )
    out_shape = (
        jax.ShapeDtypeStruct((Bp, 128), jnp.float32),
        jax.ShapeDtypeStruct((Bp, 784), jnp.float32),
    )

    z1p, dec = pl.pallas_call(
        vae_kernel,
        out_shape=out_shape,
        grid=(Bp // TB,),
        in_specs=in_specs,
        out_specs=out_specs,
        compiler_params=pltpu.CompilerParams(
            dimension_semantics=("parallel",),            # v7x: 2 TCs split batch
            vmem_limit_bytes=32 * 1024 * 1024),           # fits v7x's 64 MiB VMEM
    )(x,
      params["w1"], params["b1"],
      params["w2"], params["b2"],
      params["w3"], params["b3"],
      params["w4"], params["b4"],
      params["w5"], params["b5"])

    # wrapper-side plumbing: slice the lane-dense latent head and apply softplus
    z1_params = z1p[:B, :2 * K]                           # [B, 2k]
    mu1 = z1_params[:, :K]                                # [B, k]
    std1 = _softplus(z1_params[:, K:] - 5.0)              # [B, k]
    mu2 = mu1[:, :K // 2]                                 # [B, k//2]  (eval: z1 = mu1)
    std2 = _softplus(mu1[:, K // 2:] - 5.0)               # [B, k//2]

    # PyTorch returns decoded[0] where decoded is [1, B, 784] from unsqueeze(0);
    # the kernel works on [B, 784] directly, so dec[:B] == decoded[0].
    return (mu1, std1), (mu2, std2), dec[:B]


if __name__ == "__main__":
    key = jax.random.PRNGKey(0)
    k_params, k_x = jax.random.split(key)

    params = make_params(k_params)
    # FMNIST-like input, small batch: NCHW [B, 1, 28, 28]
    x = jax.random.uniform(k_x, (8, 1, 28, 28), jnp.float32)

    (mu1, std1), (mu2, std2), decoded = fmnist_2stochastic_vae_forward(x, params)
    jax.block_until_ready((mu1, std1, mu2, std2, decoded))

    assert mu1.shape == (8, K) and std1.shape == (8, K)
    assert mu2.shape == (8, K // 2) and std2.shape == (8, K // 2)
    assert decoded.shape == (8, 784)
    print("KERNEL_OK")
</pallas_src>

<mosaic_0001>
module attributes {stable_mosaic.version = 11 : i64} {
  func.func @vae_kernel(%arg0: i32, %arg1: memref<16x784xbf16, #tpu.memory_space<vmem>>, %arg2: memref<784x1024xbf16, #tpu.memory_space<vmem>>, %arg3: memref<1x1024xf32, #tpu.memory_space<vmem>>, %arg4: memref<1024x1024xbf16, #tpu.memory_space<vmem>>, %arg5: memref<1x1024xf32, #tpu.memory_space<vmem>>, %arg6: memref<1024x128xbf16, #tpu.memory_space<vmem>>, %arg7: memref<1x128xf32, #tpu.memory_space<vmem>>, %arg8: memref<16x1024xbf16, #tpu.memory_space<vmem>>, %arg9: memref<1x1024xf32, #tpu.memory_space<vmem>>, %arg10: memref<1024x784xbf16, #tpu.memory_space<vmem>>, %arg11: memref<1x784xf32, #tpu.memory_space<vmem>>, %arg12: memref<16x128xf32, #tpu.memory_space<vmem>>, %arg13: memref<16x784xf32, #tpu.memory_space<vmem>>) attributes {dimension_semantics = [#tpu.dimension_semantics<parallel>], iteration_bounds = array<i64: 1>, scalar_prefetch = 0 : i64, scratch_operands = 0 : i64, tpu.core_type = #tpu.core_type<tc>, window_params = [{transform_indices = @transform_0, window_bounds = array<i64: 16, 784>}, {pipeline_mode = #tpu.pipeline_mode<synchronous>, transform_indices = @transform_1, window_bounds = array<i64: 784, 1024>}, {pipeline_mode = #tpu.pipeline_mode<synchronous>, transform_indices = @transform_2, window_bounds = array<i64: 1, 1024>}, {pipeline_mode = #tpu.pipeline_mode<synchronous>, transform_indices = @transform_3, window_bounds = array<i64: 1024, 1024>}, {pipeline_mode = #tpu.pipeline_mode<synchronous>, transform_indices = @transform_4, window_bounds = array<i64: 1, 1024>}, {pipeline_mode = #tpu.pipeline_mode<synchronous>, transform_indices = @transform_5, window_bounds = array<i64: 1024, 128>}, {pipeline_mode = #tpu.pipeline_mode<synchronous>, transform_indices = @transform_6, window_bounds = array<i64: 1, 128>}, {pipeline_mode = #tpu.pipeline_mode<synchronous>, transform_indices = @transform_7, window_bounds = array<i64: 16, 1024>}, {pipeline_mode = #tpu.pipeline_mode<synchronous>, transform_indices = @transform_8, window_bounds = array<i64: 1, 1024>}, {pipeline_mode = #tpu.pipeline_mode<synchronous>, transform_indices = @transform_9, window_bounds = array<i64: 1024, 784>}, {pipeline_mode = #tpu.pipeline_mode<synchronous>, transform_indices = @transform_10, window_bounds = array<i64: 1, 784>}, {transform_indices = @transform_11, window_bounds = array<i64: 16, 128>}, {transform_indices = @transform_12, window_bounds = array<i64: 16, 784>}]} {
    %c0 = arith.constant 0 : index
    %c0_0 = arith.constant 0 : index
    %0 = vector.load %arg1[%c0, %c0_0] : memref<16x784xbf16, #tpu.memory_space<vmem>>, vector<16x784xbf16>
    %c0_1 = arith.constant 0 : index
    %c0_2 = arith.constant 0 : index
    %1 = vector.load %arg2[%c0_1, %c0_2] : memref<784x1024xbf16, #tpu.memory_space<vmem>>, vector<784x1024xbf16>
    %cst = arith.constant dense<0.000000e+00> : vector<16x1024xf32>
    %2 = tpu.matmul %0, %1, %cst {dimension_numbers = #tpu.dot_dimension_numbers<[1], [0], [0], [1], [0, 0, 1, 1], [], []>} : vector<16x784xbf16>, vector<784x1024xbf16>, vector<16x1024xf32> -> vector<16x1024xf32>
    %c0_3 = arith.constant 0 : index
    %c0_4 = arith.constant 0 : index
    %3 = vector.load %arg3[%c0_3, %c0_4] : memref<1x1024xf32, #tpu.memory_space<vmem>>, vector<1x1024xf32>
    %4 = vector.broadcast %3 : vector<1x1024xf32> to vector<16x1024xf32>
    %5 = arith.addf %2, %4 : vector<16x1024xf32>
    %cst_5 = arith.constant 0.000000e+00 : f32
    %6 = vector.broadcast %cst_5 : f32 to vector<16x1024xf32>
    %7 = arith.maximumf %5, %6 : vector<16x1024xf32>
    %8 = arith.truncf %7 : vector<16x1024xf32> to vector<16x1024xbf16>
    %c0_6 = arith.constant 0 : index
    %c0_7 = arith.constant 0 : index
    %9 = vector.load %arg4[%c0_6, %c0_7] : memref<1024x1024xbf16, #tpu.memory_space<vmem>>, vector<1024x1024xbf16>
    %cst_8 = arith.constant dense<0.000000e+00> : vector<16x1024xf32>
    %10 = tpu.matmul %8, %9, %cst_8 {dimension_numbers = #tpu.dot_dimension_numbers<[1], [0], [0], [1], [0, 0, 1, 1], [], []>} : vector<16x1024xbf16>, vector<1024x1024xbf16>, vector<16x1024xf32> -> vector<16x1024xf32>
    %c0_9 = arith.constant 0 : index
    %c0_10 = arith.constant 0 : index
    %11 = vector.load %arg5[%c0_9, %c0_10] : memref<1x1024xf32, #tpu.memory_space<vmem>>, vector<1x1024xf32>
    %12 = vector.broadcast %11 : vector<1x1024xf32> to vector<16x1024xf32>
    %13 = arith.addf %10, %12 : vector<16x1024xf32>
    %cst_11 = arith.constant 0.000000e+00 : f32
    %14 = vector.broadcast %cst_11 : f32 to vector<16x1024xf32>
    %15 = arith.maximumf %13, %14 : vector<16x1024xf32>
    %16 = arith.truncf %15 : vector<16x1024xf32> to vector<16x1024xbf16>
    %c0_12 = arith.constant 0 : index
    %c0_13 = arith.constant 0 : index
    %17 = vector.load %arg6[%c0_12, %c0_13] : memref<1024x128xbf16, #tpu.memory_space<vmem>>, vector<1024x128xbf16>
    %cst_14 = arith.constant dense<0.000000e+00> : vector<16x128xf32>
    %18 = tpu.matmul %16, %17, %cst_14 {dimension_numbers = #tpu.dot_dimension_numbers<[1], [0], [0], [1], [0, 0, 1, 1], [], []>} : vector<16x1024xbf16>, vector<1024x128xbf16>, vector<16x128xf32> -> vector<16x128xf32>
    %c0_15 = arith.constant 0 : index
    %c0_16 = arith.constant 0 : index
    %19 = vector.load %arg7[%c0_15, %c0_16] : memref<1x128xf32, #tpu.memory_space<vmem>>, vector<1x128xf32>
    %20 = vector.broadcast %19 : vector<1x128xf32> to vector<16x128xf32>
    %21 = arith.addf %18, %20 : vector<16x128xf32>
    %c0_17 = arith.constant 0 : index
    %c0_18 = arith.constant 0 : index
    %22 = vector.load %arg12[%c0_17, %c0_18] : memref<16x128xf32, #tpu.memory_space<vmem>>, vector<16x128xf32>
    tpu.vector_store %arg12[%c0_17, %c0_18], %21 {strides = array<i32>} : memref<16x128xf32, #tpu.memory_space<vmem>>, vector<16x128xf32>,
    %23 = vector.extract_strided_slice %21 {offsets = [0, 0], sizes = [16, 16], strides = [1, 1]} : vector<16x128xf32> to vector<16x16xf32>
    %24 = arith.truncf %23 : vector<16x16xf32> to vector<16x16xbf16>
    %c0_19 = arith.constant 0 : index
    %c0_20 = arith.constant 0 : index
    %25 = vector.load %arg8[%c0_19, %c0_20] : memref<16x1024xbf16, #tpu.memory_space<vmem>>, vector<16x1024xbf16>
    %cst_21 = arith.constant dense<0.000000e+00> : vector<16x1024xf32>
    %26 = tpu.matmul %24, %25, %cst_21 {dimension_numbers = #tpu.dot_dimension_numbers<[1], [0], [0], [1], [0, 0, 1, 1], [], []>} : vector<16x16xbf16>, vector<16x1024xbf16>, vector<16x1024xf32> -> vector<16x1024xf32>
    %c0_22 = arith.constant 0 : index
    %c0_23 = arith.constant 0 : index
    %27 = vector.load %arg9[%c0_22, %c0_23] : memref<1x1024xf32, #tpu.memory_space<vmem>>, vector<1x1024xf32>
    %28 = vector.broadcast %27 : vector<1x1024xf32> to vector<16x1024xf32>
    %29 = arith.addf %26, %28 : vector<16x1024xf32>
    %cst_24 = arith.constant 0.000000e+00 : f32
    %30 = vector.broadcast %cst_24 : f32 to vector<16x1024xf32>
    %31 = arith.maximumf %29, %30 : vector<16x1024xf32>
    %32 = arith.truncf %31 : vector<16x1024xf32> to vector<16x1024xbf16>
    %c0_25 = arith.constant 0 : index
    %c0_26 = arith.constant 0 : index
    %33 = vector.load %arg10[%c0_25, %c0_26] : memref<1024x784xbf16, #tpu.memory_space<vmem>>, vector<1024x784xbf16>
    %cst_27 = arith.constant dense<0.000000e+00> : vector<16x784xf32>
    %34 = tpu.matmul %32, %33, %cst_27 {dimension_numbers = #tpu.dot_dimension_numbers<[1], [0], [0], [1], [0, 0, 1, 1], [], []>} : vector<16x1024xbf16>, vector<1024x784xbf16>, vector<16x784xf32> -> vector<16x784xf32>
    %c0_28 = arith.constant 0 : index
    %c0_29 = arith.constant 0 : index
    %35 = vector.load %arg11[%c0_28, %c0_29] : memref<1x784xf32, #tpu.memory_space<vmem>>, vector<1x784xf32>
    %36 = vector.broadcast %35 : vector<1x784xf32> to vector<16x784xf32>
    %37 = arith.addf %34, %36 : vector<16x784xf32>
    %38 = arith.negf %37 : vector<16x784xf32>
    %39 = math.exp %38 : vector<16x784xf32>
    %cst_30 = arith.constant 1.000000e+00 : f32
    %40 = vector.broadcast %cst_30 : f32 to vector<16x784xf32>
    %41 = arith.addf %40, %39 : vector<16x784xf32>
    %42 = arith.divf %40, %41 : vector<16x784xf32>
    %c0_31 = arith.constant 0 : index
    %c0_32 = arith.constant 0 : index
    %43 = vector.load %arg13[%c0_31, %c0_32] : memref<16x784xf32, #tpu.memory_space<vmem>>, vector<16x784xf32>
    tpu.vector_store %arg13[%c0_31, %c0_32], %42 {strides = array<i32>} : memref<16x784xf32, #tpu.memory_space<vmem>>, vector<16x784xf32>,
    return
  }
  func.func @transform_0(%arg0: i32) -> (i32, i32) {
    %c0_i32 = arith.constant 0 : i32
    %c0_i32_0 = arith.constant 0 : i32
    return %arg0, %c0_i32 : i32, i32
  }
  func.func @transform_1(%arg0: i32) -> (i32, i32) {
    %c0_i32 = arith.constant 0 : i32
    %c0_i32_0 = arith.constant 0 : i32
    %c0_i32_1 = arith.constant 0 : i32
    return %c0_i32, %c0_i32_0 : i32, i32
  }
  func.func @transform_2(%arg0: i32) -> (i32, i32) {
    %c0_i32 = arith.constant 0 : i32
    %c0_i32_0 = arith.constant 0 : i32
    %c0_i32_1 = arith.constant 0 : i32
    return %c0_i32, %c0_i32_0 : i32, i32
  }
  func.func @transform_3(%arg0: i32) -> (i32, i32) {
    %c0_i32 = arith.constant 0 : i32
    %c0_i32_0 = arith.constant 0 : i32
    %c0_i32_1 = arith.constant 0 : i32
    return %c0_i32, %c0_i32_0 : i32, i32
  }
  func.func @transform_4(%arg0: i32) -> (i32, i32) {
    %c0_i32 = arith.constant 0 : i32
    %c0_i32_0 = arith.constant 0 : i32
    %c0_i32_1 = arith.constant 0 : i32
    return %c0_i32, %c0_i32_0 : i32, i32
  }
  func.func @transform_5(%arg0: i32) -> (i32, i32) {
    %c0_i32 = arith.constant 0 : i32
    %c0_i32_0 = arith.constant 0 : i32
    %c0_i32_1 = arith.constant 0 : i32
    return %c0_i32, %c0_i32_0 : i32, i32
  }
  func.func @transform_6(%arg0: i32) -> (i32, i32) {
    %c0_i32 = arith.constant 0 : i32
    %c0_i32_0 = arith.constant 0 : i32
    %c0_i32_1 = arith.constant 0 : i32
    return %c0_i32, %c0_i32_0 : i32, i32
  }
  func.func @transform_7(%arg0: i32) -> (i32, i32) {
    %c0_i32 = arith.constant 0 : i32
    %c0_i32_0 = arith.constant 0 : i32
    %c0_i32_1 = arith.constant 0 : i32
    return %c0_i32, %c0_i32_0 : i32, i32
  }
  func.func @transform_8(%arg0: i32) -> (i32, i32) {
    %c0_i32 = arith.constant 0 : i32
    %c0_i32_0 = arith.constant 0 : i32
    %c0_i32_1 = arith.constant 0 : i32
    return %c0_i32, %c0_i32_0 : i32, i32
  }
  func.func @transform_9(%arg0: i32) -> (i32, i32) {
    %c0_i32 = arith.constant 0 : i32
    %c0_i32_0 = arith.constant 0 : i32
    %c0_i32_1 = arith.constant 0 : i32
    return %c0_i32, %c0_i32_0 : i32, i32
  }
  func.func @transform_10(%arg0: i32) -> (i32, i32) {
    %c0_i32 = arith.constant 0 : i32
    %c0_i32_0 = arith.constant 0 : i32
    %c0_i32_1 = arith.constant 0 : i32
    return %c0_i32, %c0_i32_0 : i32, i32
  }
  func.func @transform_11(%arg0: i32) -> (i32, i32) {
    %c0_i32 = arith.constant 0 : i32
    %c0_i32_0 = arith.constant 0 : i32
    return %arg0, %c0_i32 : i32, i32
  }
  func.func @transform_12(%arg0: i32) -> (i32, i32) {
    %c0_i32 = arith.constant 0 : i32
    %c0_i32_0 = arith.constant 0 : i32
    return %arg0, %c0_i32 : i32, i32
  }
}

</mosaic_0001>

<llo_original>
// kernel: tpu_custom_call.1
$region0: #{tpu_custom_call.1}
  #allocation0 [shape = 'u32[]', space=smem, size = 0x4, offset = 0x4, fixed_abs, tag = 'smem constant byte address 0x4 - core index']
  #allocation1 [shape = 'u32[144,128]{1,0:T(1,128)}', space=vmem, size = 0x12000, scoped, tag = 'internal scratch']
  %s0 = inlined_call_operand.vmem [shape: bf16[16,784], index: 0, kind: input, shape index: {}]
  %s1 = inlined_call_operand.hbm [shape: bf16[784,1024], index: 1, kind: input, shape index: {}]
  %s2 = inlined_call_operand.vmem [shape: f32[1,1024], index: 2, kind: input, shape index: {}]
  %s3 = inlined_call_operand.vmem [shape: bf16[1024,1024], index: 3, kind: input, shape index: {}]
  %s4 = inlined_call_operand.vmem [shape: f32[1,1024], index: 4, kind: input, shape index: {}]
  %s5 = inlined_call_operand.vmem [shape: bf16[1024,128], index: 5, kind: input, shape index: {}]
  %s6 = inlined_call_operand.vmem [shape: f32[1,128], index: 6, kind: input, shape index: {}]
  %s7 = inlined_call_operand.vmem [shape: bf16[16,1024], index: 7, kind: input, shape index: {}]
  %s8 = inlined_call_operand.vmem [shape: f32[1,1024], index: 8, kind: input, shape index: {}]
  %s9 = inlined_call_operand.vmem [shape: bf16[1024,784], index: 9, kind: input, shape index: {}]
  %s10 = inlined_call_operand.vmem [shape: f32[1,784], index: 10, kind: input, shape index: {}]
  %s11 = inlined_call_operand.hbm [shape: f32[16,128], index: 11, kind: output, shape index: {0}]
  %s12 = inlined_call_operand.hbm [shape: f32[16,784], index: 12, kind: output, shape index: {1}]
  %13 = xla_tuple %s11, %s12
  %s14 = sld [smem:[#allocation0]]
  $region66: #{tpu_custom_call.1} parent=0
    _
  %s16 = ssub.s32 1, %s14
  %s17 = scalar_select 0, %s16, %s14
  $region1: #{tpu_custom_call.1} parent=0
    #allocation2 [shape = 'u8[1605632]{0}', space=vmem, size = 0x188000, scoped, tag = 'input window, operand 1, single buffered']
    #allocation3 [shape = 's32[1]{0}', space=sflag, size = 0x4, scoped, tag = 'scoped memory for tpu_custom_call.1']
    #allocation4 [shape = 's32[1]{0}', space=sflag, size = 0x4, scoped, tag = 'scoped memory for tpu_custom_call.1']
    #allocation5 [shape = 'u8[8192]{0}', space=vmem, size = 0x2000, scoped, tag = 'output window, operand 0, single buffered']
    #allocation6 [shape = 'u8[57344]{0}', space=vmem, size = 0xe000, scoped, tag = 'output window, operand 1, single buffered']
    #allocation7 [shape = 's32[1]{0}', space=sflag, size = 0x4, scoped, tag = 'scoped memory for tpu_custom_call.1']
    %18 = vsyncpa [#allocation3], 0
    %19 = vsyncpa [#allocation4], 0
    %20 = vsyncpa [#allocation7], 0
    // Predicated region
    $region2: #{tpu_custom_call.1} parent=1 // pred_check
      _
    $region3: #{tpu_custom_call.1} parent=1 // pred_check_branch
      %22 = sbr.rel (0) target = $region5
    $region4: #{tpu_custom_call.1} parent=1 // pred_region
      _
    $region5: #{tpu_custom_call.1} parent=1 // pred_fallthru
      _
    // Predicated region
    $region6: #{tpu_custom_call.1} parent=1 // pred_check
      _
    $region7: #{tpu_custom_call.1} parent=1 // pred_check_branch
      %24 = sbr.rel (0) target = $region9
    $region8: #{tpu_custom_call.1} parent=1 // pred_region
      %s26 = ssub.s32 50176, 50176
      %27 = vsyncadd [#allocation3], %s26
      %s28 = sshll.u32 [#allocation2], 4
      %s29 = int_to_ptr.vmem [resolvable:$true] %s28
      %34 = dma.hbm_to_vmem [thread:$0]  %s1, 50176, %s29, [#allocation3], 512, 512, 32
    $region9: #{tpu_custom_call.1} parent=1 // pred_fallthru
      _
    // Predicated region
    $region10: #{tpu_custom_call.1} parent=1 // pred_check
      _
    $region11: #{tpu_custom_call.1} parent=1 // pred_check_branch
      %36 = sbr.rel (0) target = $region13
    $region12: #{tpu_custom_call.1} parent=1 // pred_region
      _
    $region13: #{tpu_custom_call.1} parent=1 // pred_fallthru
      _
    // Predicated region
    $region14: #{tpu_custom_call.1} parent=1 // pred_check
      _
    $region15: #{tpu_custom_call.1} parent=1 // pred_check_branch
      %38 = sbr.rel (0) target = $region17
    $region16: #{tpu_custom_call.1} parent=1 // pred_region
      _
    $region17: #{tpu_custom_call.1} parent=1 // pred_fallthru
      _
    // Predicated region
    $region18: #{tpu_custom_call.1} parent=1 // pred_check
      _
    $region19: #{tpu_custom_call.1} parent=1 // pred_check_branch
      %40 = sbr.rel (0) target = $region21
    $region20: #{tpu_custom_call.1} parent=1 // pred_region
      _
    $region21: #{tpu_custom_call.1} parent=1 // pred_fallthru
      _
    // Predicated region
    $region22: #{tpu_custom_call.1} parent=1 // pred_check
      _
    $region23: #{tpu_custom_call.1} parent=1 // pred_check_branch
      %42 = sbr.rel (0) target = $region25
    $region24: #{tpu_custom_call.1} parent=1 // pred_region
      _
    $region25: #{tpu_custom_call.1} parent=1 // pred_fallthru
      _
    // Predicated region
    $region26: #{tpu_custom_call.1} parent=1 // pred_check
      _
    $region27: #{tpu_custom_call.1} parent=1 // pred_check_branch
      %44 = sbr.rel (0) target = $region29
    $region28: #{tpu_custom_call.1} parent=1 // pred_region
      _
    $region29: #{tpu_custom_call.1} parent=1 // pred_fallthru
      _
    // Predicated region
    $region30: #{tpu_custom_call.1} parent=1 // pred_check
      _
    $region31: #{tpu_custom_call.1} parent=1 // pred_check_branch
      %46 = sbr.rel (0) target = $region33
    $region32: #{tpu_custom_call.1} parent=1 // pred_region
      _
    $region33: #{tpu_custom_call.1} parent=1 // pred_fallthru
      _
    // Predicated region
    $region34: #{tpu_custom_call.1} parent=1 // pred_check
      _
    $region35: #{tpu_custom_call.1} parent=1 // pred_check_branch
      %48 = sbr.rel (0) target = $region37
    $region36: #{tpu_custom_call.1} parent=1 // pred_region
      _
    $region37: #{tpu_custom_call.1} parent=1 // pred_fallthru
      _
    // Predicated region
    $region38: #{tpu_custom_call.1} parent=1 // pred_check
      _
    $region39: #{tpu_custom_call.1} parent=1 // pred_check_branch
      %50 = sbr.rel (0) target = $region41
    $region40: #{tpu_custom_call.1} parent=1 // pred_region
      _
    $region41: #{tpu_custom_call.1} parent=1 // pred_fallthru
      _
    // Predicated region
    $region42: #{tpu_custom_call.1} parent=1 // pred_check
      _
    $region43: #{tpu_custom_call.1} parent=1 // pred_check_branch
      %52 = sbr.rel (0) target = $region45
    $region44: #{tpu_custom_call.1} parent=1 // pred_region
      _
    $region45: #{tpu_custom_call.1} parent=1 // pred_fallthru
      _
    // Predicated region
    $region46: #{tpu_custom_call.1} parent=1 // pred_check
      _
    $region47: #{tpu_custom_call.1} parent=1 // pred_check_branch
      %54 = sbr.rel (0) target = $region49
    $region48: #{tpu_custom_call.1} parent=1 // pred_region
      %55 = dma.done [#allocation3], 50176
    $region49: #{tpu_custom_call.1} parent=1 // pred_fallthru
      _
    %v57 = vld [vmem:[%s0] sm:$0xff]
    %v58 = vld [vmem:[%s0 + $0x8] sm:$0xff]
    %v59 = vld [vmem:[%s0 + $0x10] sm:$0xff]
    %v60 = vld [vmem:[%s0 + $0x18] sm:$0xf]
    %v61 = vld [vmem:[%s0 + $0x1c] sm:$0xff]
    %v62 = vld [vmem:[%s0 + $0x24] sm:$0xff]
    %v63 = vld [vmem:[%s0 + $0x2c] sm:$0xff]
    %v64 = vld [vmem:[%s0 + $0x34] sm:$0xf]
    %v65 = vld [vmem:[#allocation2] sm:$0xff]
    %v66 = vld [vmem:[#allocation2 + $0x8] sm:$0xff]
    %v67 = vld [vmem:[#allocation2 + $0x10] sm:$0xff]
    %v68 = vld [vmem:[#allocation2 + $0x18] sm:$0xff]
    %v69 = vld [vmem:[#allocation2 + $0x20] sm:$0xff]
    %v70 = vld [vmem:[#allocation2 + $0x28] sm:$0xff]
    %v71 = vld [vmem:[#allocation2 + $0x30] sm:$0xff]
    %v72 = vld [vmem:[#allocation2 + $0x38] sm:$0xff]
    %v73 = vld [vmem:[#allocation2 + $0x40] sm:$0xff]
    %v74 = vld [vmem:[#allocation2 + $0x48] sm:$0xff]
    %v75 = vld [vmem:[#allocation2 + $0x50] sm:$0xff]
    %v76 = vld [vmem:[#allocation2 + $0x58] sm:$0xff]
    %v77 = vld [vmem:[#allocation2 + $0x60] sm:$0xff]
    %v78 = vld [vmem:[#allocation2 + $0x68] sm:$0xff]
    %v79 = vld [vmem:[#allocation2 + $0x70] sm:$0xff]
    %v80 = vld [vmem:[#allocation2 + $0x78] sm:$0xff]
    %v81 = vld [vmem:[#allocation2 + $0x80] sm:$0xff]
    %v82 = vld [vmem:[#allocation2 + $0x88] sm:$0xff]
    %v83 = vld [vmem:[#allocation2 + $0x90] sm:$0xff]
    %v84 = vld [vmem:[#allocation2 + $0x98] sm:$0xff]
    %v85 = vld [vmem:[#allocation2 + $0xa0] sm:$0xff]
    %v86 = vld [vmem:[#allocation2 + $0xa8] sm:$0xff]
    %v87 = vld [vmem:[#allocation2 + $0xb0] sm:$0xff]
    %v88 = vld [vmem:[#allocation2 + $0xb8] sm:$0xff]
    %v89 = vld [vmem:[#allocation2 + $0xc0] sm:$0xff]
    %v90 = vld [vmem:[#allocation2 + $0xc8] sm:$0xff]
    %v91 = vld [vmem:[#allocation2 + $0xd0] sm:$0xff]
    %v92 = vld [vmem:[#allocation2 + $0xd8] sm:$0xff]
    %v93 = vld [vmem:[#allocation2 + $0xe0] sm:$0xff]
    %v94 = vld [vmem:[#allocation2 + $0xe8] sm:$0xff]
    %v95 = vld [vmem:[#allocation2 + $0xf0] sm:$0xff]
    %v96 = vld [vmem:[#allocation2 + $0xf8] sm:$0xff]
    %v97 = vld [vmem:[#allocation2 + $0x100] sm:$0xff]
    %v98 = vld [vmem:[#allocation2 + $0x108] sm:$0xff]
    %v99 = vld [vmem:[#allocation2 + $0x110] sm:$0xff]
    %v100 = vld [vmem:[#allocation2 + $0x118] sm:$0xff]
    %v101 = vld [vmem:[#allocation2 + $0x120] sm:$0xff]
    %v102 = vld [vmem:[#allocation2 + $0x128] sm:$0xff]
    %v103 = vld [vmem:[#allocation2 + $0x130] sm:$0xff]
    %v104 = vld [vmem:[#allocation2 + $0x138] sm:$0xff]
    %v105 = vld [vmem:[#allocation2 + $0x140] sm:$0xff]
    %v106 = vld [vmem:[#allocation2 + $0x148] sm:$0xff]
    %v107 = vld [vmem:[#allocation2 + $0x150] sm:$0xff]
    %v108 = vld [vmem:[#allocation2 + $0x158] sm:$0xff]
    %v109 = vld [vmem:[#allocation2 + $0x160] sm:$0xff]
    %v110 = vld [vmem:[#allocation2 + $0x168] sm:$0xff]
    %v111 = vld [vmem:[#allocation2 + $0x170] sm:$0xff]
    %v112 = vld [vmem:[#allocation2 + $0x178] sm:$0xff]
    %v113 = vld [vmem:[#allocation2 + $0x180] sm:$0xff]
    %v114 = vld [vmem:[#allocation2 + $0x188] sm:$0xff]
    %v115 = vld [vmem:[#allocation2 + $0x190] sm:$0xff]
    %v116 = vld [vmem:[#allocation2 + $0x198] sm:$0xff]
    %v117 = vld [vmem:[#allocation2 + $0x1a0] sm:$0xff]
    %v118 = vld [vmem:[#allocation2 + $0x1a8] sm:$0xff]
    %v119 = vld [vmem:[#allocation2 + $0x1b0] sm:$0xff]
    %v120 = vld [vmem:[#allocation2 + $0x1b8] sm:$0xff]
    %v121 = vld [vmem:[#allocation2 + $0x1c0] sm:$0xff]
    %v122 = vld [vmem:[#allocation2 + $0x1c8] sm:$0xff]
    %v123 = vld [vmem:[#allocation2 + $0x1d0] sm:$0xff]
    %v124 = vld [vmem:[#allocation2 + $0x1d8] sm:$0xff]
    %v125 = vld [vmem:[#allocation2 + $0x1e0] sm:$0xff]
    %v126 = vld [vmem:[#allocation2 + $0x1e8] sm:$0xff]
    %v127 = vld [vmem:[#allocation2 + $0x1f0] sm:$0xff]
    %v128 = vld [vmem:[#allocation2 + $0x1f8] sm:$0xff]
    %v129 = vld [vmem:[#allocation2 + $0x200] sm:$0xff]
    %v130 = vld [vmem:[#allocation2 + $0x208] sm:$0xff]
    %v131 = vld [vmem:[#allocation2 + $0x210] sm:$0xff]
    %v132 = vld [vmem:[#allocation2 + $0x218] sm:$0xff]
    %v133 = vld [vmem:[#allocation2 + $0x220] sm:$0xff]
    %v134 = vld [vmem:[#allocation2 + $0x228] sm:$0xff]
    %v135 = vld [vmem:[#allocation2 + $0x230] sm:$0xff]
    %v136 = vld [vmem:[#allocation2 + $0x238] sm:$0xff]
    %v137 = vld [vmem:[#allocation2 + $0x240] sm:$0xff]
    %v138 = vld [vmem:[#allocation2 + $0x248] sm:$0xff]
    %v139 = vld [vmem:[#allocation2 + $0x250] sm:$0xff]
    %v140 = vld [vmem:[#allocation2 + $0x258] sm:$0xff]
    %v141 = vld [vmem:[#allocation2 + $0x260] sm:$0xff]
    %v142 = vld [vmem:[#allocation2 + $0x268] sm:$0xff]
    %v143 = vld [vmem:[#allocation2 + $0x270] sm:$0xff]
    %v144 = vld [vmem:[#allocation2 + $0x278] sm:$0xff]
    %v145 = vld [vmem:[#allocation2 + $0x280] sm:$0xff]
    %v146 = vld [vmem:[#allocation2 + $0x288] sm:$0xff]
    %v147 = vld [vmem:[#allocation2 + $0x290] sm:$0xff]
    %v148 = vld [vmem:[#allocation2 + $0x298] sm:$0xff]
    %v149 = vld [vmem:[#allocation2 + $0x2a0] sm:$0xff]
    %v150 = vld [vmem:[#allocation2 + $0x2a8] sm:$0xff]
    %v151 = vld [vmem:[#allocation2 + $0x2b0] sm:$0xff]
    %v152 = vld [vmem:[#allocation2 + $0x2b8] sm:$0xff]
    %v153 = vld [vmem:[#allocation2 + $0x2c0] sm:$0xff]
    %v154 = vld [vmem:[#allocation2 + $0x2c8] sm:$0xff]
    %v155 = vld [vmem:[#allocation2 + $0x2d0] sm:$0xff]
    %v156 = vld [vmem:[#allocation2 + $0x2d8] sm:$0xff]
    %v157 = vld [vmem:[#allocation2 + $0x2e0] sm:$0xff]
    %v158 = vld [vmem:[#allocation2 + $0x2e8] sm:$0xff]
    %v159 = vld [vmem:[#allocation2 + $0x2f0] sm:$0xff]
    %v160 = vld [vmem:[#allocation2 + $0x2f8] sm:$0xff]
    %v161 = vld [vmem:[#allocation2 + $0x300] sm:$0xff]
    %v162 = vld [vmem:[#allocation2 + $0x308] sm:$0xff]
    %v163 = vld [vmem:[#allocation2 + $0x310] sm:$0xff]
    %v164 = vld [vmem:[#allocation2 + $0x318] sm:$0xff]
    %v165 = vld [vmem:[#allocation2 + $0x320] sm:$0xff]
    %v166 = vld [vmem:[#allocation2 + $0x328] sm:$0xff]
    %v167 = vld [vmem:[#allocation2 + $0x330] sm:$0xff]
    %v168 = vld [vmem:[#allocation2 + $0x338] sm:$0xff]
    %v169 = vld [vmem:[#allocation2 + $0x340] sm:$0xff]
    %v170 = vld [vmem:[#allocation2 + $0x348] sm:$0xff]
    %v171 = vld [vmem:[#allocation2 + $0x350] sm:$0xff]
    %v172 = vld [vmem:[#allocation2 + $0x358] sm:$0xff]
    %v173 = vld [vmem:[#allocation2 + $0x360] sm:$0xff]
    %v174 = vld [vmem:[#allocation2 + $0x368] sm:$0xff]
    %v175 = vld [vmem:[#allocation2 + $0x370] sm:$0xff]
    %v176 = vld [vmem:[#allocation2 + $0x378] sm:$0xff]
    %v177 = vld [vmem:[#allocation2 + $0x380] sm:$0xff]
    %v178 = vld [vmem:[#allocation2 + $0x388] sm:$0xff]
    %v179 = vld [vmem:[#allocation2 + $0x390] sm:$0xff]
    %v180 = vld [vmem:[#allocation2 + $0x398] sm:$0xff]
    %v181 = vld [vmem:[#allocation2 + $0x3a0] sm:$0xff]
    %v182 = vld [vmem:[#allocation2 + $0x3a8] sm:$0xff]
    %v183 = vld [vmem:[#allocation2 + $0x3b0] sm:$0xff]
    %v184 = vld [vmem:[#allocation2 + $0x3b8] sm:$0xff]
    %v185 = vld [vmem:[#allocation2 + $0x3c0] sm:$0xff]
    %v186 = vld [vmem:[#allocation2 + $0x3c8] sm:$0xff]
    %v187 = vld [vmem:[#allocation2 + $0x3d0] sm:$0xff]
    %v188 = vld [vmem:[#allocation2 + $0x3d8] sm:$0xff]
    %v189 = vld [vmem:[#allocation2 + $0x3e0] sm:$0xff]
    %v190 = vld [vmem:[#allocation2 + $0x3e8] sm:$0xff]
    %v191 = vld [vmem:[#allocation2 + $0x3f0] sm:$0xff]
    %v192 = vld [vmem:[#allocation2 + $0x3f8] sm:$0xff]
    %v193 = vld [vmem:[#allocation2 + $0x400] sm:$0xff]
    %v194 = vld [vmem:[#allocation2 + $0x408] sm:$0xff]
    %v195 = vld [vmem:[#allocation2 + $0x410] sm:$0xff]
    %v196 = vld [vmem:[#allocation2 + $0x418] sm:$0xff]
    %v197 = vld [vmem:[#allocation2 + $0x420] sm:$0xff]
    %v198 = vld [vmem:[#allocation2 + $0x428] sm:$0xff]
    %v199 = vld [vmem:[#allocation2 + $0x430] sm:$0xff]
    %v200 = vld [vmem:[#allocation2 + $0x438] sm:$0xff]
    %v201 = vld [vmem:[#allocation2 + $0x440] sm:$0xff]
    %v202 = vld [vmem:[#allocation2 + $0x448] sm:$0xff]
    %v203 = vld [vmem:[#allocation2 + $0x450] sm:$0xff]
    %v204 = vld [vmem:[#allocation2 + $0x458] sm:$0xff]
    %v205 = vld [vmem:[#allocation2 + $0x460] sm:$0xff]
    %v206 = vld [vmem:[#allocation2 + $0x468] sm:$0xff]
    %v207 = vld [vmem:[#allocation2 + $0x470] sm:$0xff]
    %v208 = vld [vmem:[#allocation2 + $0x478] sm:$0xff]
    %v209 = vld [vmem:[#allocation2 + $0x480] sm:$0xff]
    %v210 = vld [vmem:[#allocation2 + $0x488] sm:$0xff]
    %v211 = vld [vmem:[#allocation2 + $0x490] sm:$0xff]
    %v212 = vld [vmem:[#allocation2 + $0x498] sm:$0xff]
    %v213 = vld [vmem:[#allocation2 + $0x4a0] sm:$0xff]
    %v214 = vld [vmem:[#allocation2 + $0x4a8] sm:$0xff]
    %v215 = vld [vmem:[#allocation2 + $0x4b0] sm:$0xff]
    %v216 = vld [vmem:[#allocation2 + $0x4b8] sm:$0xff]
    %v217 = vld [vmem:[#allocation2 + $0x4c0] sm:$0xff]
    %v218 = vld [vmem:[#allocation2 + $0x4c8] sm:$0xff]
    %v219 = vld [vmem:[#allocation2 + $0x4d0] sm:$0xff]
    %v220 = vld [vmem:[#allocation2 + $0x4d8] sm:$0xff]
    %v221 = vld [vmem:[#allocation2 + $0x4e0] sm:$0xff]
    %v222 = vld [vmem:[#allocation2 + $0x4e8] sm:$0xff]
    %v223 = vld [vmem:[#allocation2 + $0x4f0] sm:$0xff]
    %v224 = vld [vmem:[#allocation2 + $0x4f8] sm:$0xff]
    %v225 = vld [vmem:[#allocation2 + $0x500] sm:$0xff]
    %v226 = vld [vmem:[#allocation2 + $0x508] sm:$0xff]
    %v227 = vld [vmem:[#allocation2 + $0x510] sm:$0xff]
    %v228 = vld [vmem:[#allocation2 + $0x518] sm:$0xff]
    %v229 = vld [vmem:[#allocation2 + $0x520] sm:$0xff]
    %v230 = vld [vmem:[#allocation2 + $0x528] sm:$0xff]
    %v231 = vld [vmem:[#allocation2 + $0x530] sm:$0xff]
    %v232 = vld [vmem:[#allocation2 + $0x538] sm:$0xff]
    %v233 = vld [vmem:[#allocation2 + $0x540] sm:$0xff]
    %v234 = vld [vmem:[#allocation2 + $0x548] sm:$0xff]
    %v235 = vld [vmem:[#allocation2 + $0x550] sm:$0xff]
    %v236 = vld [vmem:[#allocation2 + $0x558] sm:$0xff]
    %v237 = vld [vmem:[#allocation2 + $0x560] sm:$0xff]
    %v238 = vld [vmem:[#allocation2 + $0x568] sm:$0xff]
    %v239 = vld [vmem:[#allocation2 + $0x570] sm:$0xff]
    %v240 = vld [vmem:[#allocation2 + $0x578] sm:$0xff]
    %v241 = vld [vmem:[#allocation2 + $0x580] sm:$0xff]
    %v242 = vld [vmem:[#allocation2 + $0x588] sm:$0xff]
    %v243 = vld [vmem:[#allocation2 + $0x590] sm:$0xff]
    %v244 = vld [vmem:[#allocation2 + $0x598] sm:$0xff]
    %v245 = vld [vmem:[#allocation2 + $0x5a0] sm:$0xff]
    %v246 = vld [vmem:[#allocation2 + $0x5a8] sm:$0xff]
    %v247 = vld [vmem:[#allocation2 + $0x5b0] sm:$0xff]
    %v248 = vld [vmem:[#allocation2 + $0x5b8] sm:$0xff]
    %v249 = vld [vmem:[#allocation2 + $0x5c0] sm:$0xff]
    %v250 = vld [vmem:[#allocation2 + $0x5c8] sm:$0xff]
    %v251 = vld [vmem:[#allocation2 + $0x5d0] sm:$0xff]
    %v252 = vld [vmem:[#allocation2 + $0x5d8] sm:$0xff]
    %v253 = vld [vmem:[#allocation2 + $0x5e0] sm:$0xff]
    %v254 = vld [vmem:[#allocation2 + $0x5e8] sm:$0xff]
    %v255 = vld [vmem:[#allocation2 + $0x5f0] sm:$0xff]
    %v256 = vld [vmem:[#allocation2 + $0x5f8] sm:$0xff]
    %v257 = vld [vmem:[#allocation2 + $0x600] sm:$0xff]
    %v258 = vld [vmem:[#allocation2 + $0x608] sm:$0xff]
    %v259 = vld [vmem:[#allocation2 + $0x610] sm:$0xff]
    %v260 = vld [vmem:[#allocation2 + $0x618] sm:$0xff]
    %v261 = vld [vmem:[#allocation2 + $0x620] sm:$0xff]
    %v262 = vld [vmem:[#allocation2 + $0x628] sm:$0xff]
    %v263 = vld [vmem:[#allocation2 + $0x630] sm:$0xff]
    %v264 = vld [vmem:[#allocation2 + $0x638] sm:$0xff]
    %v265 = vld [vmem:[#allocation2 + $0x640] sm:$0xff]
    %v266 = vld [vmem:[#allocation2 + $0x648] sm:$0xff]
    %v267 = vld [vmem:[#allocation2 + $0x650] sm:$0xff]
    %v268 = vld [vmem:[#allocation2 + $0x658] sm:$0xff]
    %v269 = vld [vmem:[#allocation2 + $0x660] sm:$0xff]
    %v270 = vld [vmem:[#allocation2 + $0x668] sm:$0xff]
    %v271 = vld [vmem:[#allocation2 + $0x670] sm:$0xff]
    %v272 = vld [vmem:[#allocation2 + $0x678] sm:$0xff]
    %v273 = vld [vmem:[#allocation2 + $0x680] sm:$0xff]
    %v274 = vld [vmem:[#allocation2 + $0x688] sm:$0xff]
    %v275 = vld [vmem:[#allocation2 + $0x690] sm:$0xff]
    %v276 = vld [vmem:[#allocation2 + $0x698] sm:$0xff]
    %v277 = vld [vmem:[#allocation2 + $0x6a0] sm:$0xff]
    %v278 = vld [vmem:[#allocation2 + $0x6a8] sm:$0xff]
    %v279 = vld [vmem:[#allocation2 + $0x6b0] sm:$0xff]
    %v280 = vld [vmem:[#allocation2 + $0x6b8] sm:$0xff]
    %v281 = vld [vmem:[#allocation2 + $0x6c0] sm:$0xff]
    %v282 = vld [vmem:[#allocation2 + $0x6c8] sm:$0xff]
    %v283 = vld [vmem:[#allocation2 + $0x6d0] sm:$0xff]
    %v284 = vld [vmem:[#allocation2 + $0x6d8] sm:$0xff]
    %v285 = vld [vmem:[#allocation2 + $0x6e0] sm:$0xff]
    %v286 = vld [vmem:[#allocation2 + $0x6e8] sm:$0xff]
    %v287 = vld [vmem:[#allocation2 + $0x6f0] sm:$0xff]
    %v288 = vld [vmem:[#allocation2 + $0x6f8] sm:$0xff]
    %v289 = vld [vmem:[#allocation2 + $0x700] sm:$0xff]
    %v290 = vld [vmem:[#allocation2 + $0x708] sm:$0xff]
    %v291 = vld [vmem:[#allocation2 + $0x710] sm:$0xff]
    %v292 = vld [vmem:[#allocation2 + $0x718] sm:$0xff]
    %v293 = vld [vmem:[#allocation2 + $0x720] sm:$0xff]
    %v294 = vld [vmem:[#allocation2 + $0x728] sm:$0xff]
    %v295 = vld [vmem:[#allocation2 + $0x730] sm:$0xff]
    %v296 = vld [vmem:[#allocation2 + $0x738] sm:$0xff]
    %v297 = vld [vmem:[#allocation2 + $0x740] sm:$0xff]
    %v298 = vld [vmem:[#allocation2 + $0x748] sm:$0xff]
    %v299 = vld [vmem:[#allocation2 + $0x750] sm:$0xff]
    %v300 = vld [vmem:[#allocation2 + $0x758] sm:$0xff]
    %v301 = vld [vmem:[#allocation2 + $0x760] sm:$0xff]
    %v302 = vld [vmem:[#allocation2 + $0x768] sm:$0xff]
    %v303 = vld [vmem:[#allocation2 + $0x770] sm:$0xff]
    %v304 = vld [vmem:[#allocation2 + $0x778] sm:$0xff]
    %v305 = vld [vmem:[#allocation2 + $0x780] sm:$0xff]
    %v306 = vld [vmem:[#allocation2 + $0x788] sm:$0xff]
    %v307 = vld [vmem:[#allocation2 + $0x790] sm:$0xff]
    %v308 = vld [vmem:[#allocation2 + $0x798] sm:$0xff]
    %v309 = vld [vmem:[#allocation2 + $0x7a0] sm:$0xff]
    %v310 = vld [vmem:[#allocation2 + $0x7a8] sm:$0xff]
    %v311 = vld [vmem:[#allocation2 + $0x7b0] sm:$0xff]
    %v312 = vld [vmem:[#allocation2 + $0x7b8] sm:$0xff]
    %v313 = vld [vmem:[#allocation2 + $0x7c0] sm:$0xff]
    %v314 = vld [vmem:[#allocation2 + $0x7c8] sm:$0xff]
    %v315 = vld [vmem:[#allocation2 + $0x7d0] sm:$0xff]
    %v316 = vld [vmem:[#allocation2 + $0x7d8] sm:$0xff]
    %v317 = vld [vmem:[#allocation2 + $0x7e0] sm:$0xff]
    %v318 = vld [vmem:[#allocation2 + $0x7e8] sm:$0xff]
    %v319 = vld [vmem:[#allocation2 + $0x7f0] sm:$0xff]
    %v320 = vld [vmem:[#allocation2 + $0x7f8] sm:$0xff]
    %v321 = vld [vmem:[#allocation2 + $0x800] sm:$0xff]
    %v322 = vld [vmem:[#allocation2 + $0x808] sm:$0xff]
    %v323 = vld [vmem:[#allocation2 + $0x810] sm:$0xff]
    %v324 = vld [vmem:[#allocation2 + $0x818] sm:$0xff]
    %v325 = vld [vmem:[#allocation2 + $0x820] sm:$0xff]
    %v326 = vld [vmem:[#allocation2 + $0x828] sm:$0xff]
    %v327 = vld [vmem:[#allocation2 + $0x830] sm:$0xff]
    %v328 = vld [vmem:[#allocation2 + $0x838] sm:$0xff]
    %v329 = vld [vmem:[#allocation2 + $0x840] sm:$0xff]
    %v330 = vld [vmem:[#allocation2 + $0x848] sm:$0xff]
    %v331 = vld [vmem:[#allocation2 + $0x850] sm:$0xff]
    %v332 = vld [vmem:[#allocation2 + $0x858] sm:$0xff]
    %v333 = vld [vmem:[#allocation2 + $0x860] sm:$0xff]
    %v334 = vld [vmem:[#allocation2 + $0x868] sm:$0xff]
    %v335 = vld [vmem:[#allocation2 + $0x870] sm:$0xff]
    %v336 = vld [vmem:[#allocation2 + $0x878] sm:$0xff]
    %v337 = vld [vmem:[#allocation2 + $0x880] sm:$0xff]
    %v338 = vld [vmem:[#allocation2 + $0x888] sm:$0xff]
    %v339 = vld [vmem:[#allocation2 + $0x890] sm:$0xff]
    %v340 = vld [vmem:[#allocation2 + $0x898] sm:$0xff]
    %v341 = vld [vmem:[#allocation2 + $0x8a0] sm:$0xff]
    %v342 = vld [vmem:[#allocation2 + $0x8a8] sm:$0xff]
    %v343 = vld [vmem:[#allocation2 + $0x8b0] sm:$0xff]
    %v344 = vld [vmem:[#allocation2 + $0x8b8] sm:$0xff]
    %v345 = vld [vmem:[#allocation2 + $0x8c0] sm:$0xff]
    %v346 = vld [vmem:[#allocation2 + $0x8c8] sm:$0xff]
    %v347 = vld [vmem:[#allocation2 + $0x8d0] sm:$0xff]
    %v348 = vld [vmem:[#allocation2 + $0x8d8] sm:$0xff]
    %v349 = vld [vmem:[#allocation2 + $0x8e0] sm:$0xff]
    %v350 = vld [vmem:[#allocation2 + $0x8e8] sm:$0xff]
    %v351 = vld [vmem:[#allocation2 + $0x8f0] sm:$0xff]
    %v352 = vld [vmem:[#allocation2 + $0x8f8] sm:$0xff]
    %v353 = vld [vmem:[#allocation2 + $0x900] sm:$0xff]
    %v354 = vld [vmem:[#allocation2 + $0x908] sm:$0xff]
    %v355 = vld [vmem:[#allocation2 + $0x910] sm:$0xff]
    %v356 = vld [vmem:[#allocation2 + $0x918] sm:$0xff]
    %v357 = vld [vmem:[#allocation2 + $0x920] sm:$0xff]
    %v358 = vld [vmem:[#allocation2 + $0x928] sm:$0xff]
    %v359 = vld [vmem:[#allocation2 + $0x930] sm:$0xff]
    %v360 = vld [vmem:[#allocation2 + $0x938] sm:$0xff]
    %v361 = vld [vmem:[#allocation2 + $0x940] sm:$0xff]
    %v362 = vld [vmem:[#allocation2 + $0x948] sm:$0xff]
    %v363 = vld [vmem:[#allocation2 + $0x950] sm:$0xff]
    %v364 = vld [vmem:[#allocation2 + $0x958] sm:$0xff]
    %v365 = vld [vmem:[#allocation2 + $0x960] sm:$0xff]
    %v366 = vld [vmem:[#allocation2 + $0x968] sm:$0xff]
    %v367 = vld [vmem:[#allocation2 + $0x970] sm:$0xff]
    %v368 = vld [vmem:[#allocation2 + $0x978] sm:$0xff]
    %v369 = vld [vmem:[#allocation2 + $0x980] sm:$0xff]
    %v370 = vld [vmem:[#allocation2 + $0x988] sm:$0xff]
    %v371 = vld [vmem:[#allocation2 + $0x990] sm:$0xff]
    %v372 = vld [vmem:[#allocation2 + $0x998] sm:$0xff]
    %v373 = vld [vmem:[#allocation2 + $0x9a0] sm:$0xff]
    %v374 = vld [vmem:[#allocation2 + $0x9a8] sm:$0xff]
    %v375 = vld [vmem:[#allocation2 + $0x9b0] sm:$0xff]
    %v376 = vld [vmem:[#allocation2 + $0x9b8] sm:$0xff]
    %v377 = vld [vmem:[#allocation2 + $0x9c0] sm:$0xff]
    %v378 = vld [vmem:[#allocation2 + $0x9c8] sm:$0xff]
    %v379 = vld [vmem:[#allocation2 + $0x9d0] sm:$0xff]
    %v380 = vld [vmem:[#allocation2 + $0x9d8] sm:$0xff]
    %v381 = vld [vmem:[#allocation2 + $0x9e0] sm:$0xff]
    %v382 = vld [vmem:[#allocation2 + $0x9e8] sm:$0xff]
    %v383 = vld [vmem:[#allocation2 + $0x9f0] sm:$0xff]
    %v384 = vld [vmem:[#allocation2 + $0x9f8] sm:$0xff]
    %v385 = vld [vmem:[#allocation2 + $0xa00] sm:$0xff]
    %v386 = vld [vmem:[#allocation2 + $0xa08] sm:$0xff]
    %v387 = vld [vmem:[#allocation2 + $0xa10] sm:$0xff]
    %v388 = vld [vmem:[#allocation2 + $0xa18] sm:$0xff]
    %v389 = vld [vmem:[#allocation2 + $0xa20] sm:$0xff]
    %v390 = vld [vmem:[#allocation2 + $0xa28] sm:$0xff]
    %v391 = vld [vmem:[#allocation2 + $0xa30] sm:$0xff]
    %v392 = vld [vmem:[#allocation2 + $0xa38] sm:$0xff]
    %v393 = vld [vmem:[#allocation2 + $0xa40] sm:$0xff]
    %v394 = vld [vmem:[#allocation2 + $0xa48] sm:$0xff]
    %v395 = vld [vmem:[#allocation2 + $0xa50] sm:$0xff]
    %v396 = vld [vmem:[#allocation2 + $0xa58] sm:$0xff]
    %v397 = vld [vmem:[#allocation2 + $0xa60] sm:$0xff]
    %v398 = vld [vmem:[#allocation2 + $0xa68] sm:$0xff]
    %v399 = vld [vmem:[#allocation2 + $0xa70] sm:$0xff]
    %v400 = vld [vmem:[#allocation2 + $0xa78] sm:$0xff]
    %v401 = vld [vmem:[#allocation2 + $0xa80] sm:$0xff]
    %v402 = vld [vmem:[#allocation2 + $0xa88] sm:$0xff]
    %v403 = vld [vmem:[#allocation2 + $0xa90] sm:$0xff]
    %v404 = vld [vmem:[#allocation2 + $0xa98] sm:$0xff]
    %v405 = vld [vmem:[#allocation2 + $0xaa0] sm:$0xff]
    %v406 = vld [vmem:[#allocation2 + $0xaa8] sm:$0xff]
    %v407 = vld [vmem:[#allocation2 + $0xab0] sm:$0xff]
    %v408 = vld [vmem:[#allocation2 + $0xab8] sm:$0xff]
    %v409 = vld [vmem:[#allocation2 + $0xac0] sm:$0xff]
    %v410 = vld [vmem:[#allocation2 + $0xac8] sm:$0xff]
    %v411 = vld [vmem:[#allocation2 + $0xad0] sm:$0xff]
    %v412 = vld [vmem:[#allocation2 + $0xad8] sm:$0xff]
    %v413 = vld [vmem:[#allocation2 + $0xae0] sm:$0xff]
    %v414 = vld [vmem:[#allocation2 + $0xae8] sm:$0xff]
    %v415 = vld [vmem:[#allocation2 + $0xaf0] sm:$0xff]
    %v416 = vld [vmem:[#allocation2 + $0xaf8] sm:$0xff]
    %v417 = vld [vmem:[#allocation2 + $0xb00] sm:$0xff]
    %v418 = vld [vmem:[#allocation2 + $0xb08] sm:$0xff]
    %v419 = vld [vmem:[#allocation2 + $0xb10] sm:$0xff]
    %v420 = vld [vmem:[#allocation2 + $0xb18] sm:$0xff]
    %v421 = vld [vmem:[#allocation2 + $0xb20] sm:$0xff]
    %v422 = vld [vmem:[#allocation2 + $0xb28] sm:$0xff]
    %v423 = vld [vmem:[#allocation2 + $0xb30] sm:$0xff]
    %v424 = vld [vmem:[#allocation2 + $0xb38] sm:$0xff]
    %v425 = vld [vmem:[#allocation2 + $0xb40] sm:$0xff]
    %v426 = vld [vmem:[#allocation2 + $0xb48] sm:$0xff]
    %v427 = vld [vmem:[#allocation2 + $0xb50] sm:$0xff]
    %v428 = vld [vmem:[#allocation2 + $0xb58] sm:$0xff]
    %v429 = vld [vmem:[#allocation2 + $0xb60] sm:$0xff]
    %v430 = vld [vmem:[#allocation2 + $0xb68] sm:$0xff]
    %v431 = vld [vmem:[#allocation2 + $0xb70] sm:$0xff]
    %v432 = vld [vmem:[#allocation2 + $0xb78] sm:$0xff]
    %v433 = vld [vmem:[#allocation2 + $0xb80] sm:$0xff]
    %v434 = vld [vmem:[#allocation2 + $0xb88] sm:$0xff]
    %v435 = vld [vmem:[#allocation2 + $0xb90] sm:$0xff]
    %v436 = vld [vmem:[#allocation2 + $0xb98] sm:$0xff]
    %v437 = vld [vmem:[#allocation2 + $0xba0] sm:$0xff]
    %v438 = vld [vmem:[#allocation2 + $0xba8] sm:$0xff]
    %v439 = vld [vmem:[#allocation2 + $0xbb0] sm:$0xff]
    %v440 = vld [vmem:[#allocation2 + $0xbb8] sm:$0xff]
    %v441 = vld [vmem:[#allocation2 + $0xbc0] sm:$0xff]
    %v442 = vld [vmem:[#allocation2 + $0xbc8] sm:$0xff]
    %v443 = vld [vmem:[#allocation2 + $0xbd0] sm:$0xff]
    %v444 = vld [vmem:[#allocation2 + $0xbd8] sm:$0xff]
    %v445 = vld [vmem:[#allocation2 + $0xbe0] sm:$0xff]
    %v446 = vld [vmem:[#allocation2 + $0xbe8] sm:$0xff]
    %v447 = vld [vmem:[#allocation2 + $0xbf0] sm:$0xff]
    %v448 = vld [vmem:[#allocation2 + $0xbf8] sm:$0xff]
    %v449 = vld [vmem:[#allocation2 + $0xc00] sm:$0xff]
    %v450 = vld [vmem:[#allocation2 + $0xc08] sm:$0xff]
    %v451 = vld [vmem:[#allocation2 + $0xc10] sm:$0xff]
    %v452 = vld [vmem:[#allocation2 + $0xc18] sm:$0xff]
    %v453 = vld [vmem:[#allocation2 + $0xc20] sm:$0xff]
    %v454 = vld [vmem:[#allocation2 + $0xc28] sm:$0xff]
    %v455 = vld [vmem:[#allocation2 + $0xc30] sm:$0xff]
    %v456 = vld [vmem:[#allocation2 + $0xc38] sm:$0xff]
    %v457 = vld [vmem:[%s2] sm:$0xff]
    %v459 = vlaneseq
    %v460 = vshrl.u32 %v459, 7
    %v461 = vsub.s32 0, %v460
    %v462 = vrot.slane %v457, %v461
    %v463 = vlaneseq
    %v464 = vshrl.u32 %v463, 7
    %v465 = vsub.s32 1, %v464
    %v466 = vrot.slane %v457, %v465
    %v467 = vlaneseq
    %v468 = vshrl.u32 %v467, 7
    %v469 = vsub.s32 2, %v468
    %v470 = vrot.slane %v457, %v469
    %v471 = vlaneseq
    %v472 = vshrl.u32 %v471, 7
    %v473 = vsub.s32 3, %v472
    %v474 = vrot.slane %v457, %v473
    %v475 = vlaneseq
    %v476 = vshrl.u32 %v475, 7
    %v477 = vsub.s32 4, %v476
    %v478 = vrot.slane %v457, %v477
    %v479 = vlaneseq
    %v480 = vshrl.u32 %v479, 7
    %v481 = vsub.s32 5, %v480
    %v482 = vrot.slane %v457, %v481
    %v483 = vlaneseq
    %v484 = vshrl.u32 %v483, 7
    %v485 = vsub.s32 6, %v484
    %v486 = vrot.slane %v457, %v485
    %v487 = vlaneseq
    %v488 = vshrl.u32 %v487, 7
    %v489 = vsub.s32 7, %v488
    %v490 = vrot.slane %v457, %v489
    %v507 = vunpack.c.l.b16 %v57
    %v508 = vunpack.c.h.b16 %v57
    %v509 = vunpack.c.l.b16 %v58
    %v510 = vunpack.c.h.b16 %v58
    %v511 = vunpack.c.l.b16 %v59
    %v512 = vunpack.c.h.b16 %v59
    %v513 = vunpack.c.l.b16 %v60
    %v514 = vunpack.c.l.b16 %v61
    %v515 = vunpack.c.h.b16 %v61
    %v516 = vunpack.c.l.b16 %v62
    %v517 = vunpack.c.h.b16 %v62
    %v518 = vunpack.c.l.b16 %v63
    %v519 = vunpack.c.h.b16 %v63
    %v520 = vunpack.c.l.b16 %v64
    %v521 = vpack.c.b16 %v514, %v507
    %v522 = vpack.c.b16 %v515, %v508
    %v523 = vpack.c.b16 %v516, %v509
    %v524 = vpack.c.b16 %v517, %v510
    %v525 = vpack.c.b16 %v518, %v511
    %v526 = vpack.c.b16 %v519, %v512
    %v527 = vpack.c.b16 %v520, %v513
    %v926 = vunpack.c.l.b16 %v65
    %v927 = vunpack.c.h.b16 %v65
    %v928 = vunpack.c.l.b16 %v66
    %v929 = vunpack.c.h.b16 %v66
    %v930 = vunpack.c.l.b16 %v67
    %v931 = vunpack.c.h.b16 %v67
    %v932 = vunpack.c.l.b16 %v68
    %v933 = vunpack.c.h.b16 %v68
    %v934 = vunpack.c.l.b16 %v69
    %v935 = vunpack.c.h.b16 %v69
    %v936 = vunpack.c.l.b16 %v70
    %v937 = vunpack.c.h.b16 %v70
    %v938 = vunpack.c.l.b16 %v71
    %v939 = vunpack.c.h.b16 %v71
    %v940 = vunpack.c.l.b16 %v72
    %v941 = vunpack.c.h.b16 %v72
    %v942 = vunpack.c.l.b16 %v73
    %v943 = vunpack.c.h.b16 %v73
    %v944 = vunpack.c.l.b16 %v74
    %v945 = vunpack.c.h.b16 %v74
    %v946 = vunpack.c.l.b16 %v75
    %v947 = vunpack.c.h.b16 %v75
    %v948 = vunpack.c.l.b16 %v76
    %v949 = vunpack.c.h.b16 %v76
    %v950 = vunpack.c.l.b16 %v77
    %v951 = vunpack.c.h.b16 %v77
    %v952 = vunpack.c.l.b16 %v78
    %v953 = vunpack.c.h.b16 %v78
    %v954 = vunpack.c.l.b16 %v79
    %v955 = vunpack.c.h.b16 %v79
    %v956 = vunpack.c.l.b16 %v80
    %v957 = vunpack.c.h.b16 %v80
    %v958 = vunpack.c.l.b16 %v81
    %v959 = vunpack.c.h.b16 %v81
    %v960 = vunpack.c.l.b16 %v82
    %v961 = vunpack.c.h.b16 %v82
    %v962 = vunpack.c.l.b16 %v83
    %v963 = vunpack.c.h.b16 %v83
    %v964 = vunpack.c.l.b16 %v84
    %v965 = vunpack.c.h.b16 %v84
    %v966 = vunpack.c.l.b16 %v85
    %v967 = vunpack.c.h.b16 %v85
    %v968 = vunpack.c.l.b16 %v86
    %v969 = vunpack.c.h.b16 %v86
    %v970 = vunpack.c.l.b16 %v87
    %v971 = vunpack.c.h.b16 %v87
    %v972 = vunpack.c.l.b16 %v88
    %v973 = vunpack.c.h.b16 %v88
    %v974 = vunpack.c.l.b16 %v89
    %v975 = vunpack.c.h.b16 %v89
    %v976 = vunpack.c.l.b16 %v90
    %v977 = vunpack.c.h.b16 %v90
    %v978 = vunpack.c.l.b16 %v91
    %v979 = vunpack.c.h.b16 %v91
    %v980 = vunpack.c.l.b16 %v92
    %v981 = vunpack.c.h.b16 %v92
    %v982 = vunpack.c.l.b16 %v93
    %v983 = vunpack.c.h.b16 %v93
    %v984 = vunpack.c.l.b16 %v94
    %v985 = vunpack.c.h.b16 %v94
    %v986 = vunpack.c.l.b16 %v95
    %v987 = vunpack.c.h.b16 %v95
    %v988 = vunpack.c.l.b16 %v96
    %v989 = vunpack.c.h.b16 %v96
    %v990 = vunpack.c.l.b16 %v97
    %v991 = vunpack.c.h.b16 %v97
    %v992 = vunpack.c.l.b16 %v98
    %v993 = vunpack.c.h.b16 %v98
    %v994 = vunpack.c.l.b16 %v99
    %v995 = vunpack.c.h.b16 %v99
    %v996 = vunpack.c.l.b16 %v100
    %v997 = vunpack.c.h.b16 %v100
    %v998 = vunpack.c.l.b16 %v101
    %v999 = vunpack.c.h.b16 %v101
    %v1000 = vunpack.c.l.b16 %v102
    %v1001 = vunpack.c.h.b16 %v102
    %v1002 = vunpack.c.l.b16 %v103
    %v1003 = vunpack.c.h.b16 %v103
    %v1004 = vunpack.c.l.b16 %v104
    %v1005 = vunpack.c.h.b16 %v104
    %v1006 = vunpack.c.l.b16 %v105
    %v1007 = vunpack.c.h.b16 %v105
    %v1008 = vunpack.c.l.b16 %v106
    %v1009 = vunpack.c.h.b16 %v106
    %v1010 = vunpack.c.l.b16 %v107
    %v1011 = vunpack.c.h.b16 %v107
    %v1012 = vunpack.c.l.b16 %v108
    %v1013 = vunpack.c.h.b16 %v108
    %v1014 = vunpack.c.l.b16 %v109
    %v1015 = vunpack.c.h.b16 %v109
    %v1016 = vunpack.c.l.b16 %v110
    %v1017 = vunpack.c.h.b16 %v110
    %v1018 = vunpack.c.l.b16 %v111
    %v1019 = vunpack.c.h.b16 %v111
    %v1020 = vunpack.c.l.b16 %v112
    %v1021 = vunpack.c.h.b16 %v112
    %v1022 = vunpack.c.l.b16 %v113
    %v1023 = vunpack.c.h.b16 %v113
    %v1024 = vunpack.c.l.b16 %v114
    %v1025 = vunpack.c.h.b16 %v114
    %v1026 = vunpack.c.l.b16 %v115
    %v1027 = vunpack.c.h.b16 %v115
    %v1028 = vunpack.c.l.b16 %v116
    %v1029 = vunpack.c.h.b16 %v116
    %v1030 = vunpack.c.l.b16 %v117
    %v1031 = vunpack.c.h.b16 %v117
    %v1032 = vunpack.c.l.b16 %v118
    %v1033 = vunpack.c.h.b16 %v118
    %v1034 = vunpack.c.l.b16 %v119
    %v1035 = vunpack.c.h.b16 %v119
    %v1036 = vunpack.c.l.b16 %v120
    %v1037 = vunpack.c.h.b16 %v120
    %v1038 = vunpack.c.l.b16 %v121
    %v1039 = vunpack.c.h.b16 %v121
    %v1040 = vunpack.c.l.b16 %v122
    %v1041 = vunpack.c.h.b16 %v122
    %v1042 = vunpack.c.l.b16 %v123
    %v1043 = vunpack.c.h.b16 %v123
    %v1044 = vunpack.c.l.b16 %v124
    %v1045 = vunpack.c.h.b16 %v124
    %v1046 = vunpack.c.l.b16 %v125
    %v1047 = vunpack.c.h.b16 %v125
    %v1048 = vunpack.c.l.b16 %v126
    %v1049 = vunpack.c.h.b16 %v126
    %v1050 = vunpack.c.l.b16 %v127
    %v1051 = vunpack.c.h.b16 %v127
    %v1052 = vunpack.c.l.b16 %v128
    %v1053 = vunpack.c.h.b16 %v128
    %v1054 = vunpack.c.l.b16 %v129
    %v1055 = vunpack.c.h.b16 %v129
    %v1056 = vunpack.c.l.b16 %v130
    %v1057 = vunpack.c.h.b16 %v130
    %v1058 = vunpack.c.l.b16 %v131
    %v1059 = vunpack.c.h.b16 %v131
    %v1060 = vunpack.c.l.b16 %v132
    %v1061 = vunpack.c.h.b16 %v132
    %v1062 = vunpack.c.l.b16 %v133
    %v1063 = vunpack.c.h.b16 %v133
    %v1064 = vunpack.c.l.b16 %v134
    %v1065 = vunpack.c.h.b16 %v134
    %v1066 = vunpack.c.l.b16 %v135
    %v1067 = vunpack.c.h.b16 %v135
    %v1068 = vunpack.c.l.b16 %v136
    %v1069 = vunpack.c.h.b16 %v136
    %v1070 = vunpack.c.l.b16 %v137
    %v1071 = vunpack.c.h.b16 %v137
    %v1072 = vunpack.c.l.b16 %v138
    %v1073 = vunpack.c.h.b16 %v138
    %v1074 = vunpack.c.l.b16 %v139
    %v1075 = vunpack.c.h.b16 %v139
    %v1076 = vunpack.c.l.b16 %v140
    %v1077 = vunpack.c.h.b16 %v140
    %v1078 = vunpack.c.l.b16 %v141
    %v1079 = vunpack.c.h.b16 %v141
    %v1080 = vunpack.c.l.b16 %v142
    %v1081 = vunpack.c.h.b16 %v142
    %v1082 = vunpack.c.l.b16 %v143
    %v1083 = vunpack.c.h.b16 %v143
    %v1084 = vunpack.c.l.b16 %v144
    %v1085 = vunpack.c.h.b16 %v144
    %v1086 = vunpack.c.l.b16 %v145
    %v1087 = vunpack.c.h.b16 %v145
    %v1088 = vunpack.c.l.b16 %v146
    %v1089 = vunpack.c.h.b16 %v146
    %v1090 = vunpack.c.l.b16 %v147
    %v1091 = vunpack.c.h.b16 %v147
    %v1092 = vunpack.c.l.b16 %v148
    %v1093 = vunpack.c.h.b16 %v148
    %v1094 = vunpack.c.l.b16 %v149
    %v1095 = vunpack.c.h.b16 %v149
    %v1096 = vunpack.c.l.b16 %v150
    %v1097 = vunpack.c.h.b16 %v150
    %v1098 = vunpack.c.l.b16 %v151
    %v1099 = vunpack.c.h.b16 %v151
    %v1100 = vunpack.c.l.b16 %v152
    %v1101 = vunpack.c.h.b16 %v152
    %v1102 = vunpack.c.l.b16 %v153
    %v1103 = vunpack.c.h.b16 %v153
    %v1104 = vunpack.c.l.b16 %v154
    %v1105 = vunpack.c.h.b16 %v154
    %v1106 = vunpack.c.l.b16 %v155
    %v1107 = vunpack.c.h.b16 %v155
    %v1108 = vunpack.c.l.b16 %v156
    %v1109 = vunpack.c.h.b16 %v156
    %v1110 = vunpack.c.l.b16 %v157
    %v1111 = vunpack.c.h.b16 %v157
    %v1112 = vunpack.c.l.b16 %v158
    %v1113 = vunpack.c.h.b16 %v158
    %v1114 = vunpack.c.l.b16 %v159
    %v1115 = vunpack.c.h.b16 %v159
    %v1116 = vunpack.c.l.b16 %v160
    %v1117 = vunpack.c.h.b16 %v160
    %v1118 = vunpack.c.l.b16 %v161
    %v1119 = vunpack.c.h.b16 %v161
    %v1120 = vunpack.c.l.b16 %v162
    %v1121 = vunpack.c.h.b16 %v162
    %v1122 = vunpack.c.l.b16 %v163
    %v1123 = vunpack.c.h.b16 %v163
    %v1124 = vunpack.c.l.b16 %v164
    %v1125 = vunpack.c.h.b16 %v164
    %v1126 = vunpack.c.l.b16 %v165
    %v1127 = vunpack.c.h.b16 %v165
    %v1128 = vunpack.c.l.b16 %v166
    %v1129 = vunpack.c.h.b16 %v166
    %v1130 = vunpack.c.l.b16 %v167
    %v1131 = vunpack.c.h.b16 %v167
    %v1132 = vunpack.c.l.b16 %v168
    %v1133 = vunpack.c.h.b16 %v168
    %v1134 = vunpack.c.l.b16 %v169
    %v1135 = vunpack.c.h.b16 %v169
    %v1136 = vunpack.c.l.b16 %v170
    %v1137 = vunpack.c.h.b16 %v170
    %v1138 = vunpack.c.l.b16 %v171
    %v1139 = vunpack.c.h.b16 %v171
    %v1140 = vunpack.c.l.b16 %v172
    %v1141 = vunpack.c.h.b16 %v172
    %v1142 = vunpack.c.l.b16 %v173
    %v1143 = vunpack.c.h.b16 %v173
    %v1144 = vunpack.c.l.b16 %v174
    %v1145 = vunpack.c.h.b16 %v174
    %v1146 = vunpack.c.l.b16 %v175
    %v1147 = vunpack.c.h.b16 %v175
    %v1148 = vunpack.c.l.b16 %v176
    %v1149 = vunpack.c.h.b16 %v176
    %v1150 = vunpack.c.l.b16 %v177
    %v1151 = vunpack.c.h.b16 %v177
    %v1152 = vunpack.c.l.b16 %v178
    %v1153 = vunpack.c.h.b16 %v178
    %v1154 = vunpack.c.l.b16 %v179
    %v1155 = vunpack.c.h.b16 %v179
    %v1156 = vunpack.c.l.b16 %v180
    %v1157 = vunpack.c.h.b16 %v180
    %v1158 = vunpack.c.l.b16 %v181
    %v1159 = vunpack.c.h.b16 %v181
    %v1160 = vunpack.c.l.b16 %v182
    %v1161 = vunpack.c.h.b16 %v182
    %v1162 = vunpack.c.l.b16 %v183
    %v1163 = vunpack.c.h.b16 %v183
    %v1164 = vunpack.c.l.b16 %v184
    %v1165 = vunpack.c.h.b16 %v184
    %v1166 = vunpack.c.l.b16 %v185
    %v1167 = vunpack.c.h.b16 %v185
    %v1168 = vunpack.c.l.b16 %v186
    %v1169 = vunpack.c.h.b16 %v186
    %v1170 = vunpack.c.l.b16 %v187
    %v1171 = vunpack.c.h.b16 %v187
    %v1172 = vunpack.c.l.b16 %v188
    %v1173 = vunpack.c.h.b16 %v188
    %v1174 = vunpack.c.l.b16 %v189
    %v1175 = vunpack.c.h.b16 %v189
    %v1176 = vunpack.c.l.b16 %v190
    %v1177 = vunpack.c.h.b16 %v190
    %v1178 = vunpack.c.l.b16 %v191
    %v1179 = vunpack.c.h.b16 %v191
    %v1180 = vunpack.c.l.b16 %v192
    %v1181 = vunpack.c.h.b16 %v192
    %v1182 = vunpack.c.l.b16 %v193
    %v1183 = vunpack.c.h.b16 %v193
    %v1184 = vunpack.c.l.b16 %v194
    %v1185 = vunpack.c.h.b16 %v194
    %v1186 = vunpack.c.l.b16 %v195
    %v1187 = vunpack.c.h.b16 %v195
    %v1188 = vunpack.c.l.b16 %v196
    %v1189 = vunpack.c.h.b16 %v196
    %v1190 = vunpack.c.l.b16 %v197
    %v1191 = vunpack.c.h.b16 %v197
    %v1192 = vunpack.c.l.b16 %v198
    %v1193 = vunpack.c.h.b16 %v198
    %v1194 = vunpack.c.l.b16 %v199
    %v1195 = vunpack.c.h.b16 %v199
    %v1196 = vunpack.c.l.b16 %v200
    %v1197 = vunpack.c.h.b16 %v200
    %v1198 = vunpack.c.l.b16 %v201
    %v1199 = vunpack.c.h.b16 %v201
    %v1200 = vunpack.c.l.b16 %v202
    %v1201 = vunpack.c.h.b16 %v202
    %v1202 = vunpack.c.l.b16 %v203
    %v1203 = vunpack.c.h.b16 %v203
    %v1204 = vunpack.c.l.b16 %v204
    %v1205 = vunpack.c.h.b16 %v204
    %v1206 = vunpack.c.l.b16 %v205
    %v1207 = vunpack.c.h.b16 %v205
    %v1208 = vunpack.c.l.b16 %v206
    %v1209 = vunpack.c.h.b16 %v206
    %v1210 = vunpack.c.l.b16 %v207
    %v1211 = vunpack.c.h.b16 %v207
    %v1212 = vunpack.c.l.b16 %v208
    %v1213 = vunpack.c.h.b16 %v208
    %v1214 = vunpack.c.l.b16 %v209
    %v1215 = vunpack.c.h.b16 %v209
    %v1216 = vunpack.c.l.b16 %v210
    %v1217 = vunpack.c.h.b16 %v210
    %v1218 = vunpack.c.l.b16 %v211
    %v1219 = vunpack.c.h.b16 %v211
    %v1220 = vunpack.c.l.b16 %v212
    %v1221 = vunpack.c.h.b16 %v212
    %v1222 = vunpack.c.l.b16 %v213
    %v1223 = vunpack.c.h.b16 %v213
    %v1224 = vunpack.c.l.b16 %v214
    %v1225 = vunpack.c.h.b16 %v214
    %v1226 = vunpack.c.l.b16 %v215
    %v1227 = vunpack.c.h.b16 %v215
    %v1228 = vunpack.c.l.b16 %v216
    %v1229 = vunpack.c.h.b16 %v216
    %v1230 = vunpack.c.l.b16 %v217
    %v1231 = vunpack.c.h.b16 %v217
    %v1232 = vunpack.c.l.b16 %v218
    %v1233 = vunpack.c.h.b16 %v218
    %v1234 = vunpack.c.l.b16 %v219
    %v1235 = vunpack.c.h.b16 %v219
    %v1236 = vunpack.c.l.b16 %v220
    %v1237 = vunpack.c.h.b16 %v220
    %v1238 = vunpack.c.l.b16 %v221
    %v1239 = vunpack.c.h.b16 %v221
    %v1240 = vunpack.c.l.b16 %v222
    %v1241 = vunpack.c.h.b16 %v222
    %v1242 = vunpack.c.l.b16 %v223
    %v1243 = vunpack.c.h.b16 %v223
    %v1244 = vunpack.c.l.b16 %v224
    %v1245 = vunpack.c.h.b16 %v224
    %v1246 = vunpack.c.l.b16 %v225
    %v1247 = vunpack.c.h.b16 %v225
    %v1248 = vunpack.c.l.b16 %v226
    %v1249 = vunpack.c.h.b16 %v226
    %v1250 = vunpack.c.l.b16 %v227
    %v1251 = vunpack.c.h.b16 %v227
    %v1252 = vunpack.c.l.b16 %v228
    %v1253 = vunpack.c.h.b16 %v228
    %v1254 = vunpack.c.l.b16 %v229
    %v1255 = vunpack.c.h.b16 %v229
    %v1256 = vunpack.c.l.b16 %v230
    %v1257 = vunpack.c.h.b16 %v230
    %v1258 = vunpack.c.l.b16 %v231
    %v1259 = vunpack.c.h.b16 %v231
    %v1260 = vunpack.c.l.b16 %v232
    %v1261 = vunpack.c.h.b16 %v232
    %v1262 = vunpack.c.l.b16 %v233
    %v1263 = vunpack.c.h.b16 %v233
    %v1264 = vunpack.c.l.b16 %v234
    %v1265 = vunpack.c.h.b16 %v234
    %v1266 = vunpack.c.l.b16 %v235
    %v1267 = vunpack.c.h.b16 %v235
    %v1268 = vunpack.c.l.b16 %v236
    %v1269 = vunpack.c.h.b16 %v236
    %v1270 = vunpack.c.l.b16 %v237
    %v1271 = vunpack.c.h.b16 %v237
    %v1272 = vunpack.c.l.b16 %v238
    %v1273 = vunpack.c.h.b16 %v238
    %v1274 = vunpack.c.l.b16 %v239
    %v1275 = vunpack.c.h.b16 %v239
    %v1276 = vunpack.c.l.b16 %v240
    %v1277 = vunpack.c.h.b16 %v240
    %v1278 = vunpack.c.l.b16 %v241
    %v1279 = vunpack.c.h.b16 %v241
    %v1280 = vunpack.c.l.b16 %v242
    %v1281 = vunpack.c.h.b16 %v242
    %v1282 = vunpack.c.l.b16 %v243
    %v1283 = vunpack.c.h.b16 %v243
    %v1284 = vunpack.c.l.b16 %v244
    %v1285 = vunpack.c.h.b16 %v244
    %v1286 = vunpack.c.l.b16 %v245
    %v1287 = vunpack.c.h.b16 %v245
    %v1288 = vunpack.c.l.b16 %v246
    %v1289 = vunpack.c.h.b16 %v246
    %v1290 = vunpack.c.l.b16 %v247
    %v1291 = vunpack.c.h.b16 %v247
    %v1292 = vunpack.c.l.b16 %v248
    %v1293 = vunpack.c.h.b16 %v248
    %v1294 = vunpack.c.l.b16 %v249
    %v1295 = vunpack.c.h.b16 %v249
    %v1296 = vunpack.c.l.b16 %v250
    %v1297 = vunpack.c.h.b16 %v250
    %v1298 = vunpack.c.l.b16 %v251
    %v1299 = vunpack.c.h.b16 %v251
    %v1300 = vunpack.c.l.b16 %v252
    %v1301 = vunpack.c.h.b16 %v252
    %v1302 = vunpack.c.l.b16 %v253
    %v1303 = vunpack.c.h.b16 %v253
    %v1304 = vunpack.c.l.b16 %v254
    %v1305 = vunpack.c.h.b16 %v254
    %v1306 = vunpack.c.l.b16 %v255
    %v1307 = vunpack.c.h.b16 %v255
    %v1308 = vunpack.c.l.b16 %v256
    %v1309 = vunpack.c.h.b16 %v256
    %v1310 = vunpack.c.l.b16 %v257
    %v1311 = vunpack.c.h.b16 %v257
    %v1312 = vunpack.c.l.b16 %v258
    %v1313 = vunpack.c.h.b16 %v258
    %v1314 = vunpack.c.l.b16 %v259
    %v1315 = vunpack.c.h.b16 %v259
    %v1316 = vunpack.c.l.b16 %v260
    %v1317 = vunpack.c.h.b16 %v260
    %v1318 = vunpack.c.l.b16 %v261
    %v1319 = vunpack.c.h.b16 %v261
    %v1320 = vunpack.c.l.b16 %v262
    %v1321 = vunpack.c.h.b16 %v262
    %v1322 = vunpack.c.l.b16 %v263
    %v1323 = vunpack.c.h.b16 %v263
    %v1324 = vunpack.c.l.b16 %v264
    %v1325 = vunpack.c.h.b16 %v264
    %v1326 = vunpack.c.l.b16 %v265
    %v1327 = vunpack.c.h.b16 %v265
    %v1328 = vunpack.c.l.b16 %v266
    %v1329 = vunpack.c.h.b16 %v266
    %v1330 = vunpack.c.l.b16 %v267
    %v1331 = vunpack.c.h.b16 %v267
    %v1332 = vunpack.c.l.b16 %v268
    %v1333 = vunpack.c.h.b16 %v268
    %v1334 = vunpack.c.l.b16 %v269
    %v1335 = vunpack.c.h.b16 %v269
    %v1336 = vunpack.c.l.b16 %v270
    %v1337 = vunpack.c.h.b16 %v270
    %v1338 = vunpack.c.l.b16 %v271
    %v1339 = vunpack.c.h.b16 %v271
    %v1340 = vunpack.c.l.b16 %v272
    %v1341 = vunpack.c.h.b16 %v272
    %v1342 = vunpack.c.l.b16 %v273
    %v1343 = vunpack.c.h.b16 %v273
    %v1344 = vunpack.c.l.b16 %v274
    %v1345 = vunpack.c.h.b16 %v274
    %v1346 = vunpack.c.l.b16 %v275
    %v1347 = vunpack.c.h.b16 %v275
    %v1348 = vunpack.c.l.b16 %v276
    %v1349 = vunpack.c.h.b16 %v276
    %v1350 = vunpack.c.l.b16 %v277
    %v1351 = vunpack.c.h.b16 %v277
    %v1352 = vunpack.c.l.b16 %v278
    %v1353 = vunpack.c.h.b16 %v278
    %v1354 = vunpack.c.l.b16 %v279
    %v1355 = vunpack.c.h.b16 %v279
    %v1356 = vunpack.c.l.b16 %v280
    %v1357 = vunpack.c.h.b16 %v280
    %v1358 = vunpack.c.l.b16 %v281
    %v1359 = vunpack.c.h.b16 %v281
    %v1360 = vunpack.c.l.b16 %v282
    %v1361 = vunpack.c.h.b16 %v282
    %v1362 = vunpack.c.l.b16 %v283
    %v1363 = vunpack.c.h.b16 %v283
    %v1364 = vunpack.c.l.b16 %v284
    %v1365 = vunpack.c.h.b16 %v284
    %v1366 = vunpack.c.l.b16 %v285
    %v1367 = vunpack.c.h.b16 %v285
    %v1368 = vunpack.c.l.b16 %v286
    %v1369 = vunpack.c.h.b16 %v286
    %v1370 = vunpack.c.l.b16 %v287
    %v1371 = vunpack.c.h.b16 %v287
    %v1372 = vunpack.c.l.b16 %v288
    %v1373 = vunpack.c.h.b16 %v288
    %v1374 = vunpack.c.l.b16 %v289
    %v1375 = vunpack.c.h.b16 %v289
    %v1376 = vunpack.c.l.b16 %v290
    %v1377 = vunpack.c.h.b16 %v290
    %v1378 = vunpack.c.l.b16 %v291
    %v1379 = vunpack.c.h.b16 %v291
    %v1380 = vunpack.c.l.b16 %v292
    %v1381 = vunpack.c.h.b16 %v292
    %v1382 = vunpack.c.l.b16 %v293
    %v1383 = vunpack.c.h.b16 %v293
    %v1384 = vunpack.c.l.b16 %v294
    %v1385 = vunpack.c.h.b16 %v294
    %v1386 = vunpack.c.l.b16 %v295
    %v1387 = vunpack.c.h.b16 %v295
    %v1388 = vunpack.c.l.b16 %v296
    %v1389 = vunpack.c.h.b16 %v296
    %v1390 = vunpack.c.l.b16 %v297
    %v1391 = vunpack.c.h.b16 %v297
    %v1392 = vunpack.c.l.b16 %v298
    %v1393 = vunpack.c.h.b16 %v298
    %v1394 = vunpack.c.l.b16 %v299
    %v1395 = vunpack.c.h.b16 %v299
    %v1396 = vunpack.c.l.b16 %v300
    %v1397 = vunpack.c.h.b16 %v300
    %v1398 = vunpack.c.l.b16 %v301
    %v1399 = vunpack.c.h.b16 %v301
    %v1400 = vunpack.c.l.b16 %v302
    %v1401 = vunpack.c.h.b16 %v302
    %v1402 = vunpack.c.l.b16 %v303
    %v1403 = vunpack.c.h.b16 %v303
    %v1404 = vunpack.c.l.b16 %v304
    %v1405 = vunpack.c.h.b16 %v304
    %v1406 = vunpack.c.l.b16 %v305
    %v1407 = vunpack.c.h.b16 %v305
    %v1408 = vunpack.c.l.b16 %v306
    %v1409 = vunpack.c.h.b16 %v306
    %v1410 = vunpack.c.l.b16 %v307
    %v1411 = vunpack.c.h.b16 %v307
    %v1412 = vunpack.c.l.b16 %v308
    %v1413 = vunpack.c.h.b16 %v308
    %v1414 = vunpack.c.l.b16 %v309
    %v1415 = vunpack.c.h.b16 %v309
    %v1416 = vunpack.c.l.b16 %v310
    %v1417 = vunpack.c.h.b16 %v310
    %v1418 = vunpack.c.l.b16 %v311
    %v1419 = vunpack.c.h.b16 %v311
    %v1420 = vunpack.c.l.b16 %v312
    %v1421 = vunpack.c.h.b16 %v312
    %v1422 = vunpack.c.l.b16 %v313
    %v1423 = vunpack.c.h.b16 %v313
    %v1424 = vunpack.c.l.b16 %v314
    %v1425 = vunpack.c.h.b16 %v314
    %v1426 = vunpack.c.l.b16 %v315
    %v1427 = vunpack.c.h.b16 %v315
    %v1428 = vunpack.c.l.b16 %v316
    %v1429 = vunpack.c.h.b16 %v316
    %v1430 = vunpack.c.l.b16 %v317
    %v1431 = vunpack.c.h.b16 %v317
    %v1432 = vunpack.c.l.b16 %v318
    %v1433 = vunpack.c.h.b16 %v318
    %v1434 = vunpack.c.l.b16 %v319
    %v1435 = vunpack.c.h.b16 %v319
    %v1436 = vunpack.c.l.b16 %v320
    %v1437 = vunpack.c.h.b16 %v320
    %v1438 = vunpack.c.l.b16 %v321
    %v1439 = vunpack.c.h.b16 %v321
    %v1440 = vunpack.c.l.b16 %v322
    %v1441 = vunpack.c.h.b16 %v322
    %v1442 = vunpack.c.l.b16 %v323
    %v1443 = vunpack.c.h.b16 %v323
    %v1444 = vunpack.c.l.b16 %v324
    %v1445 = vunpack.c.h.b16 %v324
    %v1446 = vunpack.c.l.b16 %v325
    %v1447 = vunpack.c.h.b16 %v325
    %v1448 = vunpack.c.l.b16 %v326
    %v1449 = vunpack.c.h.b16 %v326
    %v1450 = vunpack.c.l.b16 %v327
    %v1451 = vunpack.c.h.b16 %v327
    %v1452 = vunpack.c.l.b16 %v328
    %v1453 = vunpack.c.h.b16 %v328
    %v1454 = vunpack.c.l.b16 %v329
    %v1455 = vunpack.c.h.b16 %v329
    %v1456 = vunpack.c.l.b16 %v330
    %v1457 = vunpack.c.h.b16 %v330
    %v1458 = vunpack.c.l.b16 %v331
    %v1459 = vunpack.c.h.b16 %v331
    %v1460 = vunpack.c.l.b16 %v332
    %v1461 = vunpack.c.h.b16 %v332
    %v1462 = vunpack.c.l.b16 %v333
    %v1463 = vunpack.c.h.b16 %v333
    %v1464 = vunpack.c.l.b16 %v334
    %v1465 = vunpack.c.h.b16 %v334
    %v1466 = vunpack.c.l.b16 %v335
    %v1467 = vunpack.c.h.b16 %v335
    %v1468 = vunpack.c.l.b16 %v336
    %v1469 = vunpack.c.h.b16 %v336
    %v1470 = vunpack.c.l.b16 %v337
    %v1471 = vunpack.c.h.b16 %v337
    %v1472 = vunpack.c.l.b16 %v338
    %v1473 = vunpack.c.h.b16 %v338
    %v1474 = vunpack.c.l.b16 %v339
    %v1475 = vunpack.c.h.b16 %v339
    %v1476 = vunpack.c.l.b16 %v340
    %v1477 = vunpack.c.h.b16 %v340
    %v1478 = vunpack.c.l.b16 %v341
    %v1479 = vunpack.c.h.b16 %v341
    %v1480 = vunpack.c.l.b16 %v342
    %v1481 = vunpack.c.h.b16 %v342
    %v1482 = vunpack.c.l.b16 %v343
    %v1483 = vunpack.c.h.b16 %v343
    %v1484 = vunpack.c.l.b16 %v344
    %v1485 = vunpack.c.h.b16 %v344
    %v1486 = vunpack.c.l.b16 %v345
    %v1487 = vunpack.c.h.b16 %v345
    %v1488 = vunpack.c.l.b16 %v346
    %v1489 = vunpack.c.h.b16 %v346
    %v1490 = vunpack.c.l.b16 %v347
    %v1491 = vunpack.c.h.b16 %v347
    %v1492 = vunpack.c.l.b16 %v348
    %v1493 = vunpack.c.h.b16 %v348
    %v1494 = vunpack.c.l.b16 %v349
    %v1495 = vunpack.c.h.b16 %v349
    %v1496 = vunpack.c.l.b16 %v350
    %v1497 = vunpack.c.h.b16 %v350
    %v1498 = vunpack.c.l.b16 %v351
    %v1499 = vunpack.c.h.b16 %v351
    %v1500 = vunpack.c.l.b16 %v352
    %v1501 = vunpack.c.h.b16 %v352
    %v1502 = vunpack.c.l.b16 %v353
    %v1503 = vunpack.c.h.b16 %v353
    %v1504 = vunpack.c.l.b16 %v354
    %v1505 = vunpack.c.h.b16 %v354
    %v1506 = vunpack.c.l.b16 %v355
    %v1507 = vunpack.c.h.b16 %v355
    %v1508 = vunpack.c.l.b16 %v356
    %v1509 = vunpack.c.h.b16 %v356
    %v1510 = vunpack.c.l.b16 %v357
    %v1511 = vunpack.c.h.b16 %v357
    %v1512 = vunpack.c.l.b16 %v358
    %v1513 = vunpack.c.h.b16 %v358
    %v1514 = vunpack.c.l.b16 %v359
    %v1515 = vunpack.c.h.b16 %v359
    %v1516 = vunpack.c.l.b16 %v360
    %v1517 = vunpack.c.h.b16 %v360
    %v1518 = vunpack.c.l.b16 %v361
    %v1519 = vunpack.c.h.b16 %v361
    %v1520 = vunpack.c.l.b16 %v362
    %v1521 = vunpack.c.h.b16 %v362
    %v1522 = vunpack.c.l.b16 %v363
    %v1523 = vunpack.c.h.b16 %v363
    %v1524 = vunpack.c.l.b16 %v364
    %v1525 = vunpack.c.h.b16 %v364
    %v1526 = vunpack.c.l.b16 %v365
    %v1527 = vunpack.c.h.b16 %v365
    %v1528 = vunpack.c.l.b16 %v366
    %v1529 = vunpack.c.h.b16 %v366
    %v1530 = vunpack.c.l.b16 %v367
    %v1531 = vunpack.c.h.b16 %v367
    %v1532 = vunpack.c.l.b16 %v368
    %v1533 = vunpack.c.h.b16 %v368
    %v1534 = vunpack.c.l.b16 %v369
    %v1535 = vunpack.c.h.b16 %v369
    %v1536 = vunpack.c.l.b16 %v370
    %v1537 = vunpack.c.h.b16 %v370
    %v1538 = vunpack.c.l.b16 %v371
    %v1539 = vunpack.c.h.b16 %v371
    %v1540 = vunpack.c.l.b16 %v372
    %v1541 = vunpack.c.h.b16 %v372
    %v1542 = vunpack.c.l.b16 %v373
    %v1543 = vunpack.c.h.b16 %v373
    %v1544 = vunpack.c.l.b16 %v374
    %v1545 = vunpack.c.h.b16 %v374
    %v1546 = vunpack.c.l.b16 %v375
    %v1547 = vunpack.c.h.b16 %v375
    %v1548 = vunpack.c.l.b16 %v376
    %v1549 = vunpack.c.h.b16 %v376
    %v1550 = vunpack.c.l.b16 %v377
    %v1551 = vunpack.c.h.b16 %v377
    %v1552 = vunpack.c.l.b16 %v378
    %v1553 = vunpack.c.h.b16 %v378
    %v1554 = vunpack.c.l.b16 %v379
    %v1555 = vunpack.c.h.b16 %v379
    %v1556 = vunpack.c.l.b16 %v380
    %v1557 = vunpack.c.h.b16 %v380
    %v1558 = vunpack.c.l.b16 %v381
    %v1559 = vunpack.c.h.b16 %v381
    %v1560 = vunpack.c.l.b16 %v382
    %v1561 = vunpack.c.h.b16 %v382
    %v1562 = vunpack.c.l.b16 %v383
    %v1563 = vunpack.c.h.b16 %v383
    %v1564 = vunpack.c.l.b16 %v384
    %v1565 = vunpack.c.h.b16 %v384
    %v1566 = vunpack.c.l.b16 %v385
    %v1567 = vunpack.c.h.b16 %v385
    %v1568 = vunpack.c.l.b16 %v386
    %v1569 = vunpack.c.h.b16 %v386
    %v1570 = vunpack.c.l.b16 %v387
    %v1571 = vunpack.c.h.b16 %v387
    %v1572 = vunpack.c.l.b16 %v388
    %v1573 = vunpack.c.h.b16 %v388
    %v1574 = vunpack.c.l.b16 %v389
    %v1575 = vunpack.c.h.b16 %v389
    %v1576 = vunpack.c.l.b16 %v390
    %v1577 = vunpack.c.h.b16 %v390
    %v1578 = vunpack.c.l.b16 %v391
    %v1579 = vunpack.c.h.b16 %v391
    %v1580 = vunpack.c.l.b16 %v392
    %v1581 = vunpack.c.h.b16 %v392
    %v1582 = vunpack.c.l.b16 %v393
    %v1583 = vunpack.c.h.b16 %v393
    %v1584 = vunpack.c.l.b16 %v394
    %v1585 = vunpack.c.h.b16 %v394
    %v1586 = vunpack.c.l.b16 %v395
    %v1587 = vunpack.c.h.b16 %v395
    %v1588 = vunpack.c.l.b16 %v396
    %v1589 = vunpack.c.h.b16 %v396
    %v1590 = vunpack.c.l.b16 %v397
    %v1591 = vunpack.c.h.b16 %v397
    %v1592 = vunpack.c.l.b16 %v398
    %v1593 = vunpack.c.h.b16 %v398
    %v1594 = vunpack.c.l.b16 %v399
    %v1595 = vunpack.c.h.b16 %v399
    %v1596 = vunpack.c.l.b16 %v400
    %v1597 = vunpack.c.h.b16 %v400
    %v1598 = vunpack.c.l.b16 %v401
    %v1599 = vunpack.c.h.b16 %v401
    %v1600 = vunpack.c.l.b16 %v402
    %v1601 = vunpack.c.h.b16 %v402
    %v1602 = vunpack.c.l.b16 %v403
    %v1603 = vunpack.c.h.b16 %v403
    %v1604 = vunpack.c.l.b16 %v404
    %v1605 = vunpack.c.h.b16 %v404
    %v1606 = vunpack.c.l.b16 %v405
    %v1607 = vunpack.c.h.b16 %v405
    %v1608 = vunpack.c.l.b16 %v406
    %v1609 = vunpack.c.h.b16 %v406
    %v1610 = vunpack.c.l.b16 %v407
    %v1611 = vunpack.c.h.b16 %v407
    %v1612 = vunpack.c.l.b16 %v408
    %v1613 = vunpack.c.h.b16 %v408
    %v1614 = vunpack.c.l.b16 %v409
    %v1615 = vunpack.c.h.b16 %v409
    %v1616 = vunpack.c.l.b16 %v410
    %v1617 = vunpack.c.h.b16 %v410
    %v1618 = vunpack.c.l.b16 %v411
    %v1619 = vunpack.c.h.b16 %v411
    %v1620 = vunpack.c.l.b16 %v412
    %v1621 = vunpack.c.h.b16 %v412
    %v1622 = vunpack.c.l.b16 %v413
    %v1623 = vunpack.c.h.b16 %v413
    %v1624 = vunpack.c.l.b16 %v414
    %v1625 = vunpack.c.h.b16 %v414
    %v1626 = vunpack.c.l.b16 %v415
    %v1627 = vunpack.c.h.b16 %v415
    %v1628 = vunpack.c.l.b16 %v416
    %v1629 = vunpack.c.h.b16 %v416
    %v1630 = vunpack.c.l.b16 %v417
    %v1631 = vunpack.c.h.b16 %v417
    %v1632 = vunpack.c.l.b16 %v418
    %v1633 = vunpack.c.h.b16 %v418
    %v1634 = vunpack.c.l.b16 %v419
    %v1635 = vunpack.c.h.b16 %v419
    %v1636 = vunpack.c.l.b16 %v420
    %v1637 = vunpack.c.h.b16 %v420
    %v1638 = vunpack.c.l.b16 %v421
    %v1639 = vunpack.c.h.b16 %v421
    %v1640 = vunpack.c.l.b16 %v422
    %v1641 = vunpack.c.h.b16 %v422
    %v1642 = vunpack.c.l.b16 %v423
    %v1643 = vunpack.c.h.b16 %v423
    %v1644 = vunpack.c.l.b16 %v424
    %v1645 = vunpack.c.h.b16 %v424
    %v1646 = vunpack.c.l.b16 %v425
    %v1647 = vunpack.c.h.b16 %v425
    %v1648 = vunpack.c.l.b16 %v426
    %v1649 = vunpack.c.h.b16 %v426
    %v1650 = vunpack.c.l.b16 %v427
    %v1651 = vunpack.c.h.b16 %v427
    %v1652 = vunpack.c.l.b16 %v428
    %v1653 = vunpack.c.h.b16 %v428
    %v1654 = vunpack.c.l.b16 %v429
    %v1655 = vunpack.c.h.b16 %v429
    %v1656 = vunpack.c.l.b16 %v430
    %v1657 = vunpack.c.h.b16 %v430
    %v1658 = vunpack.c.l.b16 %v431
    %v1659 = vunpack.c.h.b16 %v431
    %v1660 = vunpack.c.l.b16 %v432
    %v1661 = vunpack.c.h.b16 %v432
    %v1662 = vunpack.c.l.b16 %v433
    %v1663 = vunpack.c.h.b16 %v433
    %v1664 = vunpack.c.l.b16 %v434
    %v1665 = vunpack.c.h.b16 %v434
    %v1666 = vunpack.c.l.b16 %v435
    %v1667 = vunpack.c.h.b16 %v435
    %v1668 = vunpack.c.l.b16 %v436
    %v1669 = vunpack.c.h.b16 %v436
    %v1670 = vunpack.c.l.b16 %v437
    %v1671 = vunpack.c.h.b16 %v437
    %v1672 = vunpack.c.l.b16 %v438
    %v1673 = vunpack.c.h.b16 %v438
    %v1674 = vunpack.c.l.b16 %v439
    %v1675 = vunpack.c.h.b16 %v439
    %v1676 = vunpack.c.l.b16 %v440
    %v1677 = vunpack.c.h.b16 %v440
    %v1678 = vunpack.c.l.b16 %v441
    %v1679 = vunpack.c.h.b16 %v441
    %v1680 = vunpack.c.l.b16 %v442
    %v1681 = vunpack.c.h.b16 %v442
    %v1682 = vunpack.c.l.b16 %v443
    %v1683 = vunpack.c.h.b16 %v443
    %v1684 = vunpack.c.l.b16 %v444
    %v1685 = vunpack.c.h.b16 %v444
    %v1686 = vunpack.c.l.b16 %v445
    %v1687 = vunpack.c.h.b16 %v445
    %v1688 = vunpack.c.l.b16 %v446
    %v1689 = vunpack.c.h.b16 %v446
    %v1690 = vunpack.c.l.b16 %v447
    %v1691 = vunpack.c.h.b16 %v447
    %v1692 = vunpack.c.l.b16 %v448
    %v1693 = vunpack.c.h.b16 %v448
    %v1694 = vunpack.c.l.b16 %v449
    %v1695 = vunpack.c.h.b16 %v449
    %v1696 = vunpack.c.l.b16 %v450
    %v1697 = vunpack.c.h.b16 %v450
    %v1698 = vunpack.c.l.b16 %v451
    %v1699 = vunpack.c.h.b16 %v451
    %v1700 = vunpack.c.l.b16 %v452
    %v1701 = vunpack.c.h.b16 %v452
    %v1702 = vunpack.c.l.b16 %v453
    %v1703 = vunpack.c.h.b16 %v453
    %v1704 = vunpack.c.l.b16 %v454
    %v1705 = vunpack.c.h.b16 %v454
    %v1706 = vunpack.c.l.b16 %v455
    %v1707 = vunpack.c.h.b16 %v455
    %v1708 = vunpack.c.l.b16 %v456
    %v1709 = vunpack.c.h.b16 %v456
    %v1710 = vpack.c.b16 %v934, %v926
    %v1711 = vpack.c.b16 %v935, %v927
    %v1712 = vpack.c.b16 %v936, %v928
    %v1713 = vpack.c.b16 %v937, %v929
    %v1714 = vpack.c.b16 %v938, %v930
    %v1715 = vpack.c.b16 %v939, %v931
    %v1716 = vpack.c.b16 %v940, %v932
    %v1717 = vpack.c.b16 %v941, %v933
    %v1718 = vpack.c.b16 %v950, %v942
    %v1719 = vpack.c.b16 %v951, %v943
    %v1720 = vpack.c.b16 %v952, %v944
    %v1721 = vpack.c.b16 %v953, %v945
    %v1722 = vpack.c.b16 %v954, %v946
    %v1723 = vpack.c.b16 %v955, %v947
    %v1724 = vpack.c.b16 %v956, %v948
    %v1725 = vpack.c.b16 %v957, %v949
    %v1726 = vpack.c.b16 %v966, %v958
    %v1727 = vpack.c.b16 %v967, %v959
    %v1728 = vpack.c.b16 %v968, %v960
    %v1729 = vpack.c.b16 %v969, %v961
    %v1730 = vpack.c.b16 %v970, %v962
    %v1731 = vpack.c.b16 %v971, %v963
    %v1732 = vpack.c.b16 %v972, %v964
    %v1733 = vpack.c.b16 %v973, %v965
    %v1734 = vpack.c.b16 %v982, %v974
    %v1735 = vpack.c.b16 %v983, %v975
    %v1736 = vpack.c.b16 %v984, %v976
    %v1737 = vpack.c.b16 %v985, %v977
    %v1738 = vpack.c.b16 %v986, %v978
    %v1739 = vpack.c.b16 %v987, %v979
    %v1740 = vpack.c.b16 %v988, %v980
    %v1741 = vpack.c.b16 %v989, %v981
    %v1742 = vpack.c.b16 %v998, %v990
    %v1743 = vpack.c.b16 %v999, %v991
    %v1744 = vpack.c.b16 %v1000, %v992
    %v1745 = vpack.c.b16 %v1001, %v993
    %v1746 = vpack.c.b16 %v1002, %v994
    %v1747 = vpack.c.b16 %v1003, %v995
    %v1748 = vpack.c.b16 %v1004, %v996
    %v1749 = vpack.c.b16 %v1005, %v997
    %v1750 = vpack.c.b16 %v1014, %v1006
    %v1751 = vpack.c.b16 %v1015, %v1007
    %v1752 = vpack.c.b16 %v1016, %v1008
    %v1753 = vpack.c.b16 %v1017, %v1009
    %v1754 = vpack.c.b16 %v1018, %v1010
    %v1755 = vpack.c.b16 %v1019, %v1011
    %v1756 = vpack.c.b16 %v1020, %v1012
    %v1757 = vpack.c.b16 %v1021, %v1013
    %v1758 = vpack.c.b16 %v1030, %v1022
    %v1759 = vpack.c.b16 %v1031, %v1023
    %v1760 = vpack.c.b16 %v1032, %v1024
    %v1761 = vpack.c.b16 %v1033, %v1025
    %v1762 = vpack.c.b16 %v1034, %v1026
    %v1763 = vpack.c.b16 %v1035, %v1027
    %v1764 = vpack.c.b16 %v1036, %v1028
    %v1765 = vpack.c.b16 %v1037, %v1029
    %v1766 = vpack.c.b16 %v1046, %v1038
    %v1767 = vpack.c.b16 %v1047, %v1039
    %v1768 = vpack.c.b16 %v1048, %v1040
    %v1769 = vpack.c.b16 %v1049, %v1041
    %v1770 = vpack.c.b16 %v1050, %v1042
    %v1771 = vpack.c.b16 %v1051, %v1043
    %v1772 = vpack.c.b16 %v1052, %v1044
    %v1773 = vpack.c.b16 %v1053, %v1045
    %v1774 = vpack.c.b16 %v1062, %v1054
    %v1775 = vpack.c.b16 %v1063, %v1055
    %v1776 = vpack.c.b16 %v1064, %v1056
    %v1777 = vpack.c.b16 %v1065, %v1057
    %v1778 = vpack.c.b16 %v1066, %v1058
    %v1779 = vpack.c.b16 %v1067, %v1059
    %v1780 = vpack.c.b16 %v1068, %v1060
    %v1781 = vpack.c.b16 %v1069, %v1061
    %v1782 = vpack.c.b16 %v1078, %v1070
    %v1783 = vpack.c.b16 %v1079, %v1071
    %v1784 = vpack.c.b16 %v1080, %v1072
    %v1785 = vpack.c.b16 %v1081, %v1073
    %v1786 = vpack.c.b16 %v1082, %v1074
    %v1787 = vpack.c.b16 %v1083, %v1075
    %v1788 = vpack.c.b16 %v1084, %v1076
    %v1789 = vpack.c.b16 %v1085, %v1077
    %v1790 = vpack.c.b16 %v1094, %v1086
    %v1791 = vpack.c.b16 %v1095, %v1087
    %v1792 = vpack.c.b16 %v1096, %v1088
    %v1793 = vpack.c.b16 %v1097, %v1089
    %v1794 = vpack.c.b16 %v1098, %v1090
    %v1795 = vpack.c.b16 %v1099, %v1091
    %v1796 = vpack.c.b16 %v1100, %v1092
    %v1797 = vpack.c.b16 %v1101, %v1093
    %v1798 = vpack.c.b16 %v1110, %v1102
    %v1799 = vpack.c.b16 %v1111, %v1103
    %v1800 = vpack.c.b16 %v1112, %v1104
    %v1801 = vpack.c.b16 %v1113, %v1105
    %v1802 = vpack.c.b16 %v1114, %v1106
    %v1803 = vpack.c.b16 %v1115, %v1107
    %v1804 = vpack.c.b16 %v1116, %v1108
    %v1805 = vpack.c.b16 %v1117, %v1109
    %v1806 = vpack.c.b16 %v1126, %v1118
    %v1807 = vpack.c.b16 %v1127, %v1119
    %v1808 = vpack.c.b16 %v1128, %v1120
    %v1809 = vpack.c.b16 %v1129, %v1121
    %v1810 = vpack.c.b16 %v1130, %v1122
    %v1811 = vpack.c.b16 %v1131, %v1123
    %v1812 = vpack.c.b16 %v1132, %v1124
    %v1813 = vpack.c.b16 %v1133, %v1125
    %v1814 = vpack.c.b16 %v1142, %v1134
    %v1815 = vpack.c.b16 %v1143, %v1135
    %v1816 = vpack.c.b16 %v1144, %v1136
    %v1817 = vpack.c.b16 %v1145, %v1137
    %v1818 = vpack.c.b16 %v1146, %v1138
    %v1819 = vpack.c.b16 %v1147, %v1139
    %v1820 = vpack.c.b16 %v1148, %v1140
    %v1821 = vpack.c.b16 %v1149, %v1141
    %v1822 = vpack.c.b16 %v1158, %v1150
    %v1823 = vpack.c.b16 %v1159, %v1151
    %v1824 = vpack.c.b16 %v1160, %v1152
    %v1825 = vpack.c.b16 %v1161, %v1153
    %v1826 = vpack.c.b16 %v1162, %v1154
    %v1827 = vpack.c.b16 %v1163, %v1155
    %v1828 = vpack.c.b16 %v1164, %v1156
    %v1829 = vpack.c.b16 %v1165, %v1157
    %v1830 = vpack.c.b16 %v1174, %v1166
    %v1831 = vpack.c.b16 %v1175, %v1167
    %v1832 = vpack.c.b16 %v1176, %v1168
    %v1833 = vpack.c.b16 %v1177, %v1169
    %v1834 = vpack.c.b16 %v1178, %v1170
    %v1835 = vpack.c.b16 %v1179, %v1171
    %v1836 = vpack.c.b16 %v1180, %v1172
    %v1837 = vpack.c.b16 %v1181, %v1173
    %v1838 = vpack.c.b16 %v1190, %v1182
    %v1839 = vpack.c.b16 %v1191, %v1183
    %v1840 = vpack.c.b16 %v1192, %v1184
    %v1841 = vpack.c.b16 %v1193, %v1185
    %v1842 = vpack.c.b16 %v1194, %v1186
    %v1843 = vpack.c.b16 %v1195, %v1187
    %v1844 = vpack.c.b16 %v1196, %v1188
    %v1845 = vpack.c.b16 %v1197, %v1189
    %v1846 = vpack.c.b16 %v1206, %v1198
    %v1847 = vpack.c.b16 %v1207, %v1199
    %v1848 = vpack.c.b16 %v1208, %v1200
    %v1849 = vpack.c.b16 %v1209, %v1201
    %v1850 = vpack.c.b16 %v1210, %v1202
    %v1851 = vpack.c.b16 %v1211, %v1203
    %v1852 = vpack.c.b16 %v1212, %v1204
    %v1853 = vpack.c.b16 %v1213, %v1205
    %v1854 = vpack.c.b16 %v1222, %v1214
    %v1855 = vpack.c.b16 %v1223, %v1215
    %v1856 = vpack.c.b16 %v1224, %v1216
    %v1857 = vpack.c.b16 %v1225, %v1217
    %v1858 = vpack.c.b16 %v1226, %v1218
    %v1859 = vpack.c.b16 %v1227, %v1219
    %v1860 = vpack.c.b16 %v1228, %v1220
    %v1861 = vpack.c.b16 %v1229, %v1221
    %v1862 = vpack.c.b16 %v1238, %v1230
    %v1863 = vpack.c.b16 %v1239, %v1231
    %v1864 = vpack.c.b16 %v1240, %v1232
    %v1865 = vpack.c.b16 %v1241, %v1233
    %v1866 = vpack.c.b16 %v1242, %v1234
    %v1867 = vpack.c.b16 %v1243, %v1235
    %v1868 = vpack.c.b16 %v1244, %v1236
    %v1869 = vpack.c.b16 %v1245, %v1237
    %v1870 = vpack.c.b16 %v1254, %v1246
    %v1871 = vpack.c.b16 %v1255, %v1247
    %v1872 = vpack.c.b16 %v1256, %v1248
    %v1873 = vpack.c.b16 %v1257, %v1249
    %v1874 = vpack.c.b16 %v1258, %v1250
    %v1875 = vpack.c.b16 %v1259, %v1251
    %v1876 = vpack.c.b16 %v1260, %v1252
    %v1877 = vpack.c.b16 %v1261, %v1253
    %v1878 = vpack.c.b16 %v1270, %v1262
    %v1879 = vpack.c.b16 %v1271, %v1263
    %v1880 = vpack.c.b16 %v1272, %v1264
    %v1881 = vpack.c.b16 %v1273, %v1265
    %v1882 = vpack.c.b16 %v1274, %v1266
    %v1883 = vpack.c.b16 %v1275, %v1267
    %v1884 = vpack.c.b16 %v1276, %v1268
    %v1885 = vpack.c.b16 %v1277, %v1269
    %v1886 = vpack.c.b16 %v1286, %v1278
    %v1887 = vpack.c.b16 %v1287, %v1279
    %v1888 = vpack.c.b16 %v1288, %v1280
    %v1889 = vpack.c.b16 %v1289, %v1281
    %v1890 = vpack.c.b16 %v1290, %v1282
    %v1891 = vpack.c.b16 %v1291, %v1283
    %v1892 = vpack.c.b16 %v1292, %v1284
    %v1893 = vpack.c.b16 %v1293, %v1285
    %v1894 = vpack.c.b16 %v1302, %v1294
    %v1895 = vpack.c.b16 %v1303, %v1295
    %v1896 = vpack.c.b16 %v1304, %v1296
    %v1897 = vpack.c.b16 %v1305, %v1297
    %v1898 = vpack.c.b16 %v1306, %v1298
    %v1899 = vpack.c.b16 %v1307, %v1299
    %v1900 = vpack.c.b16 %v1308, %v1300
    %v1901 = vpack.c.b16 %v1309, %v1301
    %v1902 = vpack.c.b16 %v1318, %v1310
    %v1903 = vpack.c.b16 %v1319, %v1311
    %v1904 = vpack.c.b16 %v1320, %v1312
    %v1905 = vpack.c.b16 %v1321, %v1313
    %v1906 = vpack.c.b16 %v1322, %v1314
    %v1907 = vpack.c.b16 %v1323, %v1315
    %v1908 = vpack.c.b16 %v1324, %v1316
    %v1909 = vpack.c.b16 %v1325, %v1317
    %v1910 = vpack.c.b16 %v1334, %v1326
    %v1911 = vpack.c.b16 %v1335, %v1327
    %v1912 = vpack.c.b16 %v1336, %v1328
    %v1913 = vpack.c.b16 %v1337, %v1329
    %v1914 = vpack.c.b16 %v1338, %v1330
    %v1915 = vpack.c.b16 %v1339, %v1331
    %v1916 = vpack.c.b16 %v1340, %v1332
    %v1917 = vpack.c.b16 %v1341, %v1333
    %v1918 = vpack.c.b16 %v1350, %v1342
    %v1919 = vpack.c.b16 %v1351, %v1343
    %v1920 = vpack.c.b16 %v1352, %v1344
    %v1921 = vpack.c.b16 %v1353, %v1345
    %v1922 = vpack.c.b16 %v1354, %v1346
    %v1923 = vpack.c.b16 %v1355, %v1347
    %v1924 = vpack.c.b16 %v1356, %v1348
    %v1925 = vpack.c.b16 %v1357, %v1349
    %v1926 = vpack.c.b16 %v1366, %v1358
    %v1927 = vpack.c.b16 %v1367, %v1359
    %v1928 = vpack.c.b16 %v1368, %v1360
    %v1929 = vpack.c.b16 %v1369, %v1361
    %v1930 = vpack.c.b16 %v1370, %v1362
    %v1931 = vpack.c.b16 %v1371, %v1363
    %v1932 = vpack.c.b16 %v1372, %v1364
    %v1933 = vpack.c.b16 %v1373, %v1365
    %v1934 = vpack.c.b16 %v1382, %v1374
    %v1935 = vpack.c.b16 %v1383, %v1375
    %v1936 = vpack.c.b16 %v1384, %v1376
    %v1937 = vpack.c.b16 %v1385, %v1377
    %v1938 = vpack.c.b16 %v1386, %v1378
    %v1939 = vpack.c.b16 %v1387, %v1379
    %v1940 = vpack.c.b16 %v1388, %v1380
    %v1941 = vpack.c.b16 %v1389, %v1381
    %v1942 = vpack.c.b16 %v1398, %v1390
    %v1943 = vpack.c.b16 %v1399, %v1391
    %v1944 = vpack.c.b16 %v1400, %v1392
    %v1945 = vpack.c.b16 %v1401, %v1393
    %v1946 = vpack.c.b16 %v1402, %v1394
    %v1947 = vpack.c.b16 %v1403, %v1395
    %v1948 = vpack.c.b16 %v1404, %v1396
    %v1949 = vpack.c.b16 %v1405, %v1397
    %v1950 = vpack.c.b16 %v1414, %v1406
    %v1951 = vpack.c.b16 %v1415, %v1407
    %v1952 = vpack.c.b16 %v1416, %v1408
    %v1953 = vpack.c.b16 %v1417, %v1409
    %v1954 = vpack.c.b16 %v1418, %v1410
    %v1955 = vpack.c.b16 %v1419, %v1411
    %v1956 = vpack.c.b16 %v1420, %v1412
    %v1957 = vpack.c.b16 %v1421, %v1413
    %v1958 = vpack.c.b16 %v1430, %v1422
    %v1959 = vpack.c.b16 %v1431, %v1423
    %v1960 = vpack.c.b16 %v1432, %v1424
    %v1961 = vpack.c.b16 %v1433, %v1425
    %v1962 = vpack.c.b16 %v1434, %v1426
    %v1963 = vpack.c.b16 %v1435, %v1427
    %v1964 = vpack.c.b16 %v1436, %v1428
    %v1965 = vpack.c.b16 %v1437, %v1429
    %v1966 = vpack.c.b16 %v1446, %v1438
    %v1967 = vpack.c.b16 %v1447, %v1439
    %v1968 = vpack.c.b16 %v1448, %v1440
    %v1969 = vpack.c.b16 %v1449, %v1441
    %v1970 = vpack.c.b16 %v1450, %v1442
    %v1971 = vpack.c.b16 %v1451, %v1443
    %v1972 = vpack.c.b16 %v1452, %v1444
    %v1973 = vpack.c.b16 %v1453, %v1445
    %v1974 = vpack.c.b16 %v1462, %v1454
    %v1975 = vpack.c.b16 %v1463, %v1455
    %v1976 = vpack.c.b16 %v1464, %v1456
    %v1977 = vpack.c.b16 %v1465, %v1457
    %v1978 = vpack.c.b16 %v1466, %v1458
    %v1979 = vpack.c.b16 %v1467, %v1459
    %v1980 = vpack.c.b16 %v1468, %v1460
    %v1981 = vpack.c.b16 %v1469, %v1461
    %v1982 = vpack.c.b16 %v1478, %v1470
    %v1983 = vpack.c.b16 %v1479, %v1471
    %v1984 = vpack.c.b16 %v1480, %v1472
    %v1985 = vpack.c.b16 %v1481, %v1473
    %v1986 = vpack.c.b16 %v1482, %v1474
    %v1987 = vpack.c.b16 %v1483, %v1475
    %v1988 = vpack.c.b16 %v1484, %v1476
    %v1989 = vpack.c.b16 %v1485, %v1477
    %v1990 = vpack.c.b16 %v1494, %v1486
    %v1991 = vpack.c.b16 %v1495, %v1487
    %v1992 = vpack.c.b16 %v1496, %v1488
    %v1993 = vpack.c.b16 %v1497, %v1489
    %v1994 = vpack.c.b16 %v1498, %v1490
    %v1995 = vpack.c.b16 %v1499, %v1491
    %v1996 = vpack.c.b16 %v1500, %v1492
    %v1997 = vpack.c.b16 %v1501, %v1493
    %v1998 = vpack.c.b16 %v1510, %v1502
    %v1999 = vpack.c.b16 %v1511, %v1503
    %v2000 = vpack.c.b16 %v1512, %v1504
    %v2001 = vpack.c.b16 %v1513, %v1505
    %v2002 = vpack.c.b16 %v1514, %v1506
    %v2003 = vpack.c.b16 %v1515, %v1507
    %v2004 = vpack.c.b16 %v1516, %v1508
    %v2005 = vpack.c.b16 %v1517, %v1509
    %v2006 = vpack.c.b16 %v1526, %v1518
    %v2007 = vpack.c.b16 %v1527, %v1519
    %v2008 = vpack.c.b16 %v1528, %v1520
    %v2009 = vpack.c.b16 %v1529, %v1521
    %v2010 = vpack.c.b16 %v1530, %v1522
    %v2011 = vpack.c.b16 %v1531, %v1523
    %v2012 = vpack.c.b16 %v1532, %v1524
    %v2013 = vpack.c.b16 %v1533, %v1525
    %v2014 = vpack.c.b16 %v1542, %v1534
    %v2015 = vpack.c.b16 %v1543, %v1535
    %v2016 = vpack.c.b16 %v1544, %v1536
    %v2017 = vpack.c.b16 %v1545, %v1537
    %v2018 = vpack.c.b16 %v1546, %v1538
    %v2019 = vpack.c.b16 %v1547, %v1539
    %v2020 = vpack.c.b16 %v1548, %v1540
    %v2021 = vpack.c.b16 %v1549, %v1541
    %v2022 = vpack.c.b16 %v1558, %v1550
    %v2023 = vpack.c.b16 %v1559, %v1551
    %v2024 = vpack.c.b16 %v1560, %v1552
    %v2025 = vpack.c.b16 %v1561, %v1553
    %v2026 = vpack.c.b16 %v1562, %v1554
    %v2027 = vpack.c.b16 %v1563, %v1555
    %v2028 = vpack.c.b16 %v1564, %v1556
    %v2029 = vpack.c.b16 %v1565, %v1557
    %v2030 = vpack.c.b16 %v1574, %v1566
    %v2031 = vpack.c.b16 %v1575, %v1567
    %v2032 = vpack.c.b16 %v1576, %v1568
    %v2033 = vpack.c.b16 %v1577, %v1569
    %v2034 = vpack.c.b16 %v1578, %v1570
    %v2035 = vpack.c.b16 %v1579, %v1571
    %v2036 = vpack.c.b16 %v1580, %v1572
    %v2037 = vpack.c.b16 %v1581, %v1573
    %v2038 = vpack.c.b16 %v1590, %v1582
    %v2039 = vpack.c.b16 %v1591, %v1583
    %v2040 = vpack.c.b16 %v1592, %v1584
    %v2041 = vpack.c.b16 %v1593, %v1585
    %v2042 = vpack.c.b16 %v1594, %v1586
    %v2043 = vpack.c.b16 %v1595, %v1587
    %v2044 = vpack.c.b16 %v1596, %v1588
    %v2045 = vpack.c.b16 %v1597, %v1589
    %v2046 = vpack.c.b16 %v1606, %v1598
    %v2047 = vpack.c.b16 %v1607, %v1599
    %v2048 = vpack.c.b16 %v1608, %v1600
    %v2049 = vpack.c.b16 %v1609, %v1601
    %v2050 = vpack.c.b16 %v1610, %v1602
    %v2051 = vpack.c.b16 %v1611, %v1603
    %v2052 = vpack.c.b16 %v1612, %v1604
    %v2053 = vpack.c.b16 %v1613, %v1605
    %v2054 = vpack.c.b16 %v1622, %v1614
    %v2055 = vpack.c.b16 %v1623, %v1615
    %v2056 = vpack.c.b16 %v1624, %v1616
    %v2057 = vpack.c.b16 %v1625, %v1617
    %v2058 = vpack.c.b16 %v1626, %v1618
    %v2059 = vpack.c.b16 %v1627, %v1619
    %v2060 = vpack.c.b16 %v1628, %v1620
    %v2061 = vpack.c.b16 %v1629, %v1621
    %v2062 = vpack.c.b16 %v1638, %v1630
    %v2063 = vpack.c.b16 %v1639, %v1631
    %v2064 = vpack.c.b16 %v1640, %v1632
    %v2065 = vpack.c.b16 %v1641, %v1633
    %v2066 = vpack.c.b16 %v1642, %v1634
    %v2067 = vpack.c.b16 %v1643, %v1635
    %v2068 = vpack.c.b16 %v1644, %v1636
    %v2069 = vpack.c.b16 %v1645, %v1637
    %v2070 = vpack.c.b16 %v1654, %v1646
    %v2071 = vpack.c.b16 %v1655, %v1647
    %v2072 = vpack.c.b16 %v1656, %v1648
    %v2073 = vpack.c.b16 %v1657, %v1649
    %v2074 = vpack.c.b16 %v1658, %v1650
    %v2075 = vpack.c.b16 %v1659, %v1651
    %v2076 = vpack.c.b16 %v1660, %v1652
    %v2077 = vpack.c.b16 %v1661, %v1653
    %v2078 = vpack.c.b16 %v1670, %v1662
    %v2079 = vpack.c.b16 %v1671, %v1663
    %v2080 = vpack.c.b16 %v1672, %v1664
    %v2081 = vpack.c.b16 %v1673, %v1665
    %v2082 = vpack.c.b16 %v1674, %v1666
    %v2083 = vpack.c.b16 %v1675, %v1667
    %v2084 = vpack.c.b16 %v1676, %v1668
    %v2085 = vpack.c.b16 %v1677, %v1669
    %v2086 = vpack.c.b16 %v1686, %v1678
    %v2087 = vpack.c.b16 %v1687, %v1679
    %v2088 = vpack.c.b16 %v1688, %v1680
    %v2089 = vpack.c.b16 %v1689, %v1681
    %v2090 = vpack.c.b16 %v1690, %v1682
    %v2091 = vpack.c.b16 %v1691, %v1683
    %v2092 = vpack.c.b16 %v1692, %v1684
    %v2093 = vpack.c.b16 %v1693, %v1685
    %v2094 = vpack.c.b16 %v1702, %v1694
    %v2095 = vpack.c.b16 %v1703, %v1695
    %v2096 = vpack.c.b16 %v1704, %v1696
    %v2097 = vpack.c.b16 %v1705, %v1697
    %v2098 = vpack.c.b16 %v1706, %v1698
    %v2099 = vpack.c.b16 %v1707, %v1699
    %v2100 = vpack.c.b16 %v1708, %v1700
    %v2101 = vpack.c.b16 %v1709, %v1701
    %vm2494 = vcmask 130048
    %v2496 = vsel %vm2494, %v527, 0
    %2498 = vmatprep.subr.bf16.mxu0 %v1711
    %2499 = vmatpush1.bf16.msra.mxu0 %v1710
    %2500 = vmatprep.subr.bf16.mxu0 %v1719
    %2501 = vmatpush1.bf16.msra.mxu0 %v1718
    %2502 = vmatprep.subr.bf16.mxu0 %v1727
    %2503 = vmatpush1.bf16.msra.mxu0 %v1726
    %2504 = vmatprep.subr.bf16.mxu0 %v1735
    %2505 = vmatpush1.bf16.msra.mxu0 %v1734
    %2506 = vmatprep.subr.bf16.mxu0 %v1743
    %2507 = vmatpush1.bf16.msra.mxu0 %v1742
    %2508 = vmatprep.subr.bf16.mxu0 %v1751
    %2509 = vmatpush1.bf16.msra.mxu0 %v1750
    %2510 = vmatprep.subr.bf16.mxu0 %v1759
    %2511 = vmatpush1.bf16.msra.mxu0 %v1758
    %2512 = vmatprep.subr.bf16.mxu0 %v1767
    %2513 = vmatpush1.bf16.msra.mxu0 %v1766
    %2514 = vmatprep.subr.bf16.mxu0 %v1775
    %2515 = vmatpush1.bf16.msra.mxu0 %v1774
    %2516 = vmatprep.subr.bf16.mxu0 %v1783
    %2517 = vmatpush1.bf16.msra.mxu0 %v1782
    %2518 = vmatprep.subr.bf16.mxu0 %v1791
    %2519 = vmatpush1.bf16.msra.mxu0 %v1790
    %2520 = vmatprep.subr.bf16.mxu0 %v1799
    %2521 = vmatpush1.bf16.msra.mxu0 %v1798
    %2522 = vmatprep.subr.bf16.mxu0 %v1807
    %2523 = vmatpush1.bf16.msra.mxu0 %v1806
    %2524 = vmatprep.subr.bf16.mxu0 %v1815
    %2525 = vmatpush1.bf16.msra.mxu0 %v1814
    %2526 = vmatprep.subr.bf16.mxu0 %v1823
    %2527 = vmatpush1.bf16.msra.mxu0 %v1822
    %2528 = vmatprep.subr.bf16.mxu0 %v1831
    %2529 = vmatpush1.bf16.msra.mxu0 %v1830
    %2530 = vmatprep.mubr.bf16.mxu0 %v522
    %2531 = vmatmul.mubr.bf16.gmra.mrb[0].mxu0 %v521
    %v2532 = vpop.f32.mrb[0].mxu0
    %v2533 = vadd.f32 %v462, %v2532
    %v2534 = vpop.f32.mrb[0].mxu0
    %v2535 = vadd.f32 %v466, %v2534
    %v2536 = vpop.f32.mrb[0].mxu0
    %v2537 = vadd.f32 %v462, %v2536
    %v2538 = vpop.f32.mrb[0].mxu0
    %v2539 = vadd.f32 %v466, %v2538
    %2540 = vdwg.mxu0
    %2541 = vmatprep.subr.bf16.mxu0 %v1839
    %2542 = vmatpush1.bf16.msra.mxu0 %v1838
    %2543 = vmatprep.subr.bf16.mxu0 %v1847
    %2544 = vmatpush1.bf16.msra.mxu0 %v1846
    %2545 = vmatprep.subr.bf16.mxu0 %v1855
    %2546 = vmatpush1.bf16.msra.mxu0 %v1854
    %2547 = vmatprep.subr.bf16.mxu0 %v1863
    %2548 = vmatpush1.bf16.msra.mxu0 %v1862
    %2549 = vmatprep.subr.bf16.mxu0 %v1871
    %2550 = vmatpush1.bf16.msra.mxu0 %v1870
    %2551 = vmatprep.subr.bf16.mxu0 %v1879
    %2552 = vmatpush1.bf16.msra.mxu0 %v1878
    %2553 = vmatprep.subr.bf16.mxu0 %v1887
    %2554 = vmatpush1.bf16.msra.mxu0 %v1886
    %2555 = vmatprep.subr.bf16.mxu0 %v1895
    %2556 = vmatpush1.bf16.msra.mxu0 %v1894
    %2557 = vmatprep.subr.bf16.mxu0 %v1903
    %2558 = vmatpush1.bf16.msra.mxu0 %v1902
    %2559 = vmatprep.subr.bf16.mxu0 %v1911
    %2560 = vmatpush1.bf16.msra.mxu0 %v1910
    %2561 = vmatprep.subr.bf16.mxu0 %v1919
    %2562 = vmatpush1.bf16.msra.mxu0 %v1918
    %2563 = vmatprep.subr.bf16.mxu0 %v1927
    %2564 = vmatpush1.bf16.msra.mxu0 %v1926
    %2565 = vmatprep.subr.bf16.mxu0 %v1935
    %2566 = vmatpush1.bf16.msra.mxu0 %v1934
    %2567 = vmatprep.subr.bf16.mxu0 %v1943
    %2568 = vmatpush1.bf16.msra.mxu0 %v1942
    %2569 = vmatprep.subr.bf16.mxu0 %v1951
    %2570 = vmatpush1.bf16.msra.mxu0 %v1950
    %2571 = vmatprep.subr.bf16.mxu0 %v1959
    %2572 = vmatpush1.bf16.msra.mxu0 %v1958
    %2573 = vmatprep.mubr.bf16.mxu0 %v524
    %2574 = vmatmul.mubr.bf16.gmra.mrb[0].mxu0 %v523
    %v2575 = vpop.f32.mrb[0].mxu0
    %v2576 = vadd.f32 %v2533, %v2575
    %v2577 = vpop.f32.mrb[0].mxu0
    %v2578 = vadd.f32 %v2535, %v2577
    %v2579 = vpop.f32.mrb[0].mxu0
    %v2580 = vadd.f32 %v2537, %v2579
    %v2581 = vpop.f32.mrb[0].mxu0
    %v2582 = vadd.f32 %v2539, %v2581
    %2583 = vdwg.mxu0
    %2584 = vmatprep.subr.bf16.mxu0 %v1967
    %2585 = vmatpush1.bf16.msra.mxu0 %v1966
    %2586 = vmatprep.subr.bf16.mxu0 %v1975
    %2587 = vmatpush1.bf16.msra.mxu0 %v1974
    %2588 = vmatprep.subr.bf16.mxu0 %v1983
    %2589 = vmatpush1.bf16.msra.mxu0 %v1982
    %2590 = vmatprep.subr.bf16.mxu0 %v1991
    %2591 = vmatpush1.bf16.msra.mxu0 %v1990
    %2592 = vmatprep.subr.bf16.mxu0 %v1999
    %2593 = vmatpush1.bf16.msra.mxu0 %v1998
    %2594 = vmatprep.subr.bf16.mxu0 %v2007
    %2595 = vmatpush1.bf16.msra.mxu0 %v2006
    %2596 = vmatprep.subr.bf16.mxu0 %v2015
    %2597 = vmatpush1.bf16.msra.mxu0 %v2014
    %2598 = vmatprep.subr.bf16.mxu0 %v2023
    %2599 = vmatpush1.bf16.msra.mxu0 %v2022
    %2600 = vmatprep.subr.bf16.mxu0 %v2031
    %2601 = vmatpush1.bf16.msra.mxu0 %v2030
    %2602 = vmatprep.subr.bf16.mxu0 %v2039
    %2603 = vmatpush1.bf16.msra.mxu0 %v2038
    %2604 = vmatprep.subr.bf16.mxu0 %v2047
    %2605 = vmatpush1.bf16.msra.mxu0 %v2046
    %2606 = vmatprep.subr.bf16.mxu0 %v2055
    %2607 = vmatpush1.bf16.msra.mxu0 %v2054
    %2608 = vmatprep.subr.bf16.mxu0 %v2063
    %2609 = vmatpush1.bf16.msra.mxu0 %v2062
    %2610 = vmatprep.subr.bf16.mxu0 %v2071
    %2611 = vmatpush1.bf16.msra.mxu0 %v2070
    %2612 = vmatprep.subr.bf16.mxu0 %v2079
    %2613 = vmatpush1.bf16.msra.mxu0 %v2078
    %2614 = vmatprep.subr.bf16.mxu0 %v2087
    %2615 = vmatpush1.bf16.msra.mxu0 %v2086
    %2616 = vmatprep.mubr.bf16.mxu0 %v526
    %2617 = vmatmul.mubr.bf16.gmra.mrb[0].mxu0 %v525
    %v2618 = vpop.f32.mrb[0].mxu0
    %v2619 = vadd.f32 %v2576, %v2618
    %v2620 = vpop.f32.mrb[0].mxu0
    %v2621 = vadd.f32 %v2578, %v2620
    %v2622 = vpop.f32.mrb[0].mxu0
    %v2623 = vadd.f32 %v2580, %v2622
    %v2624 = vpop.f32.mrb[0].mxu0
    %v2625 = vadd.f32 %v2582, %v2624
    %2626 = vdwg.mxu0
    %2627 = vmatprep.subr.bf16.mxu0 %v2095
    %2628 = vmatpush1.bf16.msra.mxu0 %v2094
    %2629 = vmatprep.subr.bf16.mxu0 0
    %2630 = vmatpush1.bf16.msra.mxu0 0
    %2631 = vmatprep.subr.bf16.mxu0 0
    %2632 = vmatpush1.bf16.msra.mxu0 0
    %2633 = vmatprep.subr.bf16.mxu0 0
    %2634 = vmatpush1.bf16.msra.mxu0 0
    %2635 = vmatprep.subr.bf16.mxu0 0
    %2636 = vmatpush1.bf16.msra.mxu0 0
    %2637 = vmatprep.subr.bf16.mxu0 0
    %2638 = vmatpush1.bf16.msra.mxu0 0
    %2639 = vmatprep.subr.bf16.mxu0 0
    %2640 = vmatpush1.bf16.msra.mxu0 0
    %2641 = vmatprep.subr.bf16.mxu0 0
    %2642 = vmatpush1.bf16.msra.mxu0 0
    %2643 = vmatprep.subr.bf16.mxu0 0
    %2644 = vmatpush1.bf16.msra.mxu0 0
    %2645 = vmatprep.subr.bf16.mxu0 0
    %2646 = vmatpush1.bf16.msra.mxu0 0
    %2647 = vmatprep.subr.bf16.mxu0 0
    %2648 = vmatpush1.bf16.msra.mxu0 0
    %2649 = vmatprep.subr.bf16.mxu0 0
    %2650 = vmatpush1.bf16.msra.mxu0 0
    %2651 = vmatprep.subr.bf16.mxu0 0
    %2652 = vmatpush1.bf16.msra.mxu0 0
    %2653 = vmatprep.subr.bf16.mxu0 0
    %2654 = vmatpush1.bf16.msra.mxu0 0
    %2655 = vmatprep.subr.bf16.mxu0 0
    %2656 = vmatpush1.bf16.msra.mxu0 0
    %2657 = vmatprep.subr.bf16.mxu0 0
    %2658 = vmatpush1.bf16.msra.mxu0 0
    %2659 = vmatprep.mubr.bf16.mxu0 0
    %2660 = vmatmul.mubr.bf16.gmra.mrb[0].mxu0 %v2496
    %v2661 = vpop.f32.mrb[0].mxu0
    %v2662 = vadd.f32 %v2619, %v2661
    %v2663 = vpop.f32.mrb[0].mxu0
    %v2664 = vadd.f32 %v2621, %v2663
    %v2665 = vpop.f32.mrb[0].mxu0
    %v2666 = vadd.f32 %v2623, %v2665
    %v2667 = vpop.f32.mrb[0].mxu0
    %v2668 = vadd.f32 %v2625, %v2667
    %2669 = vdwg.mxu0
    %2670 = vmatprep.subr.bf16.mxu0 %v1713
    %2671 = vmatpush1.bf16.msra.mxu0 %v1712
    %2672 = vmatprep.subr.bf16.mxu0 %v1721
    %2673 = vmatpush1.bf16.msra.mxu0 %v1720
    %2674 = vmatprep.subr.bf16.mxu0 %v1729
    %2675 = vmatpush1.bf16.msra.mxu0 %v1728
    %2676 = vmatprep.subr.bf16.mxu0 %v1737
    %2677 = vmatpush1.bf16.msra.mxu0 %v1736
    %2678 = vmatprep.subr.bf16.mxu0 %v1745
    %2679 = vmatpush1.bf16.msra.mxu0 %v1744
    %2680 = vmatprep.subr.bf16.mxu0 %v1753
    %2681 = vmatpush1.bf16.msra.mxu0 %v1752
    %2682 = vmatprep.subr.bf16.mxu0 %v1761
    %2683 = vmatpush1.bf16.msra.mxu0 %v1760
    %2684 = vmatprep.subr.bf16.mxu0 %v1769
    %2685 = vmatpush1.bf16.msra.mxu0 %v1768
    %2686 = vmatprep.subr.bf16.mxu0 %v1777
    %2687 = vmatpush1.bf16.msra.mxu0 %v1776
    %2688 = vmatprep.subr.bf16.mxu0 %v1785
    %2689 = vmatpush1.bf16.msra.mxu0 %v1784
    %2690 = vmatprep.subr.bf16.mxu0 %v1793
    %2691 = vmatpush1.bf16.msra.mxu0 %v1792
    %2692 = vmatprep.subr.bf16.mxu0 %v1801
    %2693 = vmatpush1.bf16.msra.mxu0 %v1800
    %2694 = vmatprep.subr.bf16.mxu0 %v1809
    %2695 = vmatpush1.bf16.msra.mxu0 %v1808
    %2696 = vmatprep.subr.bf16.mxu0 %v1817
    %2697 = vmatpush1.bf16.msra.mxu0 %v1816
    %2698 = vmatprep.subr.bf16.mxu0 %v1825
    %2699 = vmatpush1.bf16.msra.mxu0 %v1824
    %2700 = vmatprep.subr.bf16.mxu0 %v1833
    %2701 = vmatpush1.bf16.msra.mxu0 %v1832
    %2702 = vmatprep.mubr.bf16.mxu0 %v522
    %2703 = vmatmul.mubr.bf16.gmra.mrb[0].mxu0 %v521
    %v2704 = vpop.f32.mrb[0].mxu0
    %v2705 = vadd.f32 %v470, %v2704
    %v2706 = vpop.f32.mrb[0].mxu0
    %v2707 = vadd.f32 %v474, %v2706
    %v2708 = vpop.f32.mrb[0].mxu0
    %v2709 = vadd.f32 %v470, %v2708
    %v2710 = vpop.f32.mrb[0].mxu0
    %v2711 = vadd.f32 %v474, %v2710
    %2712 = vdwg.mxu0
    %2713 = vmatprep.subr.bf16.mxu0 %v1841
    %2714 = vmatpush1.bf16.msra.mxu0 %v1840
    %2715 = vmatprep.subr.bf16.mxu0 %v1849
    %2716 = vmatpush1.bf16.msra.mxu0 %v1848
    %2717 = vmatprep.subr.bf16.mxu0 %v1857
    %2718 = vmatpush1.bf16.msra.mxu0 %v1856
    %2719 = vmatprep.subr.bf16.mxu0 %v1865
    %2720 = vmatpush1.bf16.msra.mxu0 %v1864
    %2721 = vmatprep.subr.bf16.mxu0 %v1873
    %2722 = vmatpush1.bf16.msra.mxu0 %v1872
    %2723 = vmatprep.subr.bf16.mxu0 %v1881
    %2724 = vmatpush1.bf16.msra.mxu0 %v1880
    %2725 = vmatprep.subr.bf16.mxu0 %v1889
    %2726 = vmatpush1.bf16.msra.mxu0 %v1888
    %2727 = vmatprep.subr.bf16.mxu0 %v1897
    %2728 = vmatpush1.bf16.msra.mxu0 %v1896
    %2729 = vmatprep.subr.bf16.mxu0 %v1905
    %2730 = vmatpush1.bf16.msra.mxu0 %v1904
    %2731 = vmatprep.subr.bf16.mxu0 %v1913
    %2732 = vmatpush1.bf16.msra.mxu0 %v1912
    %2733 = vmatprep.subr.bf16.mxu0 %v1921
    %2734 = vmatpush1.bf16.msra.mxu0 %v1920
    %2735 = vmatprep.subr.bf16.mxu0 %v1929
    %2736 = vmatpush1.bf16.msra.mxu0 %v1928
    %2737 = vmatprep.subr.bf16.mxu0 %v1937
    %2738 = vmatpush1.bf16.msra.mxu0 %v1936
    %2739 = vmatprep.subr.bf16.mxu0 %v1945
    %2740 = vmatpush1.bf16.msra.mxu0 %v1944
    %2741 = vmatprep.subr.bf16.mxu0 %v1953
    %2742 = vmatpush1.bf16.msra.mxu0 %v1952
    %2743 = vmatprep.subr.bf16.mxu0 %v1961
    %2744 = vmatpush1.bf16.msra.mxu0 %v1960
    %2745 = vmatprep.mubr.bf16.mxu0 %v524
    %2746 = vmatmul.mubr.bf16.gmra.mrb[0].mxu0 %v523
    %v2747 = vpop.f32.mrb[0].mxu0
    %v2748 = vadd.f32 %v2705, %v2747
    %v2749 = vpop.f32.mrb[0].mxu0
    %v2750 = vadd.f32 %v2707, %v2749
    %v2751 = vpop.f32.mrb[0].mxu0
    %v2752 = vadd.f32 %v2709, %v2751
    %v2753 = vpop.f32.mrb[0].mxu0
    %v2754 = vadd.f32 %v2711, %v2753
    %2755 = vdwg.mxu0
    %2756 = vmatprep.subr.bf16.mxu0 %v1969
    %2757 = vmatpush1.bf16.msra.mxu0 %v1968
    %2758 = vmatprep.subr.bf16.mxu0 %v1977
    %2759 = vmatpush1.bf16.msra.mxu0 %v1976
    %2760 = vmatprep.subr.bf16.mxu0 %v1985
    %2761 = vmatpush1.bf16.msra.mxu0 %v1984
    %2762 = vmatprep.subr.bf16.mxu0 %v1993
    %2763 = vmatpush1.bf16.msra.mxu0 %v1992
    %2764 = vmatprep.subr.bf16.mxu0 %v2001
    %2765 = vmatpush1.bf16.msra.mxu0 %v2000
    %2766 = vmatprep.subr.bf16.mxu0 %v2009
    %2767 = vmatpush1.bf16.msra.mxu0 %v2008
    %2768 = vmatprep.subr.bf16.mxu0 %v2017
    %2769 = vmatpush1.bf16.msra.mxu0 %v2016
    %2770 = vmatprep.subr.bf16.mxu0 %v2025
    %2771 = vmatpush1.bf16.msra.mxu0 %v2024
    %2772 = vmatprep.subr.bf16.mxu0 %v2033
    %2773 = vmatpush1.bf16.msra.mxu0 %v2032
    %2774 = vmatprep.subr.bf16.mxu0 %v2041
    %2775 = vmatpush1.bf16.msra.mxu0 %v2040
    %2776 = vmatprep.subr.bf16.mxu0 %v2049
    %2777 = vmatpush1.bf16.msra.mxu0 %v2048
    %2778 = vmatprep.subr.bf16.mxu0 %v2057
    %2779 = vmatpush1.bf16.msra.mxu0 %v2056
    %2780 = vmatprep.subr.bf16.mxu0 %v2065
    %2781 = vmatpush1.bf16.msra.mxu0 %v2064
    %2782 = vmatprep.subr.bf16.mxu0 %v2073
    %2783 = vmatpush1.bf16.msra.mxu0 %v2072
    %2784 = vmatprep.subr.bf16.mxu0 %v2081
    %2785 = vmatpush1.bf16.msra.mxu0 %v2080
    %2786 = vmatprep.subr.bf16.mxu0 %v2089
    %2787 = vmatpush1.bf16.msra.mxu0 %v2088
    %2788 = vmatprep.mubr.bf16.mxu0 %v526
    %2789 = vmatmul.mubr.bf16.gmra.mrb[0].mxu0 %v525
    %v2790 = vpop.f32.mrb[0].mxu0
    %v2791 = vadd.f32 %v2748, %v2790
    %v2792 = vpop.f32.mrb[0].mxu0
    %v2793 = vadd.f32 %v2750, %v2792
    %v2794 = vpop.f32.mrb[0].mxu0
    %v2795 = vadd.f32 %v2752, %v2794
    %v2796 = vpop.f32.mrb[0].mxu0
    %v2797 = vadd.f32 %v2754, %v2796
    %2798 = vdwg.mxu0
    %2799 = vmatprep.subr.bf16.mxu0 %v2097
    %2800 = vmatpush1.bf16.msra.mxu0 %v2096
    %2801 = vmatprep.subr.bf16.mxu0 0
    %2802 = vmatpush1.bf16.msra.mxu0 0
    %2803 = vmatprep.subr.bf16.mxu0 0
    %2804 = vmatpush1.bf16.msra.mxu0 0
    %2805 = vmatprep.subr.bf16.mxu0 0
    %2806 = vmatpush1.bf16.msra.mxu0 0
    %2807 = vmatprep.subr.bf16.mxu0 0
    %2808 = vmatpush1.bf16.msra.mxu0 0
    %2809 = vmatprep.subr.bf16.mxu0 0
    %2810 = vmatpush1.bf16.msra.mxu0 0
    %2811 = vmatprep.subr.bf16.mxu0 0
    %2812 = vmatpush1.bf16.msra.mxu0 0
    %2813 = vmatprep.subr.bf16.mxu0 0
    %2814 = vmatpush1.bf16.msra.mxu0 0
    %2815 = vmatprep.subr.bf16.mxu0 0
    %2816 = vmatpush1.bf16.msra.mxu0 0
    %2817 = vmatprep.subr.bf16.mxu0 0
    %2818 = vmatpush1.bf16.msra.mxu0 0
    %2819 = vmatprep.subr.bf16.mxu0 0
    %2820 = vmatpush1.bf16.msra.mxu0 0
    %2821 = vmatprep.subr.bf16.mxu0 0
    %2822 = vmatpush1.bf16.msra.mxu0 0
    %2823 = vmatprep.subr.bf16.mxu0 0
    %2824 = vmatpush1.bf16.msra.mxu0 0
    %2825 = vmatprep.subr.bf16.mxu0 0
    %2826 = vmatpush1.bf16.msra.mxu0 0
    %2827 = vmatprep.subr.bf16.mxu0 0
    %2828 = vmatpush1.bf16.msra.mxu0 0
    %2829 = vmatprep.subr.bf16.mxu0 0
    %2830 = vmatpush1.bf16.msra.mxu0 0
    %2831 = vmatprep.mubr.bf16.mxu0 0
    %2832 = vmatmul.mubr.bf16.gmra.mrb[0].mxu0 %v2496
    %v2833 = vpop.f32.mrb[0].mxu0
    %v2834 = vadd.f32 %v2791, %v2833
    %v2835 = vpop.f32.mrb[0].mxu0
    %v2836 = vadd.f32 %v2793, %v2835
    %v2837 = vpop.f32.mrb[0].mxu0
    %v2838 = vadd.f32 %v2795, %v2837
    %v2839 = vpop.f32.mrb[0].mxu0
    %v2840 = vadd.f32 %v2797, %v2839
    %2841 = vdwg.mxu0
    %2842 = vmatprep.subr.bf16.mxu0 %v1715
    %2843 = vmatpush1.bf16.msra.mxu0 %v1714
    %2844 = vmatprep.subr.bf16.mxu0 %v1723
    %2845 = vmatpush1.bf16.msra.mxu0 %v1722
    %2846 = vmatprep.subr.bf16.mxu0 %v1731
    %2847 = vmatpush1.bf16.msra.mxu0 %v1730
    %2848 = vmatprep.subr.bf16.mxu0 %v1739
    %2849 = vmatpush1.bf16.msra.mxu0 %v1738
    %2850 = vmatprep.subr.bf16.mxu0 %v1747
    %2851 = vmatpush1.bf16.msra.mxu0 %v1746
    %2852 = vmatprep.subr.bf16.mxu0 %v1755
    %2853 = vmatpush1.bf16.msra.mxu0 %v1754
    %2854 = vmatprep.subr.bf16.mxu0 %v1763
    %2855 = vmatpush1.bf16.msra.mxu0 %v1762
    %2856 = vmatprep.subr.bf16.mxu0 %v1771
    %2857 = vmatpush1.bf16.msra.mxu0 %v1770
    %2858 = vmatprep.subr.bf16.mxu0 %v1779
    %2859 = vmatpush1.bf16.msra.mxu0 %v1778
    %2860 = vmatprep.subr.bf16.mxu0 %v1787
    %2861 = vmatpush1.bf16.msra.mxu0 %v1786
    %2862 = vmatprep.subr.bf16.mxu0 %v1795
    %2863 = vmatpush1.bf16.msra.mxu0 %v1794
    %2864 = vmatprep.subr.bf16.mxu0 %v1803
    %2865 = vmatpush1.bf16.msra.mxu0 %v1802
    %2866 = vmatprep.subr.bf16.mxu0 %v1811
    %2867 = vmatpush1.bf16.msra.mxu0 %v1810
    %2868 = vmatprep.subr.bf16.mxu0 %v1819
    %2869 = vmatpush1.bf16.msra.mxu0 %v1818
    %2870 = vmatprep.subr.bf16.mxu0 %v1827
    %2871 = vmatpush1.bf16.msra.mxu0 %v1826
    %2872 = vmatprep.subr.bf16.mxu0 %v1835
    %2873 = vmatpush1.bf16.msra.mxu0 %v1834
    %2874 = vmatprep.mubr.bf16.mxu0 %v522
    %2875 = vmatmul.mubr.bf16.gmra.mrb[0].mxu0 %v521
    %v2876 = vpop.f32.mrb[0].mxu0
    %v2877 = vadd.f32 %v478, %v2876
    %v2878 = vpop.f32.mrb[0].mxu0
    %v2879 = vadd.f32 %v482, %v2878
    %v2880 = vpop.f32.mrb[0].mxu0
    %v2881 = vadd.f32 %v478, %v2880
    %v2882 = vpop.f32.mrb[0].mxu0
    %v2883 = vadd.f32 %v482, %v2882
    %2884 = vdwg.mxu0
    %2885 = vmatprep.subr.bf16.mxu0 %v1843
    %2886 = vmatpush1.bf16.msra.mxu0 %v1842
    %2887 = vmatprep.subr.bf16.mxu0 %v1851
    %2888 = vmatpush1.bf16.msra.mxu0 %v1850
    %2889 = vmatprep.subr.bf16.mxu0 %v1859
    %2890 = vmatpush1.bf16.msra.mxu0 %v1858
    %2891 = vmatprep.subr.bf16.mxu0 %v1867
    %2892 = vmatpush1.bf16.msra.mxu0 %v1866
    %2893 = vmatprep.subr.bf16.mxu0 %v1875
    %2894 = vmatpush1.bf16.msra.mxu0 %v1874
    %2895 = vmatprep.subr.bf16.mxu0 %v1883
    %2896 = vmatpush1.bf16.msra.mxu0 %v1882
    %2897 = vmatprep.subr.bf16.mxu0 %v1891
    %2898 = vmatpush1.bf16.msra.mxu0 %v1890
    %2899 = vmatprep.subr.bf16.mxu0 %v1899
    %2900 = vmatpush1.bf16.msra.mxu0 %v1898
    %2901 = vmatprep.subr.bf16.mxu0 %v1907
    %2902 = vmatpush1.bf16.msra.mxu0 %v1906
    %2903 = vmatprep.subr.bf16.mxu0 %v1915
    %2904 = vmatpush1.bf16.msra.mxu0 %v1914
    %2905 = vmatprep.subr.bf16.mxu0 %v1923
    %2906 = vmatpush1.bf16.msra.mxu0 %v1922
    %2907 = vmatprep.subr.bf16.mxu0 %v1931
    %2908 = vmatpush1.bf16.msra.mxu0 %v1930
    %2909 = vmatprep.subr.bf16.mxu0 %v1939
    %2910 = vmatpush1.bf16.msra.mxu0 %v1938
    %2911 = vmatprep.subr.bf16.mxu0 %v1947
    %2912 = vmatpush1.bf16.msra.mxu0 %v1946
    %2913 = vmatprep.subr.bf16.mxu0 %v1955
    %2914 = vmatpush1.bf16.msra.mxu0 %v1954
    %2915 = vmatprep.subr.bf16.mxu0 %v1963
    %2916 = vmatpush1.bf16.msra.mxu0 %v1962
    %2917 = vmatprep.mubr.bf16.mxu0 %v524
    %2918 = vmatmul.mubr.bf16.gmra.mrb[0].mxu0 %v523
    %v2919 = vpop.f32.mrb[0].mxu0
    %v2920 = vadd.f32 %v2877, %v2919
    %v2921 = vpop.f32.mrb[0].mxu0
    %v2922 = vadd.f32 %v2879, %v2921
    %v2923 = vpop.f32.mrb[0].mxu0
    %v2924 = vadd.f32 %v2881, %v2923
    %v2925 = vpop.f32.mrb[0].mxu0
    %v2926 = vadd.f32 %v2883, %v2925
    %2927 = vdwg.mxu0
    %2928 = vmatprep.subr.bf16.mxu0 %v1971
    %2929 = vmatpush1.bf16.msra.mxu0 %v1970
    %2930 = vmatprep.subr.bf16.mxu0 %v1979
    %2931 = vmatpush1.bf16.msra.mxu0 %v1978
    %2932 = vmatprep.subr.bf16.mxu0 %v1987
    %2933 = vmatpush1.bf16.msra.mxu0 %v1986
    %2934 = vmatprep.subr.bf16.mxu0 %v1995
    %2935 = vmatpush1.bf16.msra.mxu0 %v1994
    %2936 = vmatprep.subr.bf16.mxu0 %v2003
    %2937 = vmatpush1.bf16.msra.mxu0 %v2002
    %2938 = vmatprep.subr.bf16.mxu0 %v2011
    %2939 = vmatpush1.bf16.msra.mxu0 %v2010
    %2940 = vmatprep.subr.bf16.mxu0 %v2019
    %2941 = vmatpush1.bf16.msra.mxu0 %v2018
    %2942 = vmatprep.subr.bf16.mxu0 %v2027
    %2943 = vmatpush1.bf16.msra.mxu0 %v2026
    %2944 = vmatprep.subr.bf16.mxu0 %v2035
    %2945 = vmatpush1.bf16.msra.mxu0 %v2034
    %2946 = vmatprep.subr.bf16.mxu0 %v2043
    %2947 = vmatpush1.bf16.msra.mxu0 %v2042
    %2948 = vmatprep.subr.bf16.mxu0 %v2051
    %2949 = vmatpush1.bf16.msra.mxu0 %v2050
    %2950 = vmatprep.subr.bf16.mxu0 %v2059
    %2951 = vmatpush1.bf16.msra.mxu0 %v2058
    %2952 = vmatprep.subr.bf16.mxu0 %v2067
    %2953 = vmatpush1.bf16.msra.mxu0 %v2066
    %2954 = vmatprep.subr.bf16.mxu0 %v2075
    %2955 = vmatpush1.bf16.msra.mxu0 %v2074
    %2956 = vmatprep.subr.bf16.mxu0 %v2083
    %2957 = vmatpush1.bf16.msra.mxu0 %v2082
    %2958 = vmatprep.subr.bf16.mxu0 %v2091
    %2959 = vmatpush1.bf16.msra.mxu0 %v2090
    %2960 = vmatprep.mubr.bf16.mxu0 %v526
    %2961 = vmatmul.mubr.bf16.gmra.mrb[0].mxu0 %v525
    %v2962 = vpop.f32.mrb[0].mxu0
    %v2963 = vadd.f32 %v2920, %v2962
    %v2964 = vpop.f32.mrb[0].mxu0
    %v2965 = vadd.f32 %v2922, %v2964
    %v2966 = vpop.f32.mrb[0].mxu0
    %v2967 = vadd.f32 %v2924, %v2966
    %v2968 = vpop.f32.mrb[0].mxu0
    %v2969 = vadd.f32 %v2926, %v2968
    %2970 = vdwg.mxu0
    %2971 = vmatprep.subr.bf16.mxu0 %v2099
    %2972 = vmatpush1.bf16.msra.mxu0 %v2098
    %2973 = vmatprep.subr.bf16.mxu0 0
    %2974 = vmatpush1.bf16.msra.mxu0 0
    %2975 = vmatprep.subr.bf16.mxu0 0
    %2976 = vmatpush1.bf16.msra.mxu0 0
    %2977 = vmatprep.subr.bf16.mxu0 0
    %2978 = vmatpush1.bf16.msra.mxu0 0
    %2979 = vmatprep.subr.bf16.mxu0 0
    %2980 = vmatpush1.bf16.msra.mxu0 0
    %2981 = vmatprep.subr.bf16.mxu0 0
    %2982 = vmatpush1.bf16.msra.mxu0 0
    %2983 = vmatprep.subr.bf16.mxu0 0
    %2984 = vmatpush1.bf16.msra.mxu0 0
    %2985 = vmatprep.subr.bf16.mxu0 0
    %2986 = vmatpush1.bf16.msra.mxu0 0
    %2987 = vmatprep.subr.bf16.mxu0 0
    %2988 = vmatpush1.bf16.msra.mxu0 0
    %2989 = vmatprep.subr.bf16.mxu0 0
    %2990 = vmatpush1.bf16.msra.mxu0 0
    %2991 = vmatprep.subr.bf16.mxu0 0
    %2992 = vmatpush1.bf16.msra.mxu0 0
    %2993 = vmatprep.subr.bf16.mxu0 0
    %2994 = vmatpush1.bf16.msra.mxu0 0
    %2995 = vmatprep.subr.bf16.mxu0 0
    %2996 = vmatpush1.bf16.msra.mxu0 0
    %2997 = vmatprep.subr.bf16.mxu0 0
    %2998 = vmatpush1.bf16.msra.mxu0 0
    %2999 = vmatprep.subr.bf16.mxu0 0
    %3000 = vmatpush1.bf16.msra.mxu0 0
    %3001 = vmatprep.subr.bf16.mxu0 0
    %3002 = vmatpush1.bf16.msra.mxu0 0
    %3003 = vmatprep.mubr.bf16.mxu0 0
    %3004 = vmatmul.mubr.bf16.gmra.mrb[0].mxu0 %v2496
    %v3005 = vpop.f32.mrb[0].mxu0
    %v3006 = vadd.f32 %v2963, %v3005
    %v3007 = vpop.f32.mrb[0].mxu0
    %v3008 = vadd.f32 %v2965, %v3007
    %v3009 = vpop.f32.mrb[0].mxu0
    %v3010 = vadd.f32 %v2967, %v3009
    %v3011 = vpop.f32.mrb[0].mxu0
    %v3012 = vadd.f32 %v2969, %v3011
    %3013 = vdwg.mxu0
    %3014 = vmatprep.subr.bf16.mxu0 %v1717
    %3015 = vmatpush1.bf16.msra.mxu0 %v1716
    %3016 = vmatprep.subr.bf16.mxu0 %v1725
    %3017 = vmatpush1.bf16.msra.mxu0 %v1724
    %3018 = vmatprep.subr.bf16.mxu0 %v1733
    %3019 = vmatpush1.bf16.msra.mxu0 %v1732
    %3020 = vmatprep.subr.bf16.mxu0 %v1741
    %3021 = vmatpush1.bf16.msra.mxu0 %v1740
    %3022 = vmatprep.subr.bf16.mxu0 %v1749
    %3023 = vmatpush1.bf16.msra.mxu0 %v1748
    %3024 = vmatprep.subr.bf16.mxu0 %v1757
    %3025 = vmatpush1.bf16.msra.mxu0 %v1756
    %3026 = vmatprep.subr.bf16.mxu0 %v1765
    %3027 = vmatpush1.bf16.msra.mxu0 %v1764
    %3028 = vmatprep.subr.bf16.mxu0 %v1773
    %3029 = vmatpush1.bf16.msra.mxu0 %v1772
    %3030 = vmatprep.subr.bf16.mxu0 %v1781
    %3031 = vmatpush1.bf16.msra.mxu0 %v1780
    %3032 = vmatprep.subr.bf16.mxu0 %v1789
    %3033 = vmatpush1.bf16.msra.mxu0 %v1788
    %3034 = vmatprep.subr.bf16.mxu0 %v1797
    %3035 = vmatpush1.bf16.msra.mxu0 %v1796
    %3036 = vmatprep.subr.bf16.mxu0 %v1805
    %3037 = vmatpush1.bf16.msra.mxu0 %v1804
    %3038 = vmatprep.subr.bf16.mxu0 %v1813
    %3039 = vmatpush1.bf16.msra.mxu0 %v1812
    %3040 = vmatprep.subr.bf16.mxu0 %v1821
    %3041 = vmatpush1.bf16.msra.mxu0 %v1820
    %3042 = vmatprep.subr.bf16.mxu0 %v1829
    %3043 = vmatpush1.bf16.msra.mxu0 %v1828
    %3044 = vmatprep.subr.bf16.mxu0 %v1837
    %3045 = vmatpush1.bf16.msra.mxu0 %v1836
    %3046 = vmatprep.mubr.bf16.mxu0 %v522
    %3047 = vmatmul.mubr.bf16.gmra.mrb[0].mxu0 %v521
    %v3048 = vpop.f32.mrb[0].mxu0
    %v3049 = vadd.f32 %v486, %v3048
    %v3050 = vpop.f32.mrb[0].mxu0
    %v3051 = vadd.f32 %v490, %v3050
    %v3052 = vpop.f32.mrb[0].mxu0
    %v3053 = vadd.f32 %v486, %v3052
    %v3054 = vpop.f32.mrb[0].mxu0
    %v3055 = vadd.f32 %v490, %v3054
    %3056 = vdwg.mxu0
    %3057 = vmatprep.subr.bf16.mxu0 %v1845
    %3058 = vmatpush1.bf16.msra.mxu0 %v1844
    %3059 = vmatprep.subr.bf16.mxu0 %v1853
    %3060 = vmatpush1.bf16.msra.mxu0 %v1852
    %3061 = vmatprep.subr.bf16.mxu0 %v1861
    %3062 = vmatpush1.bf16.msra.mxu0 %v1860
    %3063 = vmatprep.subr.bf16.mxu0 %v1869
    %3064 = vmatpush1.bf16.msra.mxu0 %v1868
    %3065 = vmatprep.subr.bf16.mxu0 %v1877
    %3066 = vmatpush1.bf16.msra.mxu0 %v1876
    %3067 = vmatprep.subr.bf16.mxu0 %v1885
    %3068 = vmatpush1.bf16.msra.mxu0 %v1884
    %3069 = vmatprep.subr.bf16.mxu0 %v1893
    %3070 = vmatpush1.bf16.msra.mxu0 %v1892
    %3071 = vmatprep.subr.bf16.mxu0 %v1901
    %3072 = vmatpush1.bf16.msra.mxu0 %v1900
    %3073 = vmatprep.subr.bf16.mxu0 %v1909
    %3074 = vmatpush1.bf16.msra.mxu0 %v1908
    %3075 = vmatprep.subr.bf16.mxu0 %v1917
    %3076 = vmatpush1.bf16.msra.mxu0 %v1916
    %3077 = vmatprep.subr.bf16.mxu0 %v1925
    %3078 = vmatpush1.bf16.msra.mxu0 %v1924
    %3079 = vmatprep.subr.bf16.mxu0 %v1933
    %3080 = vmatpush1.bf16.msra.mxu0 %v1932
    %3081 = vmatprep.subr.bf16.mxu0 %v1941
    %3082 = vmatpush1.bf16.msra.mxu0 %v1940
    %3083 = vmatprep.subr.bf16.mxu0 %v1949
    %3084 = vmatpush1.bf16.msra.mxu0 %v1948
    %3085 = vmatprep.subr.bf16.mxu0 %v1957
    %3086 = vmatpush1.bf16.msra.mxu0 %v1956
    %3087 = vmatprep.subr.bf16.mxu0 %v1965
    %3088 = vmatpush1.bf16.msra.mxu0 %v1964
    %3089 = vmatprep.mubr.bf16.mxu0 %v524
    %3090 = vmatmul.mubr.bf16.gmra.mrb[0].mxu0 %v523
    %v3091 = vpop.f32.mrb[0].mxu0
    %v3092 = vadd.f32 %v3049, %v3091
    %v3093 = vpop.f32.mrb[0].mxu0
    %v3094 = vadd.f32 %v3051, %v3093
    %v3095 = vpop.f32.mrb[0].mxu0
    %v3096 = vadd.f32 %v3053, %v3095
    %v3097 = vpop.f32.mrb[0].mxu0
    %v3098 = vadd.f32 %v3055, %v3097
    %3099 = vdwg.mxu0
    %3100 = vmatprep.subr.bf16.mxu0 %v1973
    %3101 = vmatpush1.bf16.msra.mxu0 %v1972
    %3102 = vmatprep.subr.bf16.mxu0 %v1981
    %3103 = vmatpush1.bf16.msra.mxu0 %v1980
    %3104 = vmatprep.subr.bf16.mxu0 %v1989
    %3105 = vmatpush1.bf16.msra.mxu0 %v1988
    %3106 = vmatprep.subr.bf16.mxu0 %v1997
    %3107 = vmatpush1.bf16.msra.mxu0 %v1996
    %3108 = vmatprep.subr.bf16.mxu0 %v2005
    %3109 = vmatpush1.bf16.msra.mxu0 %v2004
    %3110 = vmatprep.subr.bf16.mxu0 %v2013
    %3111 = vmatpush1.bf16.msra.mxu0 %v2012
    %3112 = vmatprep.subr.bf16.mxu0 %v2021
    %3113 = vmatpush1.bf16.msra.mxu0 %v2020
    %3114 = vmatprep.subr.bf16.mxu0 %v2029
    %3115 = vmatpush1.bf16.msra.mxu0 %v2028
    %3116 = vmatprep.subr.bf16.mxu0 %v2037
    %3117 = vmatpush1.bf16.msra.mxu0 %v2036
    %3118 = vmatprep.subr.bf16.mxu0 %v2045
    %3119 = vmatpush1.bf16.msra.mxu0 %v2044
    %3120 = vmatprep.subr.bf16.mxu0 %v2053
    %3121 = vmatpush1.bf16.msra.mxu0 %v2052
    %3122 = vmatprep.subr.bf16.mxu0 %v2061
    %3123 = vmatpush1.bf16.msra.mxu0 %v2060
    %3124 = vmatprep.subr.bf16.mxu0 %v2069
    %3125 = vmatpush1.bf16.msra.mxu0 %v2068
    %3126 = vmatprep.subr.bf16.mxu0 %v2077
    %3127 = vmatpush1.bf16.msra.mxu0 %v2076
    %3128 = vmatprep.subr.bf16.mxu0 %v2085
    %3129 = vmatpush1.bf16.msra.mxu0 %v2084
    %3130 = vmatprep.subr.bf16.mxu0 %v2093
    %3131 = vmatpush1.bf16.msra.mxu0 %v2092
    %3132 = vmatprep.mubr.bf16.mxu0 %v526
    %3133 = vmatmul.mubr.bf16.gmra.mrb[0].mxu0 %v525
    %v3134 = vpop.f32.mrb[0].mxu0
    %v3135 = vadd.f32 %v3092, %v3134
    %v3136 = vpop.f32.mrb[0].mxu0
    %v3137 = vadd.f32 %v3094, %v3136
    %v3138 = vpop.f32.mrb[0].mxu0
    %v3139 = vadd.f32 %v3096, %v3138
    %v3140 = vpop.f32.mrb[0].mxu0
    %v3141 = vadd.f32 %v3098, %v3140
    %3142 = vdwg.mxu0
    %3143 = vmatprep.subr.bf16.mxu0 %v2101
    %3144 = vmatpush1.bf16.msra.mxu0 %v2100
    %3145 = vmatprep.subr.bf16.mxu0 0
    %3146 = vmatpush1.bf16.msra.mxu0 0
    %3147 = vmatprep.subr.bf16.mxu0 0
    %3148 = vmatpush1.bf16.msra.mxu0 0
    %3149 = vmatprep.subr.bf16.mxu0 0
    %3150 = vmatpush1.bf16.msra.mxu0 0
    %3151 = vmatprep.subr.bf16.mxu0 0
    %3152 = vmatpush1.bf16.msra.mxu0 0
    %3153 = vmatprep.subr.bf16.mxu0 0
    %3154 = vmatpush1.bf16.msra.mxu0 0
    %3155 = vmatprep.subr.bf16.mxu0 0
    %3156 = vmatpush1.bf16.msra.mxu0 0
    %3157 = vmatprep.subr.bf16.mxu0 0
    %3158 = vmatpush1.bf16.msra.mxu0 0
    %3159 = vmatprep.subr.bf16.mxu0 0
    %3160 = vmatpush1.bf16.msra.mxu0 0
    %3161 = vmatprep.subr.bf16.mxu0 0
    %3162 = vmatpush1.bf16.msra.mxu0 0
    %3163 = vmatprep.subr.bf16.mxu0 0
    %3164 = vmatpush1.bf16.msra.mxu0 0
    %3165 = vmatprep.subr.bf16.mxu0 0
    %3166 = vmatpush1.bf16.msra.mxu0 0
    %3167 = vmatprep.subr.bf16.mxu0 0
    %3168 = vmatpush1.bf16.msra.mxu0 0
    %3169 = vmatprep.subr.bf16.mxu0 0
    %3170 = vmatpush1.bf16.msra.mxu0 0
    %3171 = vmatprep.subr.bf16.mxu0 0
    %3172 = vmatpush1.bf16.msra.mxu0 0
    %3173 = vmatprep.subr.bf16.mxu0 0
    %3174 = vmatpush1.bf16.msra.mxu0 0
    %3175 = vmatprep.mubr.bf16.mxu0 0
    %3176 = vmatmul.mubr.bf16.gmra.mrb[0].mxu0 %v2496
    %v3177 = vpop.f32.mrb[0].mxu0
    %v3178 = vadd.f32 %v3135, %v3177
    %v3179 = vpop.f32.mrb[0].mxu0
    %v3180 = vadd.f32 %v3137, %v3179
    %v3181 = vpop.f32.mrb[0].mxu0
    %v3182 = vadd.f32 %v3139, %v3181
    %v3183 = vpop.f32.mrb[0].mxu0
    %v3184 = vadd.f32 %v3141, %v3183
    %3185 = vdwg.mxu0
    %v3186 = vmax.f32 %v2662, 0.0
    %v3187 = vmax.f32 %v2664, 0.0
    %v3188 = vmax.f32 %v2834, 0.0
    %v3189 = vmax.f32 %v2836, 0.0
    %v3190 = vmax.f32 %v3006, 0.0
    %v3191 = vmax.f32 %v3008, 0.0
    %v3192 = vmax.f32 %v3178, 0.0
    %v3193 = vmax.f32 %v3180, 0.0
    %v3194 = vmax.f32 %v2666, 0.0
    %v3195 = vmax.f32 %v2668, 0.0
    %v3196 = vmax.f32 %v2838, 0.0
    %v3197 = vmax.f32 %v2840, 0.0
    %v3198 = vmax.f32 %v3010, 0.0
    %v3199 = vmax.f32 %v3012, 0.0
    %v3200 = vmax.f32 %v3182, 0.0
    %v3201 = vmax.f32 %v3184, 0.0
    %v3202 = vpack.c.bf16 %v3194, %v3186
    %v3203 = vpack.c.bf16 %v3195, %v3187
    %v3204 = vpack.c.bf16 %v3196, %v3188
    %v3205 = vpack.c.bf16 %v3197, %v3189
    %v3206 = vpack.c.bf16 %v3198, %v3190
    %v3207 = vpack.c.bf16 %v3199, %v3191
    %v3208 = vpack.c.bf16 %v3200, %v3192
    %v3209 = vpack.c.bf16 %v3201, %v3193
    %v3210 = vld [vmem:[%s3] sm:$0xff]
    %v3211 = vld [vmem:[%s3 + $0x8] sm:$0xff]
    %v3212 = vld [vmem:[%s3 + $0x10] sm:$0xff]
    %v3213 = vld [vmem:[%s3 + $0x18] sm:$0xff]
    %v3214 = vld [vmem:[%s3 + $0x20] sm:$0xff]
    %v3215 = vld [vmem:[%s3 + $0x28] sm:$0xff]
    %v3216 = vld [vmem:[%s3 + $0x30] sm:$0xff]
    %v3217 = vld [vmem:[%s3 + $0x38] sm:$0xff]
    %v3218 = vld [vmem:[%s3 + $0x40] sm:$0xff]
    %v3219 = vld [vmem:[%s3 + $0x48] sm:$0xff]
    %v3220 = vld [vmem:[%s3 + $0x50] sm:$0xff]
    %v3221 = vld [vmem:[%s3 + $0x58] sm:$0xff]
    %v3222 = vld [vmem:[%s3 + $0x60] sm:$0xff]
    %v3223 = vld [vmem:[%s3 + $0x68] sm:$0xff]
    %v3224 = vld [vmem:[%s3 + $0x70] sm:$0xff]
    %v3225 = vld [vmem:[%s3 + $0x78] sm:$0xff]
    %v3226 = vld [vmem:[%s3 + $0x80] sm:$0xff]
    %v3227 = vld [vmem:[%s3 + $0x88] sm:$0xff]
    %v3228 = vld [vmem:[%s3 + $0x90] sm:$0xff]
    %v3229 = vld [vmem:[%s3 + $0x98] sm:$0xff]
    %v3230 = vld [vmem:[%s3 + $0xa0] sm:$0xff]
    %v3231 = vld [vmem:[%s3 + $0xa8] sm:$0xff]
    %v3232 = vld [vmem:[%s3 + $0xb0] sm:$0xff]
    %v3233 = vld [vmem:[%s3 + $0xb8] sm:$0xff]
    %v3234 = vld [vmem:[%s3 + $0xc0] sm:$0xff]
    %v3235 = vld [vmem:[%s3 + $0xc8] sm:$0xff]
    %v3236 = vld [vmem:[%s3 + $0xd0] sm:$0xff]
    %v3237 = vld [vmem:[%s3 + $0xd8] sm:$0xff]
    %v3238 = vld [vmem:[%s3 + $0xe0] sm:$0xff]
    %v3239 = vld [vmem:[%s3 + $0xe8] sm:$0xff]
    %v3240 = vld [vmem:[%s3 + $0xf0] sm:$0xff]
    %v3241 = vld [vmem:[%s3 + $0xf8] sm:$0xff]
    %v3242 = vld [vmem:[%s3 + $0x100] sm:$0xff]
    %v3243 = vld [vmem:[%s3 + $0x108] sm:$0xff]
    %v3244 = vld [vmem:[%s3 + $0x110] sm:$0xff]
    %v3245 = vld [vmem:[%s3 + $0x118] sm:$0xff]
    %v3246 = vld [vmem:[%s3 + $0x120] sm:$0xff]
    %v3247 = vld [vmem:[%s3 + $0x128] sm:$0xff]
    %v3248 = vld [vmem:[%s3 + $0x130] sm:$0xff]
    %v3249 = vld [vmem:[%s3 + $0x138] sm:$0xff]
    %v3250 = vld [vmem:[%s3 + $0x140] sm:$0xff]
    %v3251 = vld [vmem:[%s3 + $0x148] sm:$0xff]
    %v3252 = vld [vmem:[%s3 + $0x150] sm:$0xff]
    %v3253 = vld [vmem:[%s3 + $0x158] sm:$0xff]
    %v3254 = vld [vmem:[%s3 + $0x160] sm:$0xff]
    %v3255 = vld [vmem:[%s3 + $0x168] sm:$0xff]
    %v3256 = vld [vmem:[%s3 + $0x170] sm:$0xff]
    %v3257 = vld [vmem:[%s3 + $0x178] sm:$0xff]
    %v3258 = vld [vmem:[%s3 + $0x180] sm:$0xff]
    %v3259 = vld [vmem:[%s3 + $0x188] sm:$0xff]
    %v3260 = vld [vmem:[%s3 + $0x190] sm:$0xff]
    %v3261 = vld [vmem:[%s3 + $0x198] sm:$0xff]
    %v3262 = vld [vmem:[%s3 + $0x1a0] sm:$0xff]
    %v3263 = vld [vmem:[%s3 + $0x1a8] sm:$0xff]
    %v3264 = vld [vmem:[%s3 + $0x1b0] sm:$0xff]
    %v3265 = vld [vmem:[%s3 + $0x1b8] sm:$0xff]
    %v3266 = vld [vmem:[%s3 + $0x1c0] sm:$0xff]
    %v3267 = vld [vmem:[%s3 + $0x1c8] sm:$0xff]
    %v3268 = vld [vmem:[%s3 + $0x1d0] sm:$0xff]
    %v3269 = vld [vmem:[%s3 + $0x1d8] sm:$0xff]
    %v3270 = vld [vmem:[%s3 + $0x1e0] sm:$0xff]
    %v3271 = vld [vmem:[%s3 + $0x1e8] sm:$0xff]
    %v3272 = vld [vmem:[%s3 + $0x1f0] sm:$0xff]
    %v3273 = vld [vmem:[%s3 + $0x1f8] sm:$0xff]
    %v3274 = vld [vmem:[%s3 + $0x200] sm:$0xff]
    %v3275 = vld [vmem:[%s3 + $0x208] sm:$0xff]
    %v3276 = vld [vmem:[%s3 + $0x210] sm:$0xff]
    %v3277 = vld [vmem:[%s3 + $0x218] sm:$0xff]
    %v3278 = vld [vmem:[%s3 + $0x220] sm:$0xff]
    %v3279 = vld [vmem:[%s3 + $0x228] sm:$0xff]
    %v3280 = vld [vmem:[%s3 + $0x230] sm:$0xff]
    %v3281 = vld [vmem:[%s3 + $0x238] sm:$0xff]
    %v3282 = vld [vmem:[%s3 + $0x240] sm:$0xff]
    %v3283 = vld [vmem:[%s3 + $0x248] sm:$0xff]
    %v3284 = vld [vmem:[%s3 + $0x250] sm:$0xff]
    %v3285 = vld [vmem:[%s3 + $0x258] sm:$0xff]
    %v3286 = vld [vmem:[%s3 + $0x260] sm:$0xff]
    %v3287 = vld [vmem:[%s3 + $0x268] sm:$0xff]
    %v3288 = vld [vmem:[%s3 + $0x270] sm:$0xff]
    %v3289 = vld [vmem:[%s3 + $0x278] sm:$0xff]
    %v3290 = vld [vmem:[%s3 + $0x280] sm:$0xff]
    %v3291 = vld [vmem:[%s3 + $0x288] sm:$0xff]
    %v3292 = vld [vmem:[%s3 + $0x290] sm:$0xff]
    %v3293 = vld [vmem:[%s3 + $0x298] sm:$0xff]
    %v3294 = vld [vmem:[%s3 + $0x2a0] sm:$0xff]
    %v3295 = vld [vmem:[%s3 + $0x2a8] sm:$0xff]
    %v3296 = vld [vmem:[%s3 + $0x2b0] sm:$0xff]
    %v3297 = vld [vmem:[%s3 + $0x2b8] sm:$0xff]
    %v3298 = vld [vmem:[%s3 + $0x2c0] sm:$0xff]
    %v3299 = vld [vmem:[%s3 + $0x2c8] sm:$0xff]
    %v3300 = vld [vmem:[%s3 + $0x2d0] sm:$0xff]
    %v3301 = vld [vmem:[%s3 + $0x2d8] sm:$0xff]
    %v3302 = vld [vmem:[%s3 + $0x2e0] sm:$0xff]
    %v3303 = vld [vmem:[%s3 + $0x2e8] sm:$0xff]
    %v3304 = vld [vmem:[%s3 + $0x2f0] sm:$0xff]
    %v3305 = vld [vmem:[%s3 + $0x2f8] sm:$0xff]
    %v3306 = vld [vmem:[%s3 + $0x300] sm:$0xff]
    %v3307 = vld [vmem:[%s3 + $0x308] sm:$0xff]
    %v3308 = vld [vmem:[%s3 + $0x310] sm:$0xff]
    %v3309 = vld [vmem:[%s3 + $0x318] sm:$0xff]
    %v3310 = vld [vmem:[%s3 + $0x320] sm:$0xff]
    %v3311 = vld [vmem:[%s3 + $0x328] sm:$0xff]
    %v3312 = vld [vmem:[%s3 + $0x330] sm:$0xff]
    %v3313 = vld [vmem:[%s3 + $0x338] sm:$0xff]
    %v3314 = vld [vmem:[%s3 + $0x340] sm:$0xff]
    %v3315 = vld [vmem:[%s3 + $0x348] sm:$0xff]
    %v3316 = vld [vmem:[%s3 + $0x350] sm:$0xff]
    %v3317 = vld [vmem:[%s3 + $0x358] sm:$0xff]
    %v3318 = vld [vmem:[%s3 + $0x360] sm:$0xff]
    %v3319 = vld [vmem:[%s3 + $0x368] sm:$0xff]
    %v3320 = vld [vmem:[%s3 + $0x370] sm:$0xff]
    %v3321 = vld [vmem:[%s3 + $0x378] sm:$0xff]
    %v3322 = vld [vmem:[%s3 + $0x380] sm:$0xff]
    %v3323 = vld [vmem:[%s3 + $0x388] sm:$0xff]
    %v3324 = vld [vmem:[%s3 + $0x390] sm:$0xff]
    %v3325 = vld [vmem:[%s3 + $0x398] sm:$0xff]
    %v3326 = vld [vmem:[%s3 + $0x3a0] sm:$0xff]
    %v3327 = vld [vmem:[%s3 + $0x3a8] sm:$0xff]
    %v3328 = vld [vmem:[%s3 + $0x3b0] sm:$0xff]
    %v3329 = vld [vmem:[%s3 + $0x3b8] sm:$0xff]
    %v3330 = vld [vmem:[%s3 + $0x3c0] sm:$0xff]
    %v3331 = vld [vmem:[%s3 + $0x3c8] sm:$0xff]
    %v3332 = vld [vmem:[%s3 + $0x3d0] sm:$0xff]
    %v3333 = vld [vmem:[%s3 + $0x3d8] sm:$0xff]
    %v3334 = vld [vmem:[%s3 + $0x3e0] sm:$0xff]
    %v3335 = vld [vmem:[%s3 + $0x3e8] sm:$0xff]
    %v3336 = vld [vmem:[%s3 + $0x3f0] sm:$0xff]
    %v3337 = vld [vmem:[%s3 + $0x3f8] sm:$0xff]
    %v3338 = vld [vmem:[%s3 + $0x400] sm:$0xff]
    %v3339 = vld [vmem:[%s3 + $0x408] sm:$0xff]
    %v3340 = vld [vmem:[%s3 + $0x410] sm:$0xff]
    %v3341 = vld [vmem:[%s3 + $0x418] sm:$0xff]
    %v3342 = vld [vmem:[%s3 + $0x420] sm:$0xff]
    %v3343 = vld [vmem:[%s3 + $0x428] sm:$0xff]
    %v3344 = vld [vmem:[%s3 + $0x430] sm:$0xff]
    %v3345 = vld [vmem:[%s3 + $0x438] sm:$0xff]
    %v3346 = vld [vmem:[%s3 + $0x440] sm:$0xff]
    %v3347 = vld [vmem:[%s3 + $0x448] sm:$0xff]
    %v3348 = vld [vmem:[%s3 + $0x450] sm:$0xff]
    %v3349 = vld [vmem:[%s3 + $0x458] sm:$0xff]
    %v3350 = vld [vmem:[%s3 + $0x460] sm:$0xff]
    %v3351 = vld [vmem:[%s3 + $0x468] sm:$0xff]
    %v3352 = vld [vmem:[%s3 + $0x470] sm:$0xff]
    %v3353 = vld [vmem:[%s3 + $0x478] sm:$0xff]
    %v3354 = vld [vmem:[%s3 + $0x480] sm:$0xff]
    %v3355 = vld [vmem:[%s3 + $0x488] sm:$0xff]
    %v3356 = vld [vmem:[%s3 + $0x490] sm:$0xff]
    %v3357 = vld [vmem:[%s3 + $0x498] sm:$0xff]
    %v3358 = vld [vmem:[%s3 + $0x4a0] sm:$0xff]
    %v3359 = vld [vmem:[%s3 + $0x4a8] sm:$0xff]
    %v3360 = vld [vmem:[%s3 + $0x4b0] sm:$0xff]
    %v3361 = vld [vmem:[%s3 + $0x4b8] sm:$0xff]
    %v3362 = vld [vmem:[%s3 + $0x4c0] sm:$0xff]
    %v3363 = vld [vmem:[%s3 + $0x4c8] sm:$0xff]
    %v3364 = vld [vmem:[%s3 + $0x4d0] sm:$0xff]
    %v3365 = vld [vmem:[%s3 + $0x4d8] sm:$0xff]
    %v3366 = vld [vmem:[%s3 + $0x4e0] sm:$0xff]
    %v3367 = vld [vmem:[%s3 + $0x4e8] sm:$0xff]
    %v3368 = vld [vmem:[%s3 + $0x4f0] sm:$0xff]
    %v3369 = vld [vmem:[%s3 + $0x4f8] sm:$0xff]
    %v3370 = vld [vmem:[%s3 + $0x500] sm:$0xff]
    %v3371 = vld [vmem:[%s3 + $0x508] sm:$0xff]
    %v3372 = vld [vmem:[%s3 + $0x510] sm:$0xff]
    %v3373 = vld [vmem:[%s3 + $0x518] sm:$0xff]
    %v3374 = vld [vmem:[%s3 + $0x520] sm:$0xff]
    %v3375 = vld [vmem:[%s3 + $0x528] sm:$0xff]
    %v3376 = vld [vmem:[%s3 + $0x530] sm:$0xff]
    %v3377 = vld [vmem:[%s3 + $0x538] sm:$0xff]
    %v3378 = vld [vmem:[%s3 + $0x540] sm:$0xff]
    %v3379 = vld [vmem:[%s3 + $0x548] sm:$0xff]
    %v3380 = vld [vmem:[%s3 + $0x550] sm:$0xff]
    %v3381 = vld [vmem:[%s3 + $0x558] sm:$0xff]
    %v3382 = vld [vmem:[%s3 + $0x560] sm:$0xff]
    %v3383 = vld [vmem:[%s3 + $0x568] sm:$0xff]
    %v3384 = vld [vmem:[%s3 + $0x570] sm:$0xff]
    %v3385 = vld [vmem:[%s3 + $0x578] sm:$0xff]
    %v3386 = vld [vmem:[%s3 + $0x580] sm:$0xff]
    %v3387 = vld [vmem:[%s3 + $0x588] sm:$0xff]
    %v3388 = vld [vmem:[%s3 + $0x590] sm:$0xff]
    %v3389 = vld [vmem:[%s3 + $0x598] sm:$0xff]
    %v3390 = vld [vmem:[%s3 + $0x5a0] sm:$0xff]
    %v3391 = vld [vmem:[%s3 + $0x5a8] sm:$0xff]
    %v3392 = vld [vmem:[%s3 + $0x5b0] sm:$0xff]
    %v3393 = vld [vmem:[%s3 + $0x5b8] sm:$0xff]
    %v3394 = vld [vmem:[%s3 + $0x5c0] sm:$0xff]
    %v3395 = vld [vmem:[%s3 + $0x5c8] sm:$0xff]
    %v3396 = vld [vmem:[%s3 + $0x5d0] sm:$0xff]
    %v3397 = vld [vmem:[%s3 + $0x5d8] sm:$0xff]
    %v3398 = vld [vmem:[%s3 + $0x5e0] sm:$0xff]
    %v3399 = vld [vmem:[%s3 + $0x5e8] sm:$0xff]
    %v3400 = vld [vmem:[%s3 + $0x5f0] sm:$0xff]
    %v3401 = vld [vmem:[%s3 + $0x5f8] sm:$0xff]
    %v3402 = vld [vmem:[%s3 + $0x600] sm:$0xff]
    %v3403 = vld [vmem:[%s3 + $0x608] sm:$0xff]
    %v3404 = vld [vmem:[%s3 + $0x610] sm:$0xff]
    %v3405 = vld [vmem:[%s3 + $0x618] sm:$0xff]
    %v3406 = vld [vmem:[%s3 + $0x620] sm:$0xff]
    %v3407 = vld [vmem:[%s3 + $0x628] sm:$0xff]
    %v3408 = vld [vmem:[%s3 + $0x630] sm:$0xff]
    %v3409 = vld [vmem:[%s3 + $0x638] sm:$0xff]
    %v3410 = vld [vmem:[%s3 + $0x640] sm:$0xff]
    %v3411 = vld [vmem:[%s3 + $0x648] sm:$0xff]
    %v3412 = vld [vmem:[%s3 + $0x650] sm:$0xff]
    %v3413 = vld [vmem:[%s3 + $0x658] sm:$0xff]
    %v3414 = vld [vmem:[%s3 + $0x660] sm:$0xff]
    %v3415 = vld [vmem:[%s3 + $0x668] sm:$0xff]
    %v3416 = vld [vmem:[%s3 + $0x670] sm:$0xff]
    %v3417 = vld [vmem:[%s3 + $0x678] sm:$0xff]
    %v3418 = vld [vmem:[%s3 + $0x680] sm:$0xff]
    %v3419 = vld [vmem:[%s3 + $0x688] sm:$0xff]
    %v3420 = vld [vmem:[%s3 + $0x690] sm:$0xff]
    %v3421 = vld [vmem:[%s3 + $0x698] sm:$0xff]
    %v3422 = vld [vmem:[%s3 + $0x6a0] sm:$0xff]
    %v3423 = vld [vmem:[%s3 + $0x6a8] sm:$0xff]
    %v3424 = vld [vmem:[%s3 + $0x6b0] sm:$0xff]
    %v3425 = vld [vmem:[%s3 + $0x6b8] sm:$0xff]
    %v3426 = vld [vmem:[%s3 + $0x6c0] sm:$0xff]
    %v3427 = vld [vmem:[%s3 + $0x6c8] sm:$0xff]
    %v3428 = vld [vmem:[%s3 + $0x6d0] sm:$0xff]
    %v3429 = vld [vmem:[%s3 + $0x6d8] sm:$0xff]
    %v3430 = vld [vmem:[%s3 + $0x6e0] sm:$0xff]
    %v3431 = vld [vmem:[%s3 + $0x6e8] sm:$0xff]
    %v3432 = vld [vmem:[%s3 + $0x6f0] sm:$0xff]
    %v3433 = vld [vmem:[%s3 + $0x6f8] sm:$0xff]
    %v3434 = vld [vmem:[%s3 + $0x700] sm:$0xff]
    %v3435 = vld [vmem:[%s3 + $0x708] sm:$0xff]
    %v3436 = vld [vmem:[%s3 + $0x710] sm:$0xff]
    %v3437 = vld [vmem:[%s3 + $0x718] sm:$0xff]
    %v3438 = vld [vmem:[%s3 + $0x720] sm:$0xff]
    %v3439 = vld [vmem:[%s3 + $0x728] sm:$0xff]
    %v3440 = vld [vmem:[%s3 + $0x730] sm:$0xff]
    %v3441 = vld [vmem:[%s3 + $0x738] sm:$0xff]
    %v3442 = vld [vmem:[%s3 + $0x740] sm:$0xff]
    %v3443 = vld [vmem:[%s3 + $0x748] sm:$0xff]
    %v3444 = vld [vmem:[%s3 + $0x750] sm:$0xff]
    %v3445 = vld [vmem:[%s3 + $0x758] sm:$0xff]
    %v3446 = vld [vmem:[%s3 + $0x760] sm:$0xff]
    %v3447 = vld [vmem:[%s3 + $0x768] sm:$0xff]
    %v3448 = vld [vmem:[%s3 + $0x770] sm:$0xff]
    %v3449 = vld [vmem:[%s3 + $0x778] sm:$0xff]
    %v3450 = vld [vmem:[%s3 + $0x780] sm:$0xff]
    %v3451 = vld [vmem:[%s3 + $0x788] sm:$0xff]
    %v3452 = vld [vmem:[%s3 + $0x790] sm:$0xff]
    %v3453 = vld [vmem:[%s3 + $0x798] sm:$0xff]
    %v3454 = vld [vmem:[%s3 + $0x7a0] sm:$0xff]
    %v3455 = vld [vmem:[%s3 + $0x7a8] sm:$0xff]
    %v3456 = vld [vmem:[%s3 + $0x7b0] sm:$0xff]
    %v3457 = vld [vmem:[%s3 + $0x7b8] sm:$0xff]
    %v3458 = vld [vmem:[%s3 + $0x7c0] sm:$0xff]
    %v3459 = vld [vmem:[%s3 + $0x7c8] sm:$0xff]
    %v3460 = vld [vmem:[%s3 + $0x7d0] sm:$0xff]
    %v3461 = vld [vmem:[%s3 + $0x7d8] sm:$0xff]
    %v3462 = vld [vmem:[%s3 + $0x7e0] sm:$0xff]
    %v3463 = vld [vmem:[%s3 + $0x7e8] sm:$0xff]
    %v3464 = vld [vmem:[%s3 + $0x7f0] sm:$0xff]
    %v3465 = vld [vmem:[%s3 + $0x7f8] sm:$0xff]
    %v3466 = vld [vmem:[%s3 + $0x800] sm:$0xff]
    %v3467 = vld [vmem:[%s3 + $0x808] sm:$0xff]
    %v3468 = vld [vmem:[%s3 + $0x810] sm:$0xff]
    %v3469 = vld [vmem:[%s3 + $0x818] sm:$0xff]
    %v3470 = vld [vmem:[%s3 + $0x820] sm:$0xff]
    %v3471 = vld [vmem:[%s3 + $0x828] sm:$0xff]
    %v3472 = vld [vmem:[%s3 + $0x830] sm:$0xff]
    %v3473 = vld [vmem:[%s3 + $0x838] sm:$0xff]
    %v3474 = vld [vmem:[%s3 + $0x840] sm:$0xff]
    %v3475 = vld [vmem:[%s3 + $0x848] sm:$0xff]
    %v3476 = vld [vmem:[%s3 + $0x850] sm:$0xff]
    %v3477 = vld [vmem:[%s3 + $0x858] sm:$0xff]
    %v3478 = vld [vmem:[%s3 + $0x860] sm:$0xff]
    %v3479 = vld [vmem:[%s3 + $0x868] sm:$0xff]
    %v3480 = vld [vmem:[%s3 + $0x870] sm:$0xff]
    %v3481 = vld [vmem:[%s3 + $0x878] sm:$0xff]
    %v3482 = vld [vmem:[%s3 + $0x880] sm:$0xff]
    %v3483 = vld [vmem:[%s3 + $0x888] sm:$0xff]
    %v3484 = vld [vmem:[%s3 + $0x890] sm:$0xff]
    %v3485 = vld [vmem:[%s3 + $0x898] sm:$0xff]
    %v3486 = vld [vmem:[%s3 + $0x8a0] sm:$0xff]
    %v3487 = vld [vmem:[%s3 + $0x8a8] sm:$0xff]
    %v3488 = vld [vmem:[%s3 + $0x8b0] sm:$0xff]
    %v3489 = vld [vmem:[%s3 + $0x8b8] sm:$0xff]
    %v3490 = vld [vmem:[%s3 + $0x8c0] sm:$0xff]
    %v3491 = vld [vmem:[%s3 + $0x8c8] sm:$0xff]
    %v3492 = vld [vmem:[%s3 + $0x8d0] sm:$0xff]
    %v3493 = vld [vmem:[%s3 + $0x8d8] sm:$0xff]
    %v3494 = vld [vmem:[%s3 + $0x8e0] sm:$0xff]
    %v3495 = vld [vmem:[%s3 + $0x8e8] sm:$0xff]
    %v3496 = vld [vmem:[%s3 + $0x8f0] sm:$0xff]
    %v3497 = vld [vmem:[%s3 + $0x8f8] sm:$0xff]
    %v3498 = vld [vmem:[%s3 + $0x900] sm:$0xff]
    %v3499 = vld [vmem:[%s3 + $0x908] sm:$0xff]
    %v3500 = vld [vmem:[%s3 + $0x910] sm:$0xff]
    %v3501 = vld [vmem:[%s3 + $0x918] sm:$0xff]
    %v3502 = vld [vmem:[%s3 + $0x920] sm:$0xff]
    %v3503 = vld [vmem:[%s3 + $0x928] sm:$0xff]
    %v3504 = vld [vmem:[%s3 + $0x930] sm:$0xff]
    %v3505 = vld [vmem:[%s3 + $0x938] sm:$0xff]
    %v3506 = vld [vmem:[%s3 + $0x940] sm:$0xff]
    %v3507 = vld [vmem:[%s3 + $0x948] sm:$0xff]
    %v3508 = vld [vmem:[%s3 + $0x950] sm:$0xff]
    %v3509 = vld [vmem:[%s3 + $0x958] sm:$0xff]
    %v3510 = vld [vmem:[%s3 + $0x960] sm:$0xff]
    %v3511 = vld [vmem:[%s3 + $0x968] sm:$0xff]
    %v3512 = vld [vmem:[%s3 + $0x970] sm:$0xff]
    %v3513 = vld [vmem:[%s3 + $0x978] sm:$0xff]
    %v3514 = vld [vmem:[%s3 + $0x980] sm:$0xff]
    %v3515 = vld [vmem:[%s3 + $0x988] sm:$0xff]
    %v3516 = vld [vmem:[%s3 + $0x990] sm:$0xff]
    %v3517 = vld [vmem:[%s3 + $0x998] sm:$0xff]
    %v3518 = vld [vmem:[%s3 + $0x9a0] sm:$0xff]
    %v3519 = vld [vmem:[%s3 + $0x9a8] sm:$0xff]
    %v3520 = vld [vmem:[%s3 + $0x9b0] sm:$0xff]
    %v3521 = vld [vmem:[%s3 + $0x9b8] sm:$0xff]
    %v3522 = vld [vmem:[%s3 + $0x9c0] sm:$0xff]
    %v3523 = vld [vmem:[%s3 + $0x9c8] sm:$0xff]
    %v3524 = vld [vmem:[%s3 + $0x9d0] sm:$0xff]
    %v3525 = vld [vmem:[%s3 + $0x9d8] sm:$0xff]
    %v3526 = vld [vmem:[%s3 + $0x9e0] sm:$0xff]
    %v3527 = vld [vmem:[%s3 + $0x9e8] sm:$0xff]
    %v3528 = vld [vmem:[%s3 + $0x9f0] sm:$0xff]
    %v3529 = vld [vmem:[%s3 + $0x9f8] sm:$0xff]
    %v3530 = vld [vmem:[%s3 + $0xa00] sm:$0xff]
    %v3531 = vld [vmem:[%s3 + $0xa08] sm:$0xff]
    %v3532 = vld [vmem:[%s3 + $0xa10] sm:$0xff]
    %v3533 = vld [vmem:[%s3 + $0xa18] sm:$0xff]
    %v3534 = vld [vmem:[%s3 + $0xa20] sm:$0xff]
    %v3535 = vld [vmem:[%s3 + $0xa28] sm:$0xff]
    %v3536 = vld [vmem:[%s3 + $0xa30] sm:$0xff]
    %v3537 = vld [vmem:[%s3 + $0xa38] sm:$0xff]
    %v3538 = vld [vmem:[%s3 + $0xa40] sm:$0xff]
    %v3539 = vld [vmem:[%s3 + $0xa48] sm:$0xff]
    %v3540 = vld [vmem:[%s3 + $0xa50] sm:$0xff]
    %v3541 = vld [vmem:[%s3 + $0xa58] sm:$0xff]
    %v3542 = vld [vmem:[%s3 + $0xa60] sm:$0xff]
    %v3543 = vld [vmem:[%s3 + $0xa68] sm:$0xff]
    %v3544 = vld [vmem:[%s3 + $0xa70] sm:$0xff]
    %v3545 = vld [vmem:[%s3 + $0xa78] sm:$0xff]
    %v3546 = vld [vmem:[%s3 + $0xa80] sm:$0xff]
    %v3547 = vld [vmem:[%s3 + $0xa88] sm:$0xff]
    %v3548 = vld [vmem:[%s3 + $0xa90] sm:$0xff]
    %v3549 = vld [vmem:[%s3 + $0xa98] sm:$0xff]
    %v3550 = vld [vmem:[%s3 + $0xaa0] sm:$0xff]
    %v3551 = vld [vmem:[%s3 + $0xaa8] sm:$0xff]
    %v3552 = vld [vmem:[%s3 + $0xab0] sm:$0xff]
    %v3553 = vld [vmem:[%s3 + $0xab8] sm:$0xff]
    %v3554 = vld [vmem:[%s3 + $0xac0] sm:$0xff]
    %v3555 = vld [vmem:[%s3 + $0xac8] sm:$0xff]
    %v3556 = vld [vmem:[%s3 + $0xad0] sm:$0xff]
    %v3557 = vld [vmem:[%s3 + $0xad8] sm:$0xff]
    %v3558 = vld [vmem:[%s3 + $0xae0] sm:$0xff]
    %v3559 = vld [vmem:[%s3 + $0xae8] sm:$0xff]
    %v3560 = vld [vmem:[%s3 + $0xaf0] sm:$0xff]
    %v3561 = vld [vmem:[%s3 + $0xaf8] sm:$0xff]
    %v3562 = vld [vmem:[%s3 + $0xb00] sm:$0xff]
    %v3563 = vld [vmem:[%s3 + $0xb08] sm:$0xff]
    %v3564 = vld [vmem:[%s3 + $0xb10] sm:$0xff]
    %v3565 = vld [vmem:[%s3 + $0xb18] sm:$0xff]
    %v3566 = vld [vmem:[%s3 + $0xb20] sm:$0xff]
    %v3567 = vld [vmem:[%s3 + $0xb28] sm:$0xff]
    %v3568 = vld [vmem:[%s3 + $0xb30] sm:$0xff]
    %v3569 = vld [vmem:[%s3 + $0xb38] sm:$0xff]
    %v3570 = vld [vmem:[%s3 + $0xb40] sm:$0xff]
    %v3571 = vld [vmem:[%s3 + $0xb48] sm:$0xff]
    %v3572 = vld [vmem:[%s3 + $0xb50] sm:$0xff]
    %v3573 = vld [vmem:[%s3 + $0xb58] sm:$0xff]
    %v3574 = vld [vmem:[%s3 + $0xb60] sm:$0xff]
    %v3575 = vld [vmem:[%s3 + $0xb68] sm:$0xff]
    %v3576 = vld [vmem:[%s3 + $0xb70] sm:$0xff]
    %v3577 = vld [vmem:[%s3 + $0xb78] sm:$0xff]
    %v3578 = vld [vmem:[%s3 + $0xb80] sm:$0xff]
    %v3579 = vld [vmem:[%s3 + $0xb88] sm:$0xff]
    %v3580 = vld [vmem:[%s3 + $0xb90] sm:$0xff]
    %v3581 = vld [vmem:[%s3 + $0xb98] sm:$0xff]
    %v3582 = vld [vmem:[%s3 + $0xba0] sm:$0xff]
    %v3583 = vld [vmem:[%s3 + $0xba8] sm:$0xff]
    %v3584 = vld [vmem:[%s3 + $0xbb0] sm:$0xff]
    %v3585 = vld [vmem:[%s3 + $0xbb8] sm:$0xff]
    %v3586 = vld [vmem:[%s3 + $0xbc0] sm:$0xff]
    %v3587 = vld [vmem:[%s3 + $0xbc8] sm:$0xff]
    %v3588 = vld [vmem:[%s3 + $0xbd0] sm:$0xff]
    %v3589 = vld [vmem:[%s3 + $0xbd8] sm:$0xff]
    %v3590 = vld [vmem:[%s3 + $0xbe0] sm:$0xff]
    %v3591 = vld [vmem:[%s3 + $0xbe8] sm:$0xff]
    %v3592 = vld [vmem:[%s3 + $0xbf0] sm:$0xff]
    %v3593 = vld [vmem:[%s3 + $0xbf8] sm:$0xff]
    %v3594 = vld [vmem:[%s3 + $0xc00] sm:$0xff]
    %v3595 = vld [vmem:[%s3 + $0xc08] sm:$0xff]
    %v3596 = vld [vmem:[%s3 + $0xc10] sm:$0xff]
    %v3597 = vld [vmem:[%s3 + $0xc18] sm:$0xff]
    %v3598 = vld [vmem:[%s3 + $0xc20] sm:$0xff]
    %v3599 = vld [vmem:[%s3 + $0xc28] sm:$0xff]
    %v3600 = vld [vmem:[%s3 + $0xc30] sm:$0xff]
    %v3601 = vld [vmem:[%s3 + $0xc38] sm:$0xff]
    %v3602 = vld [vmem:[%s3 + $0xc40] sm:$0xff]
    %v3603 = vld [vmem:[%s3 + $0xc48] sm:$0xff]
    %v3604 = vld [vmem:[%s3 + $0xc50] sm:$0xff]
    %v3605 = vld [vmem:[%s3 + $0xc58] sm:$0xff]
    %v3606 = vld [vmem:[%s3 + $0xc60] sm:$0xff]
    %v3607 = vld [vmem:[%s3 + $0xc68] sm:$0xff]
    %v3608 = vld [vmem:[%s3 + $0xc70] sm:$0xff]
    %v3609 = vld [vmem:[%s3 + $0xc78] sm:$0xff]
    %v3610 = vld [vmem:[%s3 + $0xc80] sm:$0xff]
    %v3611 = vld [vmem:[%s3 + $0xc88] sm:$0xff]
    %v3612 = vld [vmem:[%s3 + $0xc90] sm:$0xff]
    %v3613 = vld [vmem:[%s3 + $0xc98] sm:$0xff]
    %v3614 = vld [vmem:[%s3 + $0xca0] sm:$0xff]
    %v3615 = vld [vmem:[%s3 + $0xca8] sm:$0xff]
    %v3616 = vld [vmem:[%s3 + $0xcb0] sm:$0xff]
    %v3617 = vld [vmem:[%s3 + $0xcb8] sm:$0xff]
    %v3618 = vld [vmem:[%s3 + $0xcc0] sm:$0xff]
    %v3619 = vld [vmem:[%s3 + $0xcc8] sm:$0xff]
    %v3620 = vld [vmem:[%s3 + $0xcd0] sm:$0xff]
    %v3621 = vld [vmem:[%s3 + $0xcd8] sm:$0xff]
    %v3622 = vld [vmem:[%s3 + $0xce0] sm:$0xff]
    %v3623 = vld [vmem:[%s3 + $0xce8] sm:$0xff]
    %v3624 = vld [vmem:[%s3 + $0xcf0] sm:$0xff]
    %v3625 = vld [vmem:[%s3 + $0xcf8] sm:$0xff]
    %v3626 = vld [vmem:[%s3 + $0xd00] sm:$0xff]
    %v3627 = vld [vmem:[%s3 + $0xd08] sm:$0xff]
    %v3628 = vld [vmem:[%s3 + $0xd10] sm:$0xff]
    %v3629 = vld [vmem:[%s3 + $0xd18] sm:$0xff]
    %v3630 = vld [vmem:[%s3 + $0xd20] sm:$0xff]
    %v3631 = vld [vmem:[%s3 + $0xd28] sm:$0xff]
    %v3632 = vld [vmem:[%s3 + $0xd30] sm:$0xff]
    %v3633 = vld [vmem:[%s3 + $0xd38] sm:$0xff]
    %v3634 = vld [vmem:[%s3 + $0xd40] sm:$0xff]
    %v3635 = vld [vmem:[%s3 + $0xd48] sm:$0xff]
    %v3636 = vld [vmem:[%s3 + $0xd50] sm:$0xff]
    %v3637 = vld [vmem:[%s3 + $0xd58] sm:$0xff]
    %v3638 = vld [vmem:[%s3 + $0xd60] sm:$0xff]
    %v3639 = vld [vmem:[%s3 + $0xd68] sm:$0xff]
    %v3640 = vld [vmem:[%s3 + $0xd70] sm:$0xff]
    %v3641 = vld [vmem:[%s3 + $0xd78] sm:$0xff]
    %v3642 = vld [vmem:[%s3 + $0xd80] sm:$0xff]
    %v3643 = vld [vmem:[%s3 + $0xd88] sm:$0xff]
    %v3644 = vld [vmem:[%s3 + $0xd90] sm:$0xff]
    %v3645 = vld [vmem:[%s3 + $0xd98] sm:$0xff]
    %v3646 = vld [vmem:[%s3 + $0xda0] sm:$0xff]
    %v3647 = vld [vmem:[%s3 + $0xda8] sm:$0xff]
    %v3648 = vld [vmem:[%s3 + $0xdb0] sm:$0xff]
    %v3649 = vld [vmem:[%s3 + $0xdb8] sm:$0xff]
    %v3650 = vld [vmem:[%s3 + $0xdc0] sm:$0xff]
    %v3651 = vld [vmem:[%s3 + $0xdc8] sm:$0xff]
    %v3652 = vld [vmem:[%s3 + $0xdd0] sm:$0xff]
    %v3653 = vld [vmem:[%s3 + $0xdd8] sm:$0xff]
    %v3654 = vld [vmem:[%s3 + $0xde0] sm:$0xff]
    %v3655 = vld [vmem:[%s3 + $0xde8] sm:$0xff]
    %v3656 = vld [vmem:[%s3 + $0xdf0] sm:$0xff]
    %v3657 = vld [vmem:[%s3 + $0xdf8] sm:$0xff]
    %v3658 = vld [vmem:[%s3 + $0xe00] sm:$0xff]
    %v3659 = vld [vmem:[%s3 + $0xe08] sm:$0xff]
    %v3660 = vld [vmem:[%s3 + $0xe10] sm:$0xff]
    %v3661 = vld [vmem:[%s3 + $0xe18] sm:$0xff]
    %v3662 = vld [vmem:[%s3 + $0xe20] sm:$0xff]
    %v3663 = vld [vmem:[%s3 + $0xe28] sm:$0xff]
    %v3664 = vld [vmem:[%s3 + $0xe30] sm:$0xff]
    %v3665 = vld [vmem:[%s3 + $0xe38] sm:$0xff]
    %v3666 = vld [vmem:[%s3 + $0xe40] sm:$0xff]
    %v3667 = vld [vmem:[%s3 + $0xe48] sm:$0xff]
    %v3668 = vld [vmem:[%s3 + $0xe50] sm:$0xff]
    %v3669 = vld [vmem:[%s3 + $0xe58] sm:$0xff]
    %v3670 = vld [vmem:[%s3 + $0xe60] sm:$0xff]
    %v3671 = vld [vmem:[%s3 + $0xe68] sm:$0xff]
    %v3672 = vld [vmem:[%s3 + $0xe70] sm:$0xff]
    %v3673 = vld [vmem:[%s3 + $0xe78] sm:$0xff]
    %v3674 = vld [vmem:[%s3 + $0xe80] sm:$0xff]
    %v3675 = vld [vmem:[%s3 + $0xe88] sm:$0xff]
    %v3676 = vld [vmem:[%s3 + $0xe90] sm:$0xff]
    %v3677 = vld [vmem:[%s3 + $0xe98] sm:$0xff]
    %v3678 = vld [vmem:[%s3 + $0xea0] sm:$0xff]
    %v3679 = vld [vmem:[%s3 + $0xea8] sm:$0xff]
    %v3680 = vld [vmem:[%s3 + $0xeb0] sm:$0xff]
    %v3681 = vld [vmem:[%s3 + $0xeb8] sm:$0xff]
    %v3682 = vld [vmem:[%s3 + $0xec0] sm:$0xff]
    %v3683 = vld [vmem:[%s3 + $0xec8] sm:$0xff]
    %v3684 = vld [vmem:[%s3 + $0xed0] sm:$0xff]
    %v3685 = vld [vmem:[%s3 + $0xed8] sm:$0xff]
    %v3686 = vld [vmem:[%s3 + $0xee0] sm:$0xff]
    %v3687 = vld [vmem:[%s3 + $0xee8] sm:$0xff]
    %v3688 = vld [vmem:[%s3 + $0xef0] sm:$0xff]
    %v3689 = vld [vmem:[%s3 + $0xef8] sm:$0xff]
    %v3690 = vld [vmem:[%s3 + $0xf00] sm:$0xff]
    %v3691 = vld [vmem:[%s3 + $0xf08] sm:$0xff]
    %v3692 = vld [vmem:[%s3 + $0xf10] sm:$0xff]
    %v3693 = vld [vmem:[%s3 + $0xf18] sm:$0xff]
    %v3694 = vld [vmem:[%s3 + $0xf20] sm:$0xff]
    %v3695 = vld [vmem:[%s3 + $0xf28] sm:$0xff]
    %v3696 = vld [vmem:[%s3 + $0xf30] sm:$0xff]
    %v3697 = vld [vmem:[%s3 + $0xf38] sm:$0xff]
    %v3698 = vld [vmem:[%s3 + $0xf40] sm:$0xff]
    %v3699 = vld [vmem:[%s3 + $0xf48] sm:$0xff]
    %v3700 = vld [vmem:[%s3 + $0xf50] sm:$0xff]
    %v3701 = vld [vmem:[%s3 + $0xf58] sm:$0xff]
    %v3702 = vld [vmem:[%s3 + $0xf60] sm:$0xff]
    %v3703 = vld [vmem:[%s3 + $0xf68] sm:$0xff]
    %v3704 = vld [vmem:[%s3 + $0xf70] sm:$0xff]
    %v3705 = vld [vmem:[%s3 + $0xf78] sm:$0xff]
    %v3706 = vld [vmem:[%s3 + $0xf80] sm:$0xff]
    %v3707 = vld [vmem:[%s3 + $0xf88] sm:$0xff]
    %v3708 = vld [vmem:[%s3 + $0xf90] sm:$0xff]
    %v3709 = vld [vmem:[%s3 + $0xf98] sm:$0xff]
    %v3710 = vld [vmem:[%s3 + $0xfa0] sm:$0xff]
    %v3711 = vld [vmem:[%s3 + $0xfa8] sm:$0xff]
    %v3712 = vld [vmem:[%s3 + $0xfb0] sm:$0xff]
    %v3713 = vld [vmem:[%s3 + $0xfb8] sm:$0xff]
    %v3714 = vld [vmem:[%s3 + $0xfc0] sm:$0xff]
    %v3715 = vld [vmem:[%s3 + $0xfc8] sm:$0xff]
    %v3716 = vld [vmem:[%s3 + $0xfd0] sm:$0xff]
    %v3717 = vld [vmem:[%s3 + $0xfd8] sm:$0xff]
    %v3718 = vld [vmem:[%s3 + $0xfe0] sm:$0xff]
    %v3719 = vld [vmem:[%s3 + $0xfe8] sm:$0xff]
    %v3720 = vld [vmem:[%s3 + $0xff0] sm:$0xff]
    %v3721 = vld [vmem:[%s3 + $0xff8] sm:$0xff]
    %v3722 = vld [vmem:[%s4] sm:$0xff]
    %v3724 = vlaneseq
    %v3725 = vshrl.u32 %v3724, 7
    %v3726 = vsub.s32 0, %v3725
    %v3727 = vrot.slane %v3722, %v3726
    %v3728 = vlaneseq
    %v3729 = vshrl.u32 %v3728, 7
    %v3730 = vsub.s32 1, %v3729
    %v3731 = vrot.slane %v3722, %v3730
    %v3732 = vlaneseq
    %v3733 = vshrl.u32 %v3732, 7
    %v3734 = vsub.s32 2, %v3733
    %v3735 = vrot.slane %v3722, %v3734
    %v3736 = vlaneseq
    %v3737 = vshrl.u32 %v3736, 7
    %v3738 = vsub.s32 3, %v3737
    %v3739 = vrot.slane %v3722, %v3738
    %v3740 = vlaneseq
    %v3741 = vshrl.u32 %v3740, 7
    %v3742 = vsub.s32 4, %v3741
    %v3743 = vrot.slane %v3722, %v3742
    %v3744 = vlaneseq
    %v3745 = vshrl.u32 %v3744, 7
    %v3746 = vsub.s32 5, %v3745
    %v3747 = vrot.slane %v3722, %v3746
    %v3748 = vlaneseq
    %v3749 = vshrl.u32 %v3748, 7
    %v3750 = vsub.s32 6, %v3749
    %v3751 = vrot.slane %v3722, %v3750
    %v3752 = vlaneseq
    %v3753 = vshrl.u32 %v3752, 7
    %v3754 = vsub.s32 7, %v3753
    %v3755 = vrot.slane %v3722, %v3754
    %v4276 = vunpack.c.l.b16 %v3210
    %v4277 = vunpack.c.h.b16 %v3210
    %v4278 = vunpack.c.l.b16 %v3211
    %v4279 = vunpack.c.h.b16 %v3211
    %v4280 = vunpack.c.l.b16 %v3212
    %v4281 = vunpack.c.h.b16 %v3212
    %v4282 = vunpack.c.l.b16 %v3213
    %v4283 = vunpack.c.h.b16 %v3213
    %v4284 = vunpack.c.l.b16 %v3214
    %v4285 = vunpack.c.h.b16 %v3214
    %v4286 = vunpack.c.l.b16 %v3215
    %v4287 = vunpack.c.h.b16 %v3215
    %v4288 = vunpack.c.l.b16 %v3216
    %v4289 = vunpack.c.h.b16 %v3216
    %v4290 = vunpack.c.l.b16 %v3217
    %v4291 = vunpack.c.h.b16 %v3217
    %v4292 = vunpack.c.l.b16 %v3218
    %v4293 = vunpack.c.h.b16 %v3218
    %v4294 = vunpack.c.l.b16 %v3219
    %v4295 = vunpack.c.h.b16 %v3219
    %v4296 = vunpack.c.l.b16 %v3220
    %v4297 = vunpack.c.h.b16 %v3220
    %v4298 = vunpack.c.l.b16 %v3221
    %v4299 = vunpack.c.h.b16 %v3221
    %v4300 = vunpack.c.l.b16 %v3222
    %v4301 = vunpack.c.h.b16 %v3222
    %v4302 = vunpack.c.l.b16 %v3223
    %v4303 = vunpack.c.h.b16 %v3223
    %v4304 = vunpack.c.l.b16 %v3224
    %v4305 = vunpack.c.h.b16 %v3224
    %v4306 = vunpack.c.l.b16 %v3225
    %v4307 = vunpack.c.h.b16 %v3225
    %v4308 = vunpack.c.l.b16 %v3226
    %v4309 = vunpack.c.h.b16 %v3226
    %v4310 = vunpack.c.l.b16 %v3227
    %v4311 = vunpack.c.h.b16 %v3227
    %v4312 = vunpack.c.l.b16 %v3228
    %v4313 = vunpack.c.h.b16 %v3228
    %v4314 = vunpack.c.l.b16 %v3229
    %v4315 = vunpack.c.h.b16 %v3229
    %v4316 = vunpack.c.l.b16 %v3230
    %v4317 = vunpack.c.h.b16 %v3230
    %v4318 = vunpack.c.l.b16 %v3231
    %v4319 = vunpack.c.h.b16 %v3231
    %v4320 = vunpack.c.l.b16 %v3232
    %v4321 = vunpack.c.h.b16 %v3232
    %v4322 = vunpack.c.l.b16 %v3233
    %v4323 = vunpack.c.h.b16 %v3233
    %v4324 = vunpack.c.l.b16 %v3234
    %v4325 = vunpack.c.h.b16 %v3234
    %v4326 = vunpack.c.l.b16 %v3235
    %v4327 = vunpack.c.h.b16 %v3235
    %v4328 = vunpack.c.l.b16 %v3236
    %v4329 = vunpack.c.h.b16 %v3236
    %v4330 = vunpack.c.l.b16 %v3237
    %v4331 = vunpack.c.h.b16 %v3237
    %v4332 = vunpack.c.l.b16 %v3238
    %v4333 = vunpack.c.h.b16 %v3238
    %v4334 = vunpack.c.l.b16 %v3239
    %v4335 = vunpack.c.h.b16 %v3239
    %v4336 = vunpack.c.l.b16 %v3240
    %v4337 = vunpack.c.h.b16 %v3240
    %v4338 = vunpack.c.l.b16 %v3241
    %v4339 = vunpack.c.h.b16 %v3241
    %v4340 = vunpack.c.l.b16 %v3242
    %v4341 = vunpack.c.h.b16 %v3242
    %v4342 = vunpack.c.l.b16 %v3243
    %v4343 = vunpack.c.h.b16 %v3243
    %v4344 = vunpack.c.l.b16 %v3244
    %v4345 = vunpack.c.h.b16 %v3244
    %v4346 = vunpack.c.l.b16 %v3245
    %v4347 = vunpack.c.h.b16 %v3245
    %v4348 = vunpack.c.l.b16 %v3246
    %v4349 = vunpack.c.h.b16 %v3246
    %v4350 = vunpack.c.l.b16 %v3247
    %v4351 = vunpack.c.h.b16 %v3247
    %v4352 = vunpack.c.l.b16 %v3248
    %v4353 = vunpack.c.h.b16 %v3248
    %v4354 = vunpack.c.l.b16 %v3249
    %v4355 = vunpack.c.h.b16 %v3249
    %v4356 = vunpack.c.l.b16 %v3250
    %v4357 = vunpack.c.h.b16 %v3250
    %v4358 = vunpack.c.l.b16 %v3251
    %v4359 = vunpack.c.h.b16 %v3251
    %v4360 = vunpack.c.l.b16 %v3252
    %v4361 = vunpack.c.h.b16 %v3252
    %v4362 = vunpack.c.l.b16 %v3253
    %v4363 = vunpack.c.h.b16 %v3253
    %v4364 = vunpack.c.l.b16 %v3254
    %v4365 = vunpack.c.h.b16 %v3254
    %v4366 = vunpack.c.l.b16 %v3255
    %v4367 = vunpack.c.h.b16 %v3255
    %v4368 = vunpack.c.l.b16 %v3256
    %v4369 = vunpack.c.h.b16 %v3256
    %v4370 = vunpack.c.l.b16 %v3257
    %v4371 = vunpack.c.h.b16 %v3257
    %v4372 = vunpack.c.l.b16 %v3258
    %v4373 = vunpack.c.h.b16 %v3258
    %v4374 = vunpack.c.l.b16 %v3259
    %v4375 = vunpack.c.h.b16 %v3259
    %v4376 = vunpack.c.l.b16 %v3260
    %v4377 = vunpack.c.h.b16 %v3260
    %v4378 = vunpack.c.l.b16 %v3261
    %v4379 = vunpack.c.h.b16 %v3261
    %v4380 = vunpack.c.l.b16 %v3262
    %v4381 = vunpack.c.h.b16 %v3262
    %v4382 = vunpack.c.l.b16 %v3263
    %v4383 = vunpack.c.h.b16 %v3263
    %v4384 = vunpack.c.l.b16 %v3264
    %v4385 = vunpack.c.h.b16 %v3264
    %v4386 = vunpack.c.l.b16 %v3265
    %v4387 = vunpack.c.h.b16 %v3265
    %v4388 = vunpack.c.l.b16 %v3266
    %v4389 = vunpack.c.h.b16 %v3266
    %v4390 = vunpack.c.l.b16 %v3267
    %v4391 = vunpack.c.h.b16 %v3267
    %v4392 = vunpack.c.l.b16 %v3268
    %v4393 = vunpack.c.h.b16 %v3268
    %v4394 = vunpack.c.l.b16 %v3269
    %v4395 = vunpack.c.h.b16 %v3269
    %v4396 = vunpack.c.l.b16 %v3270
    %v4397 = vunpack.c.h.b16 %v3270
    %v4398 = vunpack.c.l.b16 %v3271
    %v4399 = vunpack.c.h.b16 %v3271
    %v4400 = vunpack.c.l.b16 %v3272
    %v4401 = vunpack.c.h.b16 %v3272
    %v4402 = vunpack.c.l.b16 %v3273
    %v4403 = vunpack.c.h.b16 %v3273
    %v4404 = vunpack.c.l.b16 %v3274
    %v4405 = vunpack.c.h.b16 %v3274
    %v4406 = vunpack.c.l.b16 %v3275
    %v4407 = vunpack.c.h.b16 %v3275
    %v4408 = vunpack.c.l.b16 %v3276
    %v4409 = vunpack.c.h.b16 %v3276
    %v4410 = vunpack.c.l.b16 %v3277
    %v4411 = vunpack.c.h.b16 %v3277
    %v4412 = vunpack.c.l.b16 %v3278
    %v4413 = vunpack.c.h.b16 %v3278
    %v4414 = vunpack.c.l.b16 %v3279
    %v4415 = vunpack.c.h.b16 %v3279
    %v4416 = vunpack.c.l.b16 %v3280
    %v4417 = vunpack.c.h.b16 %v3280
    %v4418 = vunpack.c.l.b16 %v3281
    %v4419 = vunpack.c.h.b16 %v3281
    %v4420 = vunpack.c.l.b16 %v3282
    %v4421 = vunpack.c.h.b16 %v3282
    %v4422 = vunpack.c.l.b16 %v3283
    %v4423 = vunpack.c.h.b16 %v3283
    %v4424 = vunpack.c.l.b16 %v3284
    %v4425 = vunpack.c.h.b16 %v3284
    %v4426 = vunpack.c.l.b16 %v3285
    %v4427 = vunpack.c.h.b16 %v3285
    %v4428 = vunpack.c.l.b16 %v3286
    %v4429 = vunpack.c.h.b16 %v3286
    %v4430 = vunpack.c.l.b16 %v3287
    %v4431 = vunpack.c.h.b16 %v3287
    %v4432 = vunpack.c.l.b16 %v3288
    %v4433 = vunpack.c.h.b16 %v3288
    %v4434 = vunpack.c.l.b16 %v3289
    %v4435 = vunpack.c.h.b16 %v3289
    %v4436 = vunpack.c.l.b16 %v3290
    %v4437 = vunpack.c.h.b16 %v3290
    %v4438 = vunpack.c.l.b16 %v3291
    %v4439 = vunpack.c.h.b16 %v3291
    %v4440 = vunpack.c.l.b16 %v3292
    %v4441 = vunpack.c.h.b16 %v3292
    %v4442 = vunpack.c.l.b16 %v3293
    %v4443 = vunpack.c.h.b16 %v3293
    %v4444 = vunpack.c.l.b16 %v3294
    %v4445 = vunpack.c.h.b16 %v3294
    %v4446 = vunpack.c.l.b16 %v3295
    %v4447 = vunpack.c.h.b16 %v3295
    %v4448 = vunpack.c.l.b16 %v3296
    %v4449 = vunpack.c.h.b16 %v3296
    %v4450 = vunpack.c.l.b16 %v3297
    %v4451 = vunpack.c.h.b16 %v3297
    %v4452 = vunpack.c.l.b16 %v3298
    %v4453 = vunpack.c.h.b16 %v3298
    %v4454 = vunpack.c.l.b16 %v3299
    %v4455 = vunpack.c.h.b16 %v3299
    %v4456 = vunpack.c.l.b16 %v3300
    %v4457 = vunpack.c.h.b16 %v3300
    %v4458 = vunpack.c.l.b16 %v3301
    %v4459 = vunpack.c.h.b16 %v3301
    %v4460 = vunpack.c.l.b16 %v3302
    %v4461 = vunpack.c.h.b16 %v3302
    %v4462 = vunpack.c.l.b16 %v3303
    %v4463 = vunpack.c.h.b16 %v3303
    %v4464 = vunpack.c.l.b16 %v3304
    %v4465 = vunpack.c.h.b16 %v3304
    %v4466 = vunpack.c.l.b16 %v3305
    %v4467 = vunpack.c.h.b16 %v3305
    %v4468 = vunpack.c.l.b16 %v3306
    %v4469 = vunpack.c.h.b16 %v3306
    %v4470 = vunpack.c.l.b16 %v3307
    %v4471 = vunpack.c.h.b16 %v3307
    %v4472 = vunpack.c.l.b16 %v3308
    %v4473 = vunpack.c.h.b16 %v3308
    %v4474 = vunpack.c.l.b16 %v3309
    %v4475 = vunpack.c.h.b16 %v3309
    %v4476 = vunpack.c.l.b16 %v3310
    %v4477 = vunpack.c.h.b16 %v3310
    %v4478 = vunpack.c.l.b16 %v3311
    %v4479 = vunpack.c.h.b16 %v3311
    %v4480 = vunpack.c.l.b16 %v3312
    %v4481 = vunpack.c.h.b16 %v3312
    %v4482 = vunpack.c.l.b16 %v3313
    %v4483 = vunpack.c.h.b16 %v3313
    %v4484 = vunpack.c.l.b16 %v3314
    %v4485 = vunpack.c.h.b16 %v3314
    %v4486 = vunpack.c.l.b16 %v3315
    %v4487 = vunpack.c.h.b16 %v3315
    %v4488 = vunpack.c.l.b16 %v3316
    %v4489 = vunpack.c.h.b16 %v3316
    %v4490 = vunpack.c.l.b16 %v3317
    %v4491 = vunpack.c.h.b16 %v3317
    %v4492 = vunpack.c.l.b16 %v3318
    %v4493 = vunpack.c.h.b16 %v3318
    %v4494 = vunpack.c.l.b16 %v3319
    %v4495 = vunpack.c.h.b16 %v3319
    %v4496 = vunpack.c.l.b16 %v3320
    %v4497 = vunpack.c.h.b16 %v3320
    %v4498 = vunpack.c.l.b16 %v3321
    %v4499 = vunpack.c.h.b16 %v3321
    %v4500 = vunpack.c.l.b16 %v3322
    %v4501 = vunpack.c.h.b16 %v3322
    %v4502 = vunpack.c.l.b16 %v3323
    %v4503 = vunpack.c.h.b16 %v3323
    %v4504 = vunpack.c.l.b16 %v3324
    %v4505 = vunpack.c.h.b16 %v3324
    %v4506 = vunpack.c.l.b16 %v3325
    %v4507 = vunpack.c.h.b16 %v3325
    %v4508 = vunpack.c.l.b16 %v3326
    %v4509 = vunpack.c.h.b16 %v3326
    %v4510 = vunpack.c.l.b16 %v3327
    %v4511 = vunpack.c.h.b16 %v3327
    %v4512 = vunpack.c.l.b16 %v3328
    %v4513 = vunpack.c.h.b16 %v3328
    %v4514 = vunpack.c.l.b16 %v3329
    %v4515 = vunpack.c.h.b16 %v3329
    %v4516 = vunpack.c.l.b16 %v3330
    %v4517 = vunpack.c.h.b16 %v3330
    %v4518 = vunpack.c.l.b16 %v3331
    %v4519 = vunpack.c.h.b16 %v3331
    %v4520 = vunpack.c.l.b16 %v3332
    %v4521 = vunpack.c.h.b16 %v3332
    %v4522 = vunpack.c.l.b16 %v3333
    %v4523 = vunpack.c.h.b16 %v3333
    %v4524 = vunpack.c.l.b16 %v3334
    %v4525 = vunpack.c.h.b16 %v3334
    %v4526 = vunpack.c.l.b16 %v3335
    %v4527 = vunpack.c.h.b16 %v3335
    %v4528 = vunpack.c.l.b16 %v3336
    %v4529 = vunpack.c.h.b16 %v3336
    %v4530 = vunpack.c.l.b16 %v3337
    %v4531 = vunpack.c.h.b16 %v3337
    %v4532 = vunpack.c.l.b16 %v3338
    %v4533 = vunpack.c.h.b16 %v3338
    %v4534 = vunpack.c.l.b16 %v3339
    %v4535 = vunpack.c.h.b16 %v3339
    %v4536 = vunpack.c.l.b16 %v3340
    %v4537 = vunpack.c.h.b16 %v3340
    %v4538 = vunpack.c.l.b16 %v3341
    %v4539 = vunpack.c.h.b16 %v3341
    %v4540 = vunpack.c.l.b16 %v3342
    %v4541 = vunpack.c.h.b16 %v3342
    %v4542 = vunpack.c.l.b16 %v3343
    %v4543 = vunpack.c.h.b16 %v3343
    %v4544 = vunpack.c.l.b16 %v3344
    %v4545 = vunpack.c.h.b16 %v3344
    %v4546 = vunpack.c.l.b16 %v3345
    %v4547 = vunpack.c.h.b16 %v3345
    %v4548 = vunpack.c.l.b16 %v3346
    %v4549 = vunpack.c.h.b16 %v3346
    %v4550 = vunpack.c.l.b16 %v3347
    %v4551 = vunpack.c.h.b16 %v3347
    %v4552 = vunpack.c.l.b16 %v3348
    %v4553 = vunpack.c.h.b16 %v3348
    %v4554 = vunpack.c.l.b16 %v3349
    %v4555 = vunpack.c.h.b16 %v3349
    %v4556 = vunpack.c.l.b16 %v3350
    %v4557 = vunpack.c.h.b16 %v3350
    %v4558 = vunpack.c.l.b16 %v3351
    %v4559 = vunpack.c.h.b16 %v3351
    %v4560 = vunpack.c.l.b16 %v3352
    %v4561 = vunpack.c.h.b16 %v3352
    %v4562 = vunpack.c.l.b16 %v3353
    %v4563 = vunpack.c.h.b16 %v3353
    %v4564 = vunpack.c.l.b16 %v3354
    %v4565 = vunpack.c.h.b16 %v3354
    %v4566 = vunpack.c.l.b16 %v3355
    %v4567 = vunpack.c.h.b16 %v3355
    %v4568 = vunpack.c.l.b16 %v3356
    %v4569 = vunpack.c.h.b16 %v3356
    %v4570 = vunpack.c.l.b16 %v3357
    %v4571 = vunpack.c.h.b16 %v3357
    %v4572 = vunpack.c.l.b16 %v3358
    %v4573 = vunpack.c.h.b16 %v3358
    %v4574 = vunpack.c.l.b16 %v3359
    %v4575 = vunpack.c.h.b16 %v3359
    %v4576 = vunpack.c.l.b16 %v3360
    %v4577 = vunpack.c.h.b16 %v3360
    %v4578 = vunpack.c.l.b16 %v3361
    %v4579 = vunpack.c.h.b16 %v3361
    %v4580 = vunpack.c.l.b16 %v3362
    %v4581 = vunpack.c.h.b16 %v3362
    %v4582 = vunpack.c.l.b16 %v3363
    %v4583 = vunpack.c.h.b16 %v3363
    %v4584 = vunpack.c.l.b16 %v3364
    %v4585 = vunpack.c.h.b16 %v3364
    %v4586 = vunpack.c.l.b16 %v3365
    %v4587 = vunpack.c.h.b16 %v3365
    %v4588 = vunpack.c.l.b16 %v3366
    %v4589 = vunpack.c.h.b16 %v3366
    %v4590 = vunpack.c.l.b16 %v3367
    %v4591 = vunpack.c.h.b16 %v3367
    %v4592 = vunpack.c.l.b16 %v3368
    %v4593 = vunpack.c.h.b16 %v3368
    %v4594 = vunpack.c.l.b16 %v3369
    %v4595 = vunpack.c.h.b16 %v3369
    %v4596 = vunpack.c.l.b16 %v3370
    %v4597 = vunpack.c.h.b16 %v3370
    %v4598 = vunpack.c.l.b16 %v3371
    %v4599 = vunpack.c.h.b16 %v3371
    %v4600 = vunpack.c.l.b16 %v3372
    %v4601 = vunpack.c.h.b16 %v3372
    %v4602 = vunpack.c.l.b16 %v3373
    %v4603 = vunpack.c.h.b16 %v3373
    %v4604 = vunpack.c.l.b16 %v3374
    %v4605 = vunpack.c.h.b16 %v3374
    %v4606 = vunpack.c.l.b16 %v3375
    %v4607 = vunpack.c.h.b16 %v3375
    %v4608 = vunpack.c.l.b16 %v3376
    %v4609 = vunpack.c.h.b16 %v3376
    %v4610 = vunpack.c.l.b16 %v3377
    %v4611 = vunpack.c.h.b16 %v3377
    %v4612 = vunpack.c.l.b16 %v3378
    %v4613 = vunpack.c.h.b16 %v3378
    %v4614 = vunpack.c.l.b16 %v3379
    %v4615 = vunpack.c.h.b16 %v3379
    %v4616 = vunpack.c.l.b16 %v3380
    %v4617 = vunpack.c.h.b16 %v3380
    %v4618 = vunpack.c.l.b16 %v3381
    %v4619 = vunpack.c.h.b16 %v3381
    %v4620 = vunpack.c.l.b16 %v3382
    %v4621 = vunpack.c.h.b16 %v3382
    %v4622 = vunpack.c.l.b16 %v3383
    %v4623 = vunpack.c.h.b16 %v3383
    %v4624 = vunpack.c.l.b16 %v3384
    %v4625 = vunpack.c.h.b16 %v3384
    %v4626 = vunpack.c.l.b16 %v3385
    %v4627 = vunpack.c.h.b16 %v3385
    %v4628 = vunpack.c.l.b16 %v3386
    %v4629 = vunpack.c.h.b16 %v3386
    %v4630 = vunpack.c.l.b16 %v3387
    %v4631 = vunpack.c.h.b16 %v3387
    %v4632 = vunpack.c.l.b16 %v3388
    %v4633 = vunpack.c.h.b16 %v3388
    %v4634 = vunpack.c.l.b16 %v3389
    %v4635 = vunpack.c.h.b16 %v3389
    %v4636 = vunpack.c.l.b16 %v3390
    %v4637 = vunpack.c.h.b16 %v3390
    %v4638 = vunpack.c.l.b16 %v3391
    %v4639 = vunpack.c.h.b16 %v3391
    %v4640 = vunpack.c.l.b16 %v3392
    %v4641 = vunpack.c.h.b16 %v3392
    %v4642 = vunpack.c.l.b16 %v3393
    %v4643 = vunpack.c.h.b16 %v3393
    %v4644 = vunpack.c.l.b16 %v3394
    %v4645 = vunpack.c.h.b16 %v3394
    %v4646 = vunpack.c.l.b16 %v3395
    %v4647 = vunpack.c.h.b16 %v3395
    %v4648 = vunpack.c.l.b16 %v3396
    %v4649 = vunpack.c.h.b16 %v3396
    %v4650 = vunpack.c.l.b16 %v3397
    %v4651 = vunpack.c.h.b16 %v3397
    %v4652 = vunpack.c.l.b16 %v3398
    %v4653 = vunpack.c.h.b16 %v3398
    %v4654 = vunpack.c.l.b16 %v3399
    %v4655 = vunpack.c.h.b16 %v3399
    %v4656 = vunpack.c.l.b16 %v3400
    %v4657 = vunpack.c.h.b16 %v3400
    %v4658 = vunpack.c.l.b16 %v3401
    %v4659 = vunpack.c.h.b16 %v3401
    %v4660 = vunpack.c.l.b16 %v3402
    %v4661 = vunpack.c.h.b16 %v3402
    %v4662 = vunpack.c.l.b16 %v3403
    %v4663 = vunpack.c.h.b16 %v3403
    %v4664 = vunpack.c.l.b16 %v3404
    %v4665 = vunpack.c.h.b16 %v3404
    %v4666 = vunpack.c.l.b16 %v3405
    %v4667 = vunpack.c.h.b16 %v3405
    %v4668 = vunpack.c.l.b16 %v3406
    %v4669 = vunpack.c.h.b16 %v3406
    %v4670 = vunpack.c.l.b16 %v3407
    %v4671 = vunpack.c.h.b16 %v3407
    %v4672 = vunpack.c.l.b16 %v3408
    %v4673 = vunpack.c.h.b16 %v3408
    %v4674 = vunpack.c.l.b16 %v3409
    %v4675 = vunpack.c.h.b16 %v3409
    %v4676 = vunpack.c.l.b16 %v3410
    %v4677 = vunpack.c.h.b16 %v3410
    %v4678 = vunpack.c.l.b16 %v3411
    %v4679 = vunpack.c.h.b16 %v3411
    %v4680 = vunpack.c.l.b16 %v3412
    %v4681 = vunpack.c.h.b16 %v3412
    %v4682 = vunpack.c.l.b16 %v3413
    %v4683 = vunpack.c.h.b16 %v3413
    %v4684 = vunpack.c.l.b16 %v3414
    %v4685 = vunpack.c.h.b16 %v3414
    %v4686 = vunpack.c.l.b16 %v3415
    %v4687 = vunpack.c.h.b16 %v3415
    %v4688 = vunpack.c.l.b16 %v3416
    %v4689 = vunpack.c.h.b16 %v3416
    %v4690 = vunpack.c.l.b16 %v3417
    %v4691 = vunpack.c.h.b16 %v3417
    %v4692 = vunpack.c.l.b16 %v3418
    %v4693 = vunpack.c.h.b16 %v3418
    %v4694 = vunpack.c.l.b16 %v3419
    %v4695 = vunpack.c.h.b16 %v3419
    %v4696 = vunpack.c.l.b16 %v3420
    %v4697 = vunpack.c.h.b16 %v3420
    %v4698 = vunpack.c.l.b16 %v3421
    %v4699 = vunpack.c.h.b16 %v3421
    %v4700 = vunpack.c.l.b16 %v3422
    %v4701 = vunpack.c.h.b16 %v3422
    %v4702 = vunpack.c.l.b16 %v3423
    %v4703 = vunpack.c.h.b16 %v3423
    %v4704 = vunpack.c.l.b16 %v3424
    %v4705 = vunpack.c.h.b16 %v3424
    %v4706 = vunpack.c.l.b16 %v3425
    %v4707 = vunpack.c.h.b16 %v3425
    %v4708 = vunpack.c.l.b16 %v3426
    %v4709 = vunpack.c.h.b16 %v3426
    %v4710 = vunpack.c.l.b16 %v3427
    %v4711 = vunpack.c.h.b16 %v3427
    %v4712 = vunpack.c.l.b16 %v3428
    %v4713 = vunpack.c.h.b16 %v3428
    %v4714 = vunpack.c.l.b16 %v3429
    %v4715 = vunpack.c.h.b16 %v3429
    %v4716 = vunpack.c.l.b16 %v3430
    %v4717 = vunpack.c.h.b16 %v3430
    %v4718 = vunpack.c.l.b16 %v3431
    %v4719 = vunpack.c.h.b16 %v3431
    %v4720 = vunpack.c.l.b16 %v3432
    %v4721 = vunpack.c.h.b16 %v3432
    %v4722 = vunpack.c.l.b16 %v3433
    %v4723 = vunpack.c.h.b16 %v3433
    %v4724 = vunpack.c.l.b16 %v3434
    %v4725 = vunpack.c.h.b16 %v3434
    %v4726 = vunpack.c.l.b16 %v3435
    %v4727 = vunpack.c.h.b16 %v3435
    %v4728 = vunpack.c.l.b16 %v3436
    %v4729 = vunpack.c.h.b16 %v3436
    %v4730 = vunpack.c.l.b16 %v3437
    %v4731 = vunpack.c.h.b16 %v3437
    %v4732 = vunpack.c.l.b16 %v3438
    %v4733 = vunpack.c.h.b16 %v3438
    %v4734 = vunpack.c.l.b16 %v3439
    %v4735 = vunpack.c.h.b16 %v3439
    %v4736 = vunpack.c.l.b16 %v3440
    %v4737 = vunpack.c.h.b16 %v3440
    %v4738 = vunpack.c.l.b16 %v3441
    %v4739 = vunpack.c.h.b16 %v3441
    %v4740 = vunpack.c.l.b16 %v3442
    %v4741 = vunpack.c.h.b16 %v3442
    %v4742 = vunpack.c.l.b16 %v3443
    %v4743 = vunpack.c.h.b16 %v3443
    %v4744 = vunpack.c.l.b16 %v3444
    %v4745 = vunpack.c.h.b16 %v3444
    %v4746 = vunpack.c.l.b16 %v3445
    %v4747 = vunpack.c.h.b16 %v3445
    %v4748 = vunpack.c.l.b16 %v3446
    %v4749 = vunpack.c.h.b16 %v3446
    %v4750 = vunpack.c.l.b16 %v3447
    %v4751 = vunpack.c.h.b16 %v3447
    %v4752 = vunpack.c.l.b16 %v3448
    %v4753 = vunpack.c.h.b16 %v3448
    %v4754 = vunpack.c.l.b16 %v3449
    %v4755 = vunpack.c.h.b16 %v3449
    %v4756 = vunpack.c.l.b16 %v3450
    %v4757 = vunpack.c.h.b16 %v3450
    %v4758 = vunpack.c.l.b16 %v3451
    %v4759 = vunpack.c.h.b16 %v3451
    %v4760 = vunpack.c.l.b16 %v3452
    %v4761 = vunpack.c.h.b16 %v3452
    %v4762 = vunpack.c.l.b16 %v3453
    %v4763 = vunpack.c.h.b16 %v3453
    %v4764 = vunpack.c.l.b16 %v3454
    %v4765 = vunpack.c.h.b16 %v3454
    %v4766 = vunpack.c.l.b16 %v3455
    %v4767 = vunpack.c.h.b16 %v3455
    %v4768 = vunpack.c.l.b16 %v3456
    %v4769 = vunpack.c.h.b16 %v3456
    %v4770 = vunpack.c.l.b16 %v3457
    %v4771 = vunpack.c.h.b16 %v3457
    %v4772 = vunpack.c.l.b16 %v3458
    %v4773 = vunpack.c.h.b16 %v3458
    %v4774 = vunpack.c.l.b16 %v3459
    %v4775 = vunpack.c.h.b16 %v3459
    %v4776 = vunpack.c.l.b16 %v3460
    %v4777 = vunpack.c.h.b16 %v3460
    %v4778 = vunpack.c.l.b16 %v3461
    %v4779 = vunpack.c.h.b16 %v3461
    %v4780 = vunpack.c.l.b16 %v3462
    %v4781 = vunpack.c.h.b16 %v3462
    %v4782 = vunpack.c.l.b16 %v3463
    %v4783 = vunpack.c.h.b16 %v3463
    %v4784 = vunpack.c.l.b16 %v3464
    %v4785 = vunpack.c.h.b16 %v3464
    %v4786 = vunpack.c.l.b16 %v3465
    %v4787 = vunpack.c.h.b16 %v3465
    %v4788 = vunpack.c.l.b16 %v3466
    %v4789 = vunpack.c.h.b16 %v3466
    %v4790 = vunpack.c.l.b16 %v3467
    %v4791 = vunpack.c.h.b16 %v3467
    %v4792 = vunpack.c.l.b16 %v3468
    %v4793 = vunpack.c.h.b16 %v3468
    %v4794 = vunpack.c.l.b16 %v3469
    %v4795 = vunpack.c.h.b16 %v3469
    %v4796 = vunpack.c.l.b16 %v3470
    %v4797 = vunpack.c.h.b16 %v3470
    %v4798 = vunpack.c.l.b16 %v3471
    %v4799 = vunpack.c.h.b16 %v3471
    %v4800 = vunpack.c.l.b16 %v3472
    %v4801 = vunpack.c.h.b16 %v3472
    %v4802 = vunpack.c.l.b16 %v3473
    %v4803 = vunpack.c.h.b16 %v3473
    %v4804 = vunpack.c.l.b16 %v3474
    %v4805 = vunpack.c.h.b16 %v3474
    %v4806 = vunpack.c.l.b16 %v3475
    %v4807 = vunpack.c.h.b16 %v3475
    %v4808 = vunpack.c.l.b16 %v3476
    %v4809 = vunpack.c.h.b16 %v3476
    %v4810 = vunpack.c.l.b16 %v3477
    %v4811 = vunpack.c.h.b16 %v3477
    %v4812 = vunpack.c.l.b16 %v3478
    %v4813 = vunpack.c.h.b16 %v3478
    %v4814 = vunpack.c.l.b16 %v3479
    %v4815 = vunpack.c.h.b16 %v3479
    %v4816 = vunpack.c.l.b16 %v3480
    %v4817 = vunpack.c.h.b16 %v3480
    %v4818 = vunpack.c.l.b16 %v3481
    %v4819 = vunpack.c.h.b16 %v3481
    %v4820 = vunpack.c.l.b16 %v3482
    %v4821 = vunpack.c.h.b16 %v3482
    %v4822 = vunpack.c.l.b16 %v3483
    %v4823 = vunpack.c.h.b16 %v3483
    %v4824 = vunpack.c.l.b16 %v3484
    %v4825 = vunpack.c.h.b16 %v3484
    %v4826 = vunpack.c.l.b16 %v3485
    %v4827 = vunpack.c.h.b16 %v3485
    %v4828 = vunpack.c.l.b16 %v3486
    %v4829 = vunpack.c.h.b16 %v3486
    %v4830 = vunpack.c.l.b16 %v3487
    %v4831 = vunpack.c.h.b16 %v3487
    %v4832 = vunpack.c.l.b16 %v3488
    %v4833 = vunpack.c.h.b16 %v3488
    %v4834 = vunpack.c.l.b16 %v3489
    %v4835 = vunpack.c.h.b16 %v3489
    %v4836 = vunpack.c.l.b16 %v3490
    %v4837 = vunpack.c.h.b16 %v3490
    %v4838 = vunpack.c.l.b16 %v3491
    %v4839 = vunpack.c.h.b16 %v3491
    %v4840 = vunpack.c.l.b16 %v3492
    %v4841 = vunpack.c.h.b16 %v3492
    %v4842 = vunpack.c.l.b16 %v3493
    %v4843 = vunpack.c.h.b16 %v3493
    %v4844 = vunpack.c.l.b16 %v3494
    %v4845 = vunpack.c.h.b16 %v3494
    %v4846 = vunpack.c.l.b16 %v3495
    %v4847 = vunpack.c.h.b16 %v3495
    %v4848 = vunpack.c.l.b16 %v3496
    %v4849 = vunpack.c.h.b16 %v3496
    %v4850 = vunpack.c.l.b16 %v3497
    %v4851 = vunpack.c.h.b16 %v3497
    %v4852 = vunpack.c.l.b16 %v3498
    %v4853 = vunpack.c.h.b16 %v3498
    %v4854 = vunpack.c.l.b16 %v3499
    %v4855 = vunpack.c.h.b16 %v3499
    %v4856 = vunpack.c.l.b16 %v3500
    %v4857 = vunpack.c.h.b16 %v3500
    %v4858 = vunpack.c.l.b16 %v3501
    %v4859 = vunpack.c.h.b16 %v3501
    %v4860 = vunpack.c.l.b16 %v3502
    %v4861 = vunpack.c.h.b16 %v3502
    %v4862 = vunpack.c.l.b16 %v3503
    %v4863 = vunpack.c.h.b16 %v3503
    %v4864 = vunpack.c.l.b16 %v3504
    %v4865 = vunpack.c.h.b16 %v3504
    %v4866 = vunpack.c.l.b16 %v3505
    %v4867 = vunpack.c.h.b16 %v3505
    %v4868 = vunpack.c.l.b16 %v3506
    %v4869 = vunpack.c.h.b16 %v3506
    %v4870 = vunpack.c.l.b16 %v3507
    %v4871 = vunpack.c.h.b16 %v3507
    %v4872 = vunpack.c.l.b16 %v3508
    %v4873 = vunpack.c.h.b16 %v3508
    %v4874 = vunpack.c.l.b16 %v3509
    %v4875 = vunpack.c.h.b16 %v3509
    %v4876 = vunpack.c.l.b16 %v3510
    %v4877 = vunpack.c.h.b16 %v3510
    %v4878 = vunpack.c.l.b16 %v3511
    %v4879 = vunpack.c.h.b16 %v3511
    %v4880 = vunpack.c.l.b16 %v3512
    %v4881 = vunpack.c.h.b16 %v3512
    %v4882 = vunpack.c.l.b16 %v3513
    %v4883 = vunpack.c.h.b16 %v3513
    %v4884 = vunpack.c.l.b16 %v3514
    %v4885 = vunpack.c.h.b16 %v3514
    %v4886 = vunpack.c.l.b16 %v3515
    %v4887 = vunpack.c.h.b16 %v3515
    %v4888 = vunpack.c.l.b16 %v3516
    %v4889 = vunpack.c.h.b16 %v3516
    %v4890 = vunpack.c.l.b16 %v3517
    %v4891 = vunpack.c.h.b16 %v3517
    %v4892 = vunpack.c.l.b16 %v3518
    %v4893 = vunpack.c.h.b16 %v3518
    %v4894 = vunpack.c.l.b16 %v3519
    %v4895 = vunpack.c.h.b16 %v3519
    %v4896 = vunpack.c.l.b16 %v3520
    %v4897 = vunpack.c.h.b16 %v3520
    %v4898 = vunpack.c.l.b16 %v3521
    %v4899 = vunpack.c.h.b16 %v3521
    %v4900 = vunpack.c.l.b16 %v3522
    %v4901 = vunpack.c.h.b16 %v3522
    %v4902 = vunpack.c.l.b16 %v3523
    %v4903 = vunpack.c.h.b16 %v3523
    %v4904 = vunpack.c.l.b16 %v3524
    %v4905 = vunpack.c.h.b16 %v3524
    %v4906 = vunpack.c.l.b16 %v3525
    %v4907 = vunpack.c.h.b16 %v3525
    %v4908 = vunpack.c.l.b16 %v3526
    %v4909 = vunpack.c.h.b16 %v3526
    %v4910 = vunpack.c.l.b16 %v3527
    %v4911 = vunpack.c.h.b16 %v3527
    %v4912 = vunpack.c.l.b16 %v3528
    %v4913 = vunpack.c.h.b16 %v3528
    %v4914 = vunpack.c.l.b16 %v3529
    %v4915 = vunpack.c.h.b16 %v3529
    %v4916 = vunpack.c.l.b16 %v3530
    %v4917 = vunpack.c.h.b16 %v3530
    %v4918 = vunpack.c.l.b16 %v3531
    %v4919 = vunpack.c.h.b16 %v3531
    %v4920 = vunpack.c.l.b16 %v3532
    %v4921 = vunpack.c.h.b16 %v3532
    %v4922 = vunpack.c.l.b16 %v3533
    %v4923 = vunpack.c.h.b16 %v3533
    %v4924 = vunpack.c.l.b16 %v3534
    %v4925 = vunpack.c.h.b16 %v3534
    %v4926 = vunpack.c.l.b16 %v3535
    %v4927 = vunpack.c.h.b16 %v3535
    %v4928 = vunpack.c.l.b16 %v3536
    %v4929 = vunpack.c.h.b16 %v3536
    %v4930 = vunpack.c.l.b16 %v3537
    %v4931 = vunpack.c.h.b16 %v3537
    %v4932 = vunpack.c.l.b16 %v3538
    %v4933 = vunpack.c.h.b16 %v3538
    %v4934 = vunpack.c.l.b16 %v3539
    %v4935 = vunpack.c.h.b16 %v3539
    %v4936 = vunpack.c.l.b16 %v3540
    %v4937 = vunpack.c.h.b16 %v3540
    %v4938 = vunpack.c.l.b16 %v3541
    %v4939 = vunpack.c.h.b16 %v3541
    %v4940 = vunpack.c.l.b16 %v3542
    %v4941 = vunpack.c.h.b16 %v3542
    %v4942 = vunpack.c.l.b16 %v3543
    %v4943 = vunpack.c.h.b16 %v3543
    %v4944 = vunpack.c.l.b16 %v3544
    %v4945 = vunpack.c.h.b16 %v3544
    %v4946 = vunpack.c.l.b16 %v3545
    %v4947 = vunpack.c.h.b16 %v3545
    %v4948 = vunpack.c.l.b16 %v3546
    %v4949 = vunpack.c.h.b16 %v3546
    %v4950 = vunpack.c.l.b16 %v3547
    %v4951 = vunpack.c.h.b16 %v3547
    %v4952 = vunpack.c.l.b16 %v3548
    %v4953 = vunpack.c.h.b16 %v3548
    %v4954 = vunpack.c.l.b16 %v3549
    %v4955 = vunpack.c.h.b16 %v3549
    %v4956 = vunpack.c.l.b16 %v3550
    %v4957 = vunpack.c.h.b16 %v3550
    %v4958 = vunpack.c.l.b16 %v3551
    %v4959 = vunpack.c.h.b16 %v3551
    %v4960 = vunpack.c.l.b16 %v3552
    %v4961 = vunpack.c.h.b16 %v3552
    %v4962 = vunpack.c.l.b16 %v3553
    %v4963 = vunpack.c.h.b16 %v3553
    %v4964 = vunpack.c.l.b16 %v3554
    %v4965 = vunpack.c.h.b16 %v3554
    %v4966 = vunpack.c.l.b16 %v3555
    %v4967 = vunpack.c.h.b16 %v3555
    %v4968 = vunpack.c.l.b16 %v3556
    %v4969 = vunpack.c.h.b16 %v3556
    %v4970 = vunpack.c.l.b16 %v3557
    %v4971 = vunpack.c.h.b16 %v3557
    %v4972 = vunpack.c.l.b16 %v3558
    %v4973 = vunpack.c.h.b16 %v3558
    %v4974 = vunpack.c.l.b16 %v3559
    %v4975 = vunpack.c.h.b16 %v3559
    %v4976 = vunpack.c.l.b16 %v3560
    %v4977 = vunpack.c.h.b16 %v3560
    %v4978 = vunpack.c.l.b16 %v3561
    %v4979 = vunpack.c.h.b16 %v3561
    %v4980 = vunpack.c.l.b16 %v3562
    %v4981 = vunpack.c.h.b16 %v3562
    %v4982 = vunpack.c.l.b16 %v3563
    %v4983 = vunpack.c.h.b16 %v3563
    %v4984 = vunpack.c.l.b16 %v3564
    %v4985 = vunpack.c.h.b16 %v3564
    %v4986 = vunpack.c.l.b16 %v3565
    %v4987 = vunpack.c.h.b16 %v3565
    %v4988 = vunpack.c.l.b16 %v3566
    %v4989 = vunpack.c.h.b16 %v3566
    %v4990 = vunpack.c.l.b16 %v3567
    %v4991 = vunpack.c.h.b16 %v3567
    %v4992 = vunpack.c.l.b16 %v3568
    %v4993 = vunpack.c.h.b16 %v3568
    %v4994 = vunpack.c.l.b16 %v3569
    %v4995 = vunpack.c.h.b16 %v3569
    %v4996 = vunpack.c.l.b16 %v3570
    %v4997 = vunpack.c.h.b16 %v3570
    %v4998 = vunpack.c.l.b16 %v3571
    %v4999 = vunpack.c.h.b16 %v3571
    %v5000 = vunpack.c.l.b16 %v3572
    %v5001 = vunpack.c.h.b16 %v3572
    %v5002 = vunpack.c.l.b16 %v3573
    %v5003 = vunpack.c.h.b16 %v3573
    %v5004 = vunpack.c.l.b16 %v3574
    %v5005 = vunpack.c.h.b16 %v3574
    %v5006 = vunpack.c.l.b16 %v3575
    %v5007 = vunpack.c.h.b16 %v3575
    %v5008 = vunpack.c.l.b16 %v3576
    %v5009 = vunpack.c.h.b16 %v3576
    %v5010 = vunpack.c.l.b16 %v3577
    %v5011 = vunpack.c.h.b16 %v3577
    %v5012 = vunpack.c.l.b16 %v3578
    %v5013 = vunpack.c.h.b16 %v3578
    %v5014 = vunpack.c.l.b16 %v3579
    %v5015 = vunpack.c.h.b16 %v3579
    %v5016 = vunpack.c.l.b16 %v3580
    %v5017 = vunpack.c.h.b16 %v3580
    %v5018 = vunpack.c.l.b16 %v3581
    %v5019 = vunpack.c.h.b16 %v3581
    %v5020 = vunpack.c.l.b16 %v3582
    %v5021 = vunpack.c.h.b16 %v3582
    %v5022 = vunpack.c.l.b16 %v3583
    %v5023 = vunpack.c.h.b16 %v3583
    %v5024 = vunpack.c.l.b16 %v3584
    %v5025 = vunpack.c.h.b16 %v3584
    %v5026 = vunpack.c.l.b16 %v3585
    %v5027 = vunpack.c.h.b16 %v3585
    %v5028 = vunpack.c.l.b16 %v3586
    %v5029 = vunpack.c.h.b16 %v3586
    %v5030 = vunpack.c.l.b16 %v3587
    %v5031 = vunpack.c.h.b16 %v3587
    %v5032 = vunpack.c.l.b16 %v3588
    %v5033 = vunpack.c.h.b16 %v3588
    %v5034 = vunpack.c.l.b16 %v3589
    %v5035 = vunpack.c.h.b16 %v3589
    %v5036 = vunpack.c.l.b16 %v3590
    %v5037 = vunpack.c.h.b16 %v3590
    %v5038 = vunpack.c.l.b16 %v3591
    %v5039 = vunpack.c.h.b16 %v3591
    %v5040 = vunpack.c.l.b16 %v3592
    %v5041 = vunpack.c.h.b16 %v3592
    %v5042 = vunpack.c.l.b16 %v3593
    %v5043 = vunpack.c.h.b16 %v3593
    %v5044 = vunpack.c.l.b16 %v3594
    %v5045 = vunpack.c.h.b16 %v3594
    %v5046 = vunpack.c.l.b16 %v3595
    %v5047 = vunpack.c.h.b16 %v3595
    %v5048 = vunpack.c.l.b16 %v3596
    %v5049 = vunpack.c.h.b16 %v3596
    %v5050 = vunpack.c.l.b16 %v3597
    %v5051 = vunpack.c.h.b16 %v3597
    %v5052 = vunpack.c.l.b16 %v3598
    %v5053 = vunpack.c.h.b16 %v3598
    %v5054 = vunpack.c.l.b16 %v3599
    %v5055 = vunpack.c.h.b16 %v3599
    %v5056 = vunpack.c.l.b16 %v3600
    %v5057 = vunpack.c.h.b16 %v3600
    %v5058 = vunpack.c.l.b16 %v3601
    %v5059 = vunpack.c.h.b16 %v3601
    %v5060 = vunpack.c.l.b16 %v3602
    %v5061 = vunpack.c.h.b16 %v3602
    %v5062 = vunpack.c.l.b16 %v3603
    %v5063 = vunpack.c.h.b16 %v3603
    %v5064 = vunpack.c.l.b16 %v3604
    %v5065 = vunpack.c.h.b16 %v3604
    %v5066 = vunpack.c.l.b16 %v3605
    %v5067 = vunpack.c.h.b16 %v3605
    %v5068 = vunpack.c.l.b16 %v3606
    %v5069 = vunpack.c.h.b16 %v3606
    %v5070 = vunpack.c.l.b16 %v3607
    %v5071 = vunpack.c.h.b16 %v3607
    %v5072 = vunpack.c.l.b16 %v3608
    %v5073 = vunpack.c.h.b16 %v3608
    %v5074 = vunpack.c.l.b16 %v3609
    %v5075 = vunpack.c.h.b16 %v3609
    %v5076 = vunpack.c.l.b16 %v3610
    %v5077 = vunpack.c.h.b16 %v3610
    %v5078 = vunpack.c.l.b16 %v3611
    %v5079 = vunpack.c.h.b16 %v3611
    %v5080 = vunpack.c.l.b16 %v3612
    %v5081 = vunpack.c.h.b16 %v3612
    %v5082 = vunpack.c.l.b16 %v3613
    %v5083 = vunpack.c.h.b16 %v3613
    %v5084 = vunpack.c.l.b16 %v3614
    %v5085 = vunpack.c.h.b16 %v3614
    %v5086 = vunpack.c.l.b16 %v3615
    %v5087 = vunpack.c.h.b16 %v3615
    %v5088 = vunpack.c.l.b16 %v3616
    %v5089 = vunpack.c.h.b16 %v3616
    %v5090 = vunpack.c.l.b16 %v3617
    %v5091 = vunpack.c.h.b16 %v3617
    %v5092 = vunpack.c.l.b16 %v3618
    %v5093 = vunpack.c.h.b16 %v3618
    %v5094 = vunpack.c.l.b16 %v3619
    %v5095 = vunpack.c.h.b16 %v3619
    %v5096 = vunpack.c.l.b16 %v3620
    %v5097 = vunpack.c.h.b16 %v3620
    %v5098 = vunpack.c.l.b16 %v3621
    %v5099 = vunpack.c.h.b16 %v3621
    %v5100 = vunpack.c.l.b16 %v3622
    %v5101 = vunpack.c.h.b16 %v3622
    %v5102 = vunpack.c.l.b16 %v3623
    %v5103 = vunpack.c.h.b16 %v3623
    %v5104 = vunpack.c.l.b16 %v3624
    %v5105 = vunpack.c.h.b16 %v3624
    %v5106 = vunpack.c.l.b16 %v3625
    %v5107 = vunpack.c.h.b16 %v3625
    %v5108 = vunpack.c.l.b16 %v3626
    %v5109 = vunpack.c.h.b16 %v3626
    %v5110 = vunpack.c.l.b16 %v3627
    %v5111 = vunpack.c.h.b16 %v3627
    %v5112 = vunpack.c.l.b16 %v3628
    %v5113 = vunpack.c.h.b16 %v3628
    %v5114 = vunpack.c.l.b16 %v3629
    %v5115 = vunpack.c.h.b16 %v3629
    %v5116 = vunpack.c.l.b16 %v3630
    %v5117 = vunpack.c.h.b16 %v3630
    %v5118 = vunpack.c.l.b16 %v3631
    %v5119 = vunpack.c.h.b16 %v3631
    %v5120 = vunpack.c.l.b16 %v3632
    %v5121 = vunpack.c.h.b16 %v3632
    %v5122 = vunpack.c.l.b16 %v3633
    %v5123 = vunpack.c.h.b16 %v3633
    %v5124 = vunpack.c.l.b16 %v3634
    %v5125 = vunpack.c.h.b16 %v3634
    %v5126 = vunpack.c.l.b16 %v3635
    %v5127 = vunpack.c.h.b16 %v3635
    %v5128 = vunpack.c.l.b16 %v3636
    %v5129 = vunpack.c.h.b16 %v3636
    %v5130 = vunpack.c.l.b16 %v3637
    %v5131 = vunpack.c.h.b16 %v3637
    %v5132 = vunpack.c.l.b16 %v3638
    %v5133 = vunpack.c.h.b16 %v3638
    %v5134 = vunpack.c.l.b16 %v3639
    %v5135 = vunpack.c.h.b16 %v3639
    %v5136 = vunpack.c.l.b16 %v3640
    %v5137 = vunpack.c.h.b16 %v3640
    %v5138 = vunpack.c.l.b16 %v3641
    %v5139 = vunpack.c.h.b16 %v3641
    %v5140 = vunpack.c.l.b16 %v3642
    %v5141 = vunpack.c.h.b16 %v3642
    %v5142 = vunpack.c.l.b16 %v3643
    %v5143 = vunpack.c.h.b16 %v3643
    %v5144 = vunpack.c.l.b16 %v3644
    %v5145 = vunpack.c.h.b16 %v3644
    %v5146 = vunpack.c.l.b16 %v3645
    %v5147 = vunpack.c.h.b16 %v3645
    %v5148 = vunpack.c.l.b16 %v3646
    %v5149 = vunpack.c.h.b16 %v3646
    %v5150 = vunpack.c.l.b16 %v3647
    %v5151 = vunpack.c.h.b16 %v3647
    %v5152 = vunpack.c.l.b16 %v3648
    %v5153 = vunpack.c.h.b16 %v3648
    %v5154 = vunpack.c.l.b16 %v3649
    %v5155 = vunpack.c.h.b16 %v3649
    %v5156 = vunpack.c.l.b16 %v3650
    %v5157 = vunpack.c.h.b16 %v3650
    %v5158 = vunpack.c.l.b16 %v3651
    %v5159 = vunpack.c.h.b16 %v3651
    %v5160 = vunpack.c.l.b16 %v3652
    %v5161 = vunpack.c.h.b16 %v3652
    %v5162 = vunpack.c.l.b16 %v3653
    %v5163 = vunpack.c.h.b16 %v3653
    %v5164 = vunpack.c.l.b16 %v3654
    %v5165 = vunpack.c.h.b16 %v3654
    %v5166 = vunpack.c.l.b16 %v3655
    %v5167 = vunpack.c.h.b16 %v3655
    %v5168 = vunpack.c.l.b16 %v3656
    %v5169 = vunpack.c.h.b16 %v3656
    %v5170 = vunpack.c.l.b16 %v3657
    %v5171 = vunpack.c.h.b16 %v3657
    %v5172 = vunpack.c.l.b16 %v3658
    %v5173 = vunpack.c.h.b16 %v3658
    %v5174 = vunpack.c.l.b16 %v3659
    %v5175 = vunpack.c.h.b16 %v3659
    %v5176 = vunpack.c.l.b16 %v3660
    %v5177 = vunpack.c.h.b16 %v3660
    %v5178 = vunpack.c.l.b16 %v3661
    %v5179 = vunpack.c.h.b16 %v3661
    %v5180 = vunpack.c.l.b16 %v3662
    %v5181 = vunpack.c.h.b16 %v3662
    %v5182 = vunpack.c.l.b16 %v3663
    %v5183 = vunpack.c.h.b16 %v3663
    %v5184 = vunpack.c.l.b16 %v3664
    %v5185 = vunpack.c.h.b16 %v3664
    %v5186 = vunpack.c.l.b16 %v3665
    %v5187 = vunpack.c.h.b16 %v3665
    %v5188 = vunpack.c.l.b16 %v3666
    %v5189 = vunpack.c.h.b16 %v3666
    %v5190 = vunpack.c.l.b16 %v3667
    %v5191 = vunpack.c.h.b16 %v3667
    %v5192 = vunpack.c.l.b16 %v3668
    %v5193 = vunpack.c.h.b16 %v3668
    %v5194 = vunpack.c.l.b16 %v3669
    %v5195 = vunpack.c.h.b16 %v3669
    %v5196 = vunpack.c.l.b16 %v3670
    %v5197 = vunpack.c.h.b16 %v3670
    %v5198 = vunpack.c.l.b16 %v3671
    %v5199 = vunpack.c.h.b16 %v3671
    %v5200 = vunpack.c.l.b16 %v3672
    %v5201 = vunpack.c.h.b16 %v3672
    %v5202 = vunpack.c.l.b16 %v3673
    %v5203 = vunpack.c.h.b16 %v3673
    %v5204 = vunpack.c.l.b16 %v3674
    %v5205 = vunpack.c.h.b16 %v3674
    %v5206 = vunpack.c.l.b16 %v3675
    %v5207 = vunpack.c.h.b16 %v3675
    %v5208 = vunpack.c.l.b16 %v3676
    %v5209 = vunpack.c.h.b16 %v3676
    %v5210 = vunpack.c.l.b16 %v3677
    %v5211 = vunpack.c.h.b16 %v3677
    %v5212 = vunpack.c.l.b16 %v3678
    %v5213 = vunpack.c.h.b16 %v3678
    %v5214 = vunpack.c.l.b16 %v3679
    %v5215 = vunpack.c.h.b16 %v3679
    %v5216 = vunpack.c.l.b16 %v3680
    %v5217 = vunpack.c.h.b16 %v3680
    %v5218 = vunpack.c.l.b16 %v3681
    %v5219 = vunpack.c.h.b16 %v3681
    %v5220 = vunpack.c.l.b16 %v3682
    %v5221 = vunpack.c.h.b16 %v3682
    %v5222 = vunpack.c.l.b16 %v3683
    %v5223 = vunpack.c.h.b16 %v3683
    %v5224 = vunpack.c.l.b16 %v3684
    %v5225 = vunpack.c.h.b16 %v3684
    %v5226 = vunpack.c.l.b16 %v3685
    %v5227 = vunpack.c.h.b16 %v3685
    %v5228 = vunpack.c.l.b16 %v3686
    %v5229 = vunpack.c.h.b16 %v3686
    %v5230 = vunpack.c.l.b16 %v3687
    %v5231 = vunpack.c.h.b16 %v3687
    %v5232 = vunpack.c.l.b16 %v3688
    %v5233 = vunpack.c.h.b16 %v3688
    %v5234 = vunpack.c.l.b16 %v3689
    %v5235 = vunpack.c.h.b16 %v3689
    %v5236 = vunpack.c.l.b16 %v3690
    %v5237 = vunpack.c.h.b16 %v3690
    %v5238 = vunpack.c.l.b16 %v3691
    %v5239 = vunpack.c.h.b16 %v3691
    %v5240 = vunpack.c.l.b16 %v3692
    %v5241 = vunpack.c.h.b16 %v3692
    %v5242 = vunpack.c.l.b16 %v3693
    %v5243 = vunpack.c.h.b16 %v3693
    %v5244 = vunpack.c.l.b16 %v3694
    %v5245 = vunpack.c.h.b16 %v3694
    %v5246 = vunpack.c.l.b16 %v3695
    %v5247 = vunpack.c.h.b16 %v3695
    %v5248 = vunpack.c.l.b16 %v3696
    %v5249 = vunpack.c.h.b16 %v3696
    %v5250 = vunpack.c.l.b16 %v3697
    %v5251 = vunpack.c.h.b16 %v3697
    %v5252 = vunpack.c.l.b16 %v3698
    %v5253 = vunpack.c.h.b16 %v3698
    %v5254 = vunpack.c.l.b16 %v3699
    %v5255 = vunpack.c.h.b16 %v3699
    %v5256 = vunpack.c.l.b16 %v3700
    %v5257 = vunpack.c.h.b16 %v3700
    %v5258 = vunpack.c.l.b16 %v3701
    %v5259 = vunpack.c.h.b16 %v3701
    %v5260 = vunpack.c.l.b16 %v3702
    %v5261 = vunpack.c.h.b16 %v3702
    %v5262 = vunpack.c.l.b16 %v3703
    %v5263 = vunpack.c.h.b16 %v3703
    %v5264 = vunpack.c.l.b16 %v3704
    %v5265 = vunpack.c.h.b16 %v3704
    %v5266 = vunpack.c.l.b16 %v3705
    %v5267 = vunpack.c.h.b16 %v3705
    %v5268 = vunpack.c.l.b16 %v3706
    %v5269 = vunpack.c.h.b16 %v3706
    %v5270 = vunpack.c.l.b16 %v3707
    %v5271 = vunpack.c.h.b16 %v3707
    %v5272 = vunpack.c.l.b16 %v3708
    %v5273 = vunpack.c.h.b16 %v3708
    %v5274 = vunpack.c.l.b16 %v3709
    %v5275 = vunpack.c.h.b16 %v3709
    %v5276 = vunpack.c.l.b16 %v3710
    %v5277 = vunpack.c.h.b16 %v3710
    %v5278 = vunpack.c.l.b16 %v3711
    %v5279 = vunpack.c.h.b16 %v3711
    %v5280 = vunpack.c.l.b16 %v3712
    %v5281 = vunpack.c.h.b16 %v3712
    %v5282 = vunpack.c.l.b16 %v3713
    %v5283 = vunpack.c.h.b16 %v3713
    %v5284 = vunpack.c.l.b16 %v3714
    %v5285 = vunpack.c.h.b16 %v3714
    %v5286 = vunpack.c.l.b16 %v3715
    %v5287 = vunpack.c.h.b16 %v3715
    %v5288 = vunpack.c.l.b16 %v3716
    %v5289 = vunpack.c.h.b16 %v3716
    %v5290 = vunpack.c.l.b16 %v3717
    %v5291 = vunpack.c.h.b16 %v3717
    %v5292 = vunpack.c.l.b16 %v3718
    %v5293 = vunpack.c.h.b16 %v3718
    %v5294 = vunpack.c.l.b16 %v3719
    %v5295 = vunpack.c.h.b16 %v3719
    %v5296 = vunpack.c.l.b16 %v3720
    %v5297 = vunpack.c.h.b16 %v3720
    %v5298 = vunpack.c.l.b16 %v3721
    %v5299 = vunpack.c.h.b16 %v3721
    %v5300 = vpack.c.b16 %v4284, %v4276
    %v5301 = vpack.c.b16 %v4285, %v4277
    %v5302 = vpack.c.b16 %v4286, %v4278
    %v5303 = vpack.c.b16 %v4287, %v4279
    %v5304 = vpack.c.b16 %v4288, %v4280
    %v5305 = vpack.c.b16 %v4289, %v4281
    %v5306 = vpack.c.b16 %v4290, %v4282
    %v5307 = vpack.c.b16 %v4291, %v4283
    %v5308 = vpack.c.b16 %v4300, %v4292
    %v5309 = vpack.c.b16 %v4301, %v4293
    %v5310 = vpack.c.b16 %v4302, %v4294
    %v5311 = vpack.c.b16 %v4303, %v4295
    %v5312 = vpack.c.b16 %v4304, %v4296
    %v5313 = vpack.c.b16 %v4305, %v4297
    %v5314 = vpack.c.b16 %v4306, %v4298
    %v5315 = vpack.c.b16 %v4307, %v4299
    %v5316 = vpack.c.b16 %v4316, %v4308
    %v5317 = vpack.c.b16 %v4317, %v4309
    %v5318 = vpack.c.b16 %v4318, %v4310
    %v5319 = vpack.c.b16 %v4319, %v4311
    %v5320 = vpack.c.b16 %v4320, %v4312
    %v5321 = vpack.c.b16 %v4321, %v4313
    %v5322 = vpack.c.b16 %v4322, %v4314
    %v5323 = vpack.c.b16 %v4323, %v4315
    %v5324 = vpack.c.b16 %v4332, %v4324
    %v5325 = vpack.c.b16 %v4333, %v4325
    %v5326 = vpack.c.b16 %v4334, %v4326
    %v5327 = vpack.c.b16 %v4335, %v4327
    %v5328 = vpack.c.b16 %v4336, %v4328
    %v5329 = vpack.c.b16 %v4337, %v4329
    %v5330 = vpack.c.b16 %v4338, %v4330
    %v5331 = vpack.c.b16 %v4339, %v4331
    %v5332 = vpack.c.b16 %v4348, %v4340
    %v5333 = vpack.c.b16 %v4349, %v4341
    %v5334 = vpack.c.b16 %v4350, %v4342
    %v5335 = vpack.c.b16 %v4351, %v4343
    %v5336 = vpack.c.b16 %v4352, %v4344
    %v5337 = vpack.c.b16 %v4353, %v4345
    %v5338 = vpack.c.b16 %v4354, %v4346
    %v5339 = vpack.c.b16 %v4355, %v4347
    %v5340 = vpack.c.b16 %v4364, %v4356
    %v5341 = vpack.c.b16 %v4365, %v4357
    %v5342 = vpack.c.b16 %v4366, %v4358
    %v5343 = vpack.c.b16 %v4367, %v4359
    %v5344 = vpack.c.b16 %v4368, %v4360
    %v5345 = vpack.c.b16 %v4369, %v4361
    %v5346 = vpack.c.b16 %v4370, %v4362
    %v5347 = vpack.c.b16 %v4371, %v4363
    %v5348 = vpack.c.b16 %v4380, %v4372
    %v5349 = vpack.c.b16 %v4381, %v4373
    %v5350 = vpack.c.b16 %v4382, %v4374
    %v5351 = vpack.c.b16 %v4383, %v4375
    %v5352 = vpack.c.b16 %v4384, %v4376
    %v5353 = vpack.c.b16 %v4385, %v4377
    %v5354 = vpack.c.b16 %v4386, %v4378
    %v5355 = vpack.c.b16 %v4387, %v4379
    %v5356 = vpack.c.b16 %v4396, %v4388
    %v5357 = vpack.c.b16 %v4397, %v4389
    %v5358 = vpack.c.b16 %v4398, %v4390
    %v5359 = vpack.c.b16 %v4399, %v4391
    %v5360 = vpack.c.b16 %v4400, %v4392
    %v5361 = vpack.c.b16 %v4401, %v4393
    %v5362 = vpack.c.b16 %v4402, %v4394
    %v5363 = vpack.c.b16 %v4403, %v4395
    %v5364 = vpack.c.b16 %v4412, %v4404
    %v5365 = vpack.c.b16 %v4413, %v4405
    %v5366 = vpack.c.b16 %v4414, %v4406
    %v5367 = vpack.c.b16 %v4415, %v4407
    %v5368 = vpack.c.b16 %v4416, %v4408
    %v5369 = vpack.c.b16 %v4417, %v4409
    %v5370 = vpack.c.b16 %v4418, %v4410
    %v5371 = vpack.c.b16 %v4419, %v4411
    %v5372 = vpack.c.b16 %v4428, %v4420
    %v5373 = vpack.c.b16 %v4429, %v4421
    %v5374 = vpack.c.b16 %v4430, %v4422
    %v5375 = vpack.c.b16 %v4431, %v4423
    %v5376 = vpack.c.b16 %v4432, %v4424
    %v5377 = vpack.c.b16 %v4433, %v4425
    %v5378 = vpack.c.b16 %v4434, %v4426
    %v5379 = vpack.c.b16 %v4435, %v4427
    %v5380 = vpack.c.b16 %v4444, %v4436
    %v5381 = vpack.c.b16 %v4445, %v4437
    %v5382 = vpack.c.b16 %v4446, %v4438
    %v5383 = vpack.c.b16 %v4447, %v4439
    %v5384 = vpack.c.b16 %v4448, %v4440
    %v5385 = vpack.c.b16 %v4449, %v4441
    %v5386 = vpack.c.b16 %v4450, %v4442
    %v5387 = vpack.c.b16 %v4451, %v4443
    %v5388 = vpack.c.b16 %v4460, %v4452
    %v5389 = vpack.c.b16 %v4461, %v4453
    %v5390 = vpack.c.b16 %v4462, %v4454
    %v5391 = vpack.c.b16 %v4463, %v4455
    %v5392 = vpack.c.b16 %v4464, %v4456
    %v5393 = vpack.c.b16 %v4465, %v4457
    %v5394 = vpack.c.b16 %v4466, %v4458
    %v5395 = vpack.c.b16 %v4467, %v4459
    %v5396 = vpack.c.b16 %v4476, %v4468
    %v5397 = vpack.c.b16 %v4477, %v4469
    %v5398 = vpack.c.b16 %v4478, %v4470
    %v5399 = vpack.c.b16 %v4479, %v4471
    %v5400 = vpack.c.b16 %v4480, %v4472
    %v5401 = vpack.c.b16 %v4481, %v4473
    %v5402 = vpack.c.b16 %v4482, %v4474
    %v5403 = vpack.c.b16 %v4483, %v4475
    %v5404 = vpack.c.b16 %v4492, %v4484
    %v5405 = vpack.c.b16 %v4493, %v4485
    %v5406 = vpack.c.b16 %v4494, %v4486
    %v5407 = vpack.c.b16 %v4495, %v4487
    %v5408 = vpack.c.b16 %v4496, %v4488
    %v5409 = vpack.c.b16 %v4497, %v4489
    %v5410 = vpack.c.b16 %v4498, %v4490
    %v5411 = vpack.c.b16 %v4499, %v4491
    %v5412 = vpack.c.b16 %v4508, %v4500
    %v5413 = vpack.c.b16 %v4509, %v4501
    %v5414 = vpack.c.b16 %v4510, %v4502
    %v5415 = vpack.c.b16 %v4511, %v4503
    %v5416 = vpack.c.b16 %v4512, %v4504
    %v5417 = vpack.c.b16 %v4513, %v4505
    %v5418 = vpack.c.b16 %v4514, %v4506
    %v5419 = vpack.c.b16 %v4515, %v4507
    %v5420 = vpack.c.b16 %v4524, %v4516
    %v5421 = vpack.c.b16 %v4525, %v4517
    %v5422 = vpack.c.b16 %v4526, %v4518
    %v5423 = vpack.c.b16 %v4527, %v4519
    %v5424 = vpack.c.b16 %v4528, %v4520
    %v5425 = vpack.c.b16 %v4529, %v4521
    %v5426 = vpack.c.b16 %v4530, %v4522
    %v5427 = vpack.c.b16 %v4531, %v4523
    %v5428 = vpack.c.b16 %v4540, %v4532
    %v5429 = vpack.c.b16 %v4541, %v4533
    %v5430 = vpack.c.b16 %v4542, %v4534
    %v5431 = vpack.c.b16 %v4543, %v4535
    %v5432 = vpack.c.b16 %v4544, %v4536
    %v5433 = vpack.c.b16 %v4545, %v4537
    %v5434 = vpack.c.b16 %v4546, %v4538
    %v5435 = vpack.c.b16 %v4547, %v4539
    %v5436 = vpack.c.b16 %v4556, %v4548
    %v5437 = vpack.c.b16 %v4557, %v4549
    %v5438 = vpack.c.b16 %v4558, %v4550
    %v5439 = vpack.c.b16 %v4559, %v4551
    %v5440 = vpack.c.b16 %v4560, %v4552
    %v5441 = vpack.c.b16 %v4561, %v4553
    %v5442 = vpack.c.b16 %v4562, %v4554
    %v5443 = vpack.c.b16 %v4563, %v4555
    %v5444 = vpack.c.b16 %v4572, %v4564
    %v5445 = vpack.c.b16 %v4573, %v4565
    %v5446 = vpack.c.b16 %v4574, %v4566
    %v5447 = vpack.c.b16 %v4575, %v4567
    %v5448 = vpack.c.b16 %v4576, %v4568
    %v5449 = vpack.c.b16 %v4577, %v4569
    %v5450 = vpack.c.b16 %v4578, %v4570
    %v5451 = vpack.c.b16 %v4579, %v4571
    %v5452 = vpack.c.b16 %v4588, %v4580
    %v5453 = vpack.c.b16 %v4589, %v4581
    %v5454 = vpack.c.b16 %v4590, %v4582
    %v5455 = vpack.c.b16 %v4591, %v4583
    %v5456 = vpack.c.b16 %v4592, %v4584
    %v5457 = vpack.c.b16 %v4593, %v4585
    %v5458 = vpack.c.b16 %v4594, %v4586
    %v5459 = vpack.c.b16 %v4595, %v4587
    %v5460 = vpack.c.b16 %v4604, %v4596
    %v5461 = vpack.c.b16 %v4605, %v4597
    %v5462 = vpack.c.b16 %v4606, %v4598
    %v5463 = vpack.c.b16 %v4607, %v4599
    %v5464 = vpack.c.b16 %v4608, %v4600
    %v5465 = vpack.c.b16 %v4609, %v4601
    %v5466 = vpack.c.b16 %v4610, %v4602
    %v5467 = vpack.c.b16 %v4611, %v4603
    %v5468 = vpack.c.b16 %v4620, %v4612
    %v5469 = vpack.c.b16 %v4621, %v4613
    %v5470 = vpack.c.b16 %v4622, %v4614
    %v5471 = vpack.c.b16 %v4623, %v4615
    %v5472 = vpack.c.b16 %v4624, %v4616
    %v5473 = vpack.c.b16 %v4625, %v4617
    %v5474 = vpack.c.b16 %v4626, %v4618
    %v5475 = vpack.c.b16 %v4627, %v4619
    %v5476 = vpack.c.b16 %v4636, %v4628
    %v5477 = vpack.c.b16 %v4637, %v4629
    %v5478 = vpack.c.b16 %v4638, %v4630
    %v5479 = vpack.c.b16 %v4639, %v4631
    %v5480 = vpack.c.b16 %v4640, %v4632
    %v5481 = vpack.c.b16 %v4641, %v4633
    %v5482 = vpack.c.b16 %v4642, %v4634
    %v5483 = vpack.c.b16 %v4643, %v4635
    %v5484 = vpack.c.b16 %v4652, %v4644
    %v5485 = vpack.c.b16 %v4653, %v4645
    %v5486 = vpack.c.b16 %v4654, %v4646
    %v5487 = vpack.c.b16 %v4655, %v4647
    %v5488 = vpack.c.b16 %v4656, %v4648
    %v5489 = vpack.c.b16 %v4657, %v4649
    %v5490 = vpack.c.b16 %v4658, %v4650
    %v5491 = vpack.c.b16 %v4659, %v4651
    %v5492 = vpack.c.b16 %v4668, %v4660
    %v5493 = vpack.c.b16 %v4669, %v4661
    %v5494 = vpack.c.b16 %v4670, %v4662
    %v5495 = vpack.c.b16 %v4671, %v4663
    %v5496 = vpack.c.b16 %v4672, %v4664
    %v5497 = vpack.c.b16 %v4673, %v4665
    %v5498 = vpack.c.b16 %v4674, %v4666
    %v5499 = vpack.c.b16 %v4675, %v4667
    %v5500 = vpack.c.b16 %v4684, %v4676
    %v5501 = vpack.c.b16 %v4685, %v4677
    %v5502 = vpack.c.b16 %v4686, %v4678
    %v5503 = vpack.c.b16 %v4687, %v4679
    %v5504 = vpack.c.b16 %v4688, %v4680
    %v5505 = vpack.c.b16 %v4689, %v4681
    %v5506 = vpack.c.b16 %v4690, %v4682
    %v5507 = vpack.c.b16 %v4691, %v4683
    %v5508 = vpack.c.b16 %v4700, %v4692
    %v5509 = vpack.c.b16 %v4701, %v4693
    %v5510 = vpack.c.b16 %v4702, %v4694
    %v5511 = vpack.c.b16 %v4703, %v4695
    %v5512 = vpack.c.b16 %v4704, %v4696
    %v5513 = vpack.c.b16 %v4705, %v4697
    %v5514 = vpack.c.b16 %v4706, %v4698
    %v5515 = vpack.c.b16 %v4707, %v4699
    %v5516 = vpack.c.b16 %v4716, %v4708
    %v5517 = vpack.c.b16 %v4717, %v4709
    %v5518 = vpack.c.b16 %v4718, %v4710
    %v5519 = vpack.c.b16 %v4719, %v4711
    %v5520 = vpack.c.b16 %v4720, %v4712
    %v5521 = vpack.c.b16 %v4721, %v4713
    %v5522 = vpack.c.b16 %v4722, %v4714
    %v5523 = vpack.c.b16 %v4723, %v4715
    %v5524 = vpack.c.b16 %v4732, %v4724
    %v5525 = vpack.c.b16 %v4733, %v4725
    %v5526 = vpack.c.b16 %v4734, %v4726
    %v5527 = vpack.c.b16 %v4735, %v4727
    %v5528 = vpack.c.b16 %v4736, %v4728
    %v5529 = vpack.c.b16 %v4737, %v4729
    %v5530 = vpack.c.b16 %v4738, %v4730
    %v5531 = vpack.c.b16 %v4739, %v4731
    %v5532 = vpack.c.b16 %v4748, %v4740
    %v5533 = vpack.c.b16 %v4749, %v4741
    %v5534 = vpack.c.b16 %v4750, %v4742
    %v5535 = vpack.c.b16 %v4751, %v4743
    %v5536 = vpack.c.b16 %v4752, %v4744
    %v5537 = vpack.c.b16 %v4753, %v4745
    %v5538 = vpack.c.b16 %v4754, %v4746
    %v5539 = vpack.c.b16 %v4755, %v4747
    %v5540 = vpack.c.b16 %v4764, %v4756
    %v5541 = vpack.c.b16 %v4765, %v4757
    %v5542 = vpack.c.b16 %v4766, %v4758
    %v5543 = vpack.c.b16 %v4767, %v4759
    %v5544 = vpack.c.b16 %v4768, %v4760
    %v5545 = vpack.c.b16 %v4769, %v4761
    %v5546 = vpack.c.b16 %v4770, %v4762
    %v5547 = vpack.c.b16 %v4771, %v4763
    %v5548 = vpack.c.b16 %v4780, %v4772
    %v5549 = vpack.c.b16 %v4781, %v4773
    %v5550 = vpack.c.b16 %v4782, %v4774
    %v5551 = vpack.c.b16 %v4783, %v4775
    %v5552 = vpack.c.b16 %v4784, %v4776
    %v5553 = vpack.c.b16 %v4785, %v4777
    %v5554 = vpack.c.b16 %v4786, %v4778
    %v5555 = vpack.c.b16 %v4787, %v4779
    %v5556 = vpack.c.b16 %v4796, %v4788
    %v5557 = vpack.c.b16 %v4797, %v4789
    %v5558 = vpack.c.b16 %v4798, %v4790
    %v5559 = vpack.c.b16 %v4799, %v4791
    %v5560 = vpack.c.b16 %v4800, %v4792
    %v5561 = vpack.c.b16 %v4801, %v4793
    %v5562 = vpack.c.b16 %v4802, %v4794
    %v5563 = vpack.c.b16 %v4803, %v4795
    %v5564 = vpack.c.b16 %v4812, %v4804
    %v5565 = vpack.c.b16 %v4813, %v4805
    %v5566 = vpack.c.b16 %v4814, %v4806
    %v5567 = vpack.c.b16 %v4815, %v4807
    %v5568 = vpack.c.b16 %v4816, %v4808
    %v5569 = vpack.c.b16 %v4817, %v4809
    %v5570 = vpack.c.b16 %v4818, %v4810
    %v5571 = vpack.c.b16 %v4819, %v4811
    %v5572 = vpack.c.b16 %v4828, %v4820
    %v5573 = vpack.c.b16 %v4829, %v4821
    %v5574 = vpack.c.b16 %v4830, %v4822
    %v5575 = vpack.c.b16 %v4831, %v4823
    %v5576 = vpack.c.b16 %v4832, %v4824
    %v5577 = vpack.c.b16 %v4833, %v4825
    %v5578 = vpack.c.b16 %v4834, %v4826
    %v5579 = vpack.c.b16 %v4835, %v4827
    %v5580 = vpack.c.b16 %v4844, %v4836
    %v5581 = vpack.c.b16 %v4845, %v4837
    %v5582 = vpack.c.b16 %v4846, %v4838
    %v5583 = vpack.c.b16 %v4847, %v4839
    %v5584 = vpack.c.b16 %v4848, %v4840
    %v5585 = vpack.c.b16 %v4849, %v4841
    %v5586 = vpack.c.b16 %v4850, %v4842
    %v5587 = vpack.c.b16 %v4851, %v4843
    %v5588 = vpack.c.b16 %v4860, %v4852
    %v5589 = vpack.c.b16 %v4861, %v4853
    %v5590 = vpack.c.b16 %v4862, %v4854
    %v5591 = vpack.c.b16 %v4863, %v4855
    %v5592 = vpack.c.b16 %v4864, %v4856
    %v5593 = vpack.c.b16 %v4865, %v4857
    %v5594 = vpack.c.b16 %v4866, %v4858
    %v5595 = vpack.c.b16 %v4867, %v4859
    %v5596 = vpack.c.b16 %v4876, %v4868
    %v5597 = vpack.c.b16 %v4877, %v4869
    %v5598 = vpack.c.b16 %v4878, %v4870
    %v5599 = vpack.c.b16 %v4879, %v4871
    %v5600 = vpack.c.b16 %v4880, %v4872
    %v5601 = vpack.c.b16 %v4881, %v4873
    %v5602 = vpack.c.b16 %v4882, %v4874
    %v5603 = vpack.c.b16 %v4883, %v4875
    %v5604 = vpack.c.b16 %v4892, %v4884
    %v5605 = vpack.c.b16 %v4893, %v4885
    %v5606 = vpack.c.b16 %v4894, %v4886
    %v5607 = vpack.c.b16 %v4895, %v4887
    %v5608 = vpack.c.b16 %v4896, %v4888
    %v5609 = vpack.c.b16 %v4897, %v4889
    %v5610 = vpack.c.b16 %v4898, %v4890
    %v5611 = vpack.c.b16 %v4899, %v4891
    %v5612 = vpack.c.b16 %v4908, %v4900
    %v5613 = vpack.c.b16 %v4909, %v4901
    %v5614 = vpack.c.b16 %v4910, %v4902
    %v5615 = vpack.c.b16 %v4911, %v4903
    %v5616 = vpack.c.b16 %v4912, %v4904
    %v5617 = vpack.c.b16 %v4913, %v4905
    %v5618 = vpack.c.b16 %v4914, %v4906
    %v5619 = vpack.c.b16 %v4915, %v4907
    %v5620 = vpack.c.b16 %v4924, %v4916
    %v5621 = vpack.c.b16 %v4925, %v4917
    %v5622 = vpack.c.b16 %v4926, %v4918
    %v5623 = vpack.c.b16 %v4927, %v4919
    %v5624 = vpack.c.b16 %v4928, %v4920
    %v5625 = vpack.c.b16 %v4929, %v4921
    %v5626 = vpack.c.b16 %v4930, %v4922
    %v5627 = vpack.c.b16 %v4931, %v4923
    %v5628 = vpack.c.b16 %v4940, %v4932
    %v5629 = vpack.c.b16 %v4941, %v4933
    %v5630 = vpack.c.b16 %v4942, %v4934
    %v5631 = vpack.c.b16 %v4943, %v4935
    %v5632 = vpack.c.b16 %v4944, %v4936
    %v5633 = vpack.c.b16 %v4945, %v4937
    %v5634 = vpack.c.b16 %v4946, %v4938
    %v5635 = vpack.c.b16 %v4947, %v4939
    %v5636 = vpack.c.b16 %v4956, %v4948
    %v5637 = vpack.c.b16 %v4957, %v4949
    %v5638 = vpack.c.b16 %v4958, %v4950
    %v5639 = vpack.c.b16 %v4959, %v4951
    %v5640 = vpack.c.b16 %v4960, %v4952
    %v5641 = vpack.c.b16 %v4961, %v4953
    %v5642 = vpack.c.b16 %v4962, %v4954
    %v5643 = vpack.c.b16 %v4963, %v4955
    %v5644 = vpack.c.b16 %v4972, %v4964
    %v5645 = vpack.c.b16 %v4973, %v4965
    %v5646 = vpack.c.b16 %v4974, %v4966
    %v5647 = vpack.c.b16 %v4975, %v4967
    %v5648 = vpack.c.b16 %v4976, %v4968
    %v5649 = vpack.c.b16 %v4977, %v4969
    %v5650 = vpack.c.b16 %v4978, %v4970
    %v5651 = vpack.c.b16 %v4979, %v4971
    %v5652 = vpack.c.b16 %v4988, %v4980
    %v5653 = vpack.c.b16 %v4989, %v4981
    %v5654 = vpack.c.b16 %v4990, %v4982
    %v5655 = vpack.c.b16 %v4991, %v4983
    %v5656 = vpack.c.b16 %v4992, %v4984
    %v5657 = vpack.c.b16 %v4993, %v4985
    %v5658 = vpack.c.b16 %v4994, %v4986
    %v5659 = vpack.c.b16 %v4995, %v4987
    %v5660 = vpack.c.b16 %v5004, %v4996
    %v5661 = vpack.c.b16 %v5005, %v4997
    %v5662 = vpack.c.b16 %v5006, %v4998
    %v5663 = vpack.c.b16 %v5007, %v4999
    %v5664 = vpack.c.b16 %v5008, %v5000
    %v5665 = vpack.c.b16 %v5009, %v5001
    %v5666 = vpack.c.b16 %v5010, %v5002
    %v5667 = vpack.c.b16 %v5011, %v5003
    %v5668 = vpack.c.b16 %v5020, %v5012
    %v5669 = vpack.c.b16 %v5021, %v5013
    %v5670 = vpack.c.b16 %v5022, %v5014
    %v5671 = vpack.c.b16 %v5023, %v5015
    %v5672 = vpack.c.b16 %v5024, %v5016
    %v5673 = vpack.c.b16 %v5025, %v5017
    %v5674 = vpack.c.b16 %v5026, %v5018
    %v5675 = vpack.c.b16 %v5027, %v5019
    %v5676 = vpack.c.b16 %v5036, %v5028
    %v5677 = vpack.c.b16 %v5037, %v5029
    %v5678 = vpack.c.b16 %v5038, %v5030
    %v5679 = vpack.c.b16 %v5039, %v5031
    %v5680 = vpack.c.b16 %v5040, %v5032
    %v5681 = vpack.c.b16 %v5041, %v5033
    %v5682 = vpack.c.b16 %v5042, %v5034
    %v5683 = vpack.c.b16 %v5043, %v5035
    %v5684 = vpack.c.b16 %v5052, %v5044
    %v5685 = vpack.c.b16 %v5053, %v5045
    %v5686 = vpack.c.b16 %v5054, %v5046
    %v5687 = vpack.c.b16 %v5055, %v5047
    %v5688 = vpack.c.b16 %v5056, %v5048
    %v5689 = vpack.c.b16 %v5057, %v5049
    %v5690 = vpack.c.b16 %v5058, %v5050
    %v5691 = vpack.c.b16 %v5059, %v5051
    %v5692 = vpack.c.b16 %v5068, %v5060
    %v5693 = vpack.c.b16 %v5069, %v5061
    %v5694 = vpack.c.b16 %v5070, %v5062
    %v5695 = vpack.c.b16 %v5071, %v5063
    %v5696 = vpack.c.b16 %v5072, %v5064
    %v5697 = vpack.c.b16 %v5073, %v5065
    %v5698 = vpack.c.b16 %v5074, %v5066
    %v5699 = vpack.c.b16 %v5075, %v5067
    %v5700 = vpack.c.b16 %v5084, %v5076
    %v5701 = vpack.c.b16 %v5085, %v5077
    %v5702 = vpack.c.b16 %v5086, %v5078
    %v5703 = vpack.c.b16 %v5087, %v5079
    %v5704 = vpack.c.b16 %v5088, %v5080
    %v5705 = vpack.c.b16 %v5089, %v5081
    %v5706 = vpack.c.b16 %v5090, %v5082
    %v5707 = vpack.c.b16 %v5091, %v5083
    %v5708 = vpack.c.b16 %v5100, %v5092
    %v5709 = vpack.c.b16 %v5101, %v5093
    %v5710 = vpack.c.b16 %v5102, %v5094
    %v5711 = vpack.c.b16 %v5103, %v5095
    %v5712 = vpack.c.b16 %v5104, %v5096
    %v5713 = vpack.c.b16 %v5105, %v5097
    %v5714 = vpack.c.b16 %v5106, %v5098
    %v5715 = vpack.c.b16 %v5107, %v5099
    %v5716 = vpack.c.b16 %v5116, %v5108
    %v5717 = vpack.c.b16 %v5117, %v5109
    %v5718 = vpack.c.b16 %v5118, %v5110
    %v5719 = vpack.c.b16 %v5119, %v5111
    %v5720 = vpack.c.b16 %v5120, %v5112
    %v5721 = vpack.c.b16 %v5121, %v5113
    %v5722 = vpack.c.b16 %v5122, %v5114
    %v5723 = vpack.c.b16 %v5123, %v5115
    %v5724 = vpack.c.b16 %v5132, %v5124
    %v5725 = vpack.c.b16 %v5133, %v5125
    %v5726 = vpack.c.b16 %v5134, %v5126
    %v5727 = vpack.c.b16 %v5135, %v5127
    %v5728 = vpack.c.b16 %v5136, %v5128
    %v5729 = vpack.c.b16 %v5137, %v5129
    %v5730 = vpack.c.b16 %v5138, %v5130
    %v5731 = vpack.c.b16 %v5139, %v5131
    %v5732 = vpack.c.b16 %v5148, %v5140
    %v5733 = vpack.c.b16 %v5149, %v5141
    %v5734 = vpack.c.b16 %v5150, %v5142
    %v5735 = vpack.c.b16 %v5151, %v5143
    %v5736 = vpack.c.b16 %v5152, %v5144
    %v5737 = vpack.c.b16 %v5153, %v5145
    %v5738 = vpack.c.b16 %v5154, %v5146
    %v5739 = vpack.c.b16 %v5155, %v5147
    %v5740 = vpack.c.b16 %v5164, %v5156
    %v5741 = vpack.c.b16 %v5165, %v5157
    %v5742 = vpack.c.b16 %v5166, %v5158
    %v5743 = vpack.c.b16 %v5167, %v5159
    %v5744 = vpack.c.b16 %v5168, %v5160
    %v5745 = vpack.c.b16 %v5169, %v5161
    %v5746 = vpack.c.b16 %v5170, %v5162
    %v5747 = vpack.c.b16 %v5171, %v5163
    %v5748 = vpack.c.b16 %v5180, %v5172
    %v5749 = vpack.c.b16 %v5181, %v5173
    %v5750 = vpack.c.b16 %v5182, %v5174
    %v5751 = vpack.c.b16 %v5183, %v5175
    %v5752 = vpack.c.b16 %v5184, %v5176
    %v5753 = vpack.c.b16 %v5185, %v5177
    %v5754 = vpack.c.b16 %v5186, %v5178
    %v5755 = vpack.c.b16 %v5187, %v5179
    %v5756 = vpack.c.b16 %v5196, %v5188
    %v5757 = vpack.c.b16 %v5197, %v5189
    %v5758 = vpack.c.b16 %v5198, %v5190
    %v5759 = vpack.c.b16 %v5199, %v5191
    %v5760 = vpack.c.b16 %v5200, %v5192
    %v5761 = vpack.c.b16 %v5201, %v5193
    %v5762 = vpack.c.b16 %v5202, %v5194
    %v5763 = vpack.c.b16 %v5203, %v5195
    %v5764 = vpack.c.b16 %v5212, %v5204
    %v5765 = vpack.c.b16 %v5213, %v5205
    %v5766 = vpack.c.b16 %v5214, %v5206
    %v5767 = vpack.c.b16 %v5215, %v5207
    %v5768 = vpack.c.b16 %v5216, %v5208
    %v5769 = vpack.c.b16 %v5217, %v5209
    %v5770 = vpack.c.b16 %v5218, %v5210
    %v5771 = vpack.c.b16 %v5219, %v5211
    %v5772 = vpack.c.b16 %v5228, %v5220
    %v5773 = vpack.c.b16 %v5229, %v5221
    %v5774 = vpack.c.b16 %v5230, %v5222
    %v5775 = vpack.c.b16 %v5231, %v5223
    %v5776 = vpack.c.b16 %v5232, %v5224
    %v5777 = vpack.c.b16 %v5233, %v5225
    %v5778 = vpack.c.b16 %v5234, %v5226
    %v5779 = vpack.c.b16 %v5235, %v5227
    %v5780 = vpack.c.b16 %v5244, %v5236
    %v5781 = vpack.c.b16 %v5245, %v5237
    %v5782 = vpack.c.b16 %v5246, %v5238
    %v5783 = vpack.c.b16 %v5247, %v5239
    %v5784 = vpack.c.b16 %v5248, %v5240
    %v5785 = vpack.c.b16 %v5249, %v5241
    %v5786 = vpack.c.b16 %v5250, %v5242
    %v5787 = vpack.c.b16 %v5251, %v5243
    %v5788 = vpack.c.b16 %v5260, %v5252
    %v5789 = vpack.c.b16 %v5261, %v5253
    %v5790 = vpack.c.b16 %v5262, %v5254
    %v5791 = vpack.c.b16 %v5263, %v5255
    %v5792 = vpack.c.b16 %v5264, %v5256
    %v5793 = vpack.c.b16 %v5265, %v5257
    %v5794 = vpack.c.b16 %v5266, %v5258
    %v5795 = vpack.c.b16 %v5267, %v5259
    %v5796 = vpack.c.b16 %v5276, %v5268
    %v5797 = vpack.c.b16 %v5277, %v5269
    %v5798 = vpack.c.b16 %v5278, %v5270
    %v5799 = vpack.c.b16 %v5279, %v5271
    %v5800 = vpack.c.b16 %v5280, %v5272
    %v5801 = vpack.c.b16 %v5281, %v5273
    %v5802 = vpack.c.b16 %v5282, %v5274
    %v5803 = vpack.c.b16 %v5283, %v5275
    %v5804 = vpack.c.b16 %v5292, %v5284
    %v5805 = vpack.c.b16 %v5293, %v5285
    %v5806 = vpack.c.b16 %v5294, %v5286
    %v5807 = vpack.c.b16 %v5295, %v5287
    %v5808 = vpack.c.b16 %v5296, %v5288
    %v5809 = vpack.c.b16 %v5297, %v5289
    %v5810 = vpack.c.b16 %v5298, %v5290
    %v5811 = vpack.c.b16 %v5299, %v5291
    %6324 = vmatprep.subr.bf16.mxu0 %v5301
    %6325 = vmatpush1.bf16.msra.mxu0 %v5300
    %6326 = vmatprep.subr.bf16.mxu0 %v5309
    %6327 = vmatpush1.bf16.msra.mxu0 %v5308
    %6328 = vmatprep.subr.bf16.mxu0 %v5317
    %6329 = vmatpush1.bf16.msra.mxu0 %v5316
    %6330 = vmatprep.subr.bf16.mxu0 %v5325
    %6331 = vmatpush1.bf16.msra.mxu0 %v5324
    %6332 = vmatprep.subr.bf16.mxu0 %v5333
    %6333 = vmatpush1.bf16.msra.mxu0 %v5332
    %6334 = vmatprep.subr.bf16.mxu0 %v5341
    %6335 = vmatpush1.bf16.msra.mxu0 %v5340
    %6336 = vmatprep.subr.bf16.mxu0 %v5349
    %6337 = vmatpush1.bf16.msra.mxu0 %v5348
    %6338 = vmatprep.subr.bf16.mxu0 %v5357
    %6339 = vmatpush1.bf16.msra.mxu0 %v5356
    %6340 = vmatprep.subr.bf16.mxu0 %v5365
    %6341 = vmatpush1.bf16.msra.mxu0 %v5364
    %6342 = vmatprep.subr.bf16.mxu0 %v5373
    %6343 = vmatpush1.bf16.msra.mxu0 %v5372
    %6344 = vmatprep.subr.bf16.mxu0 %v5381
    %6345 = vmatpush1.bf16.msra.mxu0 %v5380
    %6346 = vmatprep.subr.bf16.mxu0 %v5389
    %6347 = vmatpush1.bf16.msra.mxu0 %v5388
    %6348 = vmatprep.subr.bf16.mxu0 %v5397
    %6349 = vmatpush1.bf16.msra.mxu0 %v5396
    %6350 = vmatprep.subr.bf16.mxu0 %v5405
    %6351 = vmatpush1.bf16.msra.mxu0 %v5404
    %6352 = vmatprep.subr.bf16.mxu0 %v5413
    %6353 = vmatpush1.bf16.msra.mxu0 %v5412
    %6354 = vmatprep.subr.bf16.mxu0 %v5421
    %6355 = vmatpush1.bf16.msra.mxu0 %v5420
    %6356 = vmatprep.mubr.bf16.mxu0 %v3203
    %6357 = vmatmul.mubr.bf16.gmra.mrb[0].mxu0 %v3202
    %v6358 = vpop.f32.mrb[0].mxu0
    %v6359 = vadd.f32 %v3727, %v6358
    %v6360 = vpop.f32.mrb[0].mxu0
    %v6361 = vadd.f32 %v3731, %v6360
    %v6362 = vpop.f32.mrb[0].mxu0
    %v6363 = vadd.f32 %v3727, %v6362
    %v6364 = vpop.f32.mrb[0].mxu0
    %v6365 = vadd.f32 %v3731, %v6364
    %6366 = vdwg.mxu0
    %6367 = vmatprep.subr.bf16.mxu0 %v5429
    %6368 = vmatpush1.bf16.msra.mxu0 %v5428
    %6369 = vmatprep.subr.bf16.mxu0 %v5437
    %6370 = vmatpush1.bf16.msra.mxu0 %v5436
    %6371 = vmatprep.subr.bf16.mxu0 %v5445
    %6372 = vmatpush1.bf16.msra.mxu0 %v5444
    %6373 = vmatprep.subr.bf16.mxu0 %v5453
    %6374 = vmatpush1.bf16.msra.mxu0 %v5452
    %6375 = vmatprep.subr.bf16.mxu0 %v5461
    %6376 = vmatpush1.bf16.msra.mxu0 %v5460
    %6377 = vmatprep.subr.bf16.mxu0 %v5469
    %6378 = vmatpush1.bf16.msra.mxu0 %v5468
    %6379 = vmatprep.subr.bf16.mxu0 %v5477
    %6380 = vmatpush1.bf16.msra.mxu0 %v5476
    %6381 = vmatprep.subr.bf16.mxu0 %v5485
    %6382 = vmatpush1.bf16.msra.mxu0 %v5484
    %6383 = vmatprep.subr.bf16.mxu0 %v5493
    %6384 = vmatpush1.bf16.msra.mxu0 %v5492
    %6385 = vmatprep.subr.bf16.mxu0 %v5501
    %6386 = vmatpush1.bf16.msra.mxu0 %v5500
    %6387 = vmatprep.subr.bf16.mxu0 %v5509
    %6388 = vmatpush1.bf16.msra.mxu0 %v5508
    %6389 = vmatprep.subr.bf16.mxu0 %v5517
    %6390 = vmatpush1.bf16.msra.mxu0 %v5516
    %6391 = vmatprep.subr.bf16.mxu0 %v5525
    %6392 = vmatpush1.bf16.msra.mxu0 %v5524
    %6393 = vmatprep.subr.bf16.mxu0 %v5533
    %6394 = vmatpush1.bf16.msra.mxu0 %v5532
    %6395 = vmatprep.subr.bf16.mxu0 %v5541
    %6396 = vmatpush1.bf16.msra.mxu0 %v5540
    %6397 = vmatprep.subr.bf16.mxu0 %v5549
    %6398 = vmatpush1.bf16.msra.mxu0 %v5548
    %6399 = vmatprep.mubr.bf16.mxu0 %v3205
    %6400 = vmatmul.mubr.bf16.gmra.mrb[0].mxu0 %v3204
    %v6401 = vpop.f32.mrb[0].mxu0
    %v6402 = vadd.f32 %v6359, %v6401
    %v6403 = vpop.f32.mrb[0].mxu0
    %v6404 = vadd.f32 %v6361, %v6403
    %v6405 = vpop.f32.mrb[0].mxu0
    %v6406 = vadd.f32 %v6363, %v6405
    %v6407 = vpop.f32.mrb[0].mxu0
    %v6408 = vadd.f32 %v6365, %v6407
    %6409 = vdwg.mxu0
    %6410 = vmatprep.subr.bf16.mxu0 %v5557
    %6411 = vmatpush1.bf16.msra.mxu0 %v5556
    %6412 = vmatprep.subr.bf16.mxu0 %v5565
    %6413 = vmatpush1.bf16.msra.mxu0 %v5564
    %6414 = vmatprep.subr.bf16.mxu0 %v5573
    %6415 = vmatpush1.bf16.msra.mxu0 %v5572
    %6416 = vmatprep.subr.bf16.mxu0 %v5581
    %6417 = vmatpush1.bf16.msra.mxu0 %v5580
    %6418 = vmatprep.subr.bf16.mxu0 %v5589
    %6419 = vmatpush1.bf16.msra.mxu0 %v5588
    %6420 = vmatprep.subr.bf16.mxu0 %v5597
    %6421 = vmatpush1.bf16.msra.mxu0 %v5596
    %6422 = vmatprep.subr.bf16.mxu0 %v5605
    %6423 = vmatpush1.bf16.msra.mxu0 %v5604
    %6424 = vmatprep.subr.bf16.mxu0 %v5613
    %6425 = vmatpush1.bf16.msra.mxu0 %v5612
    %6426 = vmatprep.subr.bf16.mxu0 %v5621
    %6427 = vmatpush1.bf16.msra.mxu0 %v5620
    %6428 = vmatprep.subr.bf16.mxu0 %v5629
    %6429 = vmatpush1.bf16.msra.mxu0 %v5628
    %6430 = vmatprep.subr.bf16.mxu0 %v5637
    %6431 = vmatpush1.bf16.msra.mxu0 %v5636
    %6432 = vmatprep.subr.bf16.mxu0 %v5645
    %6433 = vmatpush1.bf16.msra.mxu0 %v5644
    %6434 = vmatprep.subr.bf16.mxu0 %v5653
    %6435 = vmatpush1.bf16.msra.mxu0 %v5652
    %6436 = vmatprep.subr.bf16.mxu0 %v5661
    %6437 = vmatpush1.bf16.msra.mxu0 %v5660
    %6438 = vmatprep.subr.bf16.mxu0 %v5669
    %6439 = vmatpush1.bf16.msra.mxu0 %v5668
    %6440 = vmatprep.subr.bf16.mxu0 %v5677
    %6441 = vmatpush1.bf16.msra.mxu0 %v5676
    %6442 = vmatprep.mubr.bf16.mxu0 %v3207
    %6443 = vmatmul.mubr.bf16.gmra.mrb[0].mxu0 %v3206
    %v6444 = vpop.f32.mrb[0].mxu0
    %v6445 = vadd.f32 %v6402, %v6444
    %v6446 = vpop.f32.mrb[0].mxu0
    %v6447 = vadd.f32 %v6404, %v6446
    %v6448 = vpop.f32.mrb[0].mxu0
    %v6449 = vadd.f32 %v6406, %v6448
    %v6450 = vpop.f32.mrb[0].mxu0
    %v6451 = vadd.f32 %v6408, %v6450
    %6452 = vdwg.mxu0
    %6453 = vmatprep.subr.bf16.mxu0 %v5685
    %6454 = vmatpush1.bf16.msra.mxu0 %v5684
    %6455 = vmatprep.subr.bf16.mxu0 %v5693
    %6456 = vmatpush1.bf16.msra.mxu0 %v5692
    %6457 = vmatprep.subr.bf16.mxu0 %v5701
    %6458 = vmatpush1.bf16.msra.mxu0 %v5700
    %6459 = vmatprep.subr.bf16.mxu0 %v5709
    %6460 = vmatpush1.bf16.msra.mxu0 %v5708
    %6461 = vmatprep.subr.bf16.mxu0 %v5717
    %6462 = vmatpush1.bf16.msra.mxu0 %v5716
    %6463 = vmatprep.subr.bf16.mxu0 %v5725
    %6464 = vmatpush1.bf16.msra.mxu0 %v5724
    %6465 = vmatprep.subr.bf16.mxu0 %v5733
    %6466 = vmatpush1.bf16.msra.mxu0 %v5732
    %6467 = vmatprep.subr.bf16.mxu0 %v5741
    %6468 = vmatpush1.bf16.msra.mxu0 %v5740
    %6469 = vmatprep.subr.bf16.mxu0 %v5749
    %6470 = vmatpush1.bf16.msra.mxu0 %v5748
    %6471 = vmatprep.subr.bf16.mxu0 %v5757
    %6472 = vmatpush1.bf16.msra.mxu0 %v5756
    %6473 = vmatprep.subr.bf16.mxu0 %v5765
    %6474 = vmatpush1.bf16.msra.mxu0 %v5764
    %6475 = vmatprep.subr.bf16.mxu0 %v5773
    %6476 = vmatpush1.bf16.msra.mxu0 %v5772
    %6477 = vmatprep.subr.bf16.mxu0 %v5781
    %6478 = vmatpush1.bf16.msra.mxu0 %v5780
    %6479 = vmatprep.subr.bf16.mxu0 %v5789
    %6480 = vmatpush1.bf16.msra.mxu0 %v5788
    %6481 = vmatprep.subr.bf16.mxu0 %v5797
    %6482 = vmatpush1.bf16.msra.mxu0 %v5796
    %6483 = vmatprep.subr.bf16.mxu0 %v5805
    %6484 = vmatpush1.bf16.msra.mxu0 %v5804
    %6485 = vmatprep.mubr.bf16.mxu0 %v3209
    %6486 = vmatmul.mubr.bf16.gmra.mrb[0].mxu0 %v3208
    %v6487 = vpop.f32.mrb[0].mxu0
    %v6488 = vadd.f32 %v6445, %v6487
    %v6489 = vpop.f32.mrb[0].mxu0
    %v6490 = vadd.f32 %v6447, %v6489
    %v6491 = vpop.f32.mrb[0].mxu0
    %v6492 = vadd.f32 %v6449, %v6491
    %v6493 = vpop.f32.mrb[0].mxu0
    %v6494 = vadd.f32 %v6451, %v6493
    %6495 = vdwg.mxu0
    %6496 = vmatprep.subr.bf16.mxu0 %v5303
    %6497 = vmatpush1.bf16.msra.mxu0 %v5302
    %6498 = vmatprep.subr.bf16.mxu0 %v5311
    %6499 = vmatpush1.bf16.msra.mxu0 %v5310
    %6500 = vmatprep.subr.bf16.mxu0 %v5319
    %6501 = vmatpush1.bf16.msra.mxu0 %v5318
    %6502 = vmatprep.subr.bf16.mxu0 %v5327
    %6503 = vmatpush1.bf16.msra.mxu0 %v5326
    %6504 = vmatprep.subr.bf16.mxu0 %v5335
    %6505 = vmatpush1.bf16.msra.mxu0 %v5334
    %6506 = vmatprep.subr.bf16.mxu0 %v5343
    %6507 = vmatpush1.bf16.msra.mxu0 %v5342
    %6508 = vmatprep.subr.bf16.mxu0 %v5351
    %6509 = vmatpush1.bf16.msra.mxu0 %v5350
    %6510 = vmatprep.subr.bf16.mxu0 %v5359
    %6511 = vmatpush1.bf16.msra.mxu0 %v5358
    %6512 = vmatprep.subr.bf16.mxu0 %v5367
    %6513 = vmatpush1.bf16.msra.mxu0 %v5366
    %6514 = vmatprep.subr.bf16.mxu0 %v5375
    %6515 = vmatpush1.bf16.msra.mxu0 %v5374
    %6516 = vmatprep.subr.bf16.mxu0 %v5383
    %6517 = vmatpush1.bf16.msra.mxu0 %v5382
    %6518 = vmatprep.subr.bf16.mxu0 %v5391
    %6519 = vmatpush1.bf16.msra.mxu0 %v5390
    %6520 = vmatprep.subr.bf16.mxu0 %v5399
    %6521 = vmatpush1.bf16.msra.mxu0 %v5398
    %6522 = vmatprep.subr.bf16.mxu0 %v5407
    %6523 = vmatpush1.bf16.msra.mxu0 %v5406
    %6524 = vmatprep.subr.bf16.mxu0 %v5415
    %6525 = vmatpush1.bf16.msra.mxu0 %v5414
    %6526 = vmatprep.subr.bf16.mxu0 %v5423
    %6527 = vmatpush1.bf16.msra.mxu0 %v5422
    %6528 = vmatprep.mubr.bf16.mxu0 %v3203
    %6529 = vmatmul.mubr.bf16.gmra.mrb[0].mxu0 %v3202
    %v6530 = vpop.f32.mrb[0].mxu0
    %v6531 = vadd.f32 %v3735, %v6530
    %v6532 = vpop.f32.mrb[0].mxu0
    %v6533 = vadd.f32 %v3739, %v6532
    %v6534 = vpop.f32.mrb[0].mxu0
    %v6535 = vadd.f32 %v3735, %v6534
    %v6536 = vpop.f32.mrb[0].mxu0
    %v6537 = vadd.f32 %v3739, %v6536
    %6538 = vdwg.mxu0
    %6539 = vmatprep.subr.bf16.mxu0 %v5431
    %6540 = vmatpush1.bf16.msra.mxu0 %v5430
    %6541 = vmatprep.subr.bf16.mxu0 %v5439
    %6542 = vmatpush1.bf16.msra.mxu0 %v5438
    %6543 = vmatprep.subr.bf16.mxu0 %v5447
    %6544 = vmatpush1.bf16.msra.mxu0 %v5446
    %6545 = vmatprep.subr.bf16.mxu0 %v5455
    %6546 = vmatpush1.bf16.msra.mxu0 %v5454
    %6547 = vmatprep.subr.bf16.mxu0 %v5463
    %6548 = vmatpush1.bf16.msra.mxu0 %v5462
    %6549 = vmatprep.subr.bf16.mxu0 %v5471
    %6550 = vmatpush1.bf16.msra.mxu0 %v5470
    %6551 = vmatprep.subr.bf16.mxu0 %v5479
    %6552 = vmatpush1.bf16.msra.mxu0 %v5478
    %6553 = vmatprep.subr.bf16.mxu0 %v5487
    %6554 = vmatpush1.bf16.msra.mxu0 %v5486
    %6555 = vmatprep.subr.bf16.mxu0 %v5495
    %6556 = vmatpush1.bf16.msra.mxu0 %v5494
    %6557 = vmatprep.subr.bf16.mxu0 %v5503
    %6558 = vmatpush1.bf16.msra.mxu0 %v5502
    %6559 = vmatprep.subr.bf16.mxu0 %v5511
    %6560 = vmatpush1.bf16.msra.mxu0 %v5510
    %6561 = vmatprep.subr.bf16.mxu0 %v5519
    %6562 = vmatpush1.bf16.msra.mxu0 %v5518
    %6563 = vmatprep.subr.bf16.mxu0 %v5527
    %6564 = vmatpush1.bf16.msra.mxu0 %v5526
    %6565 = vmatprep.subr.bf16.mxu0 %v5535
    %6566 = vmatpush1.bf16.msra.mxu0 %v5534
    %6567 = vmatprep.subr.bf16.mxu0 %v5543
    %6568 = vmatpush1.bf16.msra.mxu0 %v5542
    %6569 = vmatprep.subr.bf16.mxu0 %v5551
    %6570 = vmatpush1.bf16.msra.mxu0 %v5550
    %6571 = vmatprep.mubr.bf16.mxu0 %v3205
    %6572 = vmatmul.mubr.bf16.gmra.mrb[0].mxu0 %v3204
    %v6573 = vpop.f32.mrb[0].mxu0
    %v6574 = vadd.f32 %v6531, %v6573
    %v6575 = vpop.f32.mrb[0].mxu0
    %v6576 = vadd.f32 %v6533, %v6575
    %v6577 = vpop.f32.mrb[0].mxu0
    %v6578 = vadd.f32 %v6535, %v6577
    %v6579 = vpop.f32.mrb[0].mxu0
    %v6580 = vadd.f32 %v6537, %v6579
    %6581 = vdwg.mxu0
    %6582 = vmatprep.subr.bf16.mxu0 %v5559
    %6583 = vmatpush1.bf16.msra.mxu0 %v5558
    %6584 = vmatprep.subr.bf16.mxu0 %v5567
    %6585 = vmatpush1.bf16.msra.mxu0 %v5566
    %6586 = vmatprep.subr.bf16.mxu0 %v5575
    %6587 = vmatpush1.bf16.msra.mxu0 %v5574
    %6588 = vmatprep.subr.bf16.mxu0 %v5583
    %6589 = vmatpush1.bf16.msra.mxu0 %v5582
    %6590 = vmatprep.subr.bf16.mxu0 %v5591
    %6591 = vmatpush1.bf16.msra.mxu0 %v5590
    %6592 = vmatprep.subr.bf16.mxu0 %v5599
    %6593 = vmatpush1.bf16.msra.mxu0 %v5598
    %6594 = vmatprep.subr.bf16.mxu0 %v5607
    %6595 = vmatpush1.bf16.msra.mxu0 %v5606
    %6596 = vmatprep.subr.bf16.mxu0 %v5615
    %6597 = vmatpush1.bf16.msra.mxu0 %v5614
    %6598 = vmatprep.subr.bf16.mxu0 %v5623
    %6599 = vmatpush1.bf16.msra.mxu0 %v5622
    %6600 = vmatprep.subr.bf16.mxu0 %v5631
    %6601 = vmatpush1.bf16.msra.mxu0 %v5630
    %6602 = vmatprep.subr.bf16.mxu0 %v5639
    %6603 = vmatpush1.bf16.msra.mxu0 %v5638
    %6604 = vmatprep.subr.bf16.mxu0 %v5647
    %6605 = vmatpush1.bf16.msra.mxu0 %v5646
    %6606 = vmatprep.subr.bf16.mxu0 %v5655
    %6607 = vmatpush1.bf16.msra.mxu0 %v5654
    %6608 = vmatprep.subr.bf16.mxu0 %v5663
    %6609 = vmatpush1.bf16.msra.mxu0 %v5662
    %6610 = vmatprep.subr.bf16.mxu0 %v5671
    %6611 = vmatpush1.bf16.msra.mxu0 %v5670
    %6612 = vmatprep.subr.bf16.mxu0 %v5679
    %6613 = vmatpush1.bf16.msra.mxu0 %v5678
    %6614 = vmatprep.mubr.bf16.mxu0 %v3207
    %6615 = vmatmul.mubr.bf16.gmra.mrb[0].mxu0 %v3206
    %v6616 = vpop.f32.mrb[0].mxu0
    %v6617 = vadd.f32 %v6574, %v6616
    %v6618 = vpop.f32.mrb[0].mxu0
    %v6619 = vadd.f32 %v6576, %v6618
    %v6620 = vpop.f32.mrb[0].mxu0
    %v6621 = vadd.f32 %v6578, %v6620
    %v6622 = vpop.f32.mrb[0].mxu0
    %v6623 = vadd.f32 %v6580, %v6622
    %6624 = vdwg.mxu0
    %6625 = vmatprep.subr.bf16.mxu0 %v5687
    %6626 = vmatpush1.bf16.msra.mxu0 %v5686
    %6627 = vmatprep.subr.bf16.mxu0 %v5695
    %6628 = vmatpush1.bf16.msra.mxu0 %v5694
    %6629 = vmatprep.subr.bf16.mxu0 %v5703
    %6630 = vmatpush1.bf16.msra.mxu0 %v5702
    %6631 = vmatprep.subr.bf16.mxu0 %v5711
    %6632 = vmatpush1.bf16.msra.mxu0 %v5710
    %6633 = vmatprep.subr.bf16.mxu0 %v5719
    %6634 = vmatpush1.bf16.msra.mxu0 %v5718
    %6635 = vmatprep.subr.bf16.mxu0 %v5727
    %6636 = vmatpush1.bf16.msra.mxu0 %v5726
    %6637 = vmatprep.subr.bf16.mxu0 %v5735
    %6638 = vmatpush1.bf16.msra.mxu0 %v5734
    %6639 = vmatprep.subr.bf16.mxu0 %v5743
    %6640 = vmatpush1.bf16.msra.mxu0 %v5742
    %6641 = vmatprep.subr.bf16.mxu0 %v5751
    %6642 = vmatpush1.bf16.msra.mxu0 %v5750
    %6643 = vmatprep.subr.bf16.mxu0 %v5759
    %6644 = vmatpush1.bf16.msra.mxu0 %v5758
    %6645 = vmatprep.subr.bf16.mxu0 %v5767
    %6646 = vmatpush1.bf16.msra.mxu0 %v5766
    %6647 = vmatprep.subr.bf16.mxu0 %v5775
    %6648 = vmatpush1.bf16.msra.mxu0 %v5774
    %6649 = vmatprep.subr.bf16.mxu0 %v5783
    %6650 = vmatpush1.bf16.msra.mxu0 %v5782
    %6651 = vmatprep.subr.bf16.mxu0 %v5791
    %6652 = vmatpush1.bf16.msra.mxu0 %v5790
    %6653 = vmatprep.subr.bf16.mxu0 %v5799
    %6654 = vmatpush1.bf16.msra.mxu0 %v5798
    %6655 = vmatprep.subr.bf16.mxu0 %v5807
    %6656 = vmatpush1.bf16.msra.mxu0 %v5806
    %6657 = vmatprep.mubr.bf16.mxu0 %v3209
    %6658 = vmatmul.mubr.bf16.gmra.mrb[0].mxu0 %v3208
    %v6659 = vpop.f32.mrb[0].mxu0
    %v6660 = vadd.f32 %v6617, %v6659
    %v6661 = vpop.f32.mrb[0].mxu0
    %v6662 = vadd.f32 %v6619, %v6661
    %v6663 = vpop.f32.mrb[0].mxu0
    %v6664 = vadd.f32 %v6621, %v6663
    %v6665 = vpop.f32.mrb[0].mxu0
    %v6666 = vadd.f32 %v6623, %v6665
    %6667 = vdwg.mxu0
    %6668 = vmatprep.subr.bf16.mxu0 %v5305
    %6669 = vmatpush1.bf16.msra.mxu0 %v5304
    %6670 = vmatprep.subr.bf16.mxu0 %v5313
    %6671 = vmatpush1.bf16.msra.mxu0 %v5312
    %6672 = vmatprep.subr.bf16.mxu0 %v5321
    %6673 = vmatpush1.bf16.msra.mxu0 %v5320
    %6674 = vmatprep.subr.bf16.mxu0 %v5329
    %6675 = vmatpush1.bf16.msra.mxu0 %v5328
    %6676 = vmatprep.subr.bf16.mxu0 %v5337
    %6677 = vmatpush1.bf16.msra.mxu0 %v5336
    %6678 = vmatprep.subr.bf16.mxu0 %v5345
    %6679 = vmatpush1.bf16.msra.mxu0 %v5344
    %6680 = vmatprep.subr.bf16.mxu0 %v5353
    %6681 = vmatpush1.bf16.msra.mxu0 %v5352
    %6682 = vmatprep.subr.bf16.mxu0 %v5361
    %6683 = vmatpush1.bf16.msra.mxu0 %v5360
    %6684 = vmatprep.subr.bf16.mxu0 %v5369
    %6685 = vmatpush1.bf16.msra.mxu0 %v5368
    %6686 = vmatprep.subr.bf16.mxu0 %v5377
    %6687 = vmatpush1.bf16.msra.mxu0 %v5376
    %6688 = vmatprep.subr.bf16.mxu0 %v5385
    %6689 = vmatpush1.bf16.msra.mxu0 %v5384
    %6690 = vmatprep.subr.bf16.mxu0 %v5393
    %6691 = vmatpush1.bf16.msra.mxu0 %v5392
    %6692 = vmatprep.subr.bf16.mxu0 %v5401
    %6693 = vmatpush1.bf16.msra.mxu0 %v5400
    %6694 = vmatprep.subr.bf16.mxu0 %v5409
    %6695 = vmatpush1.bf16.msra.mxu0 %v5408
    %6696 = vmatprep.subr.bf16.mxu0 %v5417
    %6697 = vmatpush1.bf16.msra.mxu0 %v5416
    %6698 = vmatprep.subr.bf16.mxu0 %v5425
    %6699 = vmatpush1.bf16.msra.mxu0 %v5424
    %6700 = vmatprep.mubr.bf16.mxu0 %v3203
    %6701 = vmatmul.mubr.bf16.gmra.mrb[0].mxu0 %v3202
    %v6702 = vpop.f32.mrb[0].mxu0
    %v6703 = vadd.f32 %v3743, %v6702
    %v6704 = vpop.f32.mrb[0].mxu0
    %v6705 = vadd.f32 %v3747, %v6704
    %v6706 = vpop.f32.mrb[0].mxu0
    %v6707 = vadd.f32 %v3743, %v6706
    %v6708 = vpop.f32.mrb[0].mxu0
    %v6709 = vadd.f32 %v3747, %v6708
    %6710 = vdwg.mxu0
    %6711 = vmatprep.subr.bf16.mxu0 %v5433
    %6712 = vmatpush1.bf16.msra.mxu0 %v5432
    %6713 = vmatprep.subr.bf16.mxu0 %v5441
    %6714 = vmatpush1.bf16.msra.mxu0 %v5440
    %6715 = vmatprep.subr.bf16.mxu0 %v5449
    %6716 = vmatpush1.bf16.msra.mxu0 %v5448
    %6717 = vmatprep.subr.bf16.mxu0 %v5457
    %6718 = vmatpush1.bf16.msra.mxu0 %v5456
    %6719 = vmatprep.subr.bf16.mxu0 %v5465
    %6720 = vmatpush1.bf16.msra.mxu0 %v5464
    %6721 = vmatprep.subr.bf16.mxu0 %v5473
    %6722 = vmatpush1.bf16.msra.mxu0 %v5472
    %6723 = vmatprep.subr.bf16.mxu0 %v5481
    %6724 = vmatpush1.bf16.msra.mxu0 %v5480
    %6725 = vmatprep.subr.bf16.mxu0 %v5489
    %6726 = vmatpush1.bf16.msra.mxu0 %v5488
    %6727 = vmatprep.subr.bf16.mxu0 %v5497
    %6728 = vmatpush1.bf16.msra.mxu0 %v5496
    %6729 = vmatprep.subr.bf16.mxu0 %v5505
    %6730 = vmatpush1.bf16.msra.mxu0 %v5504
    %6731 = vmatprep.subr.bf16.mxu0 %v5513
    %6732 = vmatpush1.bf16.msra.mxu0 %v5512
    %6733 = vmatprep.subr.bf16.mxu0 %v5521
    %6734 = vmatpush1.bf16.msra.mxu0 %v5520
    %6735 = vmatprep.subr.bf16.mxu0 %v5529
    %6736 = vmatpush1.bf16.msra.mxu0 %v5528
    %6737 = vmatprep.subr.bf16.mxu0 %v5537
    %6738 = vmatpush1.bf16.msra.mxu0 %v5536
    %6739 = vmatprep.subr.bf16.mxu0 %v5545
    %6740 = vmatpush1.bf16.msra.mxu0 %v5544
    %6741 = vmatprep.subr.bf16.mxu0 %v5553
    %6742 = vmatpush1.bf16.msra.mxu0 %v5552
    %6743 = vmatprep.mubr.bf16.mxu0 %v3205
    %6744 = vmatmul.mubr.bf16.gmra.mrb[0].mxu0 %v3204
    %v6745 = vpop.f32.mrb[0].mxu0
    %v6746 = vadd.f32 %v6703, %v6745
    %v6747 = vpop.f32.mrb[0].mxu0
    %v6748 = vadd.f32 %v6705, %v6747
    %v6749 = vpop.f32.mrb[0].mxu0
    %v6750 = vadd.f32 %v6707, %v6749
    %v6751 = vpop.f32.mrb[0].mxu0
    %v6752 = vadd.f32 %v6709, %v6751
    %6753 = vdwg.mxu0
    %6754 = vmatprep.subr.bf16.mxu0 %v5561
    %6755 = vmatpush1.bf16.msra.mxu0 %v5560
    %6756 = vmatprep.subr.bf16.mxu0 %v5569
    %6757 = vmatpush1.bf16.msra.mxu0 %v5568
    %6758 = vmatprep.subr.bf16.mxu0 %v5577
    %6759 = vmatpush1.bf16.msra.mxu0 %v5576
    %6760 = vmatprep.subr.bf16.mxu0 %v5585
    %6761 = vmatpush1.bf16.msra.mxu0 %v5584
    %6762 = vmatprep.subr.bf16.mxu0 %v5593
    %6763 = vmatpush1.bf16.msra.mxu0 %v5592
    %6764 = vmatprep.subr.bf16.mxu0 %v5601
    %6765 = vmatpush1.bf16.msra.mxu0 %v5600
    %6766 = vmatprep.subr.bf16.mxu0 %v5609
    %6767 = vmatpush1.bf16.msra.mxu0 %v5608
    %6768 = vmatprep.subr.bf16.mxu0 %v5617
    %6769 = vmatpush1.bf16.msra.mxu0 %v5616
    %6770 = vmatprep.subr.bf16.mxu0 %v5625
    %6771 = vmatpush1.bf16.msra.mxu0 %v5624
    %6772 = vmatprep.subr.bf16.mxu0 %v5633
    %6773 = vmatpush1.bf16.msra.mxu0 %v5632
    %6774 = vmatprep.subr.bf16.mxu0 %v5641
    %6775 = vmatpush1.bf16.msra.mxu0 %v5640
    %6776 = vmatprep.subr.bf16.mxu0 %v5649
    %6777 = vmatpush1.bf16.msra.mxu0 %v5648
    %6778 = vmatprep.subr.bf16.mxu0 %v5657
    %6779 = vmatpush1.bf16.msra.mxu0 %v5656
    %6780 = vmatprep.subr.bf16.mxu0 %v5665
    %6781 = vmatpush1.bf16.msra.mxu0 %v5664
    %6782 = vmatprep.subr.bf16.mxu0 %v5673
    %6783 = vmatpush1.bf16.msra.mxu0 %v5672
    %6784 = vmatprep.subr.bf16.mxu0 %v5681
    %6785 = vmatpush1.bf16.msra.mxu0 %v5680
    %6786 = vmatprep.mubr.bf16.mxu0 %v3207
    %6787 = vmatmul.mubr.bf16.gmra.mrb[0].mxu0 %v3206
    %v6788 = vpop.f32.mrb[0].mxu0
    %v6789 = vadd.f32 %v6746, %v6788
    %v6790 = vpop.f32.mrb[0].mxu0
    %v6791 = vadd.f32 %v6748, %v6790
    %v6792 = vpop.f32.mrb[0].mxu0
    %v6793 = vadd.f32 %v6750, %v6792
    %v6794 = vpop.f32.mrb[0].mxu0
    %v6795 = vadd.f32 %v6752, %v6794
    %6796 = vdwg.mxu0
    %6797 = vmatprep.subr.bf16.mxu0 %v5689
    %6798 = vmatpush1.bf16.msra.mxu0 %v5688
    %6799 = vmatprep.subr.bf16.mxu0 %v5697
    %6800 = vmatpush1.bf16.msra.mxu0 %v5696
    %6801 = vmatprep.subr.bf16.mxu0 %v5705
    %6802 = vmatpush1.bf16.msra.mxu0 %v5704
    %6803 = vmatprep.subr.bf16.mxu0 %v5713
    %6804 = vmatpush1.bf16.msra.mxu0 %v5712
    %6805 = vmatprep.subr.bf16.mxu0 %v5721
    %6806 = vmatpush1.bf16.msra.mxu0 %v5720
    %6807 = vmatprep.subr.bf16.mxu0 %v5729
    %6808 = vmatpush1.bf16.msra.mxu0 %v5728
    %6809 = vmatprep.subr.bf16.mxu0 %v5737
    %6810 = vmatpush1.bf16.msra.mxu0 %v5736
    %6811 = vmatprep.subr.bf16.mxu0 %v5745
    %6812 = vmatpush1.bf16.msra.mxu0 %v5744
    %6813 = vmatprep.subr.bf16.mxu0 %v5753
    %6814 = vmatpush1.bf16.msra.mxu0 %v5752
    %6815 = vmatprep.subr.bf16.mxu0 %v5761
    %6816 = vmatpush1.bf16.msra.mxu0 %v5760
    %6817 = vmatprep.subr.bf16.mxu0 %v5769
    %6818 = vmatpush1.bf16.msra.mxu0 %v5768
    %6819 = vmatprep.subr.bf16.mxu0 %v5777
    %6820 = vmatpush1.bf16.msra.mxu0 %v5776
    %6821 = vmatprep.subr.bf16.mxu0 %v5785
    %6822 = vmatpush1.bf16.msra.mxu0 %v5784
    %6823 = vmatprep.subr.bf16.mxu0 %v5793
    %6824 = vmatpush1.bf16.msra.mxu0 %v5792
    %6825 = vmatprep.subr.bf16.mxu0 %v5801
    %6826 = vmatpush1.bf16.msra.mxu0 %v5800
    %6827 = vmatprep.subr.bf16.mxu0 %v5809
    %6828 = vmatpush1.bf16.msra.mxu0 %v5808
    %6829 = vmatprep.mubr.bf16.mxu0 %v3209
    %6830 = vmatmul.mubr.bf16.gmra.mrb[0].mxu0 %v3208
    %v6831 = vpop.f32.mrb[0].mxu0
    %v6832 = vadd.f32 %v6789, %v6831
    %v6833 = vpop.f32.mrb[0].mxu0
    %v6834 = vadd.f32 %v6791, %v6833
    %v6835 = vpop.f32.mrb[0].mxu0
    %v6836 = vadd.f32 %v6793, %v6835
    %v6837 = vpop.f32.mrb[0].mxu0
    %v6838 = vadd.f32 %v6795, %v6837
    %6839 = vdwg.mxu0
    %6840 = vmatprep.subr.bf16.mxu0 %v5307
    %6841 = vmatpush1.bf16.msra.mxu0 %v5306
    %6842 = vmatprep.subr.bf16.mxu0 %v5315
    %6843 = vmatpush1.bf16.msra.mxu0 %v5314
    %6844 = vmatprep.subr.bf16.mxu0 %v5323
    %6845 = vmatpush1.bf16.msra.mxu0 %v5322
    %6846 = vmatprep.subr.bf16.mxu0 %v5331
    %6847 = vmatpush1.bf16.msra.mxu0 %v5330
    %6848 = vmatprep.subr.bf16.mxu0 %v5339
    %6849 = vmatpush1.bf16.msra.mxu0 %v5338
    %6850 = vmatprep.subr.bf16.mxu0 %v5347
    %6851 = vmatpush1.bf16.msra.mxu0 %v5346
    %6852 = vmatprep.subr.bf16.mxu0 %v5355
    %6853 = vmatpush1.bf16.msra.mxu0 %v5354
    %6854 = vmatprep.subr.bf16.mxu0 %v5363
    %6855 = vmatpush1.bf16.msra.mxu0 %v5362
    %6856 = vmatprep.subr.bf16.mxu0 %v5371
    %6857 = vmatpush1.bf16.msra.mxu0 %v5370
    %6858 = vmatprep.subr.bf16.mxu0 %v5379
    %6859 = vmatpush1.bf16.msra.mxu0 %v5378
    %6860 = vmatprep.subr.bf16.mxu0 %v5387
    %6861 = vmatpush1.bf16.msra.mxu0 %v5386
    %6862 = vmatprep.subr.bf16.mxu0 %v5395
    %6863 = vmatpush1.bf16.msra.mxu0 %v5394
    %6864 = vmatprep.subr.bf16.mxu0 %v5403
    %6865 = vmatpush1.bf16.msra.mxu0 %v5402
    %6866 = vmatprep.subr.bf16.mxu0 %v5411
    %6867 = vmatpush1.bf16.msra.mxu0 %v5410
    %6868 = vmatprep.subr.bf16.mxu0 %v5419
    %6869 = vmatpush1.bf16.msra.mxu0 %v5418
    %6870 = vmatprep.subr.bf16.mxu0 %v5427
    %6871 = vmatpush1.bf16.msra.mxu0 %v5426
    %6872 = vmatprep.mubr.bf16.mxu0 %v3203
    %6873 = vmatmul.mubr.bf16.gmra.mrb[0].mxu0 %v3202
    %v6874 = vpop.f32.mrb[0].mxu0
    %v6875 = vadd.f32 %v3751, %v6874
    %v6876 = vpop.f32.mrb[0].mxu0
    %v6877 = vadd.f32 %v3755, %v6876
    %v6878 = vpop.f32.mrb[0].mxu0
    %v6879 = vadd.f32 %v3751, %v6878
    %v6880 = vpop.f32.mrb[0].mxu0
    %v6881 = vadd.f32 %v3755, %v6880
    %6882 = vdwg.mxu0
    %6883 = vmatprep.subr.bf16.mxu0 %v5435
    %6884 = vmatpush1.bf16.msra.mxu0 %v5434
    %6885 = vmatprep.subr.bf16.mxu0 %v5443
    %6886 = vmatpush1.bf16.msra.mxu0 %v5442
    %6887 = vmatprep.subr.bf16.mxu0 %v5451
    %6888 = vmatpush1.bf16.msra.mxu0 %v5450
    %6889 = vmatprep.subr.bf16.mxu0 %v5459
    %6890 = vmatpush1.bf16.msra.mxu0 %v5458
    %6891 = vmatprep.subr.bf16.mxu0 %v5467
    %6892 = vmatpush1.bf16.msra.mxu0 %v5466
    %6893 = vmatprep.subr.bf16.mxu0 %v5475
    %6894 = vmatpush1.bf16.msra.mxu0 %v5474
    %6895 = vmatprep.subr.bf16.mxu0 %v5483
    %6896 = vmatpush1.bf16.msra.mxu0 %v5482
    %6897 = vmatprep.subr.bf16.mxu0 %v5491
    %6898 = vmatpush1.bf16.msra.mxu0 %v5490
    %6899 = vmatprep.subr.bf16.mxu0 %v5499
    %6900 = vmatpush1.bf16.msra.mxu0 %v5498
    %6901 = vmatprep.subr.bf16.mxu0 %v5507
    %6902 = vmatpush1.bf16.msra.mxu0 %v5506
    %6903 = vmatprep.subr.bf16.mxu0 %v5515
    %6904 = vmatpush1.bf16.msra.mxu0 %v5514
    %6905 = vmatprep.subr.bf16.mxu0 %v5523
    %6906 = vmatpush1.bf16.msra.mxu0 %v5522
    %6907 = vmatprep.subr.bf16.mxu0 %v5531
    %6908 = vmatpush1.bf16.msra.mxu0 %v5530
    %6909 = vmatprep.subr.bf16.mxu0 %v5539
    %6910 = vmatpush1.bf16.msra.mxu0 %v5538
    %6911 = vmatprep.subr.bf16.mxu0 %v5547
    %6912 = vmatpush1.bf16.msra.mxu0 %v5546
    %6913 = vmatprep.subr.bf16.mxu0 %v5555
    %6914 = vmatpush1.bf16.msra.mxu0 %v5554
    %6915 = vmatprep.mubr.bf16.mxu0 %v3205
    %6916 = vmatmul.mubr.bf16.gmra.mrb[0].mxu0 %v3204
    %v6917 = vpop.f32.mrb[0].mxu0
    %v6918 = vadd.f32 %v6875, %v6917
    %v6919 = vpop.f32.mrb[0].mxu0
    %v6920 = vadd.f32 %v6877, %v6919
    %v6921 = vpop.f32.mrb[0].mxu0
    %v6922 = vadd.f32 %v6879, %v6921
    %v6923 = vpop.f32.mrb[0].mxu0
    %v6924 = vadd.f32 %v6881, %v6923
    %6925 = vdwg.mxu0
    %6926 = vmatprep.subr.bf16.mxu0 %v5563
    %6927 = vmatpush1.bf16.msra.mxu0 %v5562
    %6928 = vmatprep.subr.bf16.mxu0 %v5571
    %6929 = vmatpush1.bf16.msra.mxu0 %v5570
    %6930 = vmatprep.subr.bf16.mxu0 %v5579
    %6931 = vmatpush1.bf16.msra.mxu0 %v5578
    %6932 = vmatprep.subr.bf16.mxu0 %v5587
    %6933 = vmatpush1.bf16.msra.mxu0 %v5586
    %6934 = vmatprep.subr.bf16.mxu0 %v5595
    %6935 = vmatpush1.bf16.msra.mxu0 %v5594
    %6936 = vmatprep.subr.bf16.mxu0 %v5603
    %6937 = vmatpush1.bf16.msra.mxu0 %v5602
    %6938 = vmatprep.subr.bf16.mxu0 %v5611
    %6939 = vmatpush1.bf16.msra.mxu0 %v5610
    %6940 = vmatprep.subr.bf16.mxu0 %v5619
    %6941 = vmatpush1.bf16.msra.mxu0 %v5618
    %6942 = vmatprep.subr.bf16.mxu0 %v5627
    %6943 = vmatpush1.bf16.msra.mxu0 %v5626
    %6944 = vmatprep.subr.bf16.mxu0 %v5635
    %6945 = vmatpush1.bf16.msra.mxu0 %v5634
    %6946 = vmatprep.subr.bf16.mxu0 %v5643
    %6947 = vmatpush1.bf16.msra.mxu0 %v5642
    %6948 = vmatprep.subr.bf16.mxu0 %v5651
    %6949 = vmatpush1.bf16.msra.mxu0 %v5650
    %6950 = vmatprep.subr.bf16.mxu0 %v5659
    %6951 = vmatpush1.bf16.msra.mxu0 %v5658
    %6952 = vmatprep.subr.bf16.mxu0 %v5667
    %6953 = vmatpush1.bf16.msra.mxu0 %v5666
    %6954 = vmatprep.subr.bf16.mxu0 %v5675
    %6955 = vmatpush1.bf16.msra.mxu0 %v5674
    %6956 = vmatprep.subr.bf16.mxu0 %v5683
    %6957 = vmatpush1.bf16.msra.mxu0 %v5682
    %6958 = vmatprep.mubr.bf16.mxu0 %v3207
    %6959 = vmatmul.mubr.bf16.gmra.mrb[0].mxu0 %v3206
    %v6960 = vpop.f32.mrb[0].mxu0
    %v6961 = vadd.f32 %v6918, %v6960
    %v6962 = vpop.f32.mrb[0].mxu0
    %v6963 = vadd.f32 %v6920, %v6962
    %v6964 = vpop.f32.mrb[0].mxu0
    %v6965 = vadd.f32 %v6922, %v6964
    %v6966 = vpop.f32.mrb[0].mxu0
    %v6967 = vadd.f32 %v6924, %v6966
    %6968 = vdwg.mxu0
    %6969 = vmatprep.subr.bf16.mxu0 %v5691
    %6970 = vmatpush1.bf16.msra.mxu0 %v5690
    %6971 = vmatprep.subr.bf16.mxu0 %v5699
    %6972 = vmatpush1.bf16.msra.mxu0 %v5698
    %6973 = vmatprep.subr.bf16.mxu0 %v5707
    %6974 = vmatpush1.bf16.msra.mxu0 %v5706
    %6975 = vmatprep.subr.bf16.mxu0 %v5715
    %6976 = vmatpush1.bf16.msra.mxu0 %v5714
    %6977 = vmatprep.subr.bf16.mxu0 %v5723
    %6978 = vmatpush1.bf16.msra.mxu0 %v5722
    %6979 = vmatprep.subr.bf16.mxu0 %v5731
    %6980 = vmatpush1.bf16.msra.mxu0 %v5730
    %6981 = vmatprep.subr.bf16.mxu0 %v5739
    %6982 = vmatpush1.bf16.msra.mxu0 %v5738
    %6983 = vmatprep.subr.bf16.mxu0 %v5747
    %6984 = vmatpush1.bf16.msra.mxu0 %v5746
    %6985 = vmatprep.subr.bf16.mxu0 %v5755
    %6986 = vmatpush1.bf16.msra.mxu0 %v5754
    %6987 = vmatprep.subr.bf16.mxu0 %v5763
    %6988 = vmatpush1.bf16.msra.mxu0 %v5762
    %6989 = vmatprep.subr.bf16.mxu0 %v5771
    %6990 = vmatpush1.bf16.msra.mxu0 %v5770
    %6991 = vmatprep.subr.bf16.mxu0 %v5779
    %6992 = vmatpush1.bf16.msra.mxu0 %v5778
    %6993 = vmatprep.subr.bf16.mxu0 %v5787
    %6994 = vmatpush1.bf16.msra.mxu0 %v5786
    %6995 = vmatprep.subr.bf16.mxu0 %v5795
    %6996 = vmatpush1.bf16.msra.mxu0 %v5794
    %6997 = vmatprep.subr.bf16.mxu0 %v5803
    %6998 = vmatpush1.bf16.msra.mxu0 %v5802
    %6999 = vmatprep.subr.bf16.mxu0 %v5811
    %7000 = vmatpush1.bf16.msra.mxu0 %v5810
    %7001 = vmatprep.mubr.bf16.mxu0 %v3209
    %7002 = vmatmul.mubr.bf16.gmra.mrb[0].mxu0 %v3208
    %v7003 = vpop.f32.mrb[0].mxu0
    %v7004 = vadd.f32 %v6961, %v7003
    %v7005 = vpop.f32.mrb[0].mxu0
    %v7006 = vadd.f32 %v6963, %v7005
    %v7007 = vpop.f32.mrb[0].mxu0
    %v7008 = vadd.f32 %v6965, %v7007
    %v7009 = vpop.f32.mrb[0].mxu0
    %v7010 = vadd.f32 %v6967, %v7009
    %7011 = vdwg.mxu0
    %v7012 = vmax.f32 %v6488, 0.0
    %v7013 = vmax.f32 %v6490, 0.0
    %v7014 = vmax.f32 %v6660, 0.0
    %v7015 = vmax.f32 %v6662, 0.0
    %v7016 = vmax.f32 %v6832, 0.0
    %v7017 = vmax.f32 %v6834, 0.0
    %v7018 = vmax.f32 %v7004, 0.0
    %v7019 = vmax.f32 %v7006, 0.0
    %v7020 = vmax.f32 %v6492, 0.0
    %v7021 = vmax.f32 %v6494, 0.0
    %v7022 = vmax.f32 %v6664, 0.0
    %v7023 = vmax.f32 %v6666, 0.0
    %v7024 = vmax.f32 %v6836, 0.0
    %v7025 = vmax.f32 %v6838, 0.0
    %v7026 = vmax.f32 %v7008, 0.0
    %v7027 = vmax.f32 %v7010, 0.0
    %v7028 = vpack.c.bf16 %v7020, %v7012
    %v7029 = vpack.c.bf16 %v7021, %v7013
    %v7030 = vpack.c.bf16 %v7022, %v7014
    %v7031 = vpack.c.bf16 %v7023, %v7015
    %v7032 = vpack.c.bf16 %v7024, %v7016
    %v7033 = vpack.c.bf16 %v7025, %v7017
    %v7034 = vpack.c.bf16 %v7026, %v7018
    %v7035 = vpack.c.bf16 %v7027, %v7019
    %v7036 = vld [vmem:[%s5] sm:$0xf]
    %v7037 = vld [vmem:[%s5 + $0x4] sm:$0xf]
    %v7038 = vld [vmem:[%s5 + $0x8] sm:$0xf]
    %v7039 = vld [vmem:[%s5 + $0xc] sm:$0xf]
    %v7040 = vld [vmem:[%s5 + $0x10] sm:$0xf]
    %v7041 = vld [vmem:[%s5 + $0x14] sm:$0xf]
    %v7042 = vld [vmem:[%s5 + $0x18] sm:$0xf]
    %v7043 = vld [vmem:[%s5 + $0x1c] sm:$0xf]
    %v7044 = vld [vmem:[%s5 + $0x20] sm:$0xf]
    %v7045 = vld [vmem:[%s5 + $0x24] sm:$0xf]
    %v7046 = vld [vmem:[%s5 + $0x28] sm:$0xf]
    %v7047 = vld [vmem:[%s5 + $0x2c] sm:$0xf]
    %v7048 = vld [vmem:[%s5 + $0x30] sm:$0xf]
    %v7049 = vld [vmem:[%s5 + $0x34] sm:$0xf]
    %v7050 = vld [vmem:[%s5 + $0x38] sm:$0xf]
    %v7051 = vld [vmem:[%s5 + $0x3c] sm:$0xf]
    %v7052 = vld [vmem:[%s5 + $0x40] sm:$0xf]
    %v7053 = vld [vmem:[%s5 + $0x44] sm:$0xf]
    %v7054 = vld [vmem:[%s5 + $0x48] sm:$0xf]
    %v7055 = vld [vmem:[%s5 + $0x4c] sm:$0xf]
    %v7056 = vld [vmem:[%s5 + $0x50] sm:$0xf]
    %v7057 = vld [vmem:[%s5 + $0x54] sm:$0xf]
    %v7058 = vld [vmem:[%s5 + $0x58] sm:$0xf]
    %v7059 = vld [vmem:[%s5 + $0x5c] sm:$0xf]
    %v7060 = vld [vmem:[%s5 + $0x60] sm:$0xf]
    %v7061 = vld [vmem:[%s5 + $0x64] sm:$0xf]
    %v7062 = vld [vmem:[%s5 + $0x68] sm:$0xf]
    %v7063 = vld [vmem:[%s5 + $0x6c] sm:$0xf]
    %v7064 = vld [vmem:[%s5 + $0x70] sm:$0xf]
    %v7065 = vld [vmem:[%s5 + $0x74] sm:$0xf]
    %v7066 = vld [vmem:[%s5 + $0x78] sm:$0xf]
    %v7067 = vld [vmem:[%s5 + $0x7c] sm:$0xf]
    %v7068 = vld [vmem:[%s5 + $0x80] sm:$0xf]
    %v7069 = vld [vmem:[%s5 + $0x84] sm:$0xf]
    %v7070 = vld [vmem:[%s5 + $0x88] sm:$0xf]
    %v7071 = vld [vmem:[%s5 + $0x8c] sm:$0xf]
    %v7072 = vld [vmem:[%s5 + $0x90] sm:$0xf]
    %v7073 = vld [vmem:[%s5 + $0x94] sm:$0xf]
    %v7074 = vld [vmem:[%s5 + $0x98] sm:$0xf]
    %v7075 = vld [vmem:[%s5 + $0x9c] sm:$0xf]
    %v7076 = vld [vmem:[%s5 + $0xa0] sm:$0xf]
    %v7077 = vld [vmem:[%s5 + $0xa4] sm:$0xf]
    %v7078 = vld [vmem:[%s5 + $0xa8] sm:$0xf]
    %v7079 = vld [vmem:[%s5 + $0xac] sm:$0xf]
    %v7080 = vld [vmem:[%s5 + $0xb0] sm:$0xf]
    %v7081 = vld [vmem:[%s5 + $0xb4] sm:$0xf]
    %v7082 = vld [vmem:[%s5 + $0xb8] sm:$0xf]
    %v7083 = vld [vmem:[%s5 + $0xbc] sm:$0xf]
    %v7084 = vld [vmem:[%s5 + $0xc0] sm:$0xf]
    %v7085 = vld [vmem:[%s5 + $0xc4] sm:$0xf]
    %v7086 = vld [vmem:[%s5 + $0xc8] sm:$0xf]
    %v7087 = vld [vmem:[%s5 + $0xcc] sm:$0xf]
    %v7088 = vld [vmem:[%s5 + $0xd0] sm:$0xf]
    %v7089 = vld [vmem:[%s5 + $0xd4] sm:$0xf]
    %v7090 = vld [vmem:[%s5 + $0xd8] sm:$0xf]
    %v7091 = vld [vmem:[%s5 + $0xdc] sm:$0xf]
    %v7092 = vld [vmem:[%s5 + $0xe0] sm:$0xf]
    %v7093 = vld [vmem:[%s5 + $0xe4] sm:$0xf]
    %v7094 = vld [vmem:[%s5 + $0xe8] sm:$0xf]
    %v7095 = vld [vmem:[%s5 + $0xec] sm:$0xf]
    %v7096 = vld [vmem:[%s5 + $0xf0] sm:$0xf]
    %v7097 = vld [vmem:[%s5 + $0xf4] sm:$0xf]
    %v7098 = vld [vmem:[%s5 + $0xf8] sm:$0xf]
    %v7099 = vld [vmem:[%s5 + $0xfc] sm:$0xf]
    %v7100 = vld [vmem:[%s5 + $0x100] sm:$0xf]
    %v7101 = vld [vmem:[%s5 + $0x104] sm:$0xf]
    %v7102 = vld [vmem:[%s5 + $0x108] sm:$0xf]
    %v7103 = vld [vmem:[%s5 + $0x10c] sm:$0xf]
    %v7104 = vld [vmem:[%s5 + $0x110] sm:$0xf]
    %v7105 = vld [vmem:[%s5 + $0x114] sm:$0xf]
    %v7106 = vld [vmem:[%s5 + $0x118] sm:$0xf]
    %v7107 = vld [vmem:[%s5 + $0x11c] sm:$0xf]
    %v7108 = vld [vmem:[%s5 + $0x120] sm:$0xf]
    %v7109 = vld [vmem:[%s5 + $0x124] sm:$0xf]
    %v7110 = vld [vmem:[%s5 + $0x128] sm:$0xf]
    %v7111 = vld [vmem:[%s5 + $0x12c] sm:$0xf]
    %v7112 = vld [vmem:[%s5 + $0x130] sm:$0xf]
    %v7113 = vld [vmem:[%s5 + $0x134] sm:$0xf]
    %v7114 = vld [vmem:[%s5 + $0x138] sm:$0xf]
    %v7115 = vld [vmem:[%s5 + $0x13c] sm:$0xf]
    %v7116 = vld [vmem:[%s5 + $0x140] sm:$0xf]
    %v7117 = vld [vmem:[%s5 + $0x144] sm:$0xf]
    %v7118 = vld [vmem:[%s5 + $0x148] sm:$0xf]
    %v7119 = vld [vmem:[%s5 + $0x14c] sm:$0xf]
    %v7120 = vld [vmem:[%s5 + $0x150] sm:$0xf]
    %v7121 = vld [vmem:[%s5 + $0x154] sm:$0xf]
    %v7122 = vld [vmem:[%s5 + $0x158] sm:$0xf]
    %v7123 = vld [vmem:[%s5 + $0x15c] sm:$0xf]
    %v7124 = vld [vmem:[%s5 + $0x160] sm:$0xf]
    %v7125 = vld [vmem:[%s5 + $0x164] sm:$0xf]
    %v7126 = vld [vmem:[%s5 + $0x168] sm:$0xf]
    %v7127 = vld [vmem:[%s5 + $0x16c] sm:$0xf]
    %v7128 = vld [vmem:[%s5 + $0x170] sm:$0xf]
    %v7129 = vld [vmem:[%s5 + $0x174] sm:$0xf]
    %v7130 = vld [vmem:[%s5 + $0x178] sm:$0xf]
    %v7131 = vld [vmem:[%s5 + $0x17c] sm:$0xf]
    %v7132 = vld [vmem:[%s5 + $0x180] sm:$0xf]
    %v7133 = vld [vmem:[%s5 + $0x184] sm:$0xf]
    %v7134 = vld [vmem:[%s5 + $0x188] sm:$0xf]
    %v7135 = vld [vmem:[%s5 + $0x18c] sm:$0xf]
    %v7136 = vld [vmem:[%s5 + $0x190] sm:$0xf]
    %v7137 = vld [vmem:[%s5 + $0x194] sm:$0xf]
    %v7138 = vld [vmem:[%s5 + $0x198] sm:$0xf]
    %v7139 = vld [vmem:[%s5 + $0x19c] sm:$0xf]
    %v7140 = vld [vmem:[%s5 + $0x1a0] sm:$0xf]
    %v7141 = vld [vmem:[%s5 + $0x1a4] sm:$0xf]
    %v7142 = vld [vmem:[%s5 + $0x1a8] sm:$0xf]
    %v7143 = vld [vmem:[%s5 + $0x1ac] sm:$0xf]
    %v7144 = vld [vmem:[%s5 + $0x1b0] sm:$0xf]
    %v7145 = vld [vmem:[%s5 + $0x1b4] sm:$0xf]
    %v7146 = vld [vmem:[%s5 + $0x1b8] sm:$0xf]
    %v7147 = vld [vmem:[%s5 + $0x1bc] sm:$0xf]
    %v7148 = vld [vmem:[%s5 + $0x1c0] sm:$0xf]
    %v7149 = vld [vmem:[%s5 + $0x1c4] sm:$0xf]
    %v7150 = vld [vmem:[%s5 + $0x1c8] sm:$0xf]
    %v7151 = vld [vmem:[%s5 + $0x1cc] sm:$0xf]
    %v7152 = vld [vmem:[%s5 + $0x1d0] sm:$0xf]
    %v7153 = vld [vmem:[%s5 + $0x1d4] sm:$0xf]
    %v7154 = vld [vmem:[%s5 + $0x1d8] sm:$0xf]
    %v7155 = vld [vmem:[%s5 + $0x1dc] sm:$0xf]
    %v7156 = vld [vmem:[%s5 + $0x1e0] sm:$0xf]
    %v7157 = vld [vmem:[%s5 + $0x1e4] sm:$0xf]
    %v7158 = vld [vmem:[%s5 + $0x1e8] sm:$0xf]
    %v7159 = vld [vmem:[%s5 + $0x1ec] sm:$0xf]
    %v7160 = vld [vmem:[%s5 + $0x1f0] sm:$0xf]
    %v7161 = vld [vmem:[%s5 + $0x1f4] sm:$0xf]
    %v7162 = vld [vmem:[%s5 + $0x1f8] sm:$0xf]
    %v7163 = vld [vmem:[%s5 + $0x1fc] sm:$0xf]
    %v7164 = vld [vmem:[%s6] sm:$0x1]
    %v7166 = vlaneseq
    %v7167 = vshrl.u32 %v7166, 7
    %v7168 = vsub.s32 0, %v7167
    %v7169 = vrot.slane %v7164, %v7168
    %v7299 = vunpack.c.l.b16 %v7036
    %v7300 = vunpack.c.l.b16 %v7037
    %v7301 = vunpack.c.l.b16 %v7038
    %v7302 = vunpack.c.l.b16 %v7039
    %v7303 = vunpack.c.l.b16 %v7040
    %v7304 = vunpack.c.l.b16 %v7041
    %v7305 = vunpack.c.l.b16 %v7042
    %v7306 = vunpack.c.l.b16 %v7043
    %v7307 = vunpack.c.l.b16 %v7044
    %v7308 = vunpack.c.l.b16 %v7045
    %v7309 = vunpack.c.l.b16 %v7046
    %v7310 = vunpack.c.l.b16 %v7047
    %v7311 = vunpack.c.l.b16 %v7048
    %v7312 = vunpack.c.l.b16 %v7049
    %v7313 = vunpack.c.l.b16 %v7050
    %v7314 = vunpack.c.l.b16 %v7051
    %v7315 = vunpack.c.l.b16 %v7052
    %v7316 = vunpack.c.l.b16 %v7053
    %v7317 = vunpack.c.l.b16 %v7054
    %v7318 = vunpack.c.l.b16 %v7055
    %v7319 = vunpack.c.l.b16 %v7056
    %v7320 = vunpack.c.l.b16 %v7057
    %v7321 = vunpack.c.l.b16 %v7058
    %v7322 = vunpack.c.l.b16 %v7059
    %v7323 = vunpack.c.l.b16 %v7060
    %v7324 = vunpack.c.l.b16 %v7061
    %v7325 = vunpack.c.l.b16 %v7062
    %v7326 = vunpack.c.l.b16 %v7063
    %v7327 = vunpack.c.l.b16 %v7064
    %v7328 = vunpack.c.l.b16 %v7065
    %v7329 = vunpack.c.l.b16 %v7066
    %v7330 = vunpack.c.l.b16 %v7067
    %v7331 = vunpack.c.l.b16 %v7068
    %v7332 = vunpack.c.l.b16 %v7069
    %v7333 = vunpack.c.l.b16 %v7070
    %v7334 = vunpack.c.l.b16 %v7071
    %v7335 = vunpack.c.l.b16 %v7072
    %v7336 = vunpack.c.l.b16 %v7073
    %v7337 = vunpack.c.l.b16 %v7074
    %v7338 = vunpack.c.l.b16 %v7075
    %v7339 = vunpack.c.l.b16 %v7076
    %v7340 = vunpack.c.l.b16 %v7077
    %v7341 = vunpack.c.l.b16 %v7078
    %v7342 = vunpack.c.l.b16 %v7079
    %v7343 = vunpack.c.l.b16 %v7080
    %v7344 = vunpack.c.l.b16 %v7081
    %v7345 = vunpack.c.l.b16 %v7082
    %v7346 = vunpack.c.l.b16 %v7083
    %v7347 = vunpack.c.l.b16 %v7084
    %v7348 = vunpack.c.l.b16 %v7085
    %v7349 = vunpack.c.l.b16 %v7086
    %v7350 = vunpack.c.l.b16 %v7087
    %v7351 = vunpack.c.l.b16 %v7088
    %v7352 = vunpack.c.l.b16 %v7089
    %v7353 = vunpack.c.l.b16 %v7090
    %v7354 = vunpack.c.l.b16 %v7091
    %v7355 = vunpack.c.l.b16 %v7092
    %v7356 = vunpack.c.l.b16 %v7093
    %v7357 = vunpack.c.l.b16 %v7094
    %v7358 = vunpack.c.l.b16 %v7095
    %v7359 = vunpack.c.l.b16 %v7096
    %v7360 = vunpack.c.l.b16 %v7097
    %v7361 = vunpack.c.l.b16 %v7098
    %v7362 = vunpack.c.l.b16 %v7099
    %v7363 = vunpack.c.l.b16 %v7100
    %v7364 = vunpack.c.l.b16 %v7101
    %v7365 = vunpack.c.l.b16 %v7102
    %v7366 = vunpack.c.l.b16 %v7103
    %v7367 = vunpack.c.l.b16 %v7104
    %v7368 = vunpack.c.l.b16 %v7105
    %v7369 = vunpack.c.l.b16 %v7106
    %v7370 = vunpack.c.l.b16 %v7107
    %v7371 = vunpack.c.l.b16 %v7108
    %v7372 = vunpack.c.l.b16 %v7109
    %v7373 = vunpack.c.l.b16 %v7110
    %v7374 = vunpack.c.l.b16 %v7111
    %v7375 = vunpack.c.l.b16 %v7112
    %v7376 = vunpack.c.l.b16 %v7113
    %v7377 = vunpack.c.l.b16 %v7114
    %v7378 = vunpack.c.l.b16 %v7115
    %v7379 = vunpack.c.l.b16 %v7116
    %v7380 = vunpack.c.l.b16 %v7117
    %v7381 = vunpack.c.l.b16 %v7118
    %v7382 = vunpack.c.l.b16 %v7119
    %v7383 = vunpack.c.l.b16 %v7120
    %v7384 = vunpack.c.l.b16 %v7121
    %v7385 = vunpack.c.l.b16 %v7122
    %v7386 = vunpack.c.l.b16 %v7123
    %v7387 = vunpack.c.l.b16 %v7124
    %v7388 = vunpack.c.l.b16 %v7125
    %v7389 = vunpack.c.l.b16 %v7126
    %v7390 = vunpack.c.l.b16 %v7127
    %v7391 = vunpack.c.l.b16 %v7128
    %v7392 = vunpack.c.l.b16 %v7129
    %v7393 = vunpack.c.l.b16 %v7130
    %v7394 = vunpack.c.l.b16 %v7131
    %v7395 = vunpack.c.l.b16 %v7132
    %v7396 = vunpack.c.l.b16 %v7133
    %v7397 = vunpack.c.l.b16 %v7134
    %v7398 = vunpack.c.l.b16 %v7135
    %v7399 = vunpack.c.l.b16 %v7136
    %v7400 = vunpack.c.l.b16 %v7137
    %v7401 = vunpack.c.l.b16 %v7138
    %v7402 = vunpack.c.l.b16 %v7139
    %v7403 = vunpack.c.l.b16 %v7140
    %v7404 = vunpack.c.l.b16 %v7141
    %v7405 = vunpack.c.l.b16 %v7142
    %v7406 = vunpack.c.l.b16 %v7143
    %v7407 = vunpack.c.l.b16 %v7144
    %v7408 = vunpack.c.l.b16 %v7145
    %v7409 = vunpack.c.l.b16 %v7146
    %v7410 = vunpack.c.l.b16 %v7147
    %v7411 = vunpack.c.l.b16 %v7148
    %v7412 = vunpack.c.l.b16 %v7149
    %v7413 = vunpack.c.l.b16 %v7150
    %v7414 = vunpack.c.l.b16 %v7151
    %v7415 = vunpack.c.l.b16 %v7152
    %v7416 = vunpack.c.l.b16 %v7153
    %v7417 = vunpack.c.l.b16 %v7154
    %v7418 = vunpack.c.l.b16 %v7155
    %v7419 = vunpack.c.l.b16 %v7156
    %v7420 = vunpack.c.l.b16 %v7157
    %v7421 = vunpack.c.l.b16 %v7158
    %v7422 = vunpack.c.l.b16 %v7159
    %v7423 = vunpack.c.l.b16 %v7160
    %v7424 = vunpack.c.l.b16 %v7161
    %v7425 = vunpack.c.l.b16 %v7162
    %v7426 = vunpack.c.l.b16 %v7163
    %v7427 = vpack.c.b16 %v7300, %v7299
    %v7428 = vpack.c.b16 %v7302, %v7301
    %v7429 = vpack.c.b16 %v7304, %v7303
    %v7430 = vpack.c.b16 %v7306, %v7305
    %v7431 = vpack.c.b16 %v7308, %v7307
    %v7432 = vpack.c.b16 %v7310, %v7309
    %v7433 = vpack.c.b16 %v7312, %v7311
    %v7434 = vpack.c.b16 %v7314, %v7313
    %v7435 = vpack.c.b16 %v7316, %v7315
    %v7436 = vpack.c.b16 %v7318, %v7317
    %v7437 = vpack.c.b16 %v7320, %v7319
    %v7438 = vpack.c.b16 %v7322, %v7321
    %v7439 = vpack.c.b16 %v7324, %v7323
    %v7440 = vpack.c.b16 %v7326, %v7325
    %v7441 = vpack.c.b16 %v7328, %v7327
    %v7442 = vpack.c.b16 %v7330, %v7329
    %v7443 = vpack.c.b16 %v7332, %v7331
    %v7444 = vpack.c.b16 %v7334, %v7333
    %v7445 = vpack.c.b16 %v7336, %v7335
    %v7446 = vpack.c.b16 %v7338, %v7337
    %v7447 = vpack.c.b16 %v7340, %v7339
    %v7448 = vpack.c.b16 %v7342, %v7341
    %v7449 = vpack.c.b16 %v7344, %v7343
    %v7450 = vpack.c.b16 %v7346, %v7345
    %v7451 = vpack.c.b16 %v7348, %v7347
    %v7452 = vpack.c.b16 %v7350, %v7349
    %v7453 = vpack.c.b16 %v7352, %v7351
    %v7454 = vpack.c.b16 %v7354, %v7353
    %v7455 = vpack.c.b16 %v7356, %v7355
    %v7456 = vpack.c.b16 %v7358, %v7357
    %v7457 = vpack.c.b16 %v7360, %v7359
    %v7458 = vpack.c.b16 %v7362, %v7361
    %v7459 = vpack.c.b16 %v7364, %v7363
    %v7460 = vpack.c.b16 %v7366, %v7365
    %v7461 = vpack.c.b16 %v7368, %v7367
    %v7462 = vpack.c.b16 %v7370, %v7369
    %v7463 = vpack.c.b16 %v7372, %v7371
    %v7464 = vpack.c.b16 %v7374, %v7373
    %v7465 = vpack.c.b16 %v7376, %v7375
    %v7466 = vpack.c.b16 %v7378, %v7377
    %v7467 = vpack.c.b16 %v7380, %v7379
    %v7468 = vpack.c.b16 %v7382, %v7381
    %v7469 = vpack.c.b16 %v7384, %v7383
    %v7470 = vpack.c.b16 %v7386, %v7385
    %v7471 = vpack.c.b16 %v7388, %v7387
    %v7472 = vpack.c.b16 %v7390, %v7389
    %v7473 = vpack.c.b16 %v7392, %v7391
    %v7474 = vpack.c.b16 %v7394, %v7393
    %v7475 = vpack.c.b16 %v7396, %v7395
    %v7476 = vpack.c.b16 %v7398, %v7397
    %v7477 = vpack.c.b16 %v7400, %v7399
    %v7478 = vpack.c.b16 %v7402, %v7401
    %v7479 = vpack.c.b16 %v7404, %v7403
    %v7480 = vpack.c.b16 %v7406, %v7405
    %v7481 = vpack.c.b16 %v7408, %v7407
    %v7482 = vpack.c.b16 %v7410, %v7409
    %v7483 = vpack.c.b16 %v7412, %v7411
    %v7484 = vpack.c.b16 %v7414, %v7413
    %v7485 = vpack.c.b16 %v7416, %v7415
    %v7486 = vpack.c.b16 %v7418, %v7417
    %v7487 = vpack.c.b16 %v7420, %v7419
    %v7488 = vpack.c.b16 %v7422, %v7421
    %v7489 = vpack.c.b16 %v7424, %v7423
    %v7490 = vpack.c.b16 %v7426, %v7425
    %7555 = vmatprep.subr.bf16.mxu0 0
    %7556 = vmatpush1.bf16.msra.mxu0 %v7427
    %7557 = vmatprep.subr.bf16.mxu0 0
    %7558 = vmatpush1.bf16.msra.mxu0 %v7428
    %7559 = vmatprep.subr.bf16.mxu0 0
    %7560 = vmatpush1.bf16.msra.mxu0 %v7429
    %7561 = vmatprep.subr.bf16.mxu0 0
    %7562 = vmatpush1.bf16.msra.mxu0 %v7430
    %7563 = vmatprep.subr.bf16.mxu0 0
    %7564 = vmatpush1.bf16.msra.mxu0 %v7431
    %7565 = vmatprep.subr.bf16.mxu0 0
    %7566 = vmatpush1.bf16.msra.mxu0 %v7432
    %7567 = vmatprep.subr.bf16.mxu0 0
    %7568 = vmatpush1.bf16.msra.mxu0 %v7433
    %7569 = vmatprep.subr.bf16.mxu0 0
    %7570 = vmatpush1.bf16.msra.mxu0 %v7434
    %7571 = vmatprep.subr.bf16.mxu0 0
    %7572 = vmatpush1.bf16.msra.mxu0 %v7435
    %7573 = vmatprep.subr.bf16.mxu0 0
    %7574 = vmatpush1.bf16.msra.mxu0 %v7436
    %7575 = vmatprep.subr.bf16.mxu0 0
    %7576 = vmatpush1.bf16.msra.mxu0 %v7437
    %7577 = vmatprep.subr.bf16.mxu0 0
    %7578 = vmatpush1.bf16.msra.mxu0 %v7438
    %7579 = vmatprep.subr.bf16.mxu0 0
    %7580 = vmatpush1.bf16.msra.mxu0 %v7439
    %7581 = vmatprep.subr.bf16.mxu0 0
    %7582 = vmatpush1.bf16.msra.mxu0 %v7440
    %7583 = vmatprep.subr.bf16.mxu0 0
    %7584 = vmatpush1.bf16.msra.mxu0 %v7441
    %7585 = vmatprep.subr.bf16.mxu0 0
    %7586 = vmatpush1.bf16.msra.mxu0 %v7442
    %7587 = vmatprep.mubr.bf16.mxu0 %v7029
    %7588 = vmatmul.mubr.bf16.gmra.mrb[0].mxu0 %v7028
    %v7589 = vpop.f32.mrb[0].mxu0
    %v7590 = vadd.f32 %v7169, %v7589
    %v7591 = vpop.f32.mrb[0].mxu0
    %v7592 = vpop.f32.mrb[0].mxu0
    %v7593 = vadd.f32 %v7169, %v7592
    %v7594 = vpop.f32.mrb[0].mxu0
    %7595 = vdwg.mxu0
    %7596 = vmatprep.subr.bf16.mxu0 0
    %7597 = vmatpush1.bf16.msra.mxu0 %v7443
    %7598 = vmatprep.subr.bf16.mxu0 0
    %7599 = vmatpush1.bf16.msra.mxu0 %v7444
    %7600 = vmatprep.subr.bf16.mxu0 0
    %7601 = vmatpush1.bf16.msra.mxu0 %v7445
    %7602 = vmatprep.subr.bf16.mxu0 0
    %7603 = vmatpush1.bf16.msra.mxu0 %v7446
    %7604 = vmatprep.subr.bf16.mxu0 0
    %7605 = vmatpush1.bf16.msra.mxu0 %v7447
    %7606 = vmatprep.subr.bf16.mxu0 0
    %7607 = vmatpush1.bf16.msra.mxu0 %v7448
    %7608 = vmatprep.subr.bf16.mxu0 0
    %7609 = vmatpush1.bf16.msra.mxu0 %v7449
    %7610 = vmatprep.subr.bf16.mxu0 0
    %7611 = vmatpush1.bf16.msra.mxu0 %v7450
    %7612 = vmatprep.subr.bf16.mxu0 0
    %7613 = vmatpush1.bf16.msra.mxu0 %v7451
    %7614 = vmatprep.subr.bf16.mxu0 0
    %7615 = vmatpush1.bf16.msra.mxu0 %v7452
    %7616 = vmatprep.subr.bf16.mxu0 0
    %7617 = vmatpush1.bf16.msra.mxu0 %v7453
    %7618 = vmatprep.subr.bf16.mxu0 0
    %7619 = vmatpush1.bf16.msra.mxu0 %v7454
    %7620 = vmatprep.subr.bf16.mxu0 0
    %7621 = vmatpush1.bf16.msra.mxu0 %v7455
    %7622 = vmatprep.subr.bf16.mxu0 0
    %7623 = vmatpush1.bf16.msra.mxu0 %v7456
    %7624 = vmatprep.subr.bf16.mxu0 0
    %7625 = vmatpush1.bf16.msra.mxu0 %v7457
    %7626 = vmatprep.subr.bf16.mxu0 0
    %7627 = vmatpush1.bf16.msra.mxu0 %v7458
    %7628 = vmatprep.mubr.bf16.mxu0 %v7031
    %7629 = vmatmul.mubr.bf16.gmra.mrb[0].mxu0 %v7030
    %v7630 = vpop.f32.mrb[0].mxu0
    %v7631 = vadd.f32 %v7590, %v7630
    %v7632 = vpop.f32.mrb[0].mxu0
    %v7633 = vpop.f32.mrb[0].mxu0
    %v7634 = vadd.f32 %v7593, %v7633
    %v7635 = vpop.f32.mrb[0].mxu0
    %7636 = vdwg.mxu0
    %7637 = vmatprep.subr.bf16.mxu0 0
    %7638 = vmatpush1.bf16.msra.mxu0 %v7459
    %7639 = vmatprep.subr.bf16.mxu0 0
    %7640 = vmatpush1.bf16.msra.mxu0 %v7460
    %7641 = vmatprep.subr.bf16.mxu0 0
    %7642 = vmatpush1.bf16.msra.mxu0 %v7461
    %7643 = vmatprep.subr.bf16.mxu0 0
    %7644 = vmatpush1.bf16.msra.mxu0 %v7462
    %7645 = vmatprep.subr.bf16.mxu0 0
    %7646 = vmatpush1.bf16.msra.mxu0 %v7463
    %7647 = vmatprep.subr.bf16.mxu0 0
    %7648 = vmatpush1.bf16.msra.mxu0 %v7464
    %7649 = vmatprep.subr.bf16.mxu0 0
    %7650 = vmatpush1.bf16.msra.mxu0 %v7465
    %7651 = vmatprep.subr.bf16.mxu0 0
    %7652 = vmatpush1.bf16.msra.mxu0 %v7466
    %7653 = vmatprep.subr.bf16.mxu0 0
    %7654 = vmatpush1.bf16.msra.mxu0 %v7467
    %7655 = vmatprep.subr.bf16.mxu0 0
    %7656 = vmatpush1.bf16.msra.mxu0 %v7468
    %7657 = vmatprep.subr.bf16.mxu0 0
    %7658 = vmatpush1.bf16.msra.mxu0 %v7469
    %7659 = vmatprep.subr.bf16.mxu0 0
    %7660 = vmatpush1.bf16.msra.mxu0 %v7470
    %7661 = vmatprep.subr.bf16.mxu0 0
    %7662 = vmatpush1.bf16.msra.mxu0 %v7471
    %7663 = vmatprep.subr.bf16.mxu0 0
    %7664 = vmatpush1.bf16.msra.mxu0 %v7472
    %7665 = vmatprep.subr.bf16.mxu0 0
    %7666 = vmatpush1.bf16.msra.mxu0 %v7473
    %7667 = vmatprep.subr.bf16.mxu0 0
    %7668 = vmatpush1.bf16.msra.mxu0 %v7474
    %7669 = vmatprep.mubr.bf16.mxu0 %v7033
    %7670 = vmatmul.mubr.bf16.gmra.mrb[0].mxu0 %v7032
    %v7671 = vpop.f32.mrb[0].mxu0
    %v7672 = vadd.f32 %v7631, %v7671
    %v7673 = vpop.f32.mrb[0].mxu0
    %v7674 = vpop.f32.mrb[0].mxu0
    %v7675 = vadd.f32 %v7634, %v7674
    %v7676 = vpop.f32.mrb[0].mxu0
    %7677 = vdwg.mxu0
    %7678 = vmatprep.subr.bf16.mxu0 0
    %7679 = vmatpush1.bf16.msra.mxu0 %v7475
    %7680 = vmatprep.subr.bf16.mxu0 0
    %7681 = vmatpush1.bf16.msra.mxu0 %v7476
    %7682 = vmatprep.subr.bf16.mxu0 0
    %7683 = vmatpush1.bf16.msra.mxu0 %v7477
    %7684 = vmatprep.subr.bf16.mxu0 0
    %7685 = vmatpush1.bf16.msra.mxu0 %v7478
    %7686 = vmatprep.subr.bf16.mxu0 0
    %7687 = vmatpush1.bf16.msra.mxu0 %v7479
    %7688 = vmatprep.subr.bf16.mxu0 0
    %7689 = vmatpush1.bf16.msra.mxu0 %v7480
    %7690 = vmatprep.subr.bf16.mxu0 0
    %7691 = vmatpush1.bf16.msra.mxu0 %v7481
    %7692 = vmatprep.subr.bf16.mxu0 0
    %7693 = vmatpush1.bf16.msra.mxu0 %v7482
    %7694 = vmatprep.subr.bf16.mxu0 0
    %7695 = vmatpush1.bf16.msra.mxu0 %v7483
    %7696 = vmatprep.subr.bf16.mxu0 0
    %7697 = vmatpush1.bf16.msra.mxu0 %v7484
    %7698 = vmatprep.subr.bf16.mxu0 0
    %7699 = vmatpush1.bf16.msra.mxu0 %v7485
    %7700 = vmatprep.subr.bf16.mxu0 0
    %7701 = vmatpush1.bf16.msra.mxu0 %v7486
    %7702 = vmatprep.subr.bf16.mxu0 0
    %7703 = vmatpush1.bf16.msra.mxu0 %v7487
    %7704 = vmatprep.subr.bf16.mxu0 0
    %7705 = vmatpush1.bf16.msra.mxu0 %v7488
    %7706 = vmatprep.subr.bf16.mxu0 0
    %7707 = vmatpush1.bf16.msra.mxu0 %v7489
    %7708 = vmatprep.subr.bf16.mxu0 0
    %7709 = vmatpush1.bf16.msra.mxu0 %v7490
    %7710 = vmatprep.mubr.bf16.mxu0 %v7035
    %7711 = vmatmul.mubr.bf16.gmra.mrb[0].mxu0 %v7034
    %v7712 = vpop.f32.mrb[0].mxu0
    %v7713 = vadd.f32 %v7672, %v7712
    %v7714 = vpop.f32.mrb[0].mxu0
    %v7715 = vpop.f32.mrb[0].mxu0
    %v7716 = vadd.f32 %v7675, %v7715
    %v7717 = vpop.f32.mrb[0].mxu0
    %7718 = vdwg.mxu0
    %7719 = vst [vmem:[#allocation5] sm:$0xff] %v7713
    %7720 = vst [vmem:[#allocation5 + $0x8] sm:$0xff] %v7716
    %v7721 = vpack.c.bf16 %v7716, %v7713
    %v7722 = vld [vmem:[%s7] sm:$0xff]
    %v7723 = vld [vmem:[%s7 + $0x8] sm:$0xff]
    %v7724 = vld [vmem:[%s7 + $0x10] sm:$0xff]
    %v7725 = vld [vmem:[%s7 + $0x18] sm:$0xff]
    %v7726 = vld [vmem:[%s7 + $0x20] sm:$0xff]
    %v7727 = vld [vmem:[%s7 + $0x28] sm:$0xff]
    %v7728 = vld [vmem:[%s7 + $0x30] sm:$0xff]
    %v7729 = vld [vmem:[%s7 + $0x38] sm:$0xff]
    %v7730 = vld [vmem:[%s8] sm:$0xff]
    %v7732 = vlaneseq
    %v7733 = vshrl.u32 %v7732, 7
    %v7734 = vsub.s32 0, %v7733
    %v7735 = vrot.slane %v7730, %v7734
    %v7736 = vlaneseq
    %v7737 = vshrl.u32 %v7736, 7
    %v7738 = vsub.s32 1, %v7737
    %v7739 = vrot.slane %v7730, %v7738
    %v7740 = vlaneseq
    %v7741 = vshrl.u32 %v7740, 7
    %v7742 = vsub.s32 2, %v7741
    %v7743 = vrot.slane %v7730, %v7742
    %v7744 = vlaneseq
    %v7745 = vshrl.u32 %v7744, 7
    %v7746 = vsub.s32 3, %v7745
    %v7747 = vrot.slane %v7730, %v7746
    %v7748 = vlaneseq
    %v7749 = vshrl.u32 %v7748, 7
    %v7750 = vsub.s32 4, %v7749
    %v7751 = vrot.slane %v7730, %v7750
    %v7752 = vlaneseq
    %v7753 = vshrl.u32 %v7752, 7
    %v7754 = vsub.s32 5, %v7753
    %v7755 = vrot.slane %v7730, %v7754
    %v7756 = vlaneseq
    %v7757 = vshrl.u32 %v7756, 7
    %v7758 = vsub.s32 6, %v7757
    %v7759 = vrot.slane %v7730, %v7758
    %v7760 = vlaneseq
    %v7761 = vshrl.u32 %v7760, 7
    %v7762 = vsub.s32 7, %v7761
    %v7763 = vrot.slane %v7730, %v7762
    %v7780 = vunpack.c.l.b16 %v7722
    %v7781 = vunpack.c.h.b16 %v7722
    %v7782 = vunpack.c.l.b16 %v7723
    %v7783 = vunpack.c.h.b16 %v7723
    %v7784 = vunpack.c.l.b16 %v7724
    %v7785 = vunpack.c.h.b16 %v7724
    %v7786 = vunpack.c.l.b16 %v7725
    %v7787 = vunpack.c.h.b16 %v7725
    %v7788 = vunpack.c.l.b16 %v7726
    %v7789 = vunpack.c.h.b16 %v7726
    %v7790 = vunpack.c.l.b16 %v7727
    %v7791 = vunpack.c.h.b16 %v7727
    %v7792 = vunpack.c.l.b16 %v7728
    %v7793 = vunpack.c.h.b16 %v7728
    %v7794 = vunpack.c.l.b16 %v7729
    %v7795 = vunpack.c.h.b16 %v7729
    %v7796 = vpack.c.b16 %v7788, %v7780
    %v7797 = vpack.c.b16 %v7789, %v7781
    %v7798 = vpack.c.b16 %v7790, %v7782
    %v7799 = vpack.c.b16 %v7791, %v7783
    %v7800 = vpack.c.b16 %v7792, %v7784
    %v7801 = vpack.c.b16 %v7793, %v7785
    %v7802 = vpack.c.b16 %v7794, %v7786
    %v7803 = vpack.c.b16 %v7795, %v7787
    %v7813 = vsel %vm2494, %v7721, 0
    %7815 = vmatprep.subr.bf16.mxu0 %v7797
    %7816 = vmatpush1.bf16.msra.mxu0 %v7796
    %7817 = vmatprep.subr.bf16.mxu0 0
    %7818 = vmatpush1.bf16.msra.mxu0 0
    %7819 = vmatprep.subr.bf16.mxu0 0
    %7820 = vmatpush1.bf16.msra.mxu0 0
    %7821 = vmatprep.subr.bf16.mxu0 0
    %7822 = vmatpush1.bf16.msra.mxu0 0
    %7823 = vmatprep.subr.bf16.mxu0 0
    %7824 = vmatpush1.bf16.msra.mxu0 0
    %7825 = vmatprep.subr.bf16.mxu0 0
    %7826 = vmatpush1.bf16.msra.mxu0 0
    %7827 = vmatprep.subr.bf16.mxu0 0
    %7828 = vmatpush1.bf16.msra.mxu0 0
    %7829 = vmatprep.subr.bf16.mxu0 0
    %7830 = vmatpush1.bf16.msra.mxu0 0
    %7831 = vmatprep.subr.bf16.mxu0 0
    %7832 = vmatpush1.bf16.msra.mxu0 0
    %7833 = vmatprep.subr.bf16.mxu0 0
    %7834 = vmatpush1.bf16.msra.mxu0 0
    %7835 = vmatprep.subr.bf16.mxu0 0
    %7836 = vmatpush1.bf16.msra.mxu0 0
    %7837 = vmatprep.subr.bf16.mxu0 0
    %7838 = vmatpush1.bf16.msra.mxu0 0
    %7839 = vmatprep.subr.bf16.mxu0 0
    %7840 = vmatpush1.bf16.msra.mxu0 0
    %7841 = vmatprep.subr.bf16.mxu0 0
    %7842 = vmatpush1.bf16.msra.mxu0 0
    %7843 = vmatprep.subr.bf16.mxu0 0
    %7844 = vmatpush1.bf16.msra.mxu0 0
    %7845 = vmatprep.subr.bf16.mxu0 0
    %7846 = vmatpush1.bf16.msra.mxu0 0
    %7847 = vmatprep.mubr.bf16.mxu0 0
    %7848 = vmatmul.mubr.bf16.gmra.mrb[0].mxu0 %v7813
    %v7849 = vpop.f32.mrb[0].mxu0
    %v7850 = vadd.f32 %v7735, %v7849
    %v7851 = vpop.f32.mrb[0].mxu0
    %v7852 = vadd.f32 %v7739, %v7851
    %v7853 = vpop.f32.mrb[0].mxu0
    %v7854 = vadd.f32 %v7735, %v7853
    %v7855 = vpop.f32.mrb[0].mxu0
    %v7856 = vadd.f32 %v7739, %v7855
    %7857 = vdwg.mxu0
    %7858 = vmatprep.subr.bf16.mxu0 %v7799
    %7859 = vmatpush1.bf16.msra.mxu0 %v7798
    %7860 = vmatprep.subr.bf16.mxu0 0
    %7861 = vmatpush1.bf16.msra.mxu0 0
    %7862 = vmatprep.subr.bf16.mxu0 0
    %7863 = vmatpush1.bf16.msra.mxu0 0
    %7864 = vmatprep.subr.bf16.mxu0 0
    %7865 = vmatpush1.bf16.msra.mxu0 0
    %7866 = vmatprep.subr.bf16.mxu0 0
    %7867 = vmatpush1.bf16.msra.mxu0 0
    %7868 = vmatprep.subr.bf16.mxu0 0
    %7869 = vmatpush1.bf16.msra.mxu0 0
    %7870 = vmatprep.subr.bf16.mxu0 0
    %7871 = vmatpush1.bf16.msra.mxu0 0
    %7872 = vmatprep.subr.bf16.mxu0 0
    %7873 = vmatpush1.bf16.msra.mxu0 0
    %7874 = vmatprep.subr.bf16.mxu0 0
    %7875 = vmatpush1.bf16.msra.mxu0 0
    %7876 = vmatprep.subr.bf16.mxu0 0
    %7877 = vmatpush1.bf16.msra.mxu0 0
    %7878 = vmatprep.subr.bf16.mxu0 0
    %7879 = vmatpush1.bf16.msra.mxu0 0
    %7880 = vmatprep.subr.bf16.mxu0 0
    %7881 = vmatpush1.bf16.msra.mxu0 0
    %7882 = vmatprep.subr.bf16.mxu0 0
    %7883 = vmatpush1.bf16.msra.mxu0 0
    %7884 = vmatprep.subr.bf16.mxu0 0
    %7885 = vmatpush1.bf16.msra.mxu0 0
    %7886 = vmatprep.subr.bf16.mxu0 0
    %7887 = vmatpush1.bf16.msra.mxu0 0
    %7888 = vmatprep.subr.bf16.mxu0 0
    %7889 = vmatpush1.bf16.msra.mxu0 0
    %7890 = vmatprep.mubr.bf16.mxu0 0
    %7891 = vmatmul.mubr.bf16.gmra.mrb[0].mxu0 %v7813
    %v7892 = vpop.f32.mrb[0].mxu0
    %v7893 = vadd.f32 %v7743, %v7892
    %v7894 = vpop.f32.mrb[0].mxu0
    %v7895 = vadd.f32 %v7747, %v7894
    %v7896 = vpop.f32.mrb[0].mxu0
    %v7897 = vadd.f32 %v7743, %v7896
    %v7898 = vpop.f32.mrb[0].mxu0
    %v7899 = vadd.f32 %v7747, %v7898
    %7900 = vdwg.mxu0
    %7901 = vmatprep.subr.bf16.mxu0 %v7801
    %7902 = vmatpush1.bf16.msra.mxu0 %v7800
    %7903 = vmatprep.subr.bf16.mxu0 0
    %7904 = vmatpush1.bf16.msra.mxu0 0
    %7905 = vmatprep.subr.bf16.mxu0 0
    %7906 = vmatpush1.bf16.msra.mxu0 0
    %7907 = vmatprep.subr.bf16.mxu0 0
    %7908 = vmatpush1.bf16.msra.mxu0 0
    %7909 = vmatprep.subr.bf16.mxu0 0
    %7910 = vmatpush1.bf16.msra.mxu0 0
    %7911 = vmatprep.subr.bf16.mxu0 0
    %7912 = vmatpush1.bf16.msra.mxu0 0
    %7913 = vmatprep.subr.bf16.mxu0 0
    %7914 = vmatpush1.bf16.msra.mxu0 0
    %7915 = vmatprep.subr.bf16.mxu0 0
    %7916 = vmatpush1.bf16.msra.mxu0 0
    %7917 = vmatprep.subr.bf16.mxu0 0
    %7918 = vmatpush1.bf16.msra.mxu0 0
    %7919 = vmatprep.subr.bf16.mxu0 0
    %7920 = vmatpush1.bf16.msra.mxu0 0
    %7921 = vmatprep.subr.bf16.mxu0 0
    %7922 = vmatpush1.bf16.msra.mxu0 0
    %7923 = vmatprep.subr.bf16.mxu0 0
    %7924 = vmatpush1.bf16.msra.mxu0 0
    %7925 = vmatprep.subr.bf16.mxu0 0
    %7926 = vmatpush1.bf16.msra.mxu0 0
    %7927 = vmatprep.subr.bf16.mxu0 0
    %7928 = vmatpush1.bf16.msra.mxu0 0
    %7929 = vmatprep.subr.bf16.mxu0 0
    %7930 = vmatpush1.bf16.msra.mxu0 0
    %7931 = vmatprep.subr.bf16.mxu0 0
    %7932 = vmatpush1.bf16.msra.mxu0 0
    %7933 = vmatprep.mubr.bf16.mxu0 0
    %7934 = vmatmul.mubr.bf16.gmra.mrb[0].mxu0 %v7813
    %v7935 = vpop.f32.mrb[0].mxu0
    %v7936 = vadd.f32 %v7751, %v7935
    %v7937 = vpop.f32.mrb[0].mxu0
    %v7938 = vadd.f32 %v7755, %v7937
    %v7939 = vpop.f32.mrb[0].mxu0
    %v7940 = vadd.f32 %v7751, %v7939
    %v7941 = vpop.f32.mrb[0].mxu0
    %v7942 = vadd.f32 %v7755, %v7941
    %7943 = vdwg.mxu0
    %7944 = vmatprep.subr.bf16.mxu0 %v7803
    %7945 = vmatpush1.bf16.msra.mxu0 %v7802
    %7946 = vmatprep.subr.bf16.mxu0 0
    %7947 = vmatpush1.bf16.msra.mxu0 0
    %7948 = vmatprep.subr.bf16.mxu0 0
    %7949 = vmatpush1.bf16.msra.mxu0 0
    %7950 = vmatprep.subr.bf16.mxu0 0
    %7951 = vmatpush1.bf16.msra.mxu0 0
    %7952 = vmatprep.subr.bf16.mxu0 0
    %7953 = vmatpush1.bf16.msra.mxu0 0
    %7954 = vmatprep.subr.bf16.mxu0 0
    %7955 = vmatpush1.bf16.msra.mxu0 0
    %7956 = vmatprep.subr.bf16.mxu0 0
    %7957 = vmatpush1.bf16.msra.mxu0 0
    %7958 = vmatprep.subr.bf16.mxu0 0
    %7959 = vmatpush1.bf16.msra.mxu0 0
    %7960 = vmatprep.subr.bf16.mxu0 0
    %7961 = vmatpush1.bf16.msra.mxu0 0
    %7962 = vmatprep.subr.bf16.mxu0 0
    %7963 = vmatpush1.bf16.msra.mxu0 0
    %7964 = vmatprep.subr.bf16.mxu0 0
    %7965 = vmatpush1.bf16.msra.mxu0 0
    %7966 = vmatprep.subr.bf16.mxu0 0
    %7967 = vmatpush1.bf16.msra.mxu0 0
    %7968 = vmatprep.subr.bf16.mxu0 0
    %7969 = vmatpush1.bf16.msra.mxu0 0
    %7970 = vmatprep.subr.bf16.mxu0 0
    %7971 = vmatpush1.bf16.msra.mxu0 0
    %7972 = vmatprep.subr.bf16.mxu0 0
    %7973 = vmatpush1.bf16.msra.mxu0 0
    %7974 = vmatprep.subr.bf16.mxu0 0
    %7975 = vmatpush1.bf16.msra.mxu0 0
    %7976 = vmatprep.mubr.bf16.mxu0 0
    %7977 = vmatmul.mubr.bf16.gmra.mrb[0].mxu0 %v7813
    %v7978 = vpop.f32.mrb[0].mxu0
    %v7979 = vadd.f32 %v7759, %v7978
    %v7980 = vpop.f32.mrb[0].mxu0
    %v7981 = vadd.f32 %v7763, %v7980
    %v7982 = vpop.f32.mrb[0].mxu0
    %v7983 = vadd.f32 %v7759, %v7982
    %v7984 = vpop.f32.mrb[0].mxu0
    %v7985 = vadd.f32 %v7763, %v7984
    %7986 = vdwg.mxu0
    %v7987 = vmax.f32 %v7850, 0.0
    %v7988 = vmax.f32 %v7852, 0.0
    %v7989 = vmax.f32 %v7893, 0.0
    %v7990 = vmax.f32 %v7895, 0.0
    %v7991 = vmax.f32 %v7936, 0.0
    %v7992 = vmax.f32 %v7938, 0.0
    %v7993 = vmax.f32 %v7979, 0.0
    %v7994 = vmax.f32 %v7981, 0.0
    %v7995 = vmax.f32 %v7854, 0.0
    %v7996 = vmax.f32 %v7856, 0.0
    %v7997 = vmax.f32 %v7897, 0.0
    %v7998 = vmax.f32 %v7899, 0.0
    %v7999 = vmax.f32 %v7940, 0.0
    %v8000 = vmax.f32 %v7942, 0.0
    %v8001 = vmax.f32 %v7983, 0.0
    %v8002 = vmax.f32 %v7985, 0.0
    %v8003 = vpack.c.bf16 %v7995, %v7987
    %v8004 = vpack.c.bf16 %v7996, %v7988
    %v8005 = vpack.c.bf16 %v7997, %v7989
    %v8006 = vpack.c.bf16 %v7998, %v7990
    %v8007 = vpack.c.bf16 %v7999, %v7991
    %v8008 = vpack.c.bf16 %v8000, %v7992
    %v8009 = vpack.c.bf16 %v8001, %v7993
    %v8010 = vpack.c.bf16 %v8002, %v7994
    %v8011 = vld [vmem:[%s9] sm:$0xff]
    %v8012 = vld [vmem:[%s9 + $0x8] sm:$0xff]
    %v8013 = vld [vmem:[%s9 + $0x10] sm:$0xff]
    %v8014 = vld [vmem:[%s9 + $0x18] sm:$0xf]
    %v8015 = vld [vmem:[%s9 + $0x1c] sm:$0xff]
    %v8016 = vld [vmem:[%s9 + $0x24] sm:$0xff]
    %v8017 = vld [vmem:[%s9 + $0x2c] sm:$0xff]
    %v8018 = vld [vmem:[%s9 + $0x34] sm:$0xf]
    %v8019 = vld [vmem:[%s9 + $0x38] sm:$0xff]
    %v8020 = vld [vmem:[%s9 + $0x40] sm:$0xff]
    %v8021 = vld [vmem:[%s9 + $0x48] sm:$0xff]
    %v8022 = vld [vmem:[%s9 + $0x50] sm:$0xf]
    %v8023 = vld [vmem:[%s9 + $0x54] sm:$0xff]
    %v8024 = vld [vmem:[%s9 + $0x5c] sm:$0xff]
    %v8025 = vld [vmem:[%s9 + $0x64] sm:$0xff]
    %v8026 = vld [vmem:[%s9 + $0x6c] sm:$0xf]
    %v8027 = vld [vmem:[%s9 + $0x70] sm:$0xff]
    %v8028 = vld [vmem:[%s9 + $0x78] sm:$0xff]
    %v8029 = vld [vmem:[%s9 + $0x80] sm:$0xff]
    %v8030 = vld [vmem:[%s9 + $0x88] sm:$0xf]
    %v8031 = vld [vmem:[%s9 + $0x8c] sm:$0xff]
    %v8032 = vld [vmem:[%s9 + $0x94] sm:$0xff]
    %v8033 = vld [vmem:[%s9 + $0x9c] sm:$0xff]
    %v8034 = vld [vmem:[%s9 + $0xa4] sm:$0xf]
    %v8035 = vld [vmem:[%s9 + $0xa8] sm:$0xff]
    %v8036 = vld [vmem:[%s9 + $0xb0] sm:$0xff]
    %v8037 = vld [vmem:[%s9 + $0xb8] sm:$0xff]
    %v8038 = vld [vmem:[%s9 + $0xc0] sm:$0xf]
    %v8039 = vld [vmem:[%s9 + $0xc4] sm:$0xff]
    %v8040 = vld [vmem:[%s9 + $0xcc] sm:$0xff]
    %v8041 = vld [vmem:[%s9 + $0xd4] sm:$0xff]
    %v8042 = vld [vmem:[%s9 + $0xdc] sm:$0xf]
    %v8043 = vld [vmem:[%s9 + $0xe0] sm:$0xff]
    %v8044 = vld [vmem:[%s9 + $0xe8] sm:$0xff]
    %v8045 = vld [vmem:[%s9 + $0xf0] sm:$0xff]
    %v8046 = vld [vmem:[%s9 + $0xf8] sm:$0xf]
    %v8047 = vld [vmem:[%s9 + $0xfc] sm:$0xff]
    %v8048 = vld [vmem:[%s9 + $0x104] sm:$0xff]
    %v8049 = vld [vmem:[%s9 + $0x10c] sm:$0xff]
    %v8050 = vld [vmem:[%s9 + $0x114] sm:$0xf]
    %v8051 = vld [vmem:[%s9 + $0x118] sm:$0xff]
    %v8052 = vld [vmem:[%s9 + $0x120] sm:$0xff]
    %v8053 = vld [vmem:[%s9 + $0x128] sm:$0xff]
    %v8054 = vld [vmem:[%s9 + $0x130] sm:$0xf]
    %v8055 = vld [vmem:[%s9 + $0x134] sm:$0xff]
    %v8056 = vld [vmem:[%s9 + $0x13c] sm:$0xff]
    %v8057 = vld [vmem:[%s9 + $0x144] sm:$0xff]
    %v8058 = vld [vmem:[%s9 + $0x14c] sm:$0xf]
    %v8059 = vld [vmem:[%s9 + $0x150] sm:$0xff]
    %v8060 = vld [vmem:[%s9 + $0x158] sm:$0xff]
    %v8061 = vld [vmem:[%s9 + $0x160] sm:$0xff]
    %v8062 = vld [vmem:[%s9 + $0x168] sm:$0xf]
    %v8063 = vld [vmem:[%s9 + $0x16c] sm:$0xff]
    %v8064 = vld [vmem:[%s9 + $0x174] sm:$0xff]
    %v8065 = vld [vmem:[%s9 + $0x17c] sm:$0xff]
    %v8066 = vld [vmem:[%s9 + $0x184] sm:$0xf]
    %v8067 = vld [vmem:[%s9 + $0x188] sm:$0xff]
    %v8068 = vld [vmem:[%s9 + $0x190] sm:$0xff]
    %v8069 = vld [vmem:[%s9 + $0x198] sm:$0xff]
    %v8070 = vld [vmem:[%s9 + $0x1a0] sm:$0xf]
    %v8071 = vld [vmem:[%s9 + $0x1a4] sm:$0xff]
    %v8072 = vld [vmem:[%s9 + $0x1ac] sm:$0xff]
    %v8073 = vld [vmem:[%s9 + $0x1b4] sm:$0xff]
    %v8074 = vld [vmem:[%s9 + $0x1bc] sm:$0xf]
    %v8075 = vld [vmem:[%s9 + $0x1c0] sm:$0xff]
    %v8076 = vld [vmem:[%s9 + $0x1c8] sm:$0xff]
    %v8077 = vld [vmem:[%s9 + $0x1d0] sm:$0xff]
    %v8078 = vld [vmem:[%s9 + $0x1d8] sm:$0xf]
    %v8079 = vld [vmem:[%s9 + $0x1dc] sm:$0xff]
    %v8080 = vld [vmem:[%s9 + $0x1e4] sm:$0xff]
    %v8081 = vld [vmem:[%s9 + $0x1ec] sm:$0xff]
    %v8082 = vld [vmem:[%s9 + $0x1f4] sm:$0xf]
    %v8083 = vld [vmem:[%s9 + $0x1f8] sm:$0xff]
    %v8084 = vld [vmem:[%s9 + $0x200] sm:$0xff]
    %v8085 = vld [vmem:[%s9 + $0x208] sm:$0xff]
    %v8086 = vld [vmem:[%s9 + $0x210] sm:$0xf]
    %v8087 = vld [vmem:[%s9 + $0x214] sm:$0xff]
    %v8088 = vld [vmem:[%s9 + $0x21c] sm:$0xff]
    %v8089 = vld [vmem:[%s9 + $0x224] sm:$0xff]
    %v8090 = vld [vmem:[%s9 + $0x22c] sm:$0xf]
    %v8091 = vld [vmem:[%s9 + $0x230] sm:$0xff]
    %v8092 = vld [vmem:[%s9 + $0x238] sm:$0xff]
    %v8093 = vld [vmem:[%s9 + $0x240] sm:$0xff]
    %v8094 = vld [vmem:[%s9 + $0x248] sm:$0xf]
    %v8095 = vld [vmem:[%s9 + $0x24c] sm:$0xff]
    %v8096 = vld [vmem:[%s9 + $0x254] sm:$0xff]
    %v8097 = vld [vmem:[%s9 + $0x25c] sm:$0xff]
    %v8098 = vld [vmem:[%s9 + $0x264] sm:$0xf]
    %v8099 = vld [vmem:[%s9 + $0x268] sm:$0xff]
    %v8100 = vld [vmem:[%s9 + $0x270] sm:$0xff]
    %v8101 = vld [vmem:[%s9 + $0x278] sm:$0xff]
    %v8102 = vld [vmem:[%s9 + $0x280] sm:$0xf]
    %v8103 = vld [vmem:[%s9 + $0x284] sm:$0xff]
    %v8104 = vld [vmem:[%s9 + $0x28c] sm:$0xff]
    %v8105 = vld [vmem:[%s9 + $0x294] sm:$0xff]
    %v8106 = vld [vmem:[%s9 + $0x29c] sm:$0xf]
    %v8107 = vld [vmem:[%s9 + $0x2a0] sm:$0xff]
    %v8108 = vld [vmem:[%s9 + $0x2a8] sm:$0xff]
    %v8109 = vld [vmem:[%s9 + $0x2b0] sm:$0xff]
    %v8110 = vld [vmem:[%s9 + $0x2b8] sm:$0xf]
    %v8111 = vld [vmem:[%s9 + $0x2bc] sm:$0xff]
    %v8112 = vld [vmem:[%s9 + $0x2c4] sm:$0xff]
    %v8113 = vld [vmem:[%s9 + $0x2cc] sm:$0xff]
    %v8114 = vld [vmem:[%s9 + $0x2d4] sm:$0xf]
    %v8115 = vld [vmem:[%s9 + $0x2d8] sm:$0xff]
    %v8116 = vld [vmem:[%s9 + $0x2e0] sm:$0xff]
    %v8117 = vld [vmem:[%s9 + $0x2e8] sm:$0xff]
    %v8118 = vld [vmem:[%s9 + $0x2f0] sm:$0xf]
    %v8119 = vld [vmem:[%s9 + $0x2f4] sm:$0xff]
    %v8120 = vld [vmem:[%s9 + $0x2fc] sm:$0xff]
    %v8121 = vld [vmem:[%s9 + $0x304] sm:$0xff]
    %v8122 = vld [vmem:[%s9 + $0x30c] sm:$0xf]
    %v8123 = vld [vmem:[%s9 + $0x310] sm:$0xff]
    %v8124 = vld [vmem:[%s9 + $0x318] sm:$0xff]
    %v8125 = vld [vmem:[%s9 + $0x320] sm:$0xff]
    %v8126 = vld [vmem:[%s9 + $0x328] sm:$0xf]
    %v8127 = vld [vmem:[%s9 + $0x32c] sm:$0xff]
    %v8128 = vld [vmem:[%s9 + $0x334] sm:$0xff]
    %v8129 = vld [vmem:[%s9 + $0x33c] sm:$0xff]
    %v8130 = vld [vmem:[%s9 + $0x344] sm:$0xf]
    %v8131 = vld [vmem:[%s9 + $0x348] sm:$0xff]
    %v8132 = vld [vmem:[%s9 + $0x350] sm:$0xff]
    %v8133 = vld [vmem:[%s9 + $0x358] sm:$0xff]
    %v8134 = vld [vmem:[%s9 + $0x360] sm:$0xf]
    %v8135 = vld [vmem:[%s9 + $0x364] sm:$0xff]
    %v8136 = vld [vmem:[%s9 + $0x36c] sm:$0xff]
    %v8137 = vld [vmem:[%s9 + $0x374] sm:$0xff]
    %v8138 = vld [vmem:[%s9 + $0x37c] sm:$0xf]
    %v8139 = vld [vmem:[%s9 + $0x380] sm:$0xff]
    %v8140 = vld [vmem:[%s9 + $0x388] sm:$0xff]
    %v8141 = vld [vmem:[%s9 + $0x390] sm:$0xff]
    %v8142 = vld [vmem:[%s9 + $0x398] sm:$0xf]
    %v8143 = vld [vmem:[%s9 + $0x39c] sm:$0xff]
    %v8144 = vld [vmem:[%s9 + $0x3a4] sm:$0xff]
    %v8145 = vld [vmem:[%s9 + $0x3ac] sm:$0xff]
    %v8146 = vld [vmem:[%s9 + $0x3b4] sm:$0xf]
    %v8147 = vld [vmem:[%s9 + $0x3b8] sm:$0xff]
    %v8148 = vld [vmem:[%s9 + $0x3c0] sm:$0xff]
    %v8149 = vld [vmem:[%s9 + $0x3c8] sm:$0xff]
    %v8150 = vld [vmem:[%s9 + $0x3d0] sm:$0xf]
    %v8151 = vld [vmem:[%s9 + $0x3d4] sm:$0xff]
    %v8152 = vld [vmem:[%s9 + $0x3dc] sm:$0xff]
    %v8153 = vld [vmem:[%s9 + $0x3e4] sm:$0xff]
    %v8154 = vld [vmem:[%s9 + $0x3ec] sm:$0xf]
    %v8155 = vld [vmem:[%s9 + $0x3f0] sm:$0xff]
    %v8156 = vld [vmem:[%s9 + $0x3f8] sm:$0xff]
    %v8157 = vld [vmem:[%s9 + $0x400] sm:$0xff]
    %v8158 = vld [vmem:[%s9 + $0x408] sm:$0xf]
    %v8159 = vld [vmem:[%s9 + $0x40c] sm:$0xff]
    %v8160 = vld [vmem:[%s9 + $0x414] sm:$0xff]
    %v8161 = vld [vmem:[%s9 + $0x41c] sm:$0xff]
    %v8162 = vld [vmem:[%s9 + $0x424] sm:$0xf]
    %v8163 = vld [vmem:[%s9 + $0x428] sm:$0xff]
    %v8164 = vld [vmem:[%s9 + $0x430] sm:$0xff]
    %v8165 = vld [vmem:[%s9 + $0x438] sm:$0xff]
    %v8166 = vld [vmem:[%s9 + $0x440] sm:$0xf]
    %v8167 = vld [vmem:[%s9 + $0x444] sm:$0xff]
    %v8168 = vld [vmem:[%s9 + $0x44c] sm:$0xff]
    %v8169 = vld [vmem:[%s9 + $0x454] sm:$0xff]
    %v8170 = vld [vmem:[%s9 + $0x45c] sm:$0xf]
    %v8171 = vld [vmem:[%s9 + $0x460] sm:$0xff]
    %v8172 = vld [vmem:[%s9 + $0x468] sm:$0xff]
    %v8173 = vld [vmem:[%s9 + $0x470] sm:$0xff]
    %v8174 = vld [vmem:[%s9 + $0x478] sm:$0xf]
    %v8175 = vld [vmem:[%s9 + $0x47c] sm:$0xff]
    %v8176 = vld [vmem:[%s9 + $0x484] sm:$0xff]
    %v8177 = vld [vmem:[%s9 + $0x48c] sm:$0xff]
    %v8178 = vld [vmem:[%s9 + $0x494] sm:$0xf]
    %v8179 = vld [vmem:[%s9 + $0x498] sm:$0xff]
    %v8180 = vld [vmem:[%s9 + $0x4a0] sm:$0xff]
    %v8181 = vld [vmem:[%s9 + $0x4a8] sm:$0xff]
    %v8182 = vld [vmem:[%s9 + $0x4b0] sm:$0xf]
    %v8183 = vld [vmem:[%s9 + $0x4b4] sm:$0xff]
    %v8184 = vld [vmem:[%s9 + $0x4bc] sm:$0xff]
    %v8185 = vld [vmem:[%s9 + $0x4c4] sm:$0xff]
    %v8186 = vld [vmem:[%s9 + $0x4cc] sm:$0xf]
    %v8187 = vld [vmem:[%s9 + $0x4d0] sm:$0xff]
    %v8188 = vld [vmem:[%s9 + $0x4d8] sm:$0xff]
    %v8189 = vld [vmem:[%s9 + $0x4e0] sm:$0xff]
    %v8190 = vld [vmem:[%s9 + $0x4e8] sm:$0xf]
    %v8191 = vld [vmem:[%s9 + $0x4ec] sm:$0xff]
    %v8192 = vld [vmem:[%s9 + $0x4f4] sm:$0xff]
    %v8193 = vld [vmem:[%s9 + $0x4fc] sm:$0xff]
    %v8194 = vld [vmem:[%s9 + $0x504] sm:$0xf]
    %v8195 = vld [vmem:[%s9 + $0x508] sm:$0xff]
    %v8196 = vld [vmem:[%s9 + $0x510] sm:$0xff]
    %v8197 = vld [vmem:[%s9 + $0x518] sm:$0xff]
    %v8198 = vld [vmem:[%s9 + $0x520] sm:$0xf]
    %v8199 = vld [vmem:[%s9 + $0x524] sm:$0xff]
    %v8200 = vld [vmem:[%s9 + $0x52c] sm:$0xff]
    %v8201 = vld [vmem:[%s9 + $0x534] sm:$0xff]
    %v8202 = vld [vmem:[%s9 + $0x53c] sm:$0xf]
    %v8203 = vld [vmem:[%s9 + $0x540] sm:$0xff]
    %v8204 = vld [vmem:[%s9 + $0x548] sm:$0xff]
    %v8205 = vld [vmem:[%s9 + $0x550] sm:$0xff]
    %v8206 = vld [vmem:[%s9 + $0x558] sm:$0xf]
    %v8207 = vld [vmem:[%s9 + $0x55c] sm:$0xff]
    %v8208 = vld [vmem:[%s9 + $0x564] sm:$0xff]
    %v8209 = vld [vmem:[%s9 + $0x56c] sm:$0xff]
    %v8210 = vld [vmem:[%s9 + $0x574] sm:$0xf]
    %v8211 = vld [vmem:[%s9 + $0x578] sm:$0xff]
    %v8212 = vld [vmem:[%s9 + $0x580] sm:$0xff]
    %v8213 = vld [vmem:[%s9 + $0x588] sm:$0xff]
    %v8214 = vld [vmem:[%s9 + $0x590] sm:$0xf]
    %v8215 = vld [vmem:[%s9 + $0x594] sm:$0xff]
    %v8216 = vld [vmem:[%s9 + $0x59c] sm:$0xff]
    %v8217 = vld [vmem:[%s9 + $0x5a4] sm:$0xff]
    %v8218 = vld [vmem:[%s9 + $0x5ac] sm:$0xf]
    %v8219 = vld [vmem:[%s9 + $0x5b0] sm:$0xff]
    %v8220 = vld [vmem:[%s9 + $0x5b8] sm:$0xff]
    %v8221 = vld [vmem:[%s9 + $0x5c0] sm:$0xff]
    %v8222 = vld [vmem:[%s9 + $0x5c8] sm:$0xf]
    %v8223 = vld [vmem:[%s9 + $0x5cc] sm:$0xff]
    %v8224 = vld [vmem:[%s9 + $0x5d4] sm:$0xff]
    %v8225 = vld [vmem:[%s9 + $0x5dc] sm:$0xff]
    %v8226 = vld [vmem:[%s9 + $0x5e4] sm:$0xf]
    %v8227 = vld [vmem:[%s9 + $0x5e8] sm:$0xff]
    %v8228 = vld [vmem:[%s9 + $0x5f0] sm:$0xff]
    %v8229 = vld [vmem:[%s9 + $0x5f8] sm:$0xff]
    %v8230 = vld [vmem:[%s9 + $0x600] sm:$0xf]
    %v8231 = vld [vmem:[%s9 + $0x604] sm:$0xff]
    %v8232 = vld [vmem:[%s9 + $0x60c] sm:$0xff]
    %v8233 = vld [vmem:[%s9 + $0x614] sm:$0xff]
    %v8234 = vld [vmem:[%s9 + $0x61c] sm:$0xf]
    %v8235 = vld [vmem:[%s9 + $0x620] sm:$0xff]
    %v8236 = vld [vmem:[%s9 + $0x628] sm:$0xff]
    %v8237 = vld [vmem:[%s9 + $0x630] sm:$0xff]
    %v8238 = vld [vmem:[%s9 + $0x638] sm:$0xf]
    %v8239 = vld [vmem:[%s9 + $0x63c] sm:$0xff]
    %v8240 = vld [vmem:[%s9 + $0x644] sm:$0xff]
    %v8241 = vld [vmem:[%s9 + $0x64c] sm:$0xff]
    %v8242 = vld [vmem:[%s9 + $0x654] sm:$0xf]
    %v8243 = vld [vmem:[%s9 + $0x658] sm:$0xff]
    %v8244 = vld [vmem:[%s9 + $0x660] sm:$0xff]
    %v8245 = vld [vmem:[%s9 + $0x668] sm:$0xff]
    %v8246 = vld [vmem:[%s9 + $0x670] sm:$0xf]
    %v8247 = vld [vmem:[%s9 + $0x674] sm:$0xff]
    %v8248 = vld [vmem:[%s9 + $0x67c] sm:$0xff]
    %v8249 = vld [vmem:[%s9 + $0x684] sm:$0xff]
    %v8250 = vld [vmem:[%s9 + $0x68c] sm:$0xf]
    %v8251 = vld [vmem:[%s9 + $0x690] sm:$0xff]
    %v8252 = vld [vmem:[%s9 + $0x698] sm:$0xff]
    %v8253 = vld [vmem:[%s9 + $0x6a0] sm:$0xff]
    %v8254 = vld [vmem:[%s9 + $0x6a8] sm:$0xf]
    %v8255 = vld [vmem:[%s9 + $0x6ac] sm:$0xff]
    %v8256 = vld [vmem:[%s9 + $0x6b4] sm:$0xff]
    %v8257 = vld [vmem:[%s9 + $0x6bc] sm:$0xff]
    %v8258 = vld [vmem:[%s9 + $0x6c4] sm:$0xf]
    %v8259 = vld [vmem:[%s9 + $0x6c8] sm:$0xff]
    %v8260 = vld [vmem:[%s9 + $0x6d0] sm:$0xff]
    %v8261 = vld [vmem:[%s9 + $0x6d8] sm:$0xff]
    %v8262 = vld [vmem:[%s9 + $0x6e0] sm:$0xf]
    %v8263 = vld [vmem:[%s9 + $0x6e4] sm:$0xff]
    %v8264 = vld [vmem:[%s9 + $0x6ec] sm:$0xff]
    %v8265 = vld [vmem:[%s9 + $0x6f4] sm:$0xff]
    %v8266 = vld [vmem:[%s9 + $0x6fc] sm:$0xf]
    %v8267 = vld [vmem:[%s9 + $0x700] sm:$0xff]
    %v8268 = vld [vmem:[%s9 + $0x708] sm:$0xff]
    %v8269 = vld [vmem:[%s9 + $0x710] sm:$0xff]
    %v8270 = vld [vmem:[%s9 + $0x718] sm:$0xf]
    %v8271 = vld [vmem:[%s9 + $0x71c] sm:$0xff]
    %v8272 = vld [vmem:[%s9 + $0x724] sm:$0xff]
    %v8273 = vld [vmem:[%s9 + $0x72c] sm:$0xff]
    %v8274 = vld [vmem:[%s9 + $0x734] sm:$0xf]
    %v8275 = vld [vmem:[%s9 + $0x738] sm:$0xff]
    %v8276 = vld [vmem:[%s9 + $0x740] sm:$0xff]
    %v8277 = vld [vmem:[%s9 + $0x748] sm:$0xff]
    %v8278 = vld [vmem:[%s9 + $0x750] sm:$0xf]
    %v8279 = vld [vmem:[%s9 + $0x754] sm:$0xff]
    %v8280 = vld [vmem:[%s9 + $0x75c] sm:$0xff]
    %v8281 = vld [vmem:[%s9 + $0x764] sm:$0xff]
    %v8282 = vld [vmem:[%s9 + $0x76c] sm:$0xf]
    %v8283 = vld [vmem:[%s9 + $0x770] sm:$0xff]
    %v8284 = vld [vmem:[%s9 + $0x778] sm:$0xff]
    %v8285 = vld [vmem:[%s9 + $0x780] sm:$0xff]
    %v8286 = vld [vmem:[%s9 + $0x788] sm:$0xf]
    %v8287 = vld [vmem:[%s9 + $0x78c] sm:$0xff]
    %v8288 = vld [vmem:[%s9 + $0x794] sm:$0xff]
    %v8289 = vld [vmem:[%s9 + $0x79c] sm:$0xff]
    %v8290 = vld [vmem:[%s9 + $0x7a4] sm:$0xf]
    %v8291 = vld [vmem:[%s9 + $0x7a8] sm:$0xff]
    %v8292 = vld [vmem:[%s9 + $0x7b0] sm:$0xff]
    %v8293 = vld [vmem:[%s9 + $0x7b8] sm:$0xff]
    %v8294 = vld [vmem:[%s9 + $0x7c0] sm:$0xf]
    %v8295 = vld [vmem:[%s9 + $0x7c4] sm:$0xff]
    %v8296 = vld [vmem:[%s9 + $0x7cc] sm:$0xff]
    %v8297 = vld [vmem:[%s9 + $0x7d4] sm:$0xff]
    %v8298 = vld [vmem:[%s9 + $0x7dc] sm:$0xf]
    %v8299 = vld [vmem:[%s9 + $0x7e0] sm:$0xff]
    %v8300 = vld [vmem:[%s9 + $0x7e8] sm:$0xff]
    %v8301 = vld [vmem:[%s9 + $0x7f0] sm:$0xff]
    %v8302 = vld [vmem:[%s9 + $0x7f8] sm:$0xf]
    %v8303 = vld [vmem:[%s9 + $0x7fc] sm:$0xff]
    %v8304 = vld [vmem:[%s9 + $0x804] sm:$0xff]
    %v8305 = vld [vmem:[%s9 + $0x80c] sm:$0xff]
    %v8306 = vld [vmem:[%s9 + $0x814] sm:$0xf]
    %v8307 = vld [vmem:[%s9 + $0x818] sm:$0xff]
    %v8308 = vld [vmem:[%s9 + $0x820] sm:$0xff]
    %v8309 = vld [vmem:[%s9 + $0x828] sm:$0xff]
    %v8310 = vld [vmem:[%s9 + $0x830] sm:$0xf]
    %v8311 = vld [vmem:[%s9 + $0x834] sm:$0xff]
    %v8312 = vld [vmem:[%s9 + $0x83c] sm:$0xff]
    %v8313 = vld [vmem:[%s9 + $0x844] sm:$0xff]
    %v8314 = vld [vmem:[%s9 + $0x84c] sm:$0xf]
    %v8315 = vld [vmem:[%s9 + $0x850] sm:$0xff]
    %v8316 = vld [vmem:[%s9 + $0x858] sm:$0xff]
    %v8317 = vld [vmem:[%s9 + $0x860] sm:$0xff]
    %v8318 = vld [vmem:[%s9 + $0x868] sm:$0xf]
    %v8319 = vld [vmem:[%s9 + $0x86c] sm:$0xff]
    %v8320 = vld [vmem:[%s9 + $0x874] sm:$0xff]
    %v8321 = vld [vmem:[%s9 + $0x87c] sm:$0xff]
    %v8322 = vld [vmem:[%s9 + $0x884] sm:$0xf]
    %v8323 = vld [vmem:[%s9 + $0x888] sm:$0xff]
    %v8324 = vld [vmem:[%s9 + $0x890] sm:$0xff]
    %v8325 = vld [vmem:[%s9 + $0x898] sm:$0xff]
    %v8326 = vld [vmem:[%s9 + $0x8a0] sm:$0xf]
    %v8327 = vld [vmem:[%s9 + $0x8a4] sm:$0xff]
    %v8328 = vld [vmem:[%s9 + $0x8ac] sm:$0xff]
    %v8329 = vld [vmem:[%s9 + $0x8b4] sm:$0xff]
    %v8330 = vld [vmem:[%s9 + $0x8bc] sm:$0xf]
    %v8331 = vld [vmem:[%s9 + $0x8c0] sm:$0xff]
    %v8332 = vld [vmem:[%s9 + $0x8c8] sm:$0xff]
    %v8333 = vld [vmem:[%s9 + $0x8d0] sm:$0xff]
    %v8334 = vld [vmem:[%s9 + $0x8d8] sm:$0xf]
    %v8335 = vld [vmem:[%s9 + $0x8dc] sm:$0xff]
    %v8336 = vld [vmem:[%s9 + $0x8e4] sm:$0xff]
    %v8337 = vld [vmem:[%s9 + $0x8ec] sm:$0xff]
    %v8338 = vld [vmem:[%s9 + $0x8f4] sm:$0xf]
    %v8339 = vld [vmem:[%s9 + $0x8f8] sm:$0xff]
    %v8340 = vld [vmem:[%s9 + $0x900] sm:$0xff]
    %v8341 = vld [vmem:[%s9 + $0x908] sm:$0xff]
    %v8342 = vld [vmem:[%s9 + $0x910] sm:$0xf]
    %v8343 = vld [vmem:[%s9 + $0x914] sm:$0xff]
    %v8344 = vld [vmem:[%s9 + $0x91c] sm:$0xff]
    %v8345 = vld [vmem:[%s9 + $0x924] sm:$0xff]
    %v8346 = vld [vmem:[%s9 + $0x92c] sm:$0xf]
    %v8347 = vld [vmem:[%s9 + $0x930] sm:$0xff]
    %v8348 = vld [vmem:[%s9 + $0x938] sm:$0xff]
    %v8349 = vld [vmem:[%s9 + $0x940] sm:$0xff]
    %v8350 = vld [vmem:[%s9 + $0x948] sm:$0xf]
    %v8351 = vld [vmem:[%s9 + $0x94c] sm:$0xff]
    %v8352 = vld [vmem:[%s9 + $0x954] sm:$0xff]
    %v8353 = vld [vmem:[%s9 + $0x95c] sm:$0xff]
    %v8354 = vld [vmem:[%s9 + $0x964] sm:$0xf]
    %v8355 = vld [vmem:[%s9 + $0x968] sm:$0xff]
    %v8356 = vld [vmem:[%s9 + $0x970] sm:$0xff]
    %v8357 = vld [vmem:[%s9 + $0x978] sm:$0xff]
    %v8358 = vld [vmem:[%s9 + $0x980] sm:$0xf]
    %v8359 = vld [vmem:[%s9 + $0x984] sm:$0xff]
    %v8360 = vld [vmem:[%s9 + $0x98c] sm:$0xff]
    %v8361 = vld [vmem:[%s9 + $0x994] sm:$0xff]
    %v8362 = vld [vmem:[%s9 + $0x99c] sm:$0xf]
    %v8363 = vld [vmem:[%s9 + $0x9a0] sm:$0xff]
    %v8364 = vld [vmem:[%s9 + $0x9a8] sm:$0xff]
    %v8365 = vld [vmem:[%s9 + $0x9b0] sm:$0xff]
    %v8366 = vld [vmem:[%s9 + $0x9b8] sm:$0xf]
    %v8367 = vld [vmem:[%s9 + $0x9bc] sm:$0xff]
    %v8368 = vld [vmem:[%s9 + $0x9c4] sm:$0xff]
    %v8369 = vld [vmem:[%s9 + $0x9cc] sm:$0xff]
    %v8370 = vld [vmem:[%s9 + $0x9d4] sm:$0xf]
    %v8371 = vld [vmem:[%s9 + $0x9d8] sm:$0xff]
    %v8372 = vld [vmem:[%s9 + $0x9e0] sm:$0xff]
    %v8373 = vld [vmem:[%s9 + $0x9e8] sm:$0xff]
    %v8374 = vld [vmem:[%s9 + $0x9f0] sm:$0xf]
    %v8375 = vld [vmem:[%s9 + $0x9f4] sm:$0xff]
    %v8376 = vld [vmem:[%s9 + $0x9fc] sm:$0xff]
    %v8377 = vld [vmem:[%s9 + $0xa04] sm:$0xff]
    %v8378 = vld [vmem:[%s9 + $0xa0c] sm:$0xf]
    %v8379 = vld [vmem:[%s9 + $0xa10] sm:$0xff]
    %v8380 = vld [vmem:[%s9 + $0xa18] sm:$0xff]
    %v8381 = vld [vmem:[%s9 + $0xa20] sm:$0xff]
    %v8382 = vld [vmem:[%s9 + $0xa28] sm:$0xf]
    %v8383 = vld [vmem:[%s9 + $0xa2c] sm:$0xff]
    %v8384 = vld [vmem:[%s9 + $0xa34] sm:$0xff]
    %v8385 = vld [vmem:[%s9 + $0xa3c] sm:$0xff]
    %v8386 = vld [vmem:[%s9 + $0xa44] sm:$0xf]
    %v8387 = vld [vmem:[%s9 + $0xa48] sm:$0xff]
    %v8388 = vld [vmem:[%s9 + $0xa50] sm:$0xff]
    %v8389 = vld [vmem:[%s9 + $0xa58] sm:$0xff]
    %v8390 = vld [vmem:[%s9 + $0xa60] sm:$0xf]
    %v8391 = vld [vmem:[%s9 + $0xa64] sm:$0xff]
    %v8392 = vld [vmem:[%s9 + $0xa6c] sm:$0xff]
    %v8393 = vld [vmem:[%s9 + $0xa74] sm:$0xff]
    %v8394 = vld [vmem:[%s9 + $0xa7c] sm:$0xf]
    %v8395 = vld [vmem:[%s9 + $0xa80] sm:$0xff]
    %v8396 = vld [vmem:[%s9 + $0xa88] sm:$0xff]
    %v8397 = vld [vmem:[%s9 + $0xa90] sm:$0xff]
    %v8398 = vld [vmem:[%s9 + $0xa98] sm:$0xf]
    %v8399 = vld [vmem:[%s9 + $0xa9c] sm:$0xff]
    %v8400 = vld [vmem:[%s9 + $0xaa4] sm:$0xff]
    %v8401 = vld [vmem:[%s9 + $0xaac] sm:$0xff]
    %v8402 = vld [vmem:[%s9 + $0xab4] sm:$0xf]
    %v8403 = vld [vmem:[%s9 + $0xab8] sm:$0xff]
    %v8404 = vld [vmem:[%s9 + $0xac0] sm:$0xff]
    %v8405 = vld [vmem:[%s9 + $0xac8] sm:$0xff]
    %v8406 = vld [vmem:[%s9 + $0xad0] sm:$0xf]
    %v8407 = vld [vmem:[%s9 + $0xad4] sm:$0xff]
    %v8408 = vld [vmem:[%s9 + $0xadc] sm:$0xff]
    %v8409 = vld [vmem:[%s9 + $0xae4] sm:$0xff]
    %v8410 = vld [vmem:[%s9 + $0xaec] sm:$0xf]
    %v8411 = vld [vmem:[%s9 + $0xaf0] sm:$0xff]
    %v8412 = vld [vmem:[%s9 + $0xaf8] sm:$0xff]
    %v8413 = vld [vmem:[%s9 + $0xb00] sm:$0xff]
    %v8414 = vld [vmem:[%s9 + $0xb08] sm:$0xf]
    %v8415 = vld [vmem:[%s9 + $0xb0c] sm:$0xff]
    %v8416 = vld [vmem:[%s9 + $0xb14] sm:$0xff]
    %v8417 = vld [vmem:[%s9 + $0xb1c] sm:$0xff]
    %v8418 = vld [vmem:[%s9 + $0xb24] sm:$0xf]
    %v8419 = vld [vmem:[%s9 + $0xb28] sm:$0xff]
    %v8420 = vld [vmem:[%s9 + $0xb30] sm:$0xff]
    %v8421 = vld [vmem:[%s9 + $0xb38] sm:$0xff]
    %v8422 = vld [vmem:[%s9 + $0xb40] sm:$0xf]
    %v8423 = vld [vmem:[%s9 + $0xb44] sm:$0xff]
    %v8424 = vld [vmem:[%s9 + $0xb4c] sm:$0xff]
    %v8425 = vld [vmem:[%s9 + $0xb54] sm:$0xff]
    %v8426 = vld [vmem:[%s9 + $0xb5c] sm:$0xf]
    %v8427 = vld [vmem:[%s9 + $0xb60] sm:$0xff]
    %v8428 = vld [vmem:[%s9 + $0xb68] sm:$0xff]
    %v8429 = vld [vmem:[%s9 + $0xb70] sm:$0xff]
    %v8430 = vld [vmem:[%s9 + $0xb78] sm:$0xf]
    %v8431 = vld [vmem:[%s9 + $0xb7c] sm:$0xff]
    %v8432 = vld [vmem:[%s9 + $0xb84] sm:$0xff]
    %v8433 = vld [vmem:[%s9 + $0xb8c] sm:$0xff]
    %v8434 = vld [vmem:[%s9 + $0xb94] sm:$0xf]
    %v8435 = vld [vmem:[%s9 + $0xb98] sm:$0xff]
    %v8436 = vld [vmem:[%s9 + $0xba0] sm:$0xff]
    %v8437 = vld [vmem:[%s9 + $0xba8] sm:$0xff]
    %v8438 = vld [vmem:[%s9 + $0xbb0] sm:$0xf]
    %v8439 = vld [vmem:[%s9 + $0xbb4] sm:$0xff]
    %v8440 = vld [vmem:[%s9 + $0xbbc] sm:$0xff]
    %v8441 = vld [vmem:[%s9 + $0xbc4] sm:$0xff]
    %v8442 = vld [vmem:[%s9 + $0xbcc] sm:$0xf]
    %v8443 = vld [vmem:[%s9 + $0xbd0] sm:$0xff]
    %v8444 = vld [vmem:[%s9 + $0xbd8] sm:$0xff]
    %v8445 = vld [vmem:[%s9 + $0xbe0] sm:$0xff]
    %v8446 = vld [vmem:[%s9 + $0xbe8] sm:$0xf]
    %v8447 = vld [vmem:[%s9 + $0xbec] sm:$0xff]
    %v8448 = vld [vmem:[%s9 + $0xbf4] sm:$0xff]
    %v8449 = vld [vmem:[%s9 + $0xbfc] sm:$0xff]
    %v8450 = vld [vmem:[%s9 + $0xc04] sm:$0xf]
    %v8451 = vld [vmem:[%s9 + $0xc08] sm:$0xff]
    %v8452 = vld [vmem:[%s9 + $0xc10] sm:$0xff]
    %v8453 = vld [vmem:[%s9 + $0xc18] sm:$0xff]
    %v8454 = vld [vmem:[%s9 + $0xc20] sm:$0xf]
    %v8455 = vld [vmem:[%s9 + $0xc24] sm:$0xff]
    %v8456 = vld [vmem:[%s9 + $0xc2c] sm:$0xff]
    %v8457 = vld [vmem:[%s9 + $0xc34] sm:$0xff]
    %v8458 = vld [vmem:[%s9 + $0xc3c] sm:$0xf]
    %v8459 = vld [vmem:[%s9 + $0xc40] sm:$0xff]
    %v8460 = vld [vmem:[%s9 + $0xc48] sm:$0xff]
    %v8461 = vld [vmem:[%s9 + $0xc50] sm:$0xff]
    %v8462 = vld [vmem:[%s9 + $0xc58] sm:$0xf]
    %v8463 = vld [vmem:[%s9 + $0xc5c] sm:$0xff]
    %v8464 = vld [vmem:[%s9 + $0xc64] sm:$0xff]
    %v8465 = vld [vmem:[%s9 + $0xc6c] sm:$0xff]
    %v8466 = vld [vmem:[%s9 + $0xc74] sm:$0xf]
    %v8467 = vld [vmem:[%s9 + $0xc78] sm:$0xff]
    %v8468 = vld [vmem:[%s9 + $0xc80] sm:$0xff]
    %v8469 = vld [vmem:[%s9 + $0xc88] sm:$0xff]
    %v8470 = vld [vmem:[%s9 + $0xc90] sm:$0xf]
    %v8471 = vld [vmem:[%s9 + $0xc94] sm:$0xff]
    %v8472 = vld [vmem:[%s9 + $0xc9c] sm:$0xff]
    %v8473 = vld [vmem:[%s9 + $0xca4] sm:$0xff]
    %v8474 = vld [vmem:[%s9 + $0xcac] sm:$0xf]
    %v8475 = vld [vmem:[%s9 + $0xcb0] sm:$0xff]
    %v8476 = vld [vmem:[%s9 + $0xcb8] sm:$0xff]
    %v8477 = vld [vmem:[%s9 + $0xcc0] sm:$0xff]
    %v8478 = vld [vmem:[%s9 + $0xcc8] sm:$0xf]
    %v8479 = vld [vmem:[%s9 + $0xccc] sm:$0xff]
    %v8480 = vld [vmem:[%s9 + $0xcd4] sm:$0xff]
    %v8481 = vld [vmem:[%s9 + $0xcdc] sm:$0xff]
    %v8482 = vld [vmem:[%s9 + $0xce4] sm:$0xf]
    %v8483 = vld [vmem:[%s9 + $0xce8] sm:$0xff]
    %v8484 = vld [vmem:[%s9 + $0xcf0] sm:$0xff]
    %v8485 = vld [vmem:[%s9 + $0xcf8] sm:$0xff]
    %v8486 = vld [vmem:[%s9 + $0xd00] sm:$0xf]
    %v8487 = vld [vmem:[%s9 + $0xd04] sm:$0xff]
    %v8488 = vld [vmem:[%s9 + $0xd0c] sm:$0xff]
    %v8489 = vld [vmem:[%s9 + $0xd14] sm:$0xff]
    %v8490 = vld [vmem:[%s9 + $0xd1c] sm:$0xf]
    %v8491 = vld [vmem:[%s9 + $0xd20] sm:$0xff]
    %v8492 = vld [vmem:[%s9 + $0xd28] sm:$0xff]
    %v8493 = vld [vmem:[%s9 + $0xd30] sm:$0xff]
    %v8494 = vld [vmem:[%s9 + $0xd38] sm:$0xf]
    %v8495 = vld [vmem:[%s9 + $0xd3c] sm:$0xff]
    %v8496 = vld [vmem:[%s9 + $0xd44] sm:$0xff]
    %v8497 = vld [vmem:[%s9 + $0xd4c] sm:$0xff]
    %v8498 = vld [vmem:[%s9 + $0xd54] sm:$0xf]
    %v8499 = vld [vmem:[%s9 + $0xd58] sm:$0xff]
    %v8500 = vld [vmem:[%s9 + $0xd60] sm:$0xff]
    %v8501 = vld [vmem:[%s9 + $0xd68] sm:$0xff]
    %v8502 = vld [vmem:[%s9 + $0xd70] sm:$0xf]
    %v8503 = vld [vmem:[%s9 + $0xd74] sm:$0xff]
    %v8504 = vld [vmem:[%s9 + $0xd7c] sm:$0xff]
    %v8505 = vld [vmem:[%s9 + $0xd84] sm:$0xff]
    %v8506 = vld [vmem:[%s9 + $0xd8c] sm:$0xf]
    %v8507 = vld [vmem:[%s9 + $0xd90] sm:$0xff]
    %v8508 = vld [vmem:[%s9 + $0xd98] sm:$0xff]
    %v8509 = vld [vmem:[%s9 + $0xda0] sm:$0xff]
    %v8510 = vld [vmem:[%s9 + $0xda8] sm:$0xf]
    %v8511 = vld [vmem:[%s9 + $0xdac] sm:$0xff]
    %v8512 = vld [vmem:[%s9 + $0xdb4] sm:$0xff]
    %v8513 = vld [vmem:[%s9 + $0xdbc] sm:$0xff]
    %v8514 = vld [vmem:[%s9 + $0xdc4] sm:$0xf]
    %v8515 = vld [vmem:[%s9 + $0xdc8] sm:$0xff]
    %v8516 = vld [vmem:[%s9 + $0xdd0] sm:$0xff]
    %v8517 = vld [vmem:[%s9 + $0xdd8] sm:$0xff]
    %v8518 = vld [vmem:[%s9 + $0xde0] sm:$0xf]
    %v8519 = vld [vmem:[%s9 + $0xde4] sm:$0xff]
    %v8520 = vld [vmem:[%s9 + $0xdec] sm:$0xff]
    %v8521 = vld [vmem:[%s9 + $0xdf4] sm:$0xff]
    %v8522 = vld [vmem:[%s9 + $0xdfc] sm:$0xf]
    %v8523 = vld [vmem:[%s10] sm:$0x7f]
    %v8525 = vlaneseq
    %v8526 = vshrl.u32 %v8525, 7
    %v8527 = vsub.s32 0, %v8526
    %v8528 = vrot.slane %v8523, %v8527
    %v8529 = vlaneseq
    %v8530 = vshrl.u32 %v8529, 7
    %v8531 = vsub.s32 1, %v8530
    %v8532 = vrot.slane %v8523, %v8531
    %v8533 = vlaneseq
    %v8534 = vshrl.u32 %v8533, 7
    %v8535 = vsub.s32 2, %v8534
    %v8536 = vrot.slane %v8523, %v8535
    %v8537 = vlaneseq
    %v8538 = vshrl.u32 %v8537, 7
    %v8539 = vsub.s32 3, %v8538
    %v8540 = vrot.slane %v8523, %v8539
    %v8541 = vlaneseq
    %v8542 = vshrl.u32 %v8541, 7
    %v8543 = vsub.s32 4, %v8542
    %v8544 = vrot.slane %v8523, %v8543
    %v8545 = vlaneseq
    %v8546 = vshrl.u32 %v8545, 7
    %v8547 = vsub.s32 5, %v8546
    %v8548 = vrot.slane %v8523, %v8547
    %v8549 = vlaneseq
    %v8550 = vshrl.u32 %v8549, 7
    %v8551 = vsub.s32 6, %v8550
    %v8552 = vrot.slane %v8523, %v8551
    %v9072 = vunpack.c.l.b16 %v8011
    %v9073 = vunpack.c.h.b16 %v8011
    %v9074 = vunpack.c.l.b16 %v8012
    %v9075 = vunpack.c.h.b16 %v8012
    %v9076 = vunpack.c.l.b16 %v8013
    %v9077 = vunpack.c.h.b16 %v8013
    %v9078 = vunpack.c.l.b16 %v8014
    %v9079 = vunpack.c.l.b16 %v8015
    %v9080 = vunpack.c.h.b16 %v8015
    %v9081 = vunpack.c.l.b16 %v8016
    %v9082 = vunpack.c.h.b16 %v8016
    %v9083 = vunpack.c.l.b16 %v8017
    %v9084 = vunpack.c.h.b16 %v8017
    %v9085 = vunpack.c.l.b16 %v8018
    %v9086 = vunpack.c.l.b16 %v8019
    %v9087 = vunpack.c.h.b16 %v8019
    %v9088 = vunpack.c.l.b16 %v8020
    %v9089 = vunpack.c.h.b16 %v8020
    %v9090 = vunpack.c.l.b16 %v8021
    %v9091 = vunpack.c.h.b16 %v8021
    %v9092 = vunpack.c.l.b16 %v8022
    %v9093 = vunpack.c.l.b16 %v8023
    %v9094 = vunpack.c.h.b16 %v8023
    %v9095 = vunpack.c.l.b16 %v8024
    %v9096 = vunpack.c.h.b16 %v8024
    %v9097 = vunpack.c.l.b16 %v8025
    %v9098 = vunpack.c.h.b16 %v8025
    %v9099 = vunpack.c.l.b16 %v8026
    %v9100 = vunpack.c.l.b16 %v8027
    %v9101 = vunpack.c.h.b16 %v8027
    %v9102 = vunpack.c.l.b16 %v8028
    %v9103 = vunpack.c.h.b16 %v8028
    %v9104 = vunpack.c.l.b16 %v8029
    %v9105 = vunpack.c.h.b16 %v8029
    %v9106 = vunpack.c.l.b16 %v8030
    %v9107 = vunpack.c.l.b16 %v8031
    %v9108 = vunpack.c.h.b16 %v8031
    %v9109 = vunpack.c.l.b16 %v8032
    %v9110 = vunpack.c.h.b16 %v8032
    %v9111 = vunpack.c.l.b16 %v8033
    %v9112 = vunpack.c.h.b16 %v8033
    %v9113 = vunpack.c.l.b16 %v8034
    %v9114 = vunpack.c.l.b16 %v8035
    %v9115 = vunpack.c.h.b16 %v8035
    %v9116 = vunpack.c.l.b16 %v8036
    %v9117 = vunpack.c.h.b16 %v8036
    %v9118 = vunpack.c.l.b16 %v8037
    %v9119 = vunpack.c.h.b16 %v8037
    %v9120 = vunpack.c.l.b16 %v8038
    %v9121 = vunpack.c.l.b16 %v8039
    %v9122 = vunpack.c.h.b16 %v8039
    %v9123 = vunpack.c.l.b16 %v8040
    %v9124 = vunpack.c.h.b16 %v8040
    %v9125 = vunpack.c.l.b16 %v8041
    %v9126 = vunpack.c.h.b16 %v8041
    %v9127 = vunpack.c.l.b16 %v8042
    %v9128 = vunpack.c.l.b16 %v8043
    %v9129 = vunpack.c.h.b16 %v8043
    %v9130 = vunpack.c.l.b16 %v8044
    %v9131 = vunpack.c.h.b16 %v8044
    %v9132 = vunpack.c.l.b16 %v8045
    %v9133 = vunpack.c.h.b16 %v8045
    %v9134 = vunpack.c.l.b16 %v8046
    %v9135 = vunpack.c.l.b16 %v8047
    %v9136 = vunpack.c.h.b16 %v8047
    %v9137 = vunpack.c.l.b16 %v8048
    %v9138 = vunpack.c.h.b16 %v8048
    %v9139 = vunpack.c.l.b16 %v8049
    %v9140 = vunpack.c.h.b16 %v8049
    %v9141 = vunpack.c.l.b16 %v8050
    %v9142 = vunpack.c.l.b16 %v8051
    %v9143 = vunpack.c.h.b16 %v8051
    %v9144 = vunpack.c.l.b16 %v8052
    %v9145 = vunpack.c.h.b16 %v8052
    %v9146 = vunpack.c.l.b16 %v8053
    %v9147 = vunpack.c.h.b16 %v8053
    %v9148 = vunpack.c.l.b16 %v8054
    %v9149 = vunpack.c.l.b16 %v8055
    %v9150 = vunpack.c.h.b16 %v8055
    %v9151 = vunpack.c.l.b16 %v8056
    %v9152 = vunpack.c.h.b16 %v8056
    %v9153 = vunpack.c.l.b16 %v8057
    %v9154 = vunpack.c.h.b16 %v8057
    %v9155 = vunpack.c.l.b16 %v8058
    %v9156 = vunpack.c.l.b16 %v8059
    %v9157 = vunpack.c.h.b16 %v8059
    %v9158 = vunpack.c.l.b16 %v8060
    %v9159 = vunpack.c.h.b16 %v8060
    %v9160 = vunpack.c.l.b16 %v8061
    %v9161 = vunpack.c.h.b16 %v8061
    %v9162 = vunpack.c.l.b16 %v8062
    %v9163 = vunpack.c.l.b16 %v8063
    %v9164 = vunpack.c.h.b16 %v8063
    %v9165 = vunpack.c.l.b16 %v8064
    %v9166 = vunpack.c.h.b16 %v8064
    %v9167 = vunpack.c.l.b16 %v8065
    %v9168 = vunpack.c.h.b16 %v8065
    %v9169 = vunpack.c.l.b16 %v8066
    %v9170 = vunpack.c.l.b16 %v8067
    %v9171 = vunpack.c.h.b16 %v8067
    %v9172 = vunpack.c.l.b16 %v8068
    %v9173 = vunpack.c.h.b16 %v8068
    %v9174 = vunpack.c.l.b16 %v8069
    %v9175 = vunpack.c.h.b16 %v8069
    %v9176 = vunpack.c.l.b16 %v8070
    %v9177 = vunpack.c.l.b16 %v8071
    %v9178 = vunpack.c.h.b16 %v8071
    %v9179 = vunpack.c.l.b16 %v8072
    %v9180 = vunpack.c.h.b16 %v8072
    %v9181 = vunpack.c.l.b16 %v8073
    %v9182 = vunpack.c.h.b16 %v8073
    %v9183 = vunpack.c.l.b16 %v8074
    %v9184 = vunpack.c.l.b16 %v8075
    %v9185 = vunpack.c.h.b16 %v8075
    %v9186 = vunpack.c.l.b16 %v8076
    %v9187 = vunpack.c.h.b16 %v8076
    %v9188 = vunpack.c.l.b16 %v8077
    %v9189 = vunpack.c.h.b16 %v8077
    %v9190 = vunpack.c.l.b16 %v8078
    %v9191 = vunpack.c.l.b16 %v8079
    %v9192 = vunpack.c.h.b16 %v8079
    %v9193 = vunpack.c.l.b16 %v8080
    %v9194 = vunpack.c.h.b16 %v8080
    %v9195 = vunpack.c.l.b16 %v8081
    %v9196 = vunpack.c.h.b16 %v8081
    %v9197 = vunpack.c.l.b16 %v8082
    %v9198 = vunpack.c.l.b16 %v8083
    %v9199 = vunpack.c.h.b16 %v8083
    %v9200 = vunpack.c.l.b16 %v8084
    %v9201 = vunpack.c.h.b16 %v8084
    %v9202 = vunpack.c.l.b16 %v8085
    %v9203 = vunpack.c.h.b16 %v8085
    %v9204 = vunpack.c.l.b16 %v8086
    %v9205 = vunpack.c.l.b16 %v8087
    %v9206 = vunpack.c.h.b16 %v8087
    %v9207 = vunpack.c.l.b16 %v8088
    %v9208 = vunpack.c.h.b16 %v8088
    %v9209 = vunpack.c.l.b16 %v8089
    %v9210 = vunpack.c.h.b16 %v8089
    %v9211 = vunpack.c.l.b16 %v8090
    %v9212 = vunpack.c.l.b16 %v8091
    %v9213 = vunpack.c.h.b16 %v8091
    %v9214 = vunpack.c.l.b16 %v8092
    %v9215 = vunpack.c.h.b16 %v8092
    %v9216 = vunpack.c.l.b16 %v8093
    %v9217 = vunpack.c.h.b16 %v8093
    %v9218 = vunpack.c.l.b16 %v8094
    %v9219 = vunpack.c.l.b16 %v8095
    %v9220 = vunpack.c.h.b16 %v8095
    %v9221 = vunpack.c.l.b16 %v8096
    %v9222 = vunpack.c.h.b16 %v8096
    %v9223 = vunpack.c.l.b16 %v8097
    %v9224 = vunpack.c.h.b16 %v8097
    %v9225 = vunpack.c.l.b16 %v8098
    %v9226 = vunpack.c.l.b16 %v8099
    %v9227 = vunpack.c.h.b16 %v8099
    %v9228 = vunpack.c.l.b16 %v8100
    %v9229 = vunpack.c.h.b16 %v8100
    %v9230 = vunpack.c.l.b16 %v8101
    %v9231 = vunpack.c.h.b16 %v8101
    %v9232 = vunpack.c.l.b16 %v8102
    %v9233 = vunpack.c.l.b16 %v8103
    %v9234 = vunpack.c.h.b16 %v8103
    %v9235 = vunpack.c.l.b16 %v8104
    %v9236 = vunpack.c.h.b16 %v8104
    %v9237 = vunpack.c.l.b16 %v8105
    %v9238 = vunpack.c.h.b16 %v8105
    %v9239 = vunpack.c.l.b16 %v8106
    %v9240 = vunpack.c.l.b16 %v8107
    %v9241 = vunpack.c.h.b16 %v8107
    %v9242 = vunpack.c.l.b16 %v8108
    %v9243 = vunpack.c.h.b16 %v8108
    %v9244 = vunpack.c.l.b16 %v8109
    %v9245 = vunpack.c.h.b16 %v8109
    %v9246 = vunpack.c.l.b16 %v8110
    %v9247 = vunpack.c.l.b16 %v8111
    %v9248 = vunpack.c.h.b16 %v8111
    %v9249 = vunpack.c.l.b16 %v8112
    %v9250 = vunpack.c.h.b16 %v8112
    %v9251 = vunpack.c.l.b16 %v8113
    %v9252 = vunpack.c.h.b16 %v8113
    %v9253 = vunpack.c.l.b16 %v8114
    %v9254 = vunpack.c.l.b16 %v8115
    %v9255 = vunpack.c.h.b16 %v8115
    %v9256 = vunpack.c.l.b16 %v8116
    %v9257 = vunpack.c.h.b16 %v8116
    %v9258 = vunpack.c.l.b16 %v8117
    %v9259 = vunpack.c.h.b16 %v8117
    %v9260 = vunpack.c.l.b16 %v8118
    %v9261 = vunpack.c.l.b16 %v8119
    %v9262 = vunpack.c.h.b16 %v8119
    %v9263 = vunpack.c.l.b16 %v8120
    %v9264 = vunpack.c.h.b16 %v8120
    %v9265 = vunpack.c.l.b16 %v8121
    %v9266 = vunpack.c.h.b16 %v8121
    %v9267 = vunpack.c.l.b16 %v8122
    %v9268 = vunpack.c.l.b16 %v8123
    %v9269 = vunpack.c.h.b16 %v8123
    %v9270 = vunpack.c.l.b16 %v8124
    %v9271 = vunpack.c.h.b16 %v8124
    %v9272 = vunpack.c.l.b16 %v8125
    %v9273 = vunpack.c.h.b16 %v8125
    %v9274 = vunpack.c.l.b16 %v8126
    %v9275 = vunpack.c.l.b16 %v8127
    %v9276 = vunpack.c.h.b16 %v8127
    %v9277 = vunpack.c.l.b16 %v8128
    %v9278 = vunpack.c.h.b16 %v8128
    %v9279 = vunpack.c.l.b16 %v8129
    %v9280 = vunpack.c.h.b16 %v8129
    %v9281 = vunpack.c.l.b16 %v8130
    %v9282 = vunpack.c.l.b16 %v8131
    %v9283 = vunpack.c.h.b16 %v8131
    %v9284 = vunpack.c.l.b16 %v8132
    %v9285 = vunpack.c.h.b16 %v8132
    %v9286 = vunpack.c.l.b16 %v8133
    %v9287 = vunpack.c.h.b16 %v8133
    %v9288 = vunpack.c.l.b16 %v8134
    %v9289 = vunpack.c.l.b16 %v8135
    %v9290 = vunpack.c.h.b16 %v8135
    %v9291 = vunpack.c.l.b16 %v8136
    %v9292 = vunpack.c.h.b16 %v8136
    %v9293 = vunpack.c.l.b16 %v8137
    %v9294 = vunpack.c.h.b16 %v8137
    %v9295 = vunpack.c.l.b16 %v8138
    %v9296 = vunpack.c.l.b16 %v8139
    %v9297 = vunpack.c.h.b16 %v8139
    %v9298 = vunpack.c.l.b16 %v8140
    %v9299 = vunpack.c.h.b16 %v8140
    %v9300 = vunpack.c.l.b16 %v8141
    %v9301 = vunpack.c.h.b16 %v8141
    %v9302 = vunpack.c.l.b16 %v8142
    %v9303 = vunpack.c.l.b16 %v8143
    %v9304 = vunpack.c.h.b16 %v8143
    %v9305 = vunpack.c.l.b16 %v8144
    %v9306 = vunpack.c.h.b16 %v8144
    %v9307 = vunpack.c.l.b16 %v8145
    %v9308 = vunpack.c.h.b16 %v8145
    %v9309 = vunpack.c.l.b16 %v8146
    %v9310 = vunpack.c.l.b16 %v8147
    %v9311 = vunpack.c.h.b16 %v8147
    %v9312 = vunpack.c.l.b16 %v8148
    %v9313 = vunpack.c.h.b16 %v8148
    %v9314 = vunpack.c.l.b16 %v8149
    %v9315 = vunpack.c.h.b16 %v8149
    %v9316 = vunpack.c.l.b16 %v8150
    %v9317 = vunpack.c.l.b16 %v8151
    %v9318 = vunpack.c.h.b16 %v8151
    %v9319 = vunpack.c.l.b16 %v8152
    %v9320 = vunpack.c.h.b16 %v8152
    %v9321 = vunpack.c.l.b16 %v8153
    %v9322 = vunpack.c.h.b16 %v8153
    %v9323 = vunpack.c.l.b16 %v8154
    %v9324 = vunpack.c.l.b16 %v8155
    %v9325 = vunpack.c.h.b16 %v8155
    %v9326 = vunpack.c.l.b16 %v8156
    %v9327 = vunpack.c.h.b16 %v8156
    %v9328 = vunpack.c.l.b16 %v8157
    %v9329 = vunpack.c.h.b16 %v8157
    %v9330 = vunpack.c.l.b16 %v8158
    %v9331 = vunpack.c.l.b16 %v8159
    %v9332 = vunpack.c.h.b16 %v8159
    %v9333 = vunpack.c.l.b16 %v8160
    %v9334 = vunpack.c.h.b16 %v8160
    %v9335 = vunpack.c.l.b16 %v8161
    %v9336 = vunpack.c.h.b16 %v8161
    %v9337 = vunpack.c.l.b16 %v8162
    %v9338 = vunpack.c.l.b16 %v8163
    %v9339 = vunpack.c.h.b16 %v8163
    %v9340 = vunpack.c.l.b16 %v8164
    %v9341 = vunpack.c.h.b16 %v8164
    %v9342 = vunpack.c.l.b16 %v8165
    %v9343 = vunpack.c.h.b16 %v8165
    %v9344 = vunpack.c.l.b16 %v8166
    %v9345 = vunpack.c.l.b16 %v8167
    %v9346 = vunpack.c.h.b16 %v8167
    %v9347 = vunpack.c.l.b16 %v8168
    %v9348 = vunpack.c.h.b16 %v8168
    %v9349 = vunpack.c.l.b16 %v8169
    %v9350 = vunpack.c.h.b16 %v8169
    %v9351 = vunpack.c.l.b16 %v8170
    %v9352 = vunpack.c.l.b16 %v8171
    %v9353 = vunpack.c.h.b16 %v8171
    %v9354 = vunpack.c.l.b16 %v8172
    %v9355 = vunpack.c.h.b16 %v8172
    %v9356 = vunpack.c.l.b16 %v8173
    %v9357 = vunpack.c.h.b16 %v8173
    %v9358 = vunpack.c.l.b16 %v8174
    %v9359 = vunpack.c.l.b16 %v8175
    %v9360 = vunpack.c.h.b16 %v8175
    %v9361 = vunpack.c.l.b16 %v8176
    %v9362 = vunpack.c.h.b16 %v8176
    %v9363 = vunpack.c.l.b16 %v8177
    %v9364 = vunpack.c.h.b16 %v8177
    %v9365 = vunpack.c.l.b16 %v8178
    %v9366 = vunpack.c.l.b16 %v8179
    %v9367 = vunpack.c.h.b16 %v8179
    %v9368 = vunpack.c.l.b16 %v8180
    %v9369 = vunpack.c.h.b16 %v8180
    %v9370 = vunpack.c.l.b16 %v8181
    %v9371 = vunpack.c.h.b16 %v8181
    %v9372 = vunpack.c.l.b16 %v8182
    %v9373 = vunpack.c.l.b16 %v8183
    %v9374 = vunpack.c.h.b16 %v8183
    %v9375 = vunpack.c.l.b16 %v8184
    %v9376 = vunpack.c.h.b16 %v8184
    %v9377 = vunpack.c.l.b16 %v8185
    %v9378 = vunpack.c.h.b16 %v8185
    %v9379 = vunpack.c.l.b16 %v8186
    %v9380 = vunpack.c.l.b16 %v8187
    %v9381 = vunpack.c.h.b16 %v8187
    %v9382 = vunpack.c.l.b16 %v8188
    %v9383 = vunpack.c.h.b16 %v8188
    %v9384 = vunpack.c.l.b16 %v8189
    %v9385 = vunpack.c.h.b16 %v8189
    %v9386 = vunpack.c.l.b16 %v8190
    %v9387 = vunpack.c.l.b16 %v8191
    %v9388 = vunpack.c.h.b16 %v8191
    %v9389 = vunpack.c.l.b16 %v8192
    %v9390 = vunpack.c.h.b16 %v8192
    %v9391 = vunpack.c.l.b16 %v8193
    %v9392 = vunpack.c.h.b16 %v8193
    %v9393 = vunpack.c.l.b16 %v8194
    %v9394 = vunpack.c.l.b16 %v8195
    %v9395 = vunpack.c.h.b16 %v8195
    %v9396 = vunpack.c.l.b16 %v8196
    %v9397 = vunpack.c.h.b16 %v8196
    %v9398 = vunpack.c.l.b16 %v8197
    %v9399 = vunpack.c.h.b16 %v8197
    %v9400 = vunpack.c.l.b16 %v8198
    %v9401 = vunpack.c.l.b16 %v8199
    %v9402 = vunpack.c.h.b16 %v8199
    %v9403 = vunpack.c.l.b16 %v8200
    %v9404 = vunpack.c.h.b16 %v8200
    %v9405 = vunpack.c.l.b16 %v8201
    %v9406 = vunpack.c.h.b16 %v8201
    %v9407 = vunpack.c.l.b16 %v8202
    %v9408 = vunpack.c.l.b16 %v8203
    %v9409 = vunpack.c.h.b16 %v8203
    %v9410 = vunpack.c.l.b16 %v8204
    %v9411 = vunpack.c.h.b16 %v8204
    %v9412 = vunpack.c.l.b16 %v8205
    %v9413 = vunpack.c.h.b16 %v8205
    %v9414 = vunpack.c.l.b16 %v8206
    %v9415 = vunpack.c.l.b16 %v8207
    %v9416 = vunpack.c.h.b16 %v8207
    %v9417 = vunpack.c.l.b16 %v8208
    %v9418 = vunpack.c.h.b16 %v8208
    %v9419 = vunpack.c.l.b16 %v8209
    %v9420 = vunpack.c.h.b16 %v8209
    %v9421 = vunpack.c.l.b16 %v8210
    %v9422 = vunpack.c.l.b16 %v8211
    %v9423 = vunpack.c.h.b16 %v8211
    %v9424 = vunpack.c.l.b16 %v8212
    %v9425 = vunpack.c.h.b16 %v8212
    %v9426 = vunpack.c.l.b16 %v8213
    %v9427 = vunpack.c.h.b16 %v8213
    %v9428 = vunpack.c.l.b16 %v8214
    %v9429 = vunpack.c.l.b16 %v8215
    %v9430 = vunpack.c.h.b16 %v8215
    %v9431 = vunpack.c.l.b16 %v8216
    %v9432 = vunpack.c.h.b16 %v8216
    %v9433 = vunpack.c.l.b16 %v8217
    %v9434 = vunpack.c.h.b16 %v8217
    %v9435 = vunpack.c.l.b16 %v8218
    %v9436 = vunpack.c.l.b16 %v8219
    %v9437 = vunpack.c.h.b16 %v8219
    %v9438 = vunpack.c.l.b16 %v8220
    %v9439 = vunpack.c.h.b16 %v8220
    %v9440 = vunpack.c.l.b16 %v8221
    %v9441 = vunpack.c.h.b16 %v8221
    %v9442 = vunpack.c.l.b16 %v8222
    %v9443 = vunpack.c.l.b16 %v8223
    %v9444 = vunpack.c.h.b16 %v8223
    %v9445 = vunpack.c.l.b16 %v8224
    %v9446 = vunpack.c.h.b16 %v8224
    %v9447 = vunpack.c.l.b16 %v8225
    %v9448 = vunpack.c.h.b16 %v8225
    %v9449 = vunpack.c.l.b16 %v8226
    %v9450 = vunpack.c.l.b16 %v8227
    %v9451 = vunpack.c.h.b16 %v8227
    %v9452 = vunpack.c.l.b16 %v8228
    %v9453 = vunpack.c.h.b16 %v8228
    %v9454 = vunpack.c.l.b16 %v8229
    %v9455 = vunpack.c.h.b16 %v8229
    %v9456 = vunpack.c.l.b16 %v8230
    %v9457 = vunpack.c.l.b16 %v8231
    %v9458 = vunpack.c.h.b16 %v8231
    %v9459 = vunpack.c.l.b16 %v8232
    %v9460 = vunpack.c.h.b16 %v8232
    %v9461 = vunpack.c.l.b16 %v8233
    %v9462 = vunpack.c.h.b16 %v8233
    %v9463 = vunpack.c.l.b16 %v8234
    %v9464 = vunpack.c.l.b16 %v8235
    %v9465 = vunpack.c.h.b16 %v8235
    %v9466 = vunpack.c.l.b16 %v8236
    %v9467 = vunpack.c.h.b16 %v8236
    %v9468 = vunpack.c.l.b16 %v8237
    %v9469 = vunpack.c.h.b16 %v8237
    %v9470 = vunpack.c.l.b16 %v8238
    %v9471 = vunpack.c.l.b16 %v8239
    %v9472 = vunpack.c.h.b16 %v8239
    %v9473 = vunpack.c.l.b16 %v8240
    %v9474 = vunpack.c.h.b16 %v8240
    %v9475 = vunpack.c.l.b16 %v8241
    %v9476 = vunpack.c.h.b16 %v8241
    %v9477 = vunpack.c.l.b16 %v8242
    %v9478 = vunpack.c.l.b16 %v8243
    %v9479 = vunpack.c.h.b16 %v8243
    %v9480 = vunpack.c.l.b16 %v8244
    %v9481 = vunpack.c.h.b16 %v8244
    %v9482 = vunpack.c.l.b16 %v8245
    %v9483 = vunpack.c.h.b16 %v8245
    %v9484 = vunpack.c.l.b16 %v8246
    %v9485 = vunpack.c.l.b16 %v8247
    %v9486 = vunpack.c.h.b16 %v8247
    %v9487 = vunpack.c.l.b16 %v8248
    %v9488 = vunpack.c.h.b16 %v8248
    %v9489 = vunpack.c.l.b16 %v8249
    %v9490 = vunpack.c.h.b16 %v8249
    %v9491 = vunpack.c.l.b16 %v8250
    %v9492 = vunpack.c.l.b16 %v8251
    %v9493 = vunpack.c.h.b16 %v8251
    %v9494 = vunpack.c.l.b16 %v8252
    %v9495 = vunpack.c.h.b16 %v8252
    %v9496 = vunpack.c.l.b16 %v8253
    %v9497 = vunpack.c.h.b16 %v8253
    %v9498 = vunpack.c.l.b16 %v8254
    %v9499 = vunpack.c.l.b16 %v8255
    %v9500 = vunpack.c.h.b16 %v8255
    %v9501 = vunpack.c.l.b16 %v8256
    %v9502 = vunpack.c.h.b16 %v8256
    %v9503 = vunpack.c.l.b16 %v8257
    %v9504 = vunpack.c.h.b16 %v8257
    %v9505 = vunpack.c.l.b16 %v8258
    %v9506 = vunpack.c.l.b16 %v8259
    %v9507 = vunpack.c.h.b16 %v8259
    %v9508 = vunpack.c.l.b16 %v8260
    %v9509 = vunpack.c.h.b16 %v8260
    %v9510 = vunpack.c.l.b16 %v8261
    %v9511 = vunpack.c.h.b16 %v8261
    %v9512 = vunpack.c.l.b16 %v8262
    %v9513 = vunpack.c.l.b16 %v8263
    %v9514 = vunpack.c.h.b16 %v8263
    %v9515 = vunpack.c.l.b16 %v8264
    %v9516 = vunpack.c.h.b16 %v8264
    %v9517 = vunpack.c.l.b16 %v8265
    %v9518 = vunpack.c.h.b16 %v8265
    %v9519 = vunpack.c.l.b16 %v8266
    %v9520 = vunpack.c.l.b16 %v8267
    %v9521 = vunpack.c.h.b16 %v8267
    %v9522 = vunpack.c.l.b16 %v8268
    %v9523 = vunpack.c.h.b16 %v8268
    %v9524 = vunpack.c.l.b16 %v8269
    %v9525 = vunpack.c.h.b16 %v8269
    %v9526 = vunpack.c.l.b16 %v8270
    %v9527 = vunpack.c.l.b16 %v8271
    %v9528 = vunpack.c.h.b16 %v8271
    %v9529 = vunpack.c.l.b16 %v8272
    %v9530 = vunpack.c.h.b16 %v8272
    %v9531 = vunpack.c.l.b16 %v8273
    %v9532 = vunpack.c.h.b16 %v8273
    %v9533 = vunpack.c.l.b16 %v8274
    %v9534 = vunpack.c.l.b16 %v8275
    %v9535 = vunpack.c.h.b16 %v8275
    %v9536 = vunpack.c.l.b16 %v8276
    %v9537 = vunpack.c.h.b16 %v8276
    %v9538 = vunpack.c.l.b16 %v8277
    %v9539 = vunpack.c.h.b16 %v8277
    %v9540 = vunpack.c.l.b16 %v8278
    %v9541 = vunpack.c.l.b16 %v8279
    %v9542 = vunpack.c.h.b16 %v8279
    %v9543 = vunpack.c.l.b16 %v8280
    %v9544 = vunpack.c.h.b16 %v8280
    %v9545 = vunpack.c.l.b16 %v8281
    %v9546 = vunpack.c.h.b16 %v8281
    %v9547 = vunpack.c.l.b16 %v8282
    %v9548 = vunpack.c.l.b16 %v8283
    %v9549 = vunpack.c.h.b16 %v8283
    %v9550 = vunpack.c.l.b16 %v8284
    %v9551 = vunpack.c.h.b16 %v8284
    %v9552 = vunpack.c.l.b16 %v8285
    %v9553 = vunpack.c.h.b16 %v8285
    %v9554 = vunpack.c.l.b16 %v8286
    %v9555 = vunpack.c.l.b16 %v8287
    %v9556 = vunpack.c.h.b16 %v8287
    %v9557 = vunpack.c.l.b16 %v8288
    %v9558 = vunpack.c.h.b16 %v8288
    %v9559 = vunpack.c.l.b16 %v8289
    %v9560 = vunpack.c.h.b16 %v8289
    %v9561 = vunpack.c.l.b16 %v8290
    %v9562 = vunpack.c.l.b16 %v8291
    %v9563 = vunpack.c.h.b16 %v8291
    %v9564 = vunpack.c.l.b16 %v8292
    %v9565 = vunpack.c.h.b16 %v8292
    %v9566 = vunpack.c.l.b16 %v8293
    %v9567 = vunpack.c.h.b16 %v8293
    %v9568 = vunpack.c.l.b16 %v8294
    %v9569 = vunpack.c.l.b16 %v8295
    %v9570 = vunpack.c.h.b16 %v8295
    %v9571 = vunpack.c.l.b16 %v8296
    %v9572 = vunpack.c.h.b16 %v8296
    %v9573 = vunpack.c.l.b16 %v8297
    %v9574 = vunpack.c.h.b16 %v8297
    %v9575 = vunpack.c.l.b16 %v8298
    %v9576 = vunpack.c.l.b16 %v8299
    %v9577 = vunpack.c.h.b16 %v8299
    %v9578 = vunpack.c.l.b16 %v8300
    %v9579 = vunpack.c.h.b16 %v8300
    %v9580 = vunpack.c.l.b16 %v8301
    %v9581 = vunpack.c.h.b16 %v8301
    %v9582 = vunpack.c.l.b16 %v8302
    %v9583 = vunpack.c.l.b16 %v8303
    %v9584 = vunpack.c.h.b16 %v8303
    %v9585 = vunpack.c.l.b16 %v8304
    %v9586 = vunpack.c.h.b16 %v8304
    %v9587 = vunpack.c.l.b16 %v8305
    %v9588 = vunpack.c.h.b16 %v8305
    %v9589 = vunpack.c.l.b16 %v8306
    %v9590 = vunpack.c.l.b16 %v8307
    %v9591 = vunpack.c.h.b16 %v8307
    %v9592 = vunpack.c.l.b16 %v8308
    %v9593 = vunpack.c.h.b16 %v8308
    %v9594 = vunpack.c.l.b16 %v8309
    %v9595 = vunpack.c.h.b16 %v8309
    %v9596 = vunpack.c.l.b16 %v8310
    %v9597 = vunpack.c.l.b16 %v8311
    %v9598 = vunpack.c.h.b16 %v8311
    %v9599 = vunpack.c.l.b16 %v8312
    %v9600 = vunpack.c.h.b16 %v8312
    %v9601 = vunpack.c.l.b16 %v8313
    %v9602 = vunpack.c.h.b16 %v8313
    %v9603 = vunpack.c.l.b16 %v8314
    %v9604 = vunpack.c.l.b16 %v8315
    %v9605 = vunpack.c.h.b16 %v8315
    %v9606 = vunpack.c.l.b16 %v8316
    %v9607 = vunpack.c.h.b16 %v8316
    %v9608 = vunpack.c.l.b16 %v8317
    %v9609 = vunpack.c.h.b16 %v8317
    %v9610 = vunpack.c.l.b16 %v8318
    %v9611 = vunpack.c.l.b16 %v8319
    %v9612 = vunpack.c.h.b16 %v8319
    %v9613 = vunpack.c.l.b16 %v8320
    %v9614 = vunpack.c.h.b16 %v8320
    %v9615 = vunpack.c.l.b16 %v8321
    %v9616 = vunpack.c.h.b16 %v8321
    %v9617 = vunpack.c.l.b16 %v8322
    %v9618 = vunpack.c.l.b16 %v8323
    %v9619 = vunpack.c.h.b16 %v8323
    %v9620 = vunpack.c.l.b16 %v8324
    %v9621 = vunpack.c.h.b16 %v8324
    %v9622 = vunpack.c.l.b16 %v8325
    %v9623 = vunpack.c.h.b16 %v8325
    %v9624 = vunpack.c.l.b16 %v8326
    %v9625 = vunpack.c.l.b16 %v8327
    %v9626 = vunpack.c.h.b16 %v8327
    %v9627 = vunpack.c.l.b16 %v8328
    %v9628 = vunpack.c.h.b16 %v8328
    %v9629 = vunpack.c.l.b16 %v8329
    %v9630 = vunpack.c.h.b16 %v8329
    %v9631 = vunpack.c.l.b16 %v8330
    %v9632 = vunpack.c.l.b16 %v8331
    %v9633 = vunpack.c.h.b16 %v8331
    %v9634 = vunpack.c.l.b16 %v8332
    %v9635 = vunpack.c.h.b16 %v8332
    %v9636 = vunpack.c.l.b16 %v8333
    %v9637 = vunpack.c.h.b16 %v8333
    %v9638 = vunpack.c.l.b16 %v8334
    %v9639 = vunpack.c.l.b16 %v8335
    %v9640 = vunpack.c.h.b16 %v8335
    %v9641 = vunpack.c.l.b16 %v8336
    %v9642 = vunpack.c.h.b16 %v8336
    %v9643 = vunpack.c.l.b16 %v8337
    %v9644 = vunpack.c.h.b16 %v8337
    %v9645 = vunpack.c.l.b16 %v8338
    %v9646 = vunpack.c.l.b16 %v8339
    %v9647 = vunpack.c.h.b16 %v8339
    %v9648 = vunpack.c.l.b16 %v8340
    %v9649 = vunpack.c.h.b16 %v8340
    %v9650 = vunpack.c.l.b16 %v8341
    %v9651 = vunpack.c.h.b16 %v8341
    %v9652 = vunpack.c.l.b16 %v8342
    %v9653 = vunpack.c.l.b16 %v8343
    %v9654 = vunpack.c.h.b16 %v8343
    %v9655 = vunpack.c.l.b16 %v8344
    %v9656 = vunpack.c.h.b16 %v8344
    %v9657 = vunpack.c.l.b16 %v8345
    %v9658 = vunpack.c.h.b16 %v8345
    %v9659 = vunpack.c.l.b16 %v8346
    %v9660 = vunpack.c.l.b16 %v8347
    %v9661 = vunpack.c.h.b16 %v8347
    %v9662 = vunpack.c.l.b16 %v8348
    %v9663 = vunpack.c.h.b16 %v8348
    %v9664 = vunpack.c.l.b16 %v8349
    %v9665 = vunpack.c.h.b16 %v8349
    %v9666 = vunpack.c.l.b16 %v8350
    %v9667 = vunpack.c.l.b16 %v8351
    %v9668 = vunpack.c.h.b16 %v8351
    %v9669 = vunpack.c.l.b16 %v8352
    %v9670 = vunpack.c.h.b16 %v8352
    %v9671 = vunpack.c.l.b16 %v8353
    %v9672 = vunpack.c.h.b16 %v8353
    %v9673 = vunpack.c.l.b16 %v8354
    %v9674 = vunpack.c.l.b16 %v8355
    %v9675 = vunpack.c.h.b16 %v8355
    %v9676 = vunpack.c.l.b16 %v8356
    %v9677 = vunpack.c.h.b16 %v8356
    %v9678 = vunpack.c.l.b16 %v8357
    %v9679 = vunpack.c.h.b16 %v8357
    %v9680 = vunpack.c.l.b16 %v8358
    %v9681 = vunpack.c.l.b16 %v8359
    %v9682 = vunpack.c.h.b16 %v8359
    %v9683 = vunpack.c.l.b16 %v8360
    %v9684 = vunpack.c.h.b16 %v8360
    %v9685 = vunpack.c.l.b16 %v8361
    %v9686 = vunpack.c.h.b16 %v8361
    %v9687 = vunpack.c.l.b16 %v8362
    %v9688 = vunpack.c.l.b16 %v8363
    %v9689 = vunpack.c.h.b16 %v8363
    %v9690 = vunpack.c.l.b16 %v8364
    %v9691 = vunpack.c.h.b16 %v8364
    %v9692 = vunpack.c.l.b16 %v8365
    %v9693 = vunpack.c.h.b16 %v8365
    %v9694 = vunpack.c.l.b16 %v8366
    %v9695 = vunpack.c.l.b16 %v8367
    %v9696 = vunpack.c.h.b16 %v8367
    %v9697 = vunpack.c.l.b16 %v8368
    %v9698 = vunpack.c.h.b16 %v8368
    %v9699 = vunpack.c.l.b16 %v8369
    %v9700 = vunpack.c.h.b16 %v8369
    %v9701 = vunpack.c.l.b16 %v8370
    %v9702 = vunpack.c.l.b16 %v8371
    %v9703 = vunpack.c.h.b16 %v8371
    %v9704 = vunpack.c.l.b16 %v8372
    %v9705 = vunpack.c.h.b16 %v8372
    %v9706 = vunpack.c.l.b16 %v8373
    %v9707 = vunpack.c.h.b16 %v8373
    %v9708 = vunpack.c.l.b16 %v8374
    %v9709 = vunpack.c.l.b16 %v8375
    %v9710 = vunpack.c.h.b16 %v8375
    %v9711 = vunpack.c.l.b16 %v8376
    %v9712 = vunpack.c.h.b16 %v8376
    %v9713 = vunpack.c.l.b16 %v8377
    %v9714 = vunpack.c.h.b16 %v8377
    %v9715 = vunpack.c.l.b16 %v8378
    %v9716 = vunpack.c.l.b16 %v8379
    %v9717 = vunpack.c.h.b16 %v8379
    %v9718 = vunpack.c.l.b16 %v8380
    %v9719 = vunpack.c.h.b16 %v8380
    %v9720 = vunpack.c.l.b16 %v8381
    %v9721 = vunpack.c.h.b16 %v8381
    %v9722 = vunpack.c.l.b16 %v8382
    %v9723 = vunpack.c.l.b16 %v8383
    %v9724 = vunpack.c.h.b16 %v8383
    %v9725 = vunpack.c.l.b16 %v8384
    %v9726 = vunpack.c.h.b16 %v8384
    %v9727 = vunpack.c.l.b16 %v8385
    %v9728 = vunpack.c.h.b16 %v8385
    %v9729 = vunpack.c.l.b16 %v8386
    %v9730 = vunpack.c.l.b16 %v8387
    %v9731 = vunpack.c.h.b16 %v8387
    %v9732 = vunpack.c.l.b16 %v8388
    %v9733 = vunpack.c.h.b16 %v8388
    %v9734 = vunpack.c.l.b16 %v8389
    %v9735 = vunpack.c.h.b16 %v8389
    %v9736 = vunpack.c.l.b16 %v8390
    %v9737 = vunpack.c.l.b16 %v8391
    %v9738 = vunpack.c.h.b16 %v8391
    %v9739 = vunpack.c.l.b16 %v8392
    %v9740 = vunpack.c.h.b16 %v8392
    %v9741 = vunpack.c.l.b16 %v8393
    %v9742 = vunpack.c.h.b16 %v8393
    %v9743 = vunpack.c.l.b16 %v8394
    %v9744 = vunpack.c.l.b16 %v8395
    %v9745 = vunpack.c.h.b16 %v8395
    %v9746 = vunpack.c.l.b16 %v8396
    %v9747 = vunpack.c.h.b16 %v8396
    %v9748 = vunpack.c.l.b16 %v8397
    %v9749 = vunpack.c.h.b16 %v8397
    %v9750 = vunpack.c.l.b16 %v8398
    %v9751 = vunpack.c.l.b16 %v8399
    %v9752 = vunpack.c.h.b16 %v8399
    %v9753 = vunpack.c.l.b16 %v8400
    %v9754 = vunpack.c.h.b16 %v8400
    %v9755 = vunpack.c.l.b16 %v8401
    %v9756 = vunpack.c.h.b16 %v8401
    %v9757 = vunpack.c.l.b16 %v8402
    %v9758 = vunpack.c.l.b16 %v8403
    %v9759 = vunpack.c.h.b16 %v8403
    %v9760 = vunpack.c.l.b16 %v8404
    %v9761 = vunpack.c.h.b16 %v8404
    %v9762 = vunpack.c.l.b16 %v8405
    %v9763 = vunpack.c.h.b16 %v8405
    %v9764 = vunpack.c.l.b16 %v8406
    %v9765 = vunpack.c.l.b16 %v8407
    %v9766 = vunpack.c.h.b16 %v8407
    %v9767 = vunpack.c.l.b16 %v8408
    %v9768 = vunpack.c.h.b16 %v8408
    %v9769 = vunpack.c.l.b16 %v8409
    %v9770 = vunpack.c.h.b16 %v8409
    %v9771 = vunpack.c.l.b16 %v8410
    %v9772 = vunpack.c.l.b16 %v8411
    %v9773 = vunpack.c.h.b16 %v8411
    %v9774 = vunpack.c.l.b16 %v8412
    %v9775 = vunpack.c.h.b16 %v8412
    %v9776 = vunpack.c.l.b16 %v8413
    %v9777 = vunpack.c.h.b16 %v8413
    %v9778 = vunpack.c.l.b16 %v8414
    %v9779 = vunpack.c.l.b16 %v8415
    %v9780 = vunpack.c.h.b16 %v8415
    %v9781 = vunpack.c.l.b16 %v8416
    %v9782 = vunpack.c.h.b16 %v8416
    %v9783 = vunpack.c.l.b16 %v8417
    %v9784 = vunpack.c.h.b16 %v8417
    %v9785 = vunpack.c.l.b16 %v8418
    %v9786 = vunpack.c.l.b16 %v8419
    %v9787 = vunpack.c.h.b16 %v8419
    %v9788 = vunpack.c.l.b16 %v8420
    %v9789 = vunpack.c.h.b16 %v8420
    %v9790 = vunpack.c.l.b16 %v8421
    %v9791 = vunpack.c.h.b16 %v8421
    %v9792 = vunpack.c.l.b16 %v8422
    %v9793 = vunpack.c.l.b16 %v8423
    %v9794 = vunpack.c.h.b16 %v8423
    %v9795 = vunpack.c.l.b16 %v8424
    %v9796 = vunpack.c.h.b16 %v8424
    %v9797 = vunpack.c.l.b16 %v8425
    %v9798 = vunpack.c.h.b16 %v8425
    %v9799 = vunpack.c.l.b16 %v8426
    %v9800 = vunpack.c.l.b16 %v8427
    %v9801 = vunpack.c.h.b16 %v8427
    %v9802 = vunpack.c.l.b16 %v8428
    %v9803 = vunpack.c.h.b16 %v8428
    %v9804 = vunpack.c.l.b16 %v8429
    %v9805 = vunpack.c.h.b16 %v8429
    %v9806 = vunpack.c.l.b16 %v8430
    %v9807 = vunpack.c.l.b16 %v8431
    %v9808 = vunpack.c.h.b16 %v8431
    %v9809 = vunpack.c.l.b16 %v8432
    %v9810 = vunpack.c.h.b16 %v8432
    %v9811 = vunpack.c.l.b16 %v8433
    %v9812 = vunpack.c.h.b16 %v8433
    %v9813 = vunpack.c.l.b16 %v8434
    %v9814 = vunpack.c.l.b16 %v8435
    %v9815 = vunpack.c.h.b16 %v8435
    %v9816 = vunpack.c.l.b16 %v8436
    %v9817 = vunpack.c.h.b16 %v8436
    %v9818 = vunpack.c.l.b16 %v8437
    %v9819 = vunpack.c.h.b16 %v8437
    %v9820 = vunpack.c.l.b16 %v8438
    %v9821 = vunpack.c.l.b16 %v8439
    %v9822 = vunpack.c.h.b16 %v8439
    %v9823 = vunpack.c.l.b16 %v8440
    %v9824 = vunpack.c.h.b16 %v8440
    %v9825 = vunpack.c.l.b16 %v8441
    %v9826 = vunpack.c.h.b16 %v8441
    %v9827 = vunpack.c.l.b16 %v8442
    %v9828 = vunpack.c.l.b16 %v8443
    %v9829 = vunpack.c.h.b16 %v8443
    %v9830 = vunpack.c.l.b16 %v8444
    %v9831 = vunpack.c.h.b16 %v8444
    %v9832 = vunpack.c.l.b16 %v8445
    %v9833 = vunpack.c.h.b16 %v8445
    %v9834 = vunpack.c.l.b16 %v8446
    %v9835 = vunpack.c.l.b16 %v8447
    %v9836 = vunpack.c.h.b16 %v8447
    %v9837 = vunpack.c.l.b16 %v8448
    %v9838 = vunpack.c.h.b16 %v8448
    %v9839 = vunpack.c.l.b16 %v8449
    %v9840 = vunpack.c.h.b16 %v8449
    %v9841 = vunpack.c.l.b16 %v8450
    %v9842 = vunpack.c.l.b16 %v8451
    %v9843 = vunpack.c.h.b16 %v8451
    %v9844 = vunpack.c.l.b16 %v8452
    %v9845 = vunpack.c.h.b16 %v8452
    %v9846 = vunpack.c.l.b16 %v8453
    %v9847 = vunpack.c.h.b16 %v8453
    %v9848 = vunpack.c.l.b16 %v8454
    %v9849 = vunpack.c.l.b16 %v8455
    %v9850 = vunpack.c.h.b16 %v8455
    %v9851 = vunpack.c.l.b16 %v8456
    %v9852 = vunpack.c.h.b16 %v8456
    %v9853 = vunpack.c.l.b16 %v8457
    %v9854 = vunpack.c.h.b16 %v8457
    %v9855 = vunpack.c.l.b16 %v8458
    %v9856 = vunpack.c.l.b16 %v8459
    %v9857 = vunpack.c.h.b16 %v8459
    %v9858 = vunpack.c.l.b16 %v8460
    %v9859 = vunpack.c.h.b16 %v8460
    %v9860 = vunpack.c.l.b16 %v8461
    %v9861 = vunpack.c.h.b16 %v8461
    %v9862 = vunpack.c.l.b16 %v8462
    %v9863 = vunpack.c.l.b16 %v8463
    %v9864 = vunpack.c.h.b16 %v8463
    %v9865 = vunpack.c.l.b16 %v8464
    %v9866 = vunpack.c.h.b16 %v8464
    %v9867 = vunpack.c.l.b16 %v8465
    %v9868 = vunpack.c.h.b16 %v8465
    %v9869 = vunpack.c.l.b16 %v8466
    %v9870 = vunpack.c.l.b16 %v8467
    %v9871 = vunpack.c.h.b16 %v8467
    %v9872 = vunpack.c.l.b16 %v8468
    %v9873 = vunpack.c.h.b16 %v8468
    %v9874 = vunpack.c.l.b16 %v8469
    %v9875 = vunpack.c.h.b16 %v8469
    %v9876 = vunpack.c.l.b16 %v8470
    %v9877 = vunpack.c.l.b16 %v8471
    %v9878 = vunpack.c.h.b16 %v8471
    %v9879 = vunpack.c.l.b16 %v8472
    %v9880 = vunpack.c.h.b16 %v8472
    %v9881 = vunpack.c.l.b16 %v8473
    %v9882 = vunpack.c.h.b16 %v8473
    %v9883 = vunpack.c.l.b16 %v8474
    %v9884 = vunpack.c.l.b16 %v8475
    %v9885 = vunpack.c.h.b16 %v8475
    %v9886 = vunpack.c.l.b16 %v8476
    %v9887 = vunpack.c.h.b16 %v8476
    %v9888 = vunpack.c.l.b16 %v8477
    %v9889 = vunpack.c.h.b16 %v8477
    %v9890 = vunpack.c.l.b16 %v8478
    %v9891 = vunpack.c.l.b16 %v8479
    %v9892 = vunpack.c.h.b16 %v8479
    %v9893 = vunpack.c.l.b16 %v8480
    %v9894 = vunpack.c.h.b16 %v8480
    %v9895 = vunpack.c.l.b16 %v8481
    %v9896 = vunpack.c.h.b16 %v8481
    %v9897 = vunpack.c.l.b16 %v8482
    %v9898 = vunpack.c.l.b16 %v8483
    %v9899 = vunpack.c.h.b16 %v8483
    %v9900 = vunpack.c.l.b16 %v8484
    %v9901 = vunpack.c.h.b16 %v8484
    %v9902 = vunpack.c.l.b16 %v8485
    %v9903 = vunpack.c.h.b16 %v8485
    %v9904 = vunpack.c.l.b16 %v8486
    %v9905 = vunpack.c.l.b16 %v8487
    %v9906 = vunpack.c.h.b16 %v8487
    %v9907 = vunpack.c.l.b16 %v8488
    %v9908 = vunpack.c.h.b16 %v8488
    %v9909 = vunpack.c.l.b16 %v8489
    %v9910 = vunpack.c.h.b16 %v8489
    %v9911 = vunpack.c.l.b16 %v8490
    %v9912 = vunpack.c.l.b16 %v8491
    %v9913 = vunpack.c.h.b16 %v8491
    %v9914 = vunpack.c.l.b16 %v8492
    %v9915 = vunpack.c.h.b16 %v8492
    %v9916 = vunpack.c.l.b16 %v8493
    %v9917 = vunpack.c.h.b16 %v8493
    %v9918 = vunpack.c.l.b16 %v8494
    %v9919 = vunpack.c.l.b16 %v8495
    %v9920 = vunpack.c.h.b16 %v8495
    %v9921 = vunpack.c.l.b16 %v8496
    %v9922 = vunpack.c.h.b16 %v8496
    %v9923 = vunpack.c.l.b16 %v8497
    %v9924 = vunpack.c.h.b16 %v8497
    %v9925 = vunpack.c.l.b16 %v8498
    %v9926 = vunpack.c.l.b16 %v8499
    %v9927 = vunpack.c.h.b16 %v8499
    %v9928 = vunpack.c.l.b16 %v8500
    %v9929 = vunpack.c.h.b16 %v8500
    %v9930 = vunpack.c.l.b16 %v8501
    %v9931 = vunpack.c.h.b16 %v8501
    %v9932 = vunpack.c.l.b16 %v8502
    %v9933 = vunpack.c.l.b16 %v8503
    %v9934 = vunpack.c.h.b16 %v8503
    %v9935 = vunpack.c.l.b16 %v8504
    %v9936 = vunpack.c.h.b16 %v8504
    %v9937 = vunpack.c.l.b16 %v8505
    %v9938 = vunpack.c.h.b16 %v8505
    %v9939 = vunpack.c.l.b16 %v8506
    %v9940 = vunpack.c.l.b16 %v8507
    %v9941 = vunpack.c.h.b16 %v8507
    %v9942 = vunpack.c.l.b16 %v8508
    %v9943 = vunpack.c.h.b16 %v8508
    %v9944 = vunpack.c.l.b16 %v8509
    %v9945 = vunpack.c.h.b16 %v8509
    %v9946 = vunpack.c.l.b16 %v8510
    %v9947 = vunpack.c.l.b16 %v8511
    %v9948 = vunpack.c.h.b16 %v8511
    %v9949 = vunpack.c.l.b16 %v8512
    %v9950 = vunpack.c.h.b16 %v8512
    %v9951 = vunpack.c.l.b16 %v8513
    %v9952 = vunpack.c.h.b16 %v8513
    %v9953 = vunpack.c.l.b16 %v8514
    %v9954 = vunpack.c.l.b16 %v8515
    %v9955 = vunpack.c.h.b16 %v8515
    %v9956 = vunpack.c.l.b16 %v8516
    %v9957 = vunpack.c.h.b16 %v8516
    %v9958 = vunpack.c.l.b16 %v8517
    %v9959 = vunpack.c.h.b16 %v8517
    %v9960 = vunpack.c.l.b16 %v8518
    %v9961 = vunpack.c.l.b16 %v8519
    %v9962 = vunpack.c.h.b16 %v8519
    %v9963 = vunpack.c.l.b16 %v8520
    %v9964 = vunpack.c.h.b16 %v8520
    %v9965 = vunpack.c.l.b16 %v8521
    %v9966 = vunpack.c.h.b16 %v8521
    %v9967 = vunpack.c.l.b16 %v8522
    %v9968 = vpack.c.b16 %v9079, %v9072
    %v9969 = vpack.c.b16 %v9080, %v9073
    %v9970 = vpack.c.b16 %v9081, %v9074
    %v9971 = vpack.c.b16 %v9082, %v9075
    %v9972 = vpack.c.b16 %v9083, %v9076
    %v9973 = vpack.c.b16 %v9084, %v9077
    %v9974 = vpack.c.b16 %v9085, %v9078
    %v9975 = vpack.c.b16 %v9093, %v9086
    %v9976 = vpack.c.b16 %v9094, %v9087
    %v9977 = vpack.c.b16 %v9095, %v9088
    %v9978 = vpack.c.b16 %v9096, %v9089
    %v9979 = vpack.c.b16 %v9097, %v9090
    %v9980 = vpack.c.b16 %v9098, %v9091
    %v9981 = vpack.c.b16 %v9099, %v9092
    %v9982 = vpack.c.b16 %v9107, %v9100
    %v9983 = vpack.c.b16 %v9108, %v9101
    %v9984 = vpack.c.b16 %v9109, %v9102
    %v9985 = vpack.c.b16 %v9110, %v9103
    %v9986 = vpack.c.b16 %v9111, %v9104
    %v9987 = vpack.c.b16 %v9112, %v9105
    %v9988 = vpack.c.b16 %v9113, %v9106
    %v9989 = vpack.c.b16 %v9121, %v9114
    %v9990 = vpack.c.b16 %v9122, %v9115
    %v9991 = vpack.c.b16 %v9123, %v9116
    %v9992 = vpack.c.b16 %v9124, %v9117
    %v9993 = vpack.c.b16 %v9125, %v9118
    %v9994 = vpack.c.b16 %v9126, %v9119
    %v9995 = vpack.c.b16 %v9127, %v9120
    %v9996 = vpack.c.b16 %v9135, %v9128
    %v9997 = vpack.c.b16 %v9136, %v9129
    %v9998 = vpack.c.b16 %v9137, %v9130
    %v9999 = vpack.c.b16 %v9138, %v9131
    %v10000 = vpack.c.b16 %v9139, %v9132
    %v10001 = vpack.c.b16 %v9140, %v9133
    %v10002 = vpack.c.b16 %v9141, %v9134
    %v10003 = vpack.c.b16 %v9149, %v9142
    %v10004 = vpack.c.b16 %v9150, %v9143
    %v10005 = vpack.c.b16 %v9151, %v9144
    %v10006 = vpack.c.b16 %v9152, %v9145
    %v10007 = vpack.c.b16 %v9153, %v9146
    %v10008 = vpack.c.b16 %v9154, %v9147
    %v10009 = vpack.c.b16 %v9155, %v9148
    %v10010 = vpack.c.b16 %v9163, %v9156
    %v10011 = vpack.c.b16 %v9164, %v9157
    %v10012 = vpack.c.b16 %v9165, %v9158
    %v10013 = vpack.c.b16 %v9166, %v9159
    %v10014 = vpack.c.b16 %v9167, %v9160
    %v10015 = vpack.c.b16 %v9168, %v9161
    %v10016 = vpack.c.b16 %v9169, %v9162
    %v10017 = vpack.c.b16 %v9177, %v9170
    %v10018 = vpack.c.b16 %v9178, %v9171
    %v10019 = vpack.c.b16 %v9179, %v9172
    %v10020 = vpack.c.b16 %v9180, %v9173
    %v10021 = vpack.c.b16 %v9181, %v9174
    %v10022 = vpack.c.b16 %v9182, %v9175
    %v10023 = vpack.c.b16 %v9183, %v9176
    %v10024 = vpack.c.b16 %v9191, %v9184
    %v10025 = vpack.c.b16 %v9192, %v9185
    %v10026 = vpack.c.b16 %v9193, %v9186
    %v10027 = vpack.c.b16 %v9194, %v9187
    %v10028 = vpack.c.b16 %v9195, %v9188
    %v10029 = vpack.c.b16 %v9196, %v9189
    %v10030 = vpack.c.b16 %v9197, %v9190
    %v10031 = vpack.c.b16 %v9205, %v9198
    %v10032 = vpack.c.b16 %v9206, %v9199
    %v10033 = vpack.c.b16 %v9207, %v9200
    %v10034 = vpack.c.b16 %v9208, %v9201
    %v10035 = vpack.c.b16 %v9209, %v9202
    %v10036 = vpack.c.b16 %v9210, %v9203
    %v10037 = vpack.c.b16 %v9211, %v9204
    %v10038 = vpack.c.b16 %v9219, %v9212
    %v10039 = vpack.c.b16 %v9220, %v9213
    %v10040 = vpack.c.b16 %v9221, %v9214
    %v10041 = vpack.c.b16 %v9222, %v9215
    %v10042 = vpack.c.b16 %v9223, %v9216
    %v10043 = vpack.c.b16 %v9224, %v9217
    %v10044 = vpack.c.b16 %v9225, %v9218
    %v10045 = vpack.c.b16 %v9233, %v9226
    %v10046 = vpack.c.b16 %v9234, %v9227
    %v10047 = vpack.c.b16 %v9235, %v9228
    %v10048 = vpack.c.b16 %v9236, %v9229
    %v10049 = vpack.c.b16 %v9237, %v9230
    %v10050 = vpack.c.b16 %v9238, %v9231
    %v10051 = vpack.c.b16 %v9239, %v9232
    %v10052 = vpack.c.b16 %v9247, %v9240
    %v10053 = vpack.c.b16 %v9248, %v9241
    %v10054 = vpack.c.b16 %v9249, %v9242
    %v10055 = vpack.c.b16 %v9250, %v9243
    %v10056 = vpack.c.b16 %v9251, %v9244
    %v10057 = vpack.c.b16 %v9252, %v9245
    %v10058 = vpack.c.b16 %v9253, %v9246
    %v10059 = vpack.c.b16 %v9261, %v9254
    %v10060 = vpack.c.b16 %v9262, %v9255
    %v10061 = vpack.c.b16 %v9263, %v9256
    %v10062 = vpack.c.b16 %v9264, %v9257
    %v10063 = vpack.c.b16 %v9265, %v9258
    %v10064 = vpack.c.b16 %v9266, %v9259
    %v10065 = vpack.c.b16 %v9267, %v9260
    %v10066 = vpack.c.b16 %v9275, %v9268
    %v10067 = vpack.c.b16 %v9276, %v9269
    %v10068 = vpack.c.b16 %v9277, %v9270
    %v10069 = vpack.c.b16 %v9278, %v9271
    %v10070 = vpack.c.b16 %v9279, %v9272
    %v10071 = vpack.c.b16 %v9280, %v9273
    %v10072 = vpack.c.b16 %v9281, %v9274
    %v10073 = vpack.c.b16 %v9289, %v9282
    %v10074 = vpack.c.b16 %v9290, %v9283
    %v10075 = vpack.c.b16 %v9291, %v9284
    %v10076 = vpack.c.b16 %v9292, %v9285
    %v10077 = vpack.c.b16 %v9293, %v9286
    %v10078 = vpack.c.b16 %v9294, %v9287
    %v10079 = vpack.c.b16 %v9295, %v9288
    %v10080 = vpack.c.b16 %v9303, %v9296
    %v10081 = vpack.c.b16 %v9304, %v9297
    %v10082 = vpack.c.b16 %v9305, %v9298
    %v10083 = vpack.c.b16 %v9306, %v9299
    %v10084 = vpack.c.b16 %v9307, %v9300
    %v10085 = vpack.c.b16 %v9308, %v9301
    %v10086 = vpack.c.b16 %v9309, %v9302
    %v10087 = vpack.c.b16 %v9317, %v9310
    %v10088 = vpack.c.b16 %v9318, %v9311
    %v10089 = vpack.c.b16 %v9319, %v9312
    %v10090 = vpack.c.b16 %v9320, %v9313
    %v10091 = vpack.c.b16 %v9321, %v9314
    %v10092 = vpack.c.b16 %v9322, %v9315
    %v10093 = vpack.c.b16 %v9323, %v9316
    %v10094 = vpack.c.b16 %v9331, %v9324
    %v10095 = vpack.c.b16 %v9332, %v9325
    %v10096 = vpack.c.b16 %v9333, %v9326
    %v10097 = vpack.c.b16 %v9334, %v9327
    %v10098 = vpack.c.b16 %v9335, %v9328
    %v10099 = vpack.c.b16 %v9336, %v9329
    %v10100 = vpack.c.b16 %v9337, %v9330
    %v10101 = vpack.c.b16 %v9345, %v9338
    %v10102 = vpack.c.b16 %v9346, %v9339
    %v10103 = vpack.c.b16 %v9347, %v9340
    %v10104 = vpack.c.b16 %v9348, %v9341
    %v10105 = vpack.c.b16 %v9349, %v9342
    %v10106 = vpack.c.b16 %v9350, %v9343
    %v10107 = vpack.c.b16 %v9351, %v9344
    %v10108 = vpack.c.b16 %v9359, %v9352
    %v10109 = vpack.c.b16 %v9360, %v9353
    %v10110 = vpack.c.b16 %v9361, %v9354
    %v10111 = vpack.c.b16 %v9362, %v9355
    %v10112 = vpack.c.b16 %v9363, %v9356
    %v10113 = vpack.c.b16 %v9364, %v9357
    %v10114 = vpack.c.b16 %v9365, %v9358
    %v10115 = vpack.c.b16 %v9373, %v9366
    %v10116 = vpack.c.b16 %v9374, %v9367
    %v10117 = vpack.c.b16 %v9375, %v9368
    %v10118 = vpack.c.b16 %v9376, %v9369
    %v10119 = vpack.c.b16 %v9377, %v9370
    %v10120 = vpack.c.b16 %v9378, %v9371
    %v10121 = vpack.c.b16 %v9379, %v9372
    %v10122 = vpack.c.b16 %v9387, %v9380
    %v10123 = vpack.c.b16 %v9388, %v9381
    %v10124 = vpack.c.b16 %v9389, %v9382
    %v10125 = vpack.c.b16 %v9390, %v9383
    %v10126 = vpack.c.b16 %v9391, %v9384
    %v10127 = vpack.c.b16 %v9392, %v9385
    %v10128 = vpack.c.b16 %v9393, %v9386
    %v10129 = vpack.c.b16 %v9401, %v9394
    %v10130 = vpack.c.b16 %v9402, %v9395
    %v10131 = vpack.c.b16 %v9403, %v9396
    %v10132 = vpack.c.b16 %v9404, %v9397
    %v10133 = vpack.c.b16 %v9405, %v9398
    %v10134 = vpack.c.b16 %v9406, %v9399
    %v10135 = vpack.c.b16 %v9407, %v9400
    %v10136 = vpack.c.b16 %v9415, %v9408
    %v10137 = vpack.c.b16 %v9416, %v9409
    %v10138 = vpack.c.b16 %v9417, %v9410
    %v10139 = vpack.c.b16 %v9418, %v9411
    %v10140 = vpack.c.b16 %v9419, %v9412
    %v10141 = vpack.c.b16 %v9420, %v9413
    %v10142 = vpack.c.b16 %v9421, %v9414
    %v10143 = vpack.c.b16 %v9429, %v9422
    %v10144 = vpack.c.b16 %v9430, %v9423
    %v10145 = vpack.c.b16 %v9431, %v9424
    %v10146 = vpack.c.b16 %v9432, %v9425
    %v10147 = vpack.c.b16 %v9433, %v9426
    %v10148 = vpack.c.b16 %v9434, %v9427
    %v10149 = vpack.c.b16 %v9435, %v9428
    %v10150 = vpack.c.b16 %v9443, %v9436
    %v10151 = vpack.c.b16 %v9444, %v9437
    %v10152 = vpack.c.b16 %v9445, %v9438
    %v10153 = vpack.c.b16 %v9446, %v9439
    %v10154 = vpack.c.b16 %v9447, %v9440
    %v10155 = vpack.c.b16 %v9448, %v9441
    %v10156 = vpack.c.b16 %v9449, %v9442
    %v10157 = vpack.c.b16 %v9457, %v9450
    %v10158 = vpack.c.b16 %v9458, %v9451
    %v10159 = vpack.c.b16 %v9459, %v9452
    %v10160 = vpack.c.b16 %v9460, %v9453
    %v10161 = vpack.c.b16 %v9461, %v9454
    %v10162 = vpack.c.b16 %v9462, %v9455
    %v10163 = vpack.c.b16 %v9463, %v9456
    %v10164 = vpack.c.b16 %v9471, %v9464
    %v10165 = vpack.c.b16 %v9472, %v9465
    %v10166 = vpack.c.b16 %v9473, %v9466
    %v10167 = vpack.c.b16 %v9474, %v9467
    %v10168 = vpack.c.b16 %v9475, %v9468
    %v10169 = vpack.c.b16 %v9476, %v9469
    %v10170 = vpack.c.b16 %v9477, %v9470
    %v10171 = vpack.c.b16 %v9485, %v9478
    %v10172 = vpack.c.b16 %v9486, %v9479
    %v10173 = vpack.c.b16 %v9487, %v9480
    %v10174 = vpack.c.b16 %v9488, %v9481
    %v10175 = vpack.c.b16 %v9489, %v9482
    %v10176 = vpack.c.b16 %v9490, %v9483
    %v10177 = vpack.c.b16 %v9491, %v9484
    %v10178 = vpack.c.b16 %v9499, %v9492
    %v10179 = vpack.c.b16 %v9500, %v9493
    %v10180 = vpack.c.b16 %v9501, %v9494
    %v10181 = vpack.c.b16 %v9502, %v9495
    %v10182 = vpack.c.b16 %v9503, %v9496
    %v10183 = vpack.c.b16 %v9504, %v9497
    %v10184 = vpack.c.b16 %v9505, %v9498
    %v10185 = vpack.c.b16 %v9513, %v9506
    %v10186 = vpack.c.b16 %v9514, %v9507
    %v10187 = vpack.c.b16 %v9515, %v9508
    %v10188 = vpack.c.b16 %v9516, %v9509
    %v10189 = vpack.c.b16 %v9517, %v9510
    %v10190 = vpack.c.b16 %v9518, %v9511
    %v10191 = vpack.c.b16 %v9519, %v9512
    %v10192 = vpack.c.b16 %v9527, %v9520
    %v10193 = vpack.c.b16 %v9528, %v9521
    %v10194 = vpack.c.b16 %v9529, %v9522
    %v10195 = vpack.c.b16 %v9530, %v9523
    %v10196 = vpack.c.b16 %v9531, %v9524
    %v10197 = vpack.c.b16 %v9532, %v9525
    %v10198 = vpack.c.b16 %v9533, %v9526
    %v10199 = vpack.c.b16 %v9541, %v9534
    %v10200 = vpack.c.b16 %v9542, %v9535
    %v10201 = vpack.c.b16 %v9543, %v9536
    %v10202 = vpack.c.b16 %v9544, %v9537
    %v10203 = vpack.c.b16 %v9545, %v9538
    %v10204 = vpack.c.b16 %v9546, %v9539
    %v10205 = vpack.c.b16 %v9547, %v9540
    %v10206 = vpack.c.b16 %v9555, %v9548
    %v10207 = vpack.c.b16 %v9556, %v9549
    %v10208 = vpack.c.b16 %v9557, %v9550
    %v10209 = vpack.c.b16 %v9558, %v9551
    %v10210 = vpack.c.b16 %v9559, %v9552
    %v10211 = vpack.c.b16 %v9560, %v9553
    %v10212 = vpack.c.b16 %v9561, %v9554
    %v10213 = vpack.c.b16 %v9569, %v9562
    %v10214 = vpack.c.b16 %v9570, %v9563
    %v10215 = vpack.c.b16 %v9571, %v9564
    %v10216 = vpack.c.b16 %v9572, %v9565
    %v10217 = vpack.c.b16 %v9573, %v9566
    %v10218 = vpack.c.b16 %v9574, %v9567
    %v10219 = vpack.c.b16 %v9575, %v9568
    %v10220 = vpack.c.b16 %v9583, %v9576
    %v10221 = vpack.c.b16 %v9584, %v9577
    %v10222 = vpack.c.b16 %v9585, %v9578
    %v10223 = vpack.c.b16 %v9586, %v9579
    %v10224 = vpack.c.b16 %v9587, %v9580
    %v10225 = vpack.c.b16 %v9588, %v9581
    %v10226 = vpack.c.b16 %v9589, %v9582
    %v10227 = vpack.c.b16 %v9597, %v9590
    %v10228 = vpack.c.b16 %v9598, %v9591
    %v10229 = vpack.c.b16 %v9599, %v9592
    %v10230 = vpack.c.b16 %v9600, %v9593
    %v10231 = vpack.c.b16 %v9601, %v9594
    %v10232 = vpack.c.b16 %v9602, %v9595
    %v10233 = vpack.c.b16 %v9603, %v9596
    %v10234 = vpack.c.b16 %v9611, %v9604
    %v10235 = vpack.c.b16 %v9612, %v9605
    %v10236 = vpack.c.b16 %v9613, %v9606
    %v10237 = vpack.c.b16 %v9614, %v9607
    %v10238 = vpack.c.b16 %v9615, %v9608
    %v10239 = vpack.c.b16 %v9616, %v9609
    %v10240 = vpack.c.b16 %v9617, %v9610
    %v10241 = vpack.c.b16 %v9625, %v9618
    %v10242 = vpack.c.b16 %v9626, %v9619
    %v10243 = vpack.c.b16 %v9627, %v9620
    %v10244 = vpack.c.b16 %v9628, %v9621
    %v10245 = vpack.c.b16 %v9629, %v9622
    %v10246 = vpack.c.b16 %v9630, %v9623
    %v10247 = vpack.c.b16 %v9631, %v9624
    %v10248 = vpack.c.b16 %v9639, %v9632
    %v10249 = vpack.c.b16 %v9640, %v9633
    %v10250 = vpack.c.b16 %v9641, %v9634
    %v10251 = vpack.c.b16 %v9642, %v9635
    %v10252 = vpack.c.b16 %v9643, %v9636
    %v10253 = vpack.c.b16 %v9644, %v9637
    %v10254 = vpack.c.b16 %v9645, %v9638
    %v10255 = vpack.c.b16 %v9653, %v9646
    %v10256 = vpack.c.b16 %v9654, %v9647
    %v10257 = vpack.c.b16 %v9655, %v9648
    %v10258 = vpack.c.b16 %v9656, %v9649
    %v10259 = vpack.c.b16 %v9657, %v9650
    %v10260 = vpack.c.b16 %v9658, %v9651
    %v10261 = vpack.c.b16 %v9659, %v9652
    %v10262 = vpack.c.b16 %v9667, %v9660
    %v10263 = vpack.c.b16 %v9668, %v9661
    %v10264 = vpack.c.b16 %v9669, %v9662
    %v10265 = vpack.c.b16 %v9670, %v9663
    %v10266 = vpack.c.b16 %v9671, %v9664
    %v10267 = vpack.c.b16 %v9672, %v9665
    %v10268 = vpack.c.b16 %v9673, %v9666
    %v10269 = vpack.c.b16 %v9681, %v9674
    %v10270 = vpack.c.b16 %v9682, %v9675
    %v10271 = vpack.c.b16 %v9683, %v9676
    %v10272 = vpack.c.b16 %v9684, %v9677
    %v10273 = vpack.c.b16 %v9685, %v9678
    %v10274 = vpack.c.b16 %v9686, %v9679
    %v10275 = vpack.c.b16 %v9687, %v9680
    %v10276 = vpack.c.b16 %v9695, %v9688
    %v10277 = vpack.c.b16 %v9696, %v9689
    %v10278 = vpack.c.b16 %v9697, %v9690
    %v10279 = vpack.c.b16 %v9698, %v9691
    %v10280 = vpack.c.b16 %v9699, %v9692
    %v10281 = vpack.c.b16 %v9700, %v9693
    %v10282 = vpack.c.b16 %v9701, %v9694
    %v10283 = vpack.c.b16 %v9709, %v9702
    %v10284 = vpack.c.b16 %v9710, %v9703
    %v10285 = vpack.c.b16 %v9711, %v9704
    %v10286 = vpack.c.b16 %v9712, %v9705
    %v10287 = vpack.c.b16 %v9713, %v9706
    %v10288 = vpack.c.b16 %v9714, %v9707
    %v10289 = vpack.c.b16 %v9715, %v9708
    %v10290 = vpack.c.b16 %v9723, %v9716
    %v10291 = vpack.c.b16 %v9724, %v9717
    %v10292 = vpack.c.b16 %v9725, %v9718
    %v10293 = vpack.c.b16 %v9726, %v9719
    %v10294 = vpack.c.b16 %v9727, %v9720
    %v10295 = vpack.c.b16 %v9728, %v9721
    %v10296 = vpack.c.b16 %v9729, %v9722
    %v10297 = vpack.c.b16 %v9737, %v9730
    %v10298 = vpack.c.b16 %v9738, %v9731
    %v10299 = vpack.c.b16 %v9739, %v9732
    %v10300 = vpack.c.b16 %v9740, %v9733
    %v10301 = vpack.c.b16 %v9741, %v9734
    %v10302 = vpack.c.b16 %v9742, %v9735
    %v10303 = vpack.c.b16 %v9743, %v9736
    %v10304 = vpack.c.b16 %v9751, %v9744
    %v10305 = vpack.c.b16 %v9752, %v9745
    %v10306 = vpack.c.b16 %v9753, %v9746
    %v10307 = vpack.c.b16 %v9754, %v9747
    %v10308 = vpack.c.b16 %v9755, %v9748
    %v10309 = vpack.c.b16 %v9756, %v9749
    %v10310 = vpack.c.b16 %v9757, %v9750
    %v10311 = vpack.c.b16 %v9765, %v9758
    %v10312 = vpack.c.b16 %v9766, %v9759
    %v10313 = vpack.c.b16 %v9767, %v9760
    %v10314 = vpack.c.b16 %v9768, %v9761
    %v10315 = vpack.c.b16 %v9769, %v9762
    %v10316 = vpack.c.b16 %v9770, %v9763
    %v10317 = vpack.c.b16 %v9771, %v9764
    %v10318 = vpack.c.b16 %v9779, %v9772
    %v10319 = vpack.c.b16 %v9780, %v9773
    %v10320 = vpack.c.b16 %v9781, %v9774
    %v10321 = vpack.c.b16 %v9782, %v9775
    %v10322 = vpack.c.b16 %v9783, %v9776
    %v10323 = vpack.c.b16 %v9784, %v9777
    %v10324 = vpack.c.b16 %v9785, %v9778
    %v10325 = vpack.c.b16 %v9793, %v9786
    %v10326 = vpack.c.b16 %v9794, %v9787
    %v10327 = vpack.c.b16 %v9795, %v9788
    %v10328 = vpack.c.b16 %v9796, %v9789
    %v10329 = vpack.c.b16 %v9797, %v9790
    %v10330 = vpack.c.b16 %v9798, %v9791
    %v10331 = vpack.c.b16 %v9799, %v9792
    %v10332 = vpack.c.b16 %v9807, %v9800
    %v10333 = vpack.c.b16 %v9808, %v9801
    %v10334 = vpack.c.b16 %v9809, %v9802
    %v10335 = vpack.c.b16 %v9810, %v9803
    %v10336 = vpack.c.b16 %v9811, %v9804
    %v10337 = vpack.c.b16 %v9812, %v9805
    %v10338 = vpack.c.b16 %v9813, %v9806
    %v10339 = vpack.c.b16 %v9821, %v9814
    %v10340 = vpack.c.b16 %v9822, %v9815
    %v10341 = vpack.c.b16 %v9823, %v9816
    %v10342 = vpack.c.b16 %v9824, %v9817
    %v10343 = vpack.c.b16 %v9825, %v9818
    %v10344 = vpack.c.b16 %v9826, %v9819
    %v10345 = vpack.c.b16 %v9827, %v9820
    %v10346 = vpack.c.b16 %v9835, %v9828
    %v10347 = vpack.c.b16 %v9836, %v9829
    %v10348 = vpack.c.b16 %v9837, %v9830
    %v10349 = vpack.c.b16 %v9838, %v9831
    %v10350 = vpack.c.b16 %v9839, %v9832
    %v10351 = vpack.c.b16 %v9840, %v9833
    %v10352 = vpack.c.b16 %v9841, %v9834
    %v10353 = vpack.c.b16 %v9849, %v9842
    %v10354 = vpack.c.b16 %v9850, %v9843
    %v10355 = vpack.c.b16 %v9851, %v9844
    %v10356 = vpack.c.b16 %v9852, %v9845
    %v10357 = vpack.c.b16 %v9853, %v9846
    %v10358 = vpack.c.b16 %v9854, %v9847
    %v10359 = vpack.c.b16 %v9855, %v9848
    %v10360 = vpack.c.b16 %v9863, %v9856
    %v10361 = vpack.c.b16 %v9864, %v9857
    %v10362 = vpack.c.b16 %v9865, %v9858
    %v10363 = vpack.c.b16 %v9866, %v9859
    %v10364 = vpack.c.b16 %v9867, %v9860
    %v10365 = vpack.c.b16 %v9868, %v9861
    %v10366 = vpack.c.b16 %v9869, %v9862
    %v10367 = vpack.c.b16 %v9877, %v9870
    %v10368 = vpack.c.b16 %v9878, %v9871
    %v10369 = vpack.c.b16 %v9879, %v9872
    %v10370 = vpack.c.b16 %v9880, %v9873
    %v10371 = vpack.c.b16 %v9881, %v9874
    %v10372 = vpack.c.b16 %v9882, %v9875
    %v10373 = vpack.c.b16 %v9883, %v9876
    %v10374 = vpack.c.b16 %v9891, %v9884
    %v10375 = vpack.c.b16 %v9892, %v9885
    %v10376 = vpack.c.b16 %v9893, %v9886
    %v10377 = vpack.c.b16 %v9894, %v9887
    %v10378 = vpack.c.b16 %v9895, %v9888
    %v10379 = vpack.c.b16 %v9896, %v9889
    %v10380 = vpack.c.b16 %v9897, %v9890
    %v10381 = vpack.c.b16 %v9905, %v9898
    %v10382 = vpack.c.b16 %v9906, %v9899
    %v10383 = vpack.c.b16 %v9907, %v9900
    %v10384 = vpack.c.b16 %v9908, %v9901
    %v10385 = vpack.c.b16 %v9909, %v9902
    %v10386 = vpack.c.b16 %v9910, %v9903
    %v10387 = vpack.c.b16 %v9911, %v9904
    %v10388 = vpack.c.b16 %v9919, %v9912
    %v10389 = vpack.c.b16 %v9920, %v9913
    %v10390 = vpack.c.b16 %v9921, %v9914
    %v10391 = vpack.c.b16 %v9922, %v9915
    %v10392 = vpack.c.b16 %v9923, %v9916
    %v10393 = vpack.c.b16 %v9924, %v9917
    %v10394 = vpack.c.b16 %v9925, %v9918
    %v10395 = vpack.c.b16 %v9933, %v9926
    %v10396 = vpack.c.b16 %v9934, %v9927
    %v10397 = vpack.c.b16 %v9935, %v9928
    %v10398 = vpack.c.b16 %v9936, %v9929
    %v10399 = vpack.c.b16 %v9937, %v9930
    %v10400 = vpack.c.b16 %v9938, %v9931
    %v10401 = vpack.c.b16 %v9939, %v9932
    %v10402 = vpack.c.b16 %v9947, %v9940
    %v10403 = vpack.c.b16 %v9948, %v9941
    %v10404 = vpack.c.b16 %v9949, %v9942
    %v10405 = vpack.c.b16 %v9950, %v9943
    %v10406 = vpack.c.b16 %v9951, %v9944
    %v10407 = vpack.c.b16 %v9952, %v9945
    %v10408 = vpack.c.b16 %v9953, %v9946
    %v10409 = vpack.c.b16 %v9961, %v9954
    %v10410 = vpack.c.b16 %v9962, %v9955
    %v10411 = vpack.c.b16 %v9963, %v9956
    %v10412 = vpack.c.b16 %v9964, %v9957
    %v10413 = vpack.c.b16 %v9965, %v9958
    %v10414 = vpack.c.b16 %v9966, %v9959
    %v10415 = vpack.c.b16 %v9967, %v9960
    %10864 = vmatprep.subr.bf16.mxu0 %v9969
    %10865 = vmatpush1.bf16.msra.mxu0 %v9968
    %10866 = vmatprep.subr.bf16.mxu0 %v9976
    %10867 = vmatpush1.bf16.msra.mxu0 %v9975
    %10868 = vmatprep.subr.bf16.mxu0 %v9983
    %10869 = vmatpush1.bf16.msra.mxu0 %v9982
    %10870 = vmatprep.subr.bf16.mxu0 %v9990
    %10871 = vmatpush1.bf16.msra.mxu0 %v9989
    %10872 = vmatprep.subr.bf16.mxu0 %v9997
    %10873 = vmatpush1.bf16.msra.mxu0 %v9996
    %10874 = vmatprep.subr.bf16.mxu0 %v10004
    %10875 = vmatpush1.bf16.msra.mxu0 %v10003
    %10876 = vmatprep.subr.bf16.mxu0 %v10011
    %10877 = vmatpush1.bf16.msra.mxu0 %v10010
    %10878 = vmatprep.subr.bf16.mxu0 %v10018
    %10879 = vmatpush1.bf16.msra.mxu0 %v10017
    %10880 = vmatprep.subr.bf16.mxu0 %v10025
    %10881 = vmatpush1.bf16.msra.mxu0 %v10024
    %10882 = vmatprep.subr.bf16.mxu0 %v10032
    %10883 = vmatpush1.bf16.msra.mxu0 %v10031
    %10884 = vmatprep.subr.bf16.mxu0 %v10039
    %10885 = vmatpush1.bf16.msra.mxu0 %v10038
    %10886 = vmatprep.subr.bf16.mxu0 %v10046
    %10887 = vmatpush1.bf16.msra.mxu0 %v10045
    %10888 = vmatprep.subr.bf16.mxu0 %v10053
    %10889 = vmatpush1.bf16.msra.mxu0 %v10052
    %10890 = vmatprep.subr.bf16.mxu0 %v10060
    %10891 = vmatpush1.bf16.msra.mxu0 %v10059
    %10892 = vmatprep.subr.bf16.mxu0 %v10067
    %10893 = vmatpush1.bf16.msra.mxu0 %v10066
    %10894 = vmatprep.subr.bf16.mxu0 %v10074
    %10895 = vmatpush1.bf16.msra.mxu0 %v10073
    %10896 = vmatprep.mubr.bf16.mxu0 %v8004
    %10897 = vmatmul.mubr.bf16.gmra.mrb[0].mxu0 %v8003
    %v10898 = vpop.f32.mrb[0].mxu0
    %v10899 = vadd.f32 %v8528, %v10898
    %v10900 = vpop.f32.mrb[0].mxu0
    %v10901 = vadd.f32 %v8532, %v10900
    %v10902 = vpop.f32.mrb[0].mxu0
    %v10903 = vadd.f32 %v8528, %v10902
    %v10904 = vpop.f32.mrb[0].mxu0
    %v10905 = vadd.f32 %v8532, %v10904
    %10906 = vdwg.mxu0
    %10907 = vmatprep.subr.bf16.mxu0 %v10081
    %10908 = vmatpush1.bf16.msra.mxu0 %v10080
    %10909 = vmatprep.subr.bf16.mxu0 %v10088
    %10910 = vmatpush1.bf16.msra.mxu0 %v10087
    %10911 = vmatprep.subr.bf16.mxu0 %v10095
    %10912 = vmatpush1.bf16.msra.mxu0 %v10094
    %10913 = vmatprep.subr.bf16.mxu0 %v10102
    %10914 = vmatpush1.bf16.msra.mxu0 %v10101
    %10915 = vmatprep.subr.bf16.mxu0 %v10109
    %10916 = vmatpush1.bf16.msra.mxu0 %v10108
    %10917 = vmatprep.subr.bf16.mxu0 %v10116
    %10918 = vmatpush1.bf16.msra.mxu0 %v10115
    %10919 = vmatprep.subr.bf16.mxu0 %v10123
    %10920 = vmatpush1.bf16.msra.mxu0 %v10122
    %10921 = vmatprep.subr.bf16.mxu0 %v10130
    %10922 = vmatpush1.bf16.msra.mxu0 %v10129
    %10923 = vmatprep.subr.bf16.mxu0 %v10137
    %10924 = vmatpush1.bf16.msra.mxu0 %v10136
    %10925 = vmatprep.subr.bf16.mxu0 %v10144
    %10926 = vmatpush1.bf16.msra.mxu0 %v10143
    %10927 = vmatprep.subr.bf16.mxu0 %v10151
    %10928 = vmatpush1.bf16.msra.mxu0 %v10150
    %10929 = vmatprep.subr.bf16.mxu0 %v10158
    %10930 = vmatpush1.bf16.msra.mxu0 %v10157
    %10931 = vmatprep.subr.bf16.mxu0 %v10165
    %10932 = vmatpush1.bf16.msra.mxu0 %v10164
    %10933 = vmatprep.subr.bf16.mxu0 %v10172
    %10934 = vmatpush1.bf16.msra.mxu0 %v10171
    %10935 = vmatprep.subr.bf16.mxu0 %v10179
    %10936 = vmatpush1.bf16.msra.mxu0 %v10178
    %10937 = vmatprep.subr.bf16.mxu0 %v10186
    %10938 = vmatpush1.bf16.msra.mxu0 %v10185
    %10939 = vmatprep.mubr.bf16.mxu0 %v8006
    %10940 = vmatmul.mubr.bf16.gmra.mrb[0].mxu0 %v8005
    %v10941 = vpop.f32.mrb[0].mxu0
    %v10942 = vadd.f32 %v10899, %v10941
    %v10943 = vpop.f32.mrb[0].mxu0
    %v10944 = vadd.f32 %v10901, %v10943
    %v10945 = vpop.f32.mrb[0].mxu0
    %v10946 = vadd.f32 %v10903, %v10945
    %v10947 = vpop.f32.mrb[0].mxu0
    %v10948 = vadd.f32 %v10905, %v10947
    %10949 = vdwg.mxu0
    %10950 = vmatprep.subr.bf16.mxu0 %v10193
    %10951 = vmatpush1.bf16.msra.mxu0 %v10192
    %10952 = vmatprep.subr.bf16.mxu0 %v10200
    %10953 = vmatpush1.bf16.msra.mxu0 %v10199
    %10954 = vmatprep.subr.bf16.mxu0 %v10207
    %10955 = vmatpush1.bf16.msra.mxu0 %v10206
    %10956 = vmatprep.subr.bf16.mxu0 %v10214
    %10957 = vmatpush1.bf16.msra.mxu0 %v10213
    %10958 = vmatprep.subr.bf16.mxu0 %v10221
    %10959 = vmatpush1.bf16.msra.mxu0 %v10220
    %10960 = vmatprep.subr.bf16.mxu0 %v10228
    %10961 = vmatpush1.bf16.msra.mxu0 %v10227
    %10962 = vmatprep.subr.bf16.mxu0 %v10235
    %10963 = vmatpush1.bf16.msra.mxu0 %v10234
    %10964 = vmatprep.subr.bf16.mxu0 %v10242
    %10965 = vmatpush1.bf16.msra.mxu0 %v10241
    %10966 = vmatprep.subr.bf16.mxu0 %v10249
    %10967 = vmatpush1.bf16.msra.mxu0 %v10248
    %10968 = vmatprep.subr.bf16.mxu0 %v10256
    %10969 = vmatpush1.bf16.msra.mxu0 %v10255
    %10970 = vmatprep.subr.bf16.mxu0 %v10263
    %10971 = vmatpush1.bf16.msra.mxu0 %v10262
    %10972 = vmatprep.subr.bf16.mxu0 %v10270
    %10973 = vmatpush1.bf16.msra.mxu0 %v10269
    %10974 = vmatprep.subr.bf16.mxu0 %v10277
    %10975 = vmatpush1.bf16.msra.mxu0 %v10276
    %10976 = vmatprep.subr.bf16.mxu0 %v10284
    %10977 = vmatpush1.bf16.msra.mxu0 %v10283
    %10978 = vmatprep.subr.bf16.mxu0 %v10291
    %10979 = vmatpush1.bf16.msra.mxu0 %v10290
    %10980 = vmatprep.subr.bf16.mxu0 %v10298
    %10981 = vmatpush1.bf16.msra.mxu0 %v10297
    %10982 = vmatprep.mubr.bf16.mxu0 %v8008
    %10983 = vmatmul.mubr.bf16.gmra.mrb[0].mxu0 %v8007
    %v10984 = vpop.f32.mrb[0].mxu0
    %v10985 = vadd.f32 %v10942, %v10984
    %v10986 = vpop.f32.mrb[0].mxu0
    %v10987 = vadd.f32 %v10944, %v10986
    %v10988 = vpop.f32.mrb[0].mxu0
    %v10989 = vadd.f32 %v10946, %v10988
    %v10990 = vpop.f32.mrb[0].mxu0
    %v10991 = vadd.f32 %v10948, %v10990
    %10992 = vdwg.mxu0
    %10993 = vmatprep.subr.bf16.mxu0 %v10305
    %10994 = vmatpush1.bf16.msra.mxu0 %v10304
    %10995 = vmatprep.subr.bf16.mxu0 %v10312
    %10996 = vmatpush1.bf16.msra.mxu0 %v10311
    %10997 = vmatprep.subr.bf16.mxu0 %v10319
    %10998 = vmatpush1.bf16.msra.mxu0 %v10318
    %10999 = vmatprep.subr.bf16.mxu0 %v10326
    %11000 = vmatpush1.bf16.msra.mxu0 %v10325
    %11001 = vmatprep.subr.bf16.mxu0 %v10333
    %11002 = vmatpush1.bf16.msra.mxu0 %v10332
    %11003 = vmatprep.subr.bf16.mxu0 %v10340
    %11004 = vmatpush1.bf16.msra.mxu0 %v10339
    %11005 = vmatprep.subr.bf16.mxu0 %v10347
    %11006 = vmatpush1.bf16.msra.mxu0 %v10346
    %11007 = vmatprep.subr.bf16.mxu0 %v10354
    %11008 = vmatpush1.bf16.msra.mxu0 %v10353
    %11009 = vmatprep.subr.bf16.mxu0 %v10361
    %11010 = vmatpush1.bf16.msra.mxu0 %v10360
    %11011 = vmatprep.subr.bf16.mxu0 %v10368
    %11012 = vmatpush1.bf16.msra.mxu0 %v10367
    %11013 = vmatprep.subr.bf16.mxu0 %v10375
    %11014 = vmatpush1.bf16.msra.mxu0 %v10374
    %11015 = vmatprep.subr.bf16.mxu0 %v10382
    %11016 = vmatpush1.bf16.msra.mxu0 %v10381
    %11017 = vmatprep.subr.bf16.mxu0 %v10389
    %11018 = vmatpush1.bf16.msra.mxu0 %v10388
    %11019 = vmatprep.subr.bf16.mxu0 %v10396
    %11020 = vmatpush1.bf16.msra.mxu0 %v10395
    %11021 = vmatprep.subr.bf16.mxu0 %v10403
    %11022 = vmatpush1.bf16.msra.mxu0 %v10402
    %11023 = vmatprep.subr.bf16.mxu0 %v10410
    %11024 = vmatpush1.bf16.msra.mxu0 %v10409
    %11025 = vmatprep.mubr.bf16.mxu0 %v8010
    %11026 = vmatmul.mubr.bf16.gmra.mrb[0].mxu0 %v8009
    %v11027 = vpop.f32.mrb[0].mxu0
    %v11028 = vadd.f32 %v10985, %v11027
    %v11029 = vpop.f32.mrb[0].mxu0
    %v11030 = vadd.f32 %v10987, %v11029
    %v11031 = vpop.f32.mrb[0].mxu0
    %v11032 = vadd.f32 %v10989, %v11031
    %v11033 = vpop.f32.mrb[0].mxu0
    %v11034 = vadd.f32 %v10991, %v11033
    %11035 = vdwg.mxu0
    %11036 = vmatprep.subr.bf16.mxu0 %v9971
    %11037 = vmatpush1.bf16.msra.mxu0 %v9970
    %11038 = vmatprep.subr.bf16.mxu0 %v9978
    %11039 = vmatpush1.bf16.msra.mxu0 %v9977
    %11040 = vmatprep.subr.bf16.mxu0 %v9985
    %11041 = vmatpush1.bf16.msra.mxu0 %v9984
    %11042 = vmatprep.subr.bf16.mxu0 %v9992
    %11043 = vmatpush1.bf16.msra.mxu0 %v9991
    %11044 = vmatprep.subr.bf16.mxu0 %v9999
    %11045 = vmatpush1.bf16.msra.mxu0 %v9998
    %11046 = vmatprep.subr.bf16.mxu0 %v10006
    %11047 = vmatpush1.bf16.msra.mxu0 %v10005
    %11048 = vmatprep.subr.bf16.mxu0 %v10013
    %11049 = vmatpush1.bf16.msra.mxu0 %v10012
    %11050 = vmatprep.subr.bf16.mxu0 %v10020
    %11051 = vmatpush1.bf16.msra.mxu0 %v10019
    %11052 = vmatprep.subr.bf16.mxu0 %v10027
    %11053 = vmatpush1.bf16.msra.mxu0 %v10026
    %11054 = vmatprep.subr.bf16.mxu0 %v10034
    %11055 = vmatpush1.bf16.msra.mxu0 %v10033
    %11056 = vmatprep.subr.bf16.mxu0 %v10041
    %11057 = vmatpush1.bf16.msra.mxu0 %v10040
    %11058 = vmatprep.subr.bf16.mxu0 %v10048
    %11059 = vmatpush1.bf16.msra.mxu0 %v10047
    %11060 = vmatprep.subr.bf16.mxu0 %v10055
    %11061 = vmatpush1.bf16.msra.mxu0 %v10054
    %11062 = vmatprep.subr.bf16.mxu0 %v10062
    %11063 = vmatpush1.bf16.msra.mxu0 %v10061
    %11064 = vmatprep.subr.bf16.mxu0 %v10069
    %11065 = vmatpush1.bf16.msra.mxu0 %v10068
    %11066 = vmatprep.subr.bf16.mxu0 %v10076
    %11067 = vmatpush1.bf16.msra.mxu0 %v10075
    %11068 = vmatprep.mubr.bf16.mxu0 %v8004
    %11069 = vmatmul.mubr.bf16.gmra.mrb[0].mxu0 %v8003
    %v11070 = vpop.f32.mrb[0].mxu0
    %v11071 = vadd.f32 %v8536, %v11070
    %v11072 = vpop.f32.mrb[0].mxu0
    %v11073 = vadd.f32 %v8540, %v11072
    %v11074 = vpop.f32.mrb[0].mxu0
    %v11075 = vadd.f32 %v8536, %v11074
    %v11076 = vpop.f32.mrb[0].mxu0
    %v11077 = vadd.f32 %v8540, %v11076
    %11078 = vdwg.mxu0
    %11079 = vmatprep.subr.bf16.mxu0 %v10083
    %11080 = vmatpush1.bf16.msra.mxu0 %v10082
    %11081 = vmatprep.subr.bf16.mxu0 %v10090
    %11082 = vmatpush1.bf16.msra.mxu0 %v10089
    %11083 = vmatprep.subr.bf16.mxu0 %v10097
    %11084 = vmatpush1.bf16.msra.mxu0 %v10096
    %11085 = vmatprep.subr.bf16.mxu0 %v10104
    %11086 = vmatpush1.bf16.msra.mxu0 %v10103
    %11087 = vmatprep.subr.bf16.mxu0 %v10111
    %11088 = vmatpush1.bf16.msra.mxu0 %v10110
    %11089 = vmatprep.subr.bf16.mxu0 %v10118
    %11090 = vmatpush1.bf16.msra.mxu0 %v10117
    %11091 = vmatprep.subr.bf16.mxu0 %v10125
    %11092 = vmatpush1.bf16.msra.mxu0 %v10124
    %11093 = vmatprep.subr.bf16.mxu0 %v10132
    %11094 = vmatpush1.bf16.msra.mxu0 %v10131
    %11095 = vmatprep.subr.bf16.mxu0 %v10139
    %11096 = vmatpush1.bf16.msra.mxu0 %v10138
    %11097 = vmatprep.subr.bf16.mxu0 %v10146
    %11098 = vmatpush1.bf16.msra.mxu0 %v10145
    %11099 = vmatprep.subr.bf16.mxu0 %v10153
    %11100 = vmatpush1.bf16.msra.mxu0 %v10152
    %11101 = vmatprep.subr.bf16.mxu0 %v10160
    %11102 = vmatpush1.bf16.msra.mxu0 %v10159
    %11103 = vmatprep.subr.bf16.mxu0 %v10167
    %11104 = vmatpush1.bf16.msra.mxu0 %v10166
    %11105 = vmatprep.subr.bf16.mxu0 %v10174
    %11106 = vmatpush1.bf16.msra.mxu0 %v10173
    %11107 = vmatprep.subr.bf16.mxu0 %v10181
    %11108 = vmatpush1.bf16.msra.mxu0 %v10180
    %11109 = vmatprep.subr.bf16.mxu0 %v10188
    %11110 = vmatpush1.bf16.msra.mxu0 %v10187
    %11111 = vmatprep.mubr.bf16.mxu0 %v8006
    %11112 = vmatmul.mubr.bf16.gmra.mrb[0].mxu0 %v8005
    %v11113 = vpop.f32.mrb[0].mxu0
    %v11114 = vadd.f32 %v11071, %v11113
    %v11115 = vpop.f32.mrb[0].mxu0
    %v11116 = vadd.f32 %v11073, %v11115
    %v11117 = vpop.f32.mrb[0].mxu0
    %v11118 = vadd.f32 %v11075, %v11117
    %v11119 = vpop.f32.mrb[0].mxu0
    %v11120 = vadd.f32 %v11077, %v11119
    %11121 = vdwg.mxu0
    %11122 = vmatprep.subr.bf16.mxu0 %v10195
    %11123 = vmatpush1.bf16.msra.mxu0 %v10194
    %11124 = vmatprep.subr.bf16.mxu0 %v10202
    %11125 = vmatpush1.bf16.msra.mxu0 %v10201
    %11126 = vmatprep.subr.bf16.mxu0 %v10209
    %11127 = vmatpush1.bf16.msra.mxu0 %v10208
    %11128 = vmatprep.subr.bf16.mxu0 %v10216
    %11129 = vmatpush1.bf16.msra.mxu0 %v10215
    %11130 = vmatprep.subr.bf16.mxu0 %v10223
    %11131 = vmatpush1.bf16.msra.mxu0 %v10222
    %11132 = vmatprep.subr.bf16.mxu0 %v10230
    %11133 = vmatpush1.bf16.msra.mxu0 %v10229
    %11134 = vmatprep.subr.bf16.mxu0 %v10237
    %11135 = vmatpush1.bf16.msra.mxu0 %v10236
    %11136 = vmatprep.subr.bf16.mxu0 %v10244
    %11137 = vmatpush1.bf16.msra.mxu0 %v10243
    %11138 = vmatprep.subr.bf16.mxu0 %v10251
    %11139 = vmatpush1.bf16.msra.mxu0 %v10250
    %11140 = vmatprep.subr.bf16.mxu0 %v10258
    %11141 = vmatpush1.bf16.msra.mxu0 %v10257
    %11142 = vmatprep.subr.bf16.mxu0 %v10265
    %11143 = vmatpush1.bf16.msra.mxu0 %v10264
    %11144 = vmatprep.subr.bf16.mxu0 %v10272
    %11145 = vmatpush1.bf16.msra.mxu0 %v10271
    %11146 = vmatprep.subr.bf16.mxu0 %v10279
    %11147 = vmatpush1.bf16.msra.mxu0 %v10278
    %11148 = vmatprep.subr.bf16.mxu0 %v10286
    %11149 = vmatpush1.bf16.msra.mxu0 %v10285
    %11150 = vmatprep.subr.bf16.mxu0 %v10293
    %11151 = vmatpush1.bf16.msra.mxu0 %v10292
    %11152 = vmatprep.subr.bf16.mxu0 %v10300
    %11153 = vmatpush1.bf16.msra.mxu0 %v10299
    %11154 = vmatprep.mubr.bf16.mxu0 %v8008
    %11155 = vmatmul.mubr.bf16.gmra.mrb[0].mxu0 %v8007
    %v11156 = vpop.f32.mrb[0].mxu0
    %v11157 = vadd.f32 %v11114, %v11156
    %v11158 = vpop.f32.mrb[0].mxu0
    %v11159 = vadd.f32 %v11116, %v11158
    %v11160 = vpop.f32.mrb[0].mxu0
    %v11161 = vadd.f32 %v11118, %v11160
    %v11162 = vpop.f32.mrb[0].mxu0
    %v11163 = vadd.f32 %v11120, %v11162
    %11164 = vdwg.mxu0
    %11165 = vmatprep.subr.bf16.mxu0 %v10307
    %11166 = vmatpush1.bf16.msra.mxu0 %v10306
    %11167 = vmatprep.subr.bf16.mxu0 %v10314
    %11168 = vmatpush1.bf16.msra.mxu0 %v10313
    %11169 = vmatprep.subr.bf16.mxu0 %v10321
    %11170 = vmatpush1.bf16.msra.mxu0 %v10320
    %11171 = vmatprep.subr.bf16.mxu0 %v10328
    %11172 = vmatpush1.bf16.msra.mxu0 %v10327
    %11173 = vmatprep.subr.bf16.mxu0 %v10335
    %11174 = vmatpush1.bf16.msra.mxu0 %v10334
    %11175 = vmatprep.subr.bf16.mxu0 %v10342
    %11176 = vmatpush1.bf16.msra.mxu0 %v10341
    %11177 = vmatprep.subr.bf16.mxu0 %v10349
    %11178 = vmatpush1.bf16.msra.mxu0 %v10348
    %11179 = vmatprep.subr.bf16.mxu0 %v10356
    %11180 = vmatpush1.bf16.msra.mxu0 %v10355
    %11181 = vmatprep.subr.bf16.mxu0 %v10363
    %11182 = vmatpush1.bf16.msra.mxu0 %v10362
    %11183 = vmatprep.subr.bf16.mxu0 %v10370
    %11184 = vmatpush1.bf16.msra.mxu0 %v10369
    %11185 = vmatprep.subr.bf16.mxu0 %v10377
    %11186 = vmatpush1.bf16.msra.mxu0 %v10376
    %11187 = vmatprep.subr.bf16.mxu0 %v10384
    %11188 = vmatpush1.bf16.msra.mxu0 %v10383
    %11189 = vmatprep.subr.bf16.mxu0 %v10391
    %11190 = vmatpush1.bf16.msra.mxu0 %v10390
    %11191 = vmatprep.subr.bf16.mxu0 %v10398
    %11192 = vmatpush1.bf16.msra.mxu0 %v10397
    %11193 = vmatprep.subr.bf16.mxu0 %v10405
    %11194 = vmatpush1.bf16.msra.mxu0 %v10404
    %11195 = vmatprep.subr.bf16.mxu0 %v10412
    %11196 = vmatpush1.bf16.msra.mxu0 %v10411
    %11197 = vmatprep.mubr.bf16.mxu0 %v8010
    %11198 = vmatmul.mubr.bf16.gmra.mrb[0].mxu0 %v8009
    %v11199 = vpop.f32.mrb[0].mxu0
    %v11200 = vadd.f32 %v11157, %v11199
    %v11201 = vpop.f32.mrb[0].mxu0
    %v11202 = vadd.f32 %v11159, %v11201
    %v11203 = vpop.f32.mrb[0].mxu0
    %v11204 = vadd.f32 %v11161, %v11203
    %v11205 = vpop.f32.mrb[0].mxu0
    %v11206 = vadd.f32 %v11163, %v11205
    %11207 = vdwg.mxu0
    %11208 = vmatprep.subr.bf16.mxu0 %v9973
    %11209 = vmatpush1.bf16.msra.mxu0 %v9972
    %11210 = vmatprep.subr.bf16.mxu0 %v9980
    %11211 = vmatpush1.bf16.msra.mxu0 %v9979
    %11212 = vmatprep.subr.bf16.mxu0 %v9987
    %11213 = vmatpush1.bf16.msra.mxu0 %v9986
    %11214 = vmatprep.subr.bf16.mxu0 %v9994
    %11215 = vmatpush1.bf16.msra.mxu0 %v9993
    %11216 = vmatprep.subr.bf16.mxu0 %v10001
    %11217 = vmatpush1.bf16.msra.mxu0 %v10000
    %11218 = vmatprep.subr.bf16.mxu0 %v10008
    %11219 = vmatpush1.bf16.msra.mxu0 %v10007
    %11220 = vmatprep.subr.bf16.mxu0 %v10015
    %11221 = vmatpush1.bf16.msra.mxu0 %v10014
    %11222 = vmatprep.subr.bf16.mxu0 %v10022
    %11223 = vmatpush1.bf16.msra.mxu0 %v10021
    %11224 = vmatprep.subr.bf16.mxu0 %v10029
    %11225 = vmatpush1.bf16.msra.mxu0 %v10028
    %11226 = vmatprep.subr.bf16.mxu0 %v10036
    %11227 = vmatpush1.bf16.msra.mxu0 %v10035
    %11228 = vmatprep.subr.bf16.mxu0 %v10043
    %11229 = vmatpush1.bf16.msra.mxu0 %v10042
    %11230 = vmatprep.subr.bf16.mxu0 %v10050
    %11231 = vmatpush1.bf16.msra.mxu0 %v10049
    %11232 = vmatprep.subr.bf16.mxu0 %v10057
    %11233 = vmatpush1.bf16.msra.mxu0 %v10056
    %11234 = vmatprep.subr.bf16.mxu0 %v10064
    %11235 = vmatpush1.bf16.msra.mxu0 %v10063
    %11236 = vmatprep.subr.bf16.mxu0 %v10071
    %11237 = vmatpush1.bf16.msra.mxu0 %v10070
    %11238 = vmatprep.subr.bf16.mxu0 %v10078
    %11239 = vmatpush1.bf16.msra.mxu0 %v10077
    %11240 = vmatprep.mubr.bf16.mxu0 %v8004
    %11241 = vmatmul.mubr.bf16.gmra.mrb[0].mxu0 %v8003
    %v11242 = vpop.f32.mrb[0].mxu0
    %v11243 = vadd.f32 %v8544, %v11242
    %v11244 = vpop.f32.mrb[0].mxu0
    %v11245 = vadd.f32 %v8548, %v11244
    %v11246 = vpop.f32.mrb[0].mxu0
    %v11247 = vadd.f32 %v8544, %v11246
    %v11248 = vpop.f32.mrb[0].mxu0
    %v11249 = vadd.f32 %v8548, %v11248
    %11250 = vdwg.mxu0
    %11251 = vmatprep.subr.bf16.mxu0 %v10085
    %11252 = vmatpush1.bf16.msra.mxu0 %v10084
    %11253 = vmatprep.subr.bf16.mxu0 %v10092
    %11254 = vmatpush1.bf16.msra.mxu0 %v10091
    %11255 = vmatprep.subr.bf16.mxu0 %v10099
    %11256 = vmatpush1.bf16.msra.mxu0 %v10098
    %11257 = vmatprep.subr.bf16.mxu0 %v10106
    %11258 = vmatpush1.bf16.msra.mxu0 %v10105
    %11259 = vmatprep.subr.bf16.mxu0 %v10113
    %11260 = vmatpush1.bf16.msra.mxu0 %v10112
    %11261 = vmatprep.subr.bf16.mxu0 %v10120
    %11262 = vmatpush1.bf16.msra.mxu0 %v10119
    %11263 = vmatprep.subr.bf16.mxu0 %v10127
    %11264 = vmatpush1.bf16.msra.mxu0 %v10126
    %11265 = vmatprep.subr.bf16.mxu0 %v10134
    %11266 = vmatpush1.bf16.msra.mxu0 %v10133
    %11267 = vmatprep.subr.bf16.mxu0 %v10141
    %11268 = vmatpush1.bf16.msra.mxu0 %v10140
    %11269 = vmatprep.subr.bf16.mxu0 %v10148
    %11270 = vmatpush1.bf16.msra.mxu0 %v10147
    %11271 = vmatprep.subr.bf16.mxu0 %v10155
    %11272 = vmatpush1.bf16.msra.mxu0 %v10154
    %11273 = vmatprep.subr.bf16.mxu0 %v10162
    %11274 = vmatpush1.bf16.msra.mxu0 %v10161
    %11275 = vmatprep.subr.bf16.mxu0 %v10169
    %11276 = vmatpush1.bf16.msra.mxu0 %v10168
    %11277 = vmatprep.subr.bf16.mxu0 %v10176
    %11278 = vmatpush1.bf16.msra.mxu0 %v10175
    %11279 = vmatprep.subr.bf16.mxu0 %v10183
    %11280 = vmatpush1.bf16.msra.mxu0 %v10182
    %11281 = vmatprep.subr.bf16.mxu0 %v10190
    %11282 = vmatpush1.bf16.msra.mxu0 %v10189
    %11283 = vmatprep.mubr.bf16.mxu0 %v8006
    %11284 = vmatmul.mubr.bf16.gmra.mrb[0].mxu0 %v8005
    %v11285 = vpop.f32.mrb[0].mxu0
    %v11286 = vadd.f32 %v11243, %v11285
    %v11287 = vpop.f32.mrb[0].mxu0
    %v11288 = vadd.f32 %v11245, %v11287
    %v11289 = vpop.f32.mrb[0].mxu0
    %v11290 = vadd.f32 %v11247, %v11289
    %v11291 = vpop.f32.mrb[0].mxu0
    %v11292 = vadd.f32 %v11249, %v11291
    %11293 = vdwg.mxu0
    %11294 = vmatprep.subr.bf16.mxu0 %v10197
    %11295 = vmatpush1.bf16.msra.mxu0 %v10196
    %11296 = vmatprep.subr.bf16.mxu0 %v10204
    %11297 = vmatpush1.bf16.msra.mxu0 %v10203
    %11298 = vmatprep.subr.bf16.mxu0 %v10211
    %11299 = vmatpush1.bf16.msra.mxu0 %v10210
    %11300 = vmatprep.subr.bf16.mxu0 %v10218
    %11301 = vmatpush1.bf16.msra.mxu0 %v10217
    %11302 = vmatprep.subr.bf16.mxu0 %v10225
    %11303 = vmatpush1.bf16.msra.mxu0 %v10224
    %11304 = vmatprep.subr.bf16.mxu0 %v10232
    %11305 = vmatpush1.bf16.msra.mxu0 %v10231
    %11306 = vmatprep.subr.bf16.mxu0 %v10239
    %11307 = vmatpush1.bf16.msra.mxu0 %v10238
    %11308 = vmatprep.subr.bf16.mxu0 %v10246
    %11309 = vmatpush1.bf16.msra.mxu0 %v10245
    %11310 = vmatprep.subr.bf16.mxu0 %v10253
    %11311 = vmatpush1.bf16.msra.mxu0 %v10252
    %11312 = vmatprep.subr.bf16.mxu0 %v10260
    %11313 = vmatpush1.bf16.msra.mxu0 %v10259
    %11314 = vmatprep.subr.bf16.mxu0 %v10267
    %11315 = vmatpush1.bf16.msra.mxu0 %v10266
    %11316 = vmatprep.subr.bf16.mxu0 %v10274
    %11317 = vmatpush1.bf16.msra.mxu0 %v10273
    %11318 = vmatprep.subr.bf16.mxu0 %v10281
    %11319 = vmatpush1.bf16.msra.mxu0 %v10280
    %11320 = vmatprep.subr.bf16.mxu0 %v10288
    %11321 = vmatpush1.bf16.msra.mxu0 %v10287
    %11322 = vmatprep.subr.bf16.mxu0 %v10295
    %11323 = vmatpush1.bf16.msra.mxu0 %v10294
    %11324 = vmatprep.subr.bf16.mxu0 %v10302
    %11325 = vmatpush1.bf16.msra.mxu0 %v10301
    %11326 = vmatprep.mubr.bf16.mxu0 %v8008
    %11327 = vmatmul.mubr.bf16.gmra.mrb[0].mxu0 %v8007
    %v11328 = vpop.f32.mrb[0].mxu0
    %v11329 = vadd.f32 %v11286, %v11328
    %v11330 = vpop.f32.mrb[0].mxu0
    %v11331 = vadd.f32 %v11288, %v11330
    %v11332 = vpop.f32.mrb[0].mxu0
    %v11333 = vadd.f32 %v11290, %v11332
    %v11334 = vpop.f32.mrb[0].mxu0
    %v11335 = vadd.f32 %v11292, %v11334
    %11336 = vdwg.mxu0
    %11337 = vmatprep.subr.bf16.mxu0 %v10309
    %11338 = vmatpush1.bf16.msra.mxu0 %v10308
    %11339 = vmatprep.subr.bf16.mxu0 %v10316
    %11340 = vmatpush1.bf16.msra.mxu0 %v10315
    %11341 = vmatprep.subr.bf16.mxu0 %v10323
    %11342 = vmatpush1.bf16.msra.mxu0 %v10322
    %11343 = vmatprep.subr.bf16.mxu0 %v10330
    %11344 = vmatpush1.bf16.msra.mxu0 %v10329
    %11345 = vmatprep.subr.bf16.mxu0 %v10337
    %11346 = vmatpush1.bf16.msra.mxu0 %v10336
    %11347 = vmatprep.subr.bf16.mxu0 %v10344
    %11348 = vmatpush1.bf16.msra.mxu0 %v10343
    %11349 = vmatprep.subr.bf16.mxu0 %v10351
    %11350 = vmatpush1.bf16.msra.mxu0 %v10350
    %11351 = vmatprep.subr.bf16.mxu0 %v10358
    %11352 = vmatpush1.bf16.msra.mxu0 %v10357
    %11353 = vmatprep.subr.bf16.mxu0 %v10365
    %11354 = vmatpush1.bf16.msra.mxu0 %v10364
    %11355 = vmatprep.subr.bf16.mxu0 %v10372
    %11356 = vmatpush1.bf16.msra.mxu0 %v10371
    %11357 = vmatprep.subr.bf16.mxu0 %v10379
    %11358 = vmatpush1.bf16.msra.mxu0 %v10378
    %11359 = vmatprep.subr.bf16.mxu0 %v10386
    %11360 = vmatpush1.bf16.msra.mxu0 %v10385
    %11361 = vmatprep.subr.bf16.mxu0 %v10393
    %11362 = vmatpush1.bf16.msra.mxu0 %v10392
    %11363 = vmatprep.subr.bf16.mxu0 %v10400
    %11364 = vmatpush1.bf16.msra.mxu0 %v10399
    %11365 = vmatprep.subr.bf16.mxu0 %v10407
    %11366 = vmatpush1.bf16.msra.mxu0 %v10406
    %11367 = vmatprep.subr.bf16.mxu0 %v10414
    %11368 = vmatpush1.bf16.msra.mxu0 %v10413
    %11369 = vmatprep.mubr.bf16.mxu0 %v8010
    %11370 = vmatmul.mubr.bf16.gmra.mrb[0].mxu0 %v8009
    %v11371 = vpop.f32.mrb[0].mxu0
    %v11372 = vadd.f32 %v11329, %v11371
    %v11373 = vpop.f32.mrb[0].mxu0
    %v11374 = vadd.f32 %v11331, %v11373
    %v11375 = vpop.f32.mrb[0].mxu0
    %v11376 = vadd.f32 %v11333, %v11375
    %v11377 = vpop.f32.mrb[0].mxu0
    %v11378 = vadd.f32 %v11335, %v11377
    %11379 = vdwg.mxu0
    %11380 = vmatprep.subr.bf16.mxu0 0
    %11381 = vmatpush1.bf16.msra.mxu0 %v9974
    %11382 = vmatprep.subr.bf16.mxu0 0
    %11383 = vmatpush1.bf16.msra.mxu0 %v9981
    %11384 = vmatprep.subr.bf16.mxu0 0
    %11385 = vmatpush1.bf16.msra.mxu0 %v9988
    %11386 = vmatprep.subr.bf16.mxu0 0
    %11387 = vmatpush1.bf16.msra.mxu0 %v9995
    %11388 = vmatprep.subr.bf16.mxu0 0
    %11389 = vmatpush1.bf16.msra.mxu0 %v10002
    %11390 = vmatprep.subr.bf16.mxu0 0
    %11391 = vmatpush1.bf16.msra.mxu0 %v10009
    %11392 = vmatprep.subr.bf16.mxu0 0
    %11393 = vmatpush1.bf16.msra.mxu0 %v10016
    %11394 = vmatprep.subr.bf16.mxu0 0
    %11395 = vmatpush1.bf16.msra.mxu0 %v10023
    %11396 = vmatprep.subr.bf16.mxu0 0
    %11397 = vmatpush1.bf16.msra.mxu0 %v10030
    %11398 = vmatprep.subr.bf16.mxu0 0
    %11399 = vmatpush1.bf16.msra.mxu0 %v10037
    %11400 = vmatprep.subr.bf16.mxu0 0
    %11401 = vmatpush1.bf16.msra.mxu0 %v10044
    %11402 = vmatprep.subr.bf16.mxu0 0
    %11403 = vmatpush1.bf16.msra.mxu0 %v10051
    %11404 = vmatprep.subr.bf16.mxu0 0
    %11405 = vmatpush1.bf16.msra.mxu0 %v10058
    %11406 = vmatprep.subr.bf16.mxu0 0
    %11407 = vmatpush1.bf16.msra.mxu0 %v10065
    %11408 = vmatprep.subr.bf16.mxu0 0
    %11409 = vmatpush1.bf16.msra.mxu0 %v10072
    %11410 = vmatprep.subr.bf16.mxu0 0
    %11411 = vmatpush1.bf16.msra.mxu0 %v10079
    %11412 = vmatprep.mubr.bf16.mxu0 %v8004
    %11413 = vmatmul.mubr.bf16.gmra.mrb[0].mxu0 %v8003
    %v11414 = vpop.f32.mrb[0].mxu0
    %v11415 = vadd.f32 %v8552, %v11414
    %v11416 = vpop.f32.mrb[0].mxu0
    %v11417 = vpop.f32.mrb[0].mxu0
    %v11418 = vadd.f32 %v8552, %v11417
    %v11419 = vpop.f32.mrb[0].mxu0
    %11420 = vdwg.mxu0
    %11421 = vmatprep.subr.bf16.mxu0 0
    %11422 = vmatpush1.bf16.msra.mxu0 %v10086
    %11423 = vmatprep.subr.bf16.mxu0 0
    %11424 = vmatpush1.bf16.msra.mxu0 %v10093
    %11425 = vmatprep.subr.bf16.mxu0 0
    %11426 = vmatpush1.bf16.msra.mxu0 %v10100
    %11427 = vmatprep.subr.bf16.mxu0 0
    %11428 = vmatpush1.bf16.msra.mxu0 %v10107
    %11429 = vmatprep.subr.bf16.mxu0 0
    %11430 = vmatpush1.bf16.msra.mxu0 %v10114
    %11431 = vmatprep.subr.bf16.mxu0 0
    %11432 = vmatpush1.bf16.msra.mxu0 %v10121
    %11433 = vmatprep.subr.bf16.mxu0 0
    %11434 = vmatpush1.bf16.msra.mxu0 %v10128
    %11435 = vmatprep.subr.bf16.mxu0 0
    %11436 = vmatpush1.bf16.msra.mxu0 %v10135
    %11437 = vmatprep.subr.bf16.mxu0 0
    %11438 = vmatpush1.bf16.msra.mxu0 %v10142
    %11439 = vmatprep.subr.bf16.mxu0 0
    %11440 = vmatpush1.bf16.msra.mxu0 %v10149
    %11441 = vmatprep.subr.bf16.mxu0 0
    %11442 = vmatpush1.bf16.msra.mxu0 %v10156
    %11443 = vmatprep.subr.bf16.mxu0 0
    %11444 = vmatpush1.bf16.msra.mxu0 %v10163
    %11445 = vmatprep.subr.bf16.mxu0 0
    %11446 = vmatpush1.bf16.msra.mxu0 %v10170
    %11447 = vmatprep.subr.bf16.mxu0 0
    %11448 = vmatpush1.bf16.msra.mxu0 %v10177
    %11449 = vmatprep.subr.bf16.mxu0 0
    %11450 = vmatpush1.bf16.msra.mxu0 %v10184
    %11451 = vmatprep.subr.bf16.mxu0 0
    %11452 = vmatpush1.bf16.msra.mxu0 %v10191
    %11453 = vmatprep.mubr.bf16.mxu0 %v8006
    %11454 = vmatmul.mubr.bf16.gmra.mrb[0].mxu0 %v8005
    %v11455 = vpop.f32.mrb[0].mxu0
    %v11456 = vadd.f32 %v11415, %v11455
    %v11457 = vpop.f32.mrb[0].mxu0
    %v11458 = vpop.f32.mrb[0].mxu0
    %v11459 = vadd.f32 %v11418, %v11458
    %v11460 = vpop.f32.mrb[0].mxu0
    %11461 = vdwg.mxu0
    %11462 = vmatprep.subr.bf16.mxu0 0
    %11463 = vmatpush1.bf16.msra.mxu0 %v10198
    %11464 = vmatprep.subr.bf16.mxu0 0
    %11465 = vmatpush1.bf16.msra.mxu0 %v10205
    %11466 = vmatprep.subr.bf16.mxu0 0
    %11467 = vmatpush1.bf16.msra.mxu0 %v10212
    %11468 = vmatprep.subr.bf16.mxu0 0
    %11469 = vmatpush1.bf16.msra.mxu0 %v10219
    %11470 = vmatprep.subr.bf16.mxu0 0
    %11471 = vmatpush1.bf16.msra.mxu0 %v10226
    %11472 = vmatprep.subr.bf16.mxu0 0
    %11473 = vmatpush1.bf16.msra.mxu0 %v10233
    %11474 = vmatprep.subr.bf16.mxu0 0
    %11475 = vmatpush1.bf16.msra.mxu0 %v10240
    %11476 = vmatprep.subr.bf16.mxu0 0
    %11477 = vmatpush1.bf16.msra.mxu0 %v10247
    %11478 = vmatprep.subr.bf16.mxu0 0
    %11479 = vmatpush1.bf16.msra.mxu0 %v10254
    %11480 = vmatprep.subr.bf16.mxu0 0
    %11481 = vmatpush1.bf16.msra.mxu0 %v10261
    %11482 = vmatprep.subr.bf16.mxu0 0
    %11483 = vmatpush1.bf16.msra.mxu0 %v10268
    %11484 = vmatprep.subr.bf16.mxu0 0
    %11485 = vmatpush1.bf16.msra.mxu0 %v10275
    %11486 = vmatprep.subr.bf16.mxu0 0
    %11487 = vmatpush1.bf16.msra.mxu0 %v10282
    %11488 = vmatprep.subr.bf16.mxu0 0
    %11489 = vmatpush1.bf16.msra.mxu0 %v10289
    %11490 = vmatprep.subr.bf16.mxu0 0
    %11491 = vmatpush1.bf16.msra.mxu0 %v10296
    %11492 = vmatprep.subr.bf16.mxu0 0
    %11493 = vmatpush1.bf16.msra.mxu0 %v10303
    %11494 = vmatprep.mubr.bf16.mxu0 %v8008
    %11495 = vmatmul.mubr.bf16.gmra.mrb[0].mxu0 %v8007
    %v11496 = vpop.f32.mrb[0].mxu0
    %v11497 = vadd.f32 %v11456, %v11496
    %v11498 = vpop.f32.mrb[0].mxu0
    %v11499 = vpop.f32.mrb[0].mxu0
    %v11500 = vadd.f32 %v11459, %v11499
    %v11501 = vpop.f32.mrb[0].mxu0
    %11502 = vdwg.mxu0
    %11503 = vmatprep.subr.bf16.mxu0 0
    %11504 = vmatpush1.bf16.msra.mxu0 %v10310
    %11505 = vmatprep.subr.bf16.mxu0 0
    %11506 = vmatpush1.bf16.msra.mxu0 %v10317
    %11507 = vmatprep.subr.bf16.mxu0 0
    %11508 = vmatpush1.bf16.msra.mxu0 %v10324
    %11509 = vmatprep.subr.bf16.mxu0 0
    %11510 = vmatpush1.bf16.msra.mxu0 %v10331
    %11511 = vmatprep.subr.bf16.mxu0 0
    %11512 = vmatpush1.bf16.msra.mxu0 %v10338
    %11513 = vmatprep.subr.bf16.mxu0 0
    %11514 = vmatpush1.bf16.msra.mxu0 %v10345
    %11515 = vmatprep.subr.bf16.mxu0 0
    %11516 = vmatpush1.bf16.msra.mxu0 %v10352
    %11517 = vmatprep.subr.bf16.mxu0 0
    %11518 = vmatpush1.bf16.msra.mxu0 %v10359
    %11519 = vmatprep.subr.bf16.mxu0 0
    %11520 = vmatpush1.bf16.msra.mxu0 %v10366
    %11521 = vmatprep.subr.bf16.mxu0 0
    %11522 = vmatpush1.bf16.msra.mxu0 %v10373
    %11523 = vmatprep.subr.bf16.mxu0 0
    %11524 = vmatpush1.bf16.msra.mxu0 %v10380
    %11525 = vmatprep.subr.bf16.mxu0 0
    %11526 = vmatpush1.bf16.msra.mxu0 %v10387
    %11527 = vmatprep.subr.bf16.mxu0 0
    %11528 = vmatpush1.bf16.msra.mxu0 %v10394
    %11529 = vmatprep.subr.bf16.mxu0 0
    %11530 = vmatpush1.bf16.msra.mxu0 %v10401
    %11531 = vmatprep.subr.bf16.mxu0 0
    %11532 = vmatpush1.bf16.msra.mxu0 %v10408
    %11533 = vmatprep.subr.bf16.mxu0 0
    %11534 = vmatpush1.bf16.msra.mxu0 %v10415
    %11535 = vmatprep.mubr.bf16.mxu0 %v8010
    %11536 = vmatmul.mubr.bf16.gmra.mrb[0].mxu0 %v8009
    %v11537 = vpop.f32.mrb[0].mxu0
    %v11538 = vadd.f32 %v11497, %v11537
    %v11539 = vpop.f32.mrb[0].mxu0
    %v11540 = vpop.f32.mrb[0].mxu0
    %v11541 = vadd.f32 %v11500, %v11540
    %v11542 = vpop.f32.mrb[0].mxu0
    %11543 = vdwg.mxu0
    %v11544 = vxor.u32 %v11028, 2147483648
    %v11545 = vxor.u32 %v11030, 2147483648
    %v11546 = vxor.u32 %v11200, 2147483648
    %v11547 = vxor.u32 %v11202, 2147483648
    %v11548 = vxor.u32 %v11372, 2147483648
    %v11549 = vxor.u32 %v11374, 2147483648
    %v11550 = vxor.u32 %v11538, 2147483648
    %v11551 = vxor.u32 %v11032, 2147483648
    %v11552 = vxor.u32 %v11034, 2147483648
    %v11553 = vxor.u32 %v11204, 2147483648
    %v11554 = vxor.u32 %v11206, 2147483648
    %v11555 = vxor.u32 %v11376, 2147483648
    %v11556 = vxor.u32 %v11378, 2147483648
    %v11557 = vxor.u32 %v11541, 2147483648
    %v11558 = vmul.f32 %v11544, 1.442695
    %v11559 = vpow.pop %v11558
    %v11560 = vmul.f32 %v11545, 1.442695
    %v11561 = vpow.pop %v11560
    %v11562 = vmul.f32 %v11546, 1.442695
    %v11563 = vpow.pop %v11562
    %v11564 = vmul.f32 %v11547, 1.442695
    %v11565 = vpow.pop %v11564
    %v11566 = vmul.f32 %v11548, 1.442695
    %v11567 = vpow.pop %v11566
    %v11568 = vmul.f32 %v11549, 1.442695
    %v11569 = vpow.pop %v11568
    %v11570 = vmul.f32 %v11550, 1.442695
    %v11571 = vpow.pop %v11570
    %v11572 = vmul.f32 %v11551, 1.442695
    %v11573 = vpow.pop %v11572
    %v11574 = vmul.f32 %v11552, 1.442695
    %v11575 = vpow.pop %v11574
    %v11576 = vmul.f32 %v11553, 1.442695
    %v11577 = vpow.pop %v11576
    %v11578 = vmul.f32 %v11554, 1.442695
    %v11579 = vpow.pop %v11578
    %v11580 = vmul.f32 %v11555, 1.442695
    %v11581 = vpow.pop %v11580
    %v11582 = vmul.f32 %v11556, 1.442695
    %v11583 = vpow.pop %v11582
    %v11584 = vmul.f32 %v11557, 1.442695
    %v11585 = vpow.pop %v11584
    %v11586 = vadd.f32 %v11559, 1.0
    %v11587 = vadd.f32 %v11561, 1.0
    %v11588 = vadd.f32 %v11563, 1.0
    %v11589 = vadd.f32 %v11565, 1.0
    %v11590 = vadd.f32 %v11567, 1.0
    %v11591 = vadd.f32 %v11569, 1.0
    %v11592 = vadd.f32 %v11571, 1.0
    %v11593 = vadd.f32 %v11573, 1.0
    %v11594 = vadd.f32 %v11575, 1.0
    %v11595 = vadd.f32 %v11577, 1.0
    %v11596 = vadd.f32 %v11579, 1.0
    %v11597 = vadd.f32 %v11581, 1.0
    %v11598 = vadd.f32 %v11583, 1.0
    %v11599 = vadd.f32 %v11585, 1.0
    %v11600 = vrcp.pop %v11586
    %v11601 = vmul.f32 1.0, %v11600
    %v11602 = vrcp.pop %v11587
    %v11603 = vmul.f32 1.0, %v11602
    %v11604 = vrcp.pop %v11588
    %v11605 = vmul.f32 1.0, %v11604
    %v11606 = vrcp.pop %v11589
    %v11607 = vmul.f32 1.0, %v11606
    %v11608 = vrcp.pop %v11590
    %v11609 = vmul.f32 1.0, %v11608
    %v11610 = vrcp.pop %v11591
    %v11611 = vmul.f32 1.0, %v11610
    %v11612 = vrcp.pop %v11592
    %v11613 = vmul.f32 1.0, %v11612
    %v11614 = vrcp.pop %v11593
    %v11615 = vmul.f32 1.0, %v11614
    %v11616 = vrcp.pop %v11594
    %v11617 = vmul.f32 1.0, %v11616
    %v11618 = vrcp.pop %v11595
    %v11619 = vmul.f32 1.0, %v11618
    %v11620 = vrcp.pop %v11596
    %v11621 = vmul.f32 1.0, %v11620
    %v11622 = vrcp.pop %v11597
    %v11623 = vmul.f32 1.0, %v11622
    %v11624 = vrcp.pop %v11598
    %v11625 = vmul.f32 1.0, %v11624
    %v11626 = vrcp.pop %v11599
    %v11627 = vmul.f32 1.0, %v11626
    %11628 = vst [vmem:[#allocation6] sm:$0xff] %v11601
    %11629 = vst [vmem:[#allocation6 + $0x8] sm:$0xff] %v11603
    %11630 = vst [vmem:[#allocation6 + $0x10] sm:$0xff] %v11605
    %11631 = vst [vmem:[#allocation6 + $0x18] sm:$0xff] %v11607
    %11632 = vst [vmem:[#allocation6 + $0x20] sm:$0xff] %v11609
    %11633 = vst [vmem:[#allocation6 + $0x28] sm:$0xff] %v11611
    %11634 = vst.msk [vmem:[#allocation6 + $0x30] sm:$0xff] %vm2494, %v11613
    %11635 = vst [vmem:[#allocation6 + $0x38] sm:$0xff] %v11615
    %11636 = vst [vmem:[#allocation6 + $0x40] sm:$0xff] %v11617
    %11637 = vst [vmem:[#allocation6 + $0x48] sm:$0xff] %v11619
    %11638 = vst [vmem:[#allocation6 + $0x50] sm:$0xff] %v11621
    %11639 = vst [vmem:[#allocation6 + $0x58] sm:$0xff] %v11623
    %11640 = vst [vmem:[#allocation6 + $0x60] sm:$0xff] %v11625
    %11641 = vst.msk [vmem:[#allocation6 + $0x68] sm:$0xff] %vm2494, %v11627
    // Predicated region
    $region50: #{tpu_custom_call.1} parent=1 // pred_check
      _
    $region51: #{tpu_custom_call.1} parent=1 // pred_check_branch
      %11643 = sbr.rel (0) target = $region53
    $region52: #{tpu_custom_call.1} parent=1 // pred_region
      %s11645 = ssub.s32 256, 256
      %11646 = vsyncadd [#allocation4], %s11645
      %s11647 = sshll.u32 [#allocation5], 4
      %s11648 = int_to_ptr.vmem [resolvable:$true] %s11647
      %11653 = dma.vmem_to_hbm [thread:$0]  %s11648, 256, %s11, [#allocation4], 128, 128, 8
    $region53: #{tpu_custom_call.1} parent=1 // pred_fallthru
      _
    // Predicated region
    $region54: #{tpu_custom_call.1} parent=1 // pred_check
      _
    $region55: #{tpu_custom_call.1} parent=1 // pred_check_branch
      %11655 = sbr.rel (0) target = $region57
    $region56: #{tpu_custom_call.1} parent=1 // pred_region
      %s11657 = ssub.s32 1792, 1792
      %11658 = vsyncadd [#allocation7], %s11657
      %s11659 = sshll.u32 [#allocation6], 4
      %s11660 = int_to_ptr.vmem [resolvable:$true] %s11659
      %11665 = dma.vmem_to_hbm [thread:$0]  %s11660, 1792, %s12, [#allocation7], 896, 896, 56
    $region57: #{tpu_custom_call.1} parent=1 // pred_fallthru
      _
    // Predicated region
    $region58: #{tpu_custom_call.1} parent=1 // pred_check
      _
    $region59: #{tpu_custom_call.1} parent=1 // pred_check_branch
      %11667 = sbr.rel (0) target = $region61
    $region60: #{tpu_custom_call.1} parent=1 // pred_region
      %11668 = dma.done [#allocation4], 256
    $region61: #{tpu_custom_call.1} parent=1 // pred_fallthru
      _
    // Predicated region
    $region62: #{tpu_custom_call.1} parent=1 // pred_check
      _
    $region63: #{tpu_custom_call.1} parent=1 // pred_check_branch
      %11670 = sbr.rel (0) target = $region65
    $region64: #{tpu_custom_call.1} parent=1 // pred_region
      %11671 = dma.done [#allocation7], 1792
    $region65: #{tpu_custom_call.1} parent=1 // pred_fallthru
      _
    %11672 = vsyncpa [#allocation3], 1
    %11673 = vsyncpa [#allocation4], 1
    %11674 = vsyncpa [#allocation7], 1

</llo_original>
